<compile_context>
chip_gen: v5e
topology: v5e:2x2
jax: 0.10.0
libtpu: 0.0.40
codegen_flags: <defaults>
</compile_context>

<pallas_src>
import functools

import jax
import jax.numpy as jnp
from jax.experimental import pallas as pl
from jax.experimental.pallas import tpu as pltpu


# ------------------------------ tiling helpers ------------------------------

_TILE_M = 256  # rows per grid step: multiple of 128, fits v7x's smaller VMEM


def _row_tile(m, cap=_TILE_M):
    """Full M for small inputs (block == full dim), else a 256-row tile so the
    Pallas pipeline double-buffers over the M grid (partial last block OK)."""
    return m if m <= cap else cap


# -------------------------------- kernels -----------------------------------


def _matmul_bias_kernel(x_ref, w_ref, b_ref, o_ref, *, relu):
    # x: (tm, K) bf16, w: (K, N) bf16 (resident), b: (1, N) f32 -> o: (tm, N)
    acc = jnp.dot(x_ref[...], w_ref[...], preferred_element_type=jnp.float32)
    acc = acc + b_ref[...]
    if relu:
        acc = jnp.maximum(acc, 0.0)
    o_ref[...] = acc.astype(o_ref.dtype)


def matmul_bias(x, w, b, *, relu, out_dtype=jnp.bfloat16):
    """x: (M, K), w: (K, N), b: (1, N) f32 -> (M, N). Grid over M row tiles."""
    m, k = x.shape
    k2, n = w.shape
    assert k == k2
    tm = _row_tile(m)
    kernel = functools.partial(_matmul_bias_kernel, relu=relu)
    return pl.pallas_call(
        kernel,
        out_shape=jax.ShapeDtypeStruct((m, n), out_dtype),
        grid=(pl.cdiv(m, tm),),
        in_specs=[
            pl.BlockSpec((tm, k), lambda i: (i, 0)),
            pl.BlockSpec((k, n), lambda i: (0, 0)),   # weight stays resident
            pl.BlockSpec((1, n), lambda i: (0, 0)),   # bias stays resident
        ],
        out_specs=pl.BlockSpec((tm, n), lambda i: (i, 0)),
        compiler_params=pltpu.CompilerParams(
            dimension_semantics=("parallel",)),
    )(x, w, b)


def _mlp_head_kernel(x_ref, w1_ref, b1_ref, w2_ref, b2_ref, o_ref):
    # Fused fc1 + ReLU + fc2 + log_softmax; f32 accumulation on the MXU.
    h = jnp.dot(x_ref[...], w1_ref[...], preferred_element_type=jnp.float32)
    h = jnp.maximum(h + b1_ref[...], 0.0).astype(w2_ref.dtype)
    logits = jnp.dot(h, w2_ref[...], preferred_element_type=jnp.float32)
    logits = logits + b2_ref[...]
    m = jnp.max(logits, axis=-1, keepdims=True)
    s = logits - m
    lse = jnp.log(jnp.sum(jnp.exp(s), axis=-1, keepdims=True))
    o_ref[...] = (s - lse).astype(o_ref.dtype)


def mlp_head(x, w1, b1, w2, b2):
    """x: (M, 1250) bf16 -> (M, n_classes) f32 log-probabilities."""
    m, k1 = x.shape
    _, n1 = w1.shape
    _, n2 = w2.shape
    tm = _row_tile(m)
    return pl.pallas_call(
        _mlp_head_kernel,
        out_shape=jax.ShapeDtypeStruct((m, n2), jnp.float32),
        grid=(pl.cdiv(m, tm),),
        in_specs=[
            pl.BlockSpec((tm, k1), lambda i: (i, 0)),
            pl.BlockSpec((k1, n1), lambda i: (0, 0)),  # 2.5 MB bf16, resident
            pl.BlockSpec((1, n1), lambda i: (0, 0)),
            pl.BlockSpec((n1, n2), lambda i: (0, 0)),
            pl.BlockSpec((1, n2), lambda i: (0, 0)),
        ],
        out_specs=pl.BlockSpec((tm, n2), lambda i: (i, 0)),
        compiler_params=pltpu.CompilerParams(
            dimension_semantics=("parallel",)),
    )(x, w1, b1, w2, b2)


def _maxpool2x2_kernel(x_ref, o_ref):
    # x_ref: (1, H, W, C), o_ref: (1, H//2, W//2, C); C is the lane dim.
    _, h, w, c = x_ref.shape
    hp, wp = h // 2, w // 2
    # 0/1 selection matrices picking the even / odd column of each 2-wide
    # window: the horizontal "stride-2 gather" becomes a tiny MXU matmul
    # (exact for max-pool since each output sums exactly one element).
    r = jax.lax.broadcasted_iota(jnp.int32, (wp, w), 0)
    col = jax.lax.broadcasted_iota(jnp.int32, (wp, w), 1)
    s_even = (col == 2 * r).astype(x_ref.dtype)
    s_odd = (col == 2 * r + 1).astype(x_ref.dtype)
    for pp in range(hp):
        v = jnp.maximum(x_ref[0, 2 * pp], x_ref[0, 2 * pp + 1])     # (W, C)
        left = jnp.dot(s_even, v, preferred_element_type=jnp.float32)
        right = jnp.dot(s_odd, v, preferred_element_type=jnp.float32)
        o_ref[0, pp] = jnp.maximum(left, right).astype(o_ref.dtype)


def maxpool2x2(y):
    """y: (N, H, W, C) -> (N, H//2, W//2, C), 2x2/stride-2 max pool."""
    n, h, w, c = y.shape
    hp, wp = h // 2, w // 2
    return pl.pallas_call(
        _maxpool2x2_kernel,
        out_shape=jax.ShapeDtypeStruct((n, hp, wp, c), y.dtype),
        grid=(n,),
        in_specs=[pl.BlockSpec((1, h, w, c), lambda i: (i, 0, 0, 0))],
        out_specs=pl.BlockSpec((1, hp, wp, c), lambda i: (i, 0, 0, 0)),
        compiler_params=pltpu.CompilerParams(
            dimension_semantics=("parallel",)),
    )(y)


# ------------------------------- model glue ---------------------------------


def _im2col_nhwc(x, kh, kw):
    """x: (N, H, W, C) -> (N*Ho*Wo, kh*kw*C), column ordering (kh, kw, cin)."""
    n, h, w, c = x.shape
    ho, wo = h - kh + 1, w - kw + 1
    cols = [x[:, i:i + ho, j:j + wo, :] for i in range(kh) for j in range(kw)]
    patches = jnp.concatenate(cols, axis=-1)          # (N, Ho, Wo, kh*kw*C)
    return patches.reshape(n * ho * wo, kh * kw * c), ho, wo


def conv2d_relu(x_nhwc, w_km, b):
    """x: (N, H, W, Cin) bf16, w_km: (25*Cin, Cout) bf16 with rows ordered
    (kh, kw, cin), b: (1, Cout) f32 -> (N, Ho, Wo, Cout) bf16, ReLU applied."""
    n = x_nhwc.shape[0]
    cout = w_km.shape[1]
    patches, ho, wo = _im2col_nhwc(x_nhwc, 5, 5)
    out = matmul_bias(patches, w_km, b, relu=True)    # Pallas hot path
    return out.reshape(n, ho, wo, cout)


def init_params(key):
    """Random parameters in the PyTorch CIFARLeNet layout."""
    ks = jax.random.split(key, 8)
    scale = 0.05
    return {
        "conv1_w": jax.random.normal(ks[0], (20, 3, 5, 5), jnp.float32) * scale,
        "conv1_b": jax.random.normal(ks[1], (20,), jnp.float32) * scale,
        "conv2_w": jax.random.normal(ks[2], (50, 20, 5, 5), jnp.float32) * scale,
        "conv2_b": jax.random.normal(ks[3], (50,), jnp.float32) * scale,
        "fc1_w": jax.random.normal(ks[4], (500, 1250), jnp.float32) * scale,
        "fc1_b": jax.random.normal(ks[5], (500,), jnp.float32) * scale,
        "fc2_w": jax.random.normal(ks[6], (10, 500), jnp.float32) * scale,
        "fc2_b": jax.random.normal(ks[7], (10,), jnp.float32) * scale,
    }


def prepare_params(params):
    """One-time conversion from PyTorch layout to kernel-ready layout:
    conv weights -> (kh*kw*Cin, Cout) matching the im2col column order;
    fc1 columns permuted from PyTorch's (c, h, w) flatten order to the NHWC
    (h, w, c) order used here, then transposed to (K, N); fc2 transposed;
    weights cast to bf16 (f32 accumulation in-kernel); biases kept f32."""
    wd = jnp.bfloat16
    c1 = params["conv1_w"].transpose(2, 3, 1, 0).reshape(75, 20).astype(wd)
    c2 = params["conv2_w"].transpose(2, 3, 1, 0).reshape(500, 50).astype(wd)
    f1 = (params["fc1_w"].reshape(500, 50, 5, 5).transpose(0, 2, 3, 1)
          .reshape(500, 1250).T.astype(wd))
    f2 = params["fc2_w"].T.astype(wd)
    return {
        "conv1_w": c1, "conv1_b": params["conv1_b"].reshape(1, 20),
        "conv2_w": c2, "conv2_b": params["conv2_b"].reshape(1, 50),
        "fc1_w": f1, "fc1_b": params["fc1_b"].reshape(1, 500),
        "fc2_w": f2, "fc2_b": params["fc2_b"].reshape(1, 10),
    }


def cifar_lenet_forward(kp, x):
    """x: (N, 3, 32, 32) float32 NCHW -> (N, 10) log-probabilities."""
    n = x.shape[0]
    y = x.transpose(0, 2, 3, 1).astype(jnp.bfloat16)           # NCHW -> NHWC, bf16
    y = conv2d_relu(y, kp["conv1_w"], kp["conv1_b"])            # (N, 28, 28, 20)
    y = maxpool2x2(y)                                           # (N, 14, 14, 20)
    y = conv2d_relu(y, kp["conv2_w"], kp["conv2_b"])            # (N, 10, 10, 50)
    y = maxpool2x2(y)                                           # (N, 5, 5, 50)
    flat = y.reshape(n, 5 * 5 * 50)                             # NHWC flatten (fc1_w pre-permuted)
    return mlp_head(flat, kp["fc1_w"], kp["fc1_b"],
                    kp["fc2_w"], kp["fc2_b"])                   # (N, 10)


if __name__ == "__main__":
    key = jax.random.PRNGKey(0)
    pkey, xkey = jax.random.split(key)
    kernel_params = prepare_params(init_params(pkey))
    # CIFAR input: batch=2, NCHW (3, 32, 32) — required by the view(-1, 5*5*50)
    x = jax.random.normal(xkey, (2, 3, 32, 32), jnp.float32)

    fwd = jax.jit(cifar_lenet_forward)
    out = fwd(kernel_params, x)
    jax.block_until_ready(out)

    assert out.shape == (2, 10)
    # log_softmax sanity: rows sum to ~1 in probability space
    assert jnp.allclose(jnp.exp(out).sum(axis=1), 1.0, atol=1e-4)
    print("KERNEL_OK")
</pallas_src>

<mosaic_0001>
module attributes {stable_mosaic.version = 11 : i64} {
  func.func @_matmul_bias_kernel(%arg0: i32, %arg1: memref<256x75xbf16, #tpu.memory_space<vmem>>, %arg2: memref<75x20xbf16, #tpu.memory_space<vmem>>, %arg3: memref<1x20xf32, #tpu.memory_space<vmem>>, %arg4: memref<256x20xbf16, #tpu.memory_space<vmem>>) attributes {dimension_semantics = [#tpu.dimension_semantics<parallel>], iteration_bounds = array<i64: 7>, scalar_prefetch = 0 : i64, scratch_operands = 0 : i64, tpu.core_type = #tpu.core_type<tc>, window_params = [{transform_indices = @transform_0, window_bounds = array<i64: 256, 75>}, {pipeline_mode = #tpu.pipeline_mode<synchronous>, transform_indices = @transform_1, window_bounds = array<i64: 75, 20>}, {pipeline_mode = #tpu.pipeline_mode<synchronous>, transform_indices = @transform_2, window_bounds = array<i64: 1, 20>}, {transform_indices = @transform_3, window_bounds = array<i64: 256, 20>}]} {
    %c0 = arith.constant 0 : index
    %c0_0 = arith.constant 0 : index
    %0 = vector.load %arg1[%c0, %c0_0] : memref<256x75xbf16, #tpu.memory_space<vmem>>, vector<256x75xbf16>
    %c0_1 = arith.constant 0 : index
    %c0_2 = arith.constant 0 : index
    %1 = vector.load %arg2[%c0_1, %c0_2] : memref<75x20xbf16, #tpu.memory_space<vmem>>, vector<75x20xbf16>
    %cst = arith.constant dense<0.000000e+00> : vector<256x20xf32>
    %2 = tpu.matmul %0, %1, %cst {dimension_numbers = #tpu.dot_dimension_numbers<[1], [0], [0], [1], [0, 0, 1, 1], [], []>} : vector<256x75xbf16>, vector<75x20xbf16>, vector<256x20xf32> -> vector<256x20xf32>
    %c0_3 = arith.constant 0 : index
    %c0_4 = arith.constant 0 : index
    %3 = vector.load %arg3[%c0_3, %c0_4] : memref<1x20xf32, #tpu.memory_space<vmem>>, vector<1x20xf32>
    %4 = vector.broadcast %3 : vector<1x20xf32> to vector<256x20xf32>
    %5 = arith.addf %2, %4 : vector<256x20xf32>
    %cst_5 = arith.constant 0.000000e+00 : f32
    %6 = vector.broadcast %cst_5 : f32 to vector<256x20xf32>
    %7 = arith.maximumf %5, %6 : vector<256x20xf32>
    %8 = arith.truncf %7 : vector<256x20xf32> to vector<256x20xbf16>
    %c0_6 = arith.constant 0 : index
    %c0_7 = arith.constant 0 : index
    %9 = vector.load %arg4[%c0_6, %c0_7] : memref<256x20xbf16, #tpu.memory_space<vmem>>, vector<256x20xbf16>
    tpu.vector_store %arg4[%c0_6, %c0_7], %8 {strides = array<i32>} : memref<256x20xbf16, #tpu.memory_space<vmem>>, vector<256x20xbf16>,
    return
  }
  func.func @transform_0(%arg0: i32) -> (i32, i32) {
    %c0_i32 = arith.constant 0 : i32
    %c0_i32_0 = arith.constant 0 : i32
    return %arg0, %c0_i32 : i32, i32
  }
  func.func @transform_1(%arg0: i32) -> (i32, i32) {
    %c0_i32 = arith.constant 0 : i32
    %c0_i32_0 = arith.constant 0 : i32
    %c0_i32_1 = arith.constant 0 : i32
    return %c0_i32, %c0_i32_0 : i32, i32
  }
  func.func @transform_2(%arg0: i32) -> (i32, i32) {
    %c0_i32 = arith.constant 0 : i32
    %c0_i32_0 = arith.constant 0 : i32
    %c0_i32_1 = arith.constant 0 : i32
    return %c0_i32, %c0_i32_0 : i32, i32
  }
  func.func @transform_3(%arg0: i32) -> (i32, i32) {
    %c0_i32 = arith.constant 0 : i32
    %c0_i32_0 = arith.constant 0 : i32
    return %arg0, %c0_i32 : i32, i32
  }
}

module attributes {stable_mosaic.version = 11 : i64} {
  func.func @_maxpool2x2_kernel(%arg0: i32, %arg1: memref<1x28x28x20xbf16, #tpu.memory_space<vmem>>, %arg2: memref<1x14x14x20xbf16, #tpu.memory_space<vmem>>) attributes {dimension_semantics = [#tpu.dimension_semantics<parallel>], iteration_bounds = array<i64: 2>, scalar_prefetch = 0 : i64, scratch_operands = 0 : i64, tpu.core_type = #tpu.core_type<tc>, window_params = [{transform_indices = @transform_0, window_bounds = array<i64: 1, 28, 28, 20>}, {transform_indices = @transform_1, window_bounds = array<i64: 1, 14, 14, 20>}]} {
    %0 = tpu.iota {dimensions = array<i32: 0>} : vector<14x28xi32>
    %1 = tpu.iota {dimensions = array<i32: 1>} : vector<14x28xi32>
    %c2_i32 = arith.constant 2 : i32
    %2 = vector.broadcast %c2_i32 : i32 to vector<14x28xi32>
    %3 = arith.muli %2, %0 : vector<14x28xi32>
    %4 = arith.cmpi eq, %1, %3 : vector<14x28xi32>
    %5 = arith.extui %4 : vector<14x28xi1> to vector<14x28xi32>
    %6 = arith.sitofp %5 : vector<14x28xi32> to vector<14x28xf32>
    %7 = arith.truncf %6 : vector<14x28xf32> to vector<14x28xbf16>
    %c2_i32_0 = arith.constant 2 : i32
    %8 = vector.broadcast %c2_i32_0 : i32 to vector<14x28xi32>
    %9 = arith.muli %8, %0 : vector<14x28xi32>
    %c1_i32 = arith.constant 1 : i32
    %10 = vector.broadcast %c1_i32 : i32 to vector<14x28xi32>
    %11 = arith.addi %9, %10 : vector<14x28xi32>
    %12 = arith.cmpi eq, %1, %11 : vector<14x28xi32>
    %13 = arith.extui %12 : vector<14x28xi1> to vector<14x28xi32>
    %14 = arith.sitofp %13 : vector<14x28xi32> to vector<14x28xf32>
    %15 = arith.truncf %14 : vector<14x28xf32> to vector<14x28xbf16>
    %c0 = arith.constant 0 : index
    %c0_1 = arith.constant 0 : index
    %c0_2 = arith.constant 0 : index
    %c0_3 = arith.constant 0 : index
    %16 = vector.load %arg1[%c0, %c0_1, %c0_2, %c0_3] : memref<1x28x28x20xbf16, #tpu.memory_space<vmem>>, vector<1x1x28x20xbf16>
    %17 = vector.shape_cast %16 : vector<1x1x28x20xbf16> to vector<28x20xbf16>
    %c0_4 = arith.constant 0 : index
    %c1 = arith.constant 1 : index
    %c0_5 = arith.constant 0 : index
    %c0_6 = arith.constant 0 : index
    %18 = vector.load %arg1[%c0_4, %c1, %c0_5, %c0_6] : memref<1x28x28x20xbf16, #tpu.memory_space<vmem>>, vector<1x1x28x20xbf16>
    %19 = vector.shape_cast %18 : vector<1x1x28x20xbf16> to vector<28x20xbf16>
    %20 = arith.maximumf %17, %19 : vector<28x20xbf16>
    %cst = arith.constant dense<0.000000e+00> : vector<14x20xf32>
    %21 = tpu.matmul %7, %20, %cst {dimension_numbers = #tpu.dot_dimension_numbers<[1], [0], [0], [1], [0, 0, 1, 1], [], []>} : vector<14x28xbf16>, vector<28x20xbf16>, vector<14x20xf32> -> vector<14x20xf32>
    %cst_7 = arith.constant dense<0.000000e+00> : vector<14x20xf32>
    %22 = tpu.matmul %15, %20, %cst_7 {dimension_numbers = #tpu.dot_dimension_numbers<[1], [0], [0], [1], [0, 0, 1, 1], [], []>} : vector<14x28xbf16>, vector<28x20xbf16>, vector<14x20xf32> -> vector<14x20xf32>
    %23 = arith.maximumf %21, %22 : vector<14x20xf32>
    %24 = arith.truncf %23 : vector<14x20xf32> to vector<14x20xbf16>
    %c0_8 = arith.constant 0 : index
    %c0_9 = arith.constant 0 : index
    %c0_10 = arith.constant 0 : index
    %c0_11 = arith.constant 0 : index
    %25 = vector.load %arg2[%c0_8, %c0_9, %c0_10, %c0_11] : memref<1x14x14x20xbf16, #tpu.memory_space<vmem>>, vector<1x1x14x20xbf16>
    %26 = vector.shape_cast %25 : vector<1x1x14x20xbf16> to vector<14x20xbf16>
    %27 = vector.shape_cast %24 : vector<14x20xbf16> to vector<1x1x14x20xbf16>
    tpu.vector_store %arg2[%c0_8, %c0_9, %c0_10, %c0_11], %27 {strides = array<i32>} : memref<1x14x14x20xbf16, #tpu.memory_space<vmem>>, vector<1x1x14x20xbf16>,
    %c0_12 = arith.constant 0 : index
    %c2 = arith.constant 2 : index
    %c0_13 = arith.constant 0 : index
    %c0_14 = arith.constant 0 : index
    %28 = vector.load %arg1[%c0_12, %c2, %c0_13, %c0_14] : memref<1x28x28x20xbf16, #tpu.memory_space<vmem>>, vector<1x1x28x20xbf16>
    %29 = vector.shape_cast %28 : vector<1x1x28x20xbf16> to vector<28x20xbf16>
    %c0_15 = arith.constant 0 : index
    %c3 = arith.constant 3 : index
    %c0_16 = arith.constant 0 : index
    %c0_17 = arith.constant 0 : index
    %30 = vector.load %arg1[%c0_15, %c3, %c0_16, %c0_17] : memref<1x28x28x20xbf16, #tpu.memory_space<vmem>>, vector<1x1x28x20xbf16>
    %31 = vector.shape_cast %30 : vector<1x1x28x20xbf16> to vector<28x20xbf16>
    %32 = arith.maximumf %29, %31 : vector<28x20xbf16>
    %cst_18 = arith.constant dense<0.000000e+00> : vector<14x20xf32>
    %33 = tpu.matmul %7, %32, %cst_18 {dimension_numbers = #tpu.dot_dimension_numbers<[1], [0], [0], [1], [0, 0, 1, 1], [], []>} : vector<14x28xbf16>, vector<28x20xbf16>, vector<14x20xf32> -> vector<14x20xf32>
    %cst_19 = arith.constant dense<0.000000e+00> : vector<14x20xf32>
    %34 = tpu.matmul %15, %32, %cst_19 {dimension_numbers = #tpu.dot_dimension_numbers<[1], [0], [0], [1], [0, 0, 1, 1], [], []>} : vector<14x28xbf16>, vector<28x20xbf16>, vector<14x20xf32> -> vector<14x20xf32>
    %35 = arith.maximumf %33, %34 : vector<14x20xf32>
    %36 = arith.truncf %35 : vector<14x20xf32> to vector<14x20xbf16>
    %c0_20 = arith.constant 0 : index
    %c1_21 = arith.constant 1 : index
    %c0_22 = arith.constant 0 : index
    %c0_23 = arith.constant 0 : index
    %37 = vector.load %arg2[%c0_20, %c1_21, %c0_22, %c0_23] : memref<1x14x14x20xbf16, #tpu.memory_space<vmem>>, vector<1x1x14x20xbf16>
    %38 = vector.shape_cast %37 : vector<1x1x14x20xbf16> to vector<14x20xbf16>
    %39 = vector.shape_cast %36 : vector<14x20xbf16> to vector<1x1x14x20xbf16>
    tpu.vector_store %arg2[%c0_20, %c1_21, %c0_22, %c0_23], %39 {strides = array<i32>} : memref<1x14x14x20xbf16, #tpu.memory_space<vmem>>, vector<1x1x14x20xbf16>,
    %c0_24 = arith.constant 0 : index
    %c4 = arith.constant 4 : index
    %c0_25 = arith.constant 0 : index
    %c0_26 = arith.constant 0 : index
    %40 = vector.load %arg1[%c0_24, %c4, %c0_25, %c0_26] : memref<1x28x28x20xbf16, #tpu.memory_space<vmem>>, vector<1x1x28x20xbf16>
    %41 = vector.shape_cast %40 : vector<1x1x28x20xbf16> to vector<28x20xbf16>
    %c0_27 = arith.constant 0 : index
    %c5 = arith.constant 5 : index
    %c0_28 = arith.constant 0 : index
    %c0_29 = arith.constant 0 : index
    %42 = vector.load %arg1[%c0_27, %c5, %c0_28, %c0_29] : memref<1x28x28x20xbf16, #tpu.memory_space<vmem>>, vector<1x1x28x20xbf16>
    %43 = vector.shape_cast %42 : vector<1x1x28x20xbf16> to vector<28x20xbf16>
    %44 = arith.maximumf %41, %43 : vector<28x20xbf16>
    %cst_30 = arith.constant dense<0.000000e+00> : vector<14x20xf32>
    %45 = tpu.matmul %7, %44, %cst_30 {dimension_numbers = #tpu.dot_dimension_numbers<[1], [0], [0], [1], [0, 0, 1, 1], [], []>} : vector<14x28xbf16>, vector<28x20xbf16>, vector<14x20xf32> -> vector<14x20xf32>
    %cst_31 = arith.constant dense<0.000000e+00> : vector<14x20xf32>
    %46 = tpu.matmul %15, %44, %cst_31 {dimension_numbers = #tpu.dot_dimension_numbers<[1], [0], [0], [1], [0, 0, 1, 1], [], []>} : vector<14x28xbf16>, vector<28x20xbf16>, vector<14x20xf32> -> vector<14x20xf32>
    %47 = arith.maximumf %45, %46 : vector<14x20xf32>
    %48 = arith.truncf %47 : vector<14x20xf32> to vector<14x20xbf16>
    %c0_32 = arith.constant 0 : index
    %c2_33 = arith.constant 2 : index
    %c0_34 = arith.constant 0 : index
    %c0_35 = arith.constant 0 : index
    %49 = vector.load %arg2[%c0_32, %c2_33, %c0_34, %c0_35] : memref<1x14x14x20xbf16, #tpu.memory_space<vmem>>, vector<1x1x14x20xbf16>
    %50 = vector.shape_cast %49 : vector<1x1x14x20xbf16> to vector<14x20xbf16>
    %51 = vector.shape_cast %48 : vector<14x20xbf16> to vector<1x1x14x20xbf16>
    tpu.vector_store %arg2[%c0_32, %c2_33, %c0_34, %c0_35], %51 {strides = array<i32>} : memref<1x14x14x20xbf16, #tpu.memory_space<vmem>>, vector<1x1x14x20xbf16>,
    %c0_36 = arith.constant 0 : index
    %c6 = arith.constant 6 : index
    %c0_37 = arith.constant 0 : index
    %c0_38 = arith.constant 0 : index
    %52 = vector.load %arg1[%c0_36, %c6, %c0_37, %c0_38] : memref<1x28x28x20xbf16, #tpu.memory_space<vmem>>, vector<1x1x28x20xbf16>
    %53 = vector.shape_cast %52 : vector<1x1x28x20xbf16> to vector<28x20xbf16>
    %c0_39 = arith.constant 0 : index
    %c7 = arith.constant 7 : index
    %c0_40 = arith.constant 0 : index
    %c0_41 = arith.constant 0 : index
    %54 = vector.load %arg1[%c0_39, %c7, %c0_40, %c0_41] : memref<1x28x28x20xbf16, #tpu.memory_space<vmem>>, vector<1x1x28x20xbf16>
    %55 = vector.shape_cast %54 : vector<1x1x28x20xbf16> to vector<28x20xbf16>
    %56 = arith.maximumf %53, %55 : vector<28x20xbf16>
    %cst_42 = arith.constant dense<0.000000e+00> : vector<14x20xf32>
    %57 = tpu.matmul %7, %56, %cst_42 {dimension_numbers = #tpu.dot_dimension_numbers<[1], [0], [0], [1], [0, 0, 1, 1], [], []>} : vector<14x28xbf16>, vector<28x20xbf16>, vector<14x20xf32> -> vector<14x20xf32>
    %cst_43 = arith.constant dense<0.000000e+00> : vector<14x20xf32>
    %58 = tpu.matmul %15, %56, %cst_43 {dimension_numbers = #tpu.dot_dimension_numbers<[1], [0], [0], [1], [0, 0, 1, 1], [], []>} : vector<14x28xbf16>, vector<28x20xbf16>, vector<14x20xf32> -> vector<14x20xf32>
    %59 = arith.maximumf %57, %58 : vector<14x20xf32>
    %60 = arith.truncf %59 : vector<14x20xf32> to vector<14x20xbf16>
    %c0_44 = arith.constant 0 : index
    %c3_45 = arith.constant 3 : index
    %c0_46 = arith.constant 0 : index
    %c0_47 = arith.constant 0 : index
    %61 = vector.load %arg2[%c0_44, %c3_45, %c0_46, %c0_47] : memref<1x14x14x20xbf16, #tpu.memory_space<vmem>>, vector<1x1x14x20xbf16>
    %62 = vector.shape_cast %61 : vector<1x1x14x20xbf16> to vector<14x20xbf16>
    %63 = vector.shape_cast %60 : vector<14x20xbf16> to vector<1x1x14x20xbf16>
    tpu.vector_store %arg2[%c0_44, %c3_45, %c0_46, %c0_47], %63 {strides = array<i32>} : memref<1x14x14x20xbf16, #tpu.memory_space<vmem>>, vector<1x1x14x20xbf16>,
    %c0_48 = arith.constant 0 : index
    %c8 = arith.constant 8 : index
    %c0_49 = arith.constant 0 : index
    %c0_50 = arith.constant 0 : index
    %64 = vector.load %arg1[%c0_48, %c8, %c0_49, %c0_50] : memref<1x28x28x20xbf16, #tpu.memory_space<vmem>>, vector<1x1x28x20xbf16>
    %65 = vector.shape_cast %64 : vector<1x1x28x20xbf16> to vector<28x20xbf16>
    %c0_51 = arith.constant 0 : index
    %c9 = arith.constant 9 : index
    %c0_52 = arith.constant 0 : index
    %c0_53 = arith.constant 0 : index
    %66 = vector.load %arg1[%c0_51, %c9, %c0_52, %c0_53] : memref<1x28x28x20xbf16, #tpu.memory_space<vmem>>, vector<1x1x28x20xbf16>
    %67 = vector.shape_cast %66 : vector<1x1x28x20xbf16> to vector<28x20xbf16>
    %68 = arith.maximumf %65, %67 : vector<28x20xbf16>
    %cst_54 = arith.constant dense<0.000000e+00> : vector<14x20xf32>
    %69 = tpu.matmul %7, %68, %cst_54 {dimension_numbers = #tpu.dot_dimension_numbers<[1], [0], [0], [1], [0, 0, 1, 1], [], []>} : vector<14x28xbf16>, vector<28x20xbf16>, vector<14x20xf32> -> vector<14x20xf32>
    %cst_55 = arith.constant dense<0.000000e+00> : vector<14x20xf32>
    %70 = tpu.matmul %15, %68, %cst_55 {dimension_numbers = #tpu.dot_dimension_numbers<[1], [0], [0], [1], [0, 0, 1, 1], [], []>} : vector<14x28xbf16>, vector<28x20xbf16>, vector<14x20xf32> -> vector<14x20xf32>
    %71 = arith.maximumf %69, %70 : vector<14x20xf32>
    %72 = arith.truncf %71 : vector<14x20xf32> to vector<14x20xbf16>
    %c0_56 = arith.constant 0 : index
    %c4_57 = arith.constant 4 : index
    %c0_58 = arith.constant 0 : index
    %c0_59 = arith.constant 0 : index
    %73 = vector.load %arg2[%c0_56, %c4_57, %c0_58, %c0_59] : memref<1x14x14x20xbf16, #tpu.memory_space<vmem>>, vector<1x1x14x20xbf16>
    %74 = vector.shape_cast %73 : vector<1x1x14x20xbf16> to vector<14x20xbf16>
    %75 = vector.shape_cast %72 : vector<14x20xbf16> to vector<1x1x14x20xbf16>
    tpu.vector_store %arg2[%c0_56, %c4_57, %c0_58, %c0_59], %75 {strides = array<i32>} : memref<1x14x14x20xbf16, #tpu.memory_space<vmem>>, vector<1x1x14x20xbf16>,
    %c0_60 = arith.constant 0 : index
    %c10 = arith.constant 10 : index
    %c0_61 = arith.constant 0 : index
    %c0_62 = arith.constant 0 : index
    %76 = vector.load %arg1[%c0_60, %c10, %c0_61, %c0_62] : memref<1x28x28x20xbf16, #tpu.memory_space<vmem>>, vector<1x1x28x20xbf16>
    %77 = vector.shape_cast %76 : vector<1x1x28x20xbf16> to vector<28x20xbf16>
    %c0_63 = arith.constant 0 : index
    %c11 = arith.constant 11 : index
    %c0_64 = arith.constant 0 : index
    %c0_65 = arith.constant 0 : index
    %78 = vector.load %arg1[%c0_63, %c11, %c0_64, %c0_65] : memref<1x28x28x20xbf16, #tpu.memory_space<vmem>>, vector<1x1x28x20xbf16>
    %79 = vector.shape_cast %78 : vector<1x1x28x20xbf16> to vector<28x20xbf16>
    %80 = arith.maximumf %77, %79 : vector<28x20xbf16>
    %cst_66 = arith.constant dense<0.000000e+00> : vector<14x20xf32>
    %81 = tpu.matmul %7, %80, %cst_66 {dimension_numbers = #tpu.dot_dimension_numbers<[1], [0], [0], [1], [0, 0, 1, 1], [], []>} : vector<14x28xbf16>, vector<28x20xbf16>, vector<14x20xf32> -> vector<14x20xf32>
    %cst_67 = arith.constant dense<0.000000e+00> : vector<14x20xf32>
    %82 = tpu.matmul %15, %80, %cst_67 {dimension_numbers = #tpu.dot_dimension_numbers<[1], [0], [0], [1], [0, 0, 1, 1], [], []>} : vector<14x28xbf16>, vector<28x20xbf16>, vector<14x20xf32> -> vector<14x20xf32>
    %83 = arith.maximumf %81, %82 : vector<14x20xf32>
    %84 = arith.truncf %83 : vector<14x20xf32> to vector<14x20xbf16>
    %c0_68 = arith.constant 0 : index
    %c5_69 = arith.constant 5 : index
    %c0_70 = arith.constant 0 : index
    %c0_71 = arith.constant 0 : index
    %85 = vector.load %arg2[%c0_68, %c5_69, %c0_70, %c0_71] : memref<1x14x14x20xbf16, #tpu.memory_space<vmem>>, vector<1x1x14x20xbf16>
    %86 = vector.shape_cast %85 : vector<1x1x14x20xbf16> to vector<14x20xbf16>
    %87 = vector.shape_cast %84 : vector<14x20xbf16> to vector<1x1x14x20xbf16>
    tpu.vector_store %arg2[%c0_68, %c5_69, %c0_70, %c0_71], %87 {strides = array<i32>} : memref<1x14x14x20xbf16, #tpu.memory_space<vmem>>, vector<1x1x14x20xbf16>,
    %c0_72 = arith.constant 0 : index
    %c12 = arith.constant 12 : index
    %c0_73 = arith.constant 0 : index
    %c0_74 = arith.constant 0 : index
    %88 = vector.load %arg1[%c0_72, %c12, %c0_73, %c0_74] : memref<1x28x28x20xbf16, #tpu.memory_space<vmem>>, vector<1x1x28x20xbf16>
    %89 = vector.shape_cast %88 : vector<1x1x28x20xbf16> to vector<28x20xbf16>
    %c0_75 = arith.constant 0 : index
    %c13 = arith.constant 13 : index
    %c0_76 = arith.constant 0 : index
    %c0_77 = arith.constant 0 : index
    %90 = vector.load %arg1[%c0_75, %c13, %c0_76, %c0_77] : memref<1x28x28x20xbf16, #tpu.memory_space<vmem>>, vector<1x1x28x20xbf16>
    %91 = vector.shape_cast %90 : vector<1x1x28x20xbf16> to vector<28x20xbf16>
    %92 = arith.maximumf %89, %91 : vector<28x20xbf16>
    %cst_78 = arith.constant dense<0.000000e+00> : vector<14x20xf32>
    %93 = tpu.matmul %7, %92, %cst_78 {dimension_numbers = #tpu.dot_dimension_numbers<[1], [0], [0], [1], [0, 0, 1, 1], [], []>} : vector<14x28xbf16>, vector<28x20xbf16>, vector<14x20xf32> -> vector<14x20xf32>
    %cst_79 = arith.constant dense<0.000000e+00> : vector<14x20xf32>
    %94 = tpu.matmul %15, %92, %cst_79 {dimension_numbers = #tpu.dot_dimension_numbers<[1], [0], [0], [1], [0, 0, 1, 1], [], []>} : vector<14x28xbf16>, vector<28x20xbf16>, vector<14x20xf32> -> vector<14x20xf32>
    %95 = arith.maximumf %93, %94 : vector<14x20xf32>
    %96 = arith.truncf %95 : vector<14x20xf32> to vector<14x20xbf16>
    %c0_80 = arith.constant 0 : index
    %c6_81 = arith.constant 6 : index
    %c0_82 = arith.constant 0 : index
    %c0_83 = arith.constant 0 : index
    %97 = vector.load %arg2[%c0_80, %c6_81, %c0_82, %c0_83] : memref<1x14x14x20xbf16, #tpu.memory_space<vmem>>, vector<1x1x14x20xbf16>
    %98 = vector.shape_cast %97 : vector<1x1x14x20xbf16> to vector<14x20xbf16>
    %99 = vector.shape_cast %96 : vector<14x20xbf16> to vector<1x1x14x20xbf16>
    tpu.vector_store %arg2[%c0_80, %c6_81, %c0_82, %c0_83], %99 {strides = array<i32>} : memref<1x14x14x20xbf16, #tpu.memory_space<vmem>>, vector<1x1x14x20xbf16>,
    %c0_84 = arith.constant 0 : index
    %c14 = arith.constant 14 : index
    %c0_85 = arith.constant 0 : index
    %c0_86 = arith.constant 0 : index
    %100 = vector.load %arg1[%c0_84, %c14, %c0_85, %c0_86] : memref<1x28x28x20xbf16, #tpu.memory_space<vmem>>, vector<1x1x28x20xbf16>
    %101 = vector.shape_cast %100 : vector<1x1x28x20xbf16> to vector<28x20xbf16>
    %c0_87 = arith.constant 0 : index
    %c15 = arith.constant 15 : index
    %c0_88 = arith.constant 0 : index
    %c0_89 = arith.constant 0 : index
    %102 = vector.load %arg1[%c0_87, %c15, %c0_88, %c0_89] : memref<1x28x28x20xbf16, #tpu.memory_space<vmem>>, vector<1x1x28x20xbf16>
    %103 = vector.shape_cast %102 : vector<1x1x28x20xbf16> to vector<28x20xbf16>
    %104 = arith.maximumf %101, %103 : vector<28x20xbf16>
    %cst_90 = arith.constant dense<0.000000e+00> : vector<14x20xf32>
    %105 = tpu.matmul %7, %104, %cst_90 {dimension_numbers = #tpu.dot_dimension_numbers<[1], [0], [0], [1], [0, 0, 1, 1], [], []>} : vector<14x28xbf16>, vector<28x20xbf16>, vector<14x20xf32> -> vector<14x20xf32>
    %cst_91 = arith.constant dense<0.000000e+00> : vector<14x20xf32>
    %106 = tpu.matmul %15, %104, %cst_91 {dimension_numbers = #tpu.dot_dimension_numbers<[1], [0], [0], [1], [0, 0, 1, 1], [], []>} : vector<14x28xbf16>, vector<28x20xbf16>, vector<14x20xf32> -> vector<14x20xf32>
    %107 = arith.maximumf %105, %106 : vector<14x20xf32>
    %108 = arith.truncf %107 : vector<14x20xf32> to vector<14x20xbf16>
    %c0_92 = arith.constant 0 : index
    %c7_93 = arith.constant 7 : index
    %c0_94 = arith.constant 0 : index
    %c0_95 = arith.constant 0 : index
    %109 = vector.load %arg2[%c0_92, %c7_93, %c0_94, %c0_95] : memref<1x14x14x20xbf16, #tpu.memory_space<vmem>>, vector<1x1x14x20xbf16>
    %110 = vector.shape_cast %109 : vector<1x1x14x20xbf16> to vector<14x20xbf16>
    %111 = vector.shape_cast %108 : vector<14x20xbf16> to vector<1x1x14x20xbf16>
    tpu.vector_store %arg2[%c0_92, %c7_93, %c0_94, %c0_95], %111 {strides = array<i32>} : memref<1x14x14x20xbf16, #tpu.memory_space<vmem>>, vector<1x1x14x20xbf16>,
    %c0_96 = arith.constant 0 : index
    %c16 = arith.constant 16 : index
    %c0_97 = arith.constant 0 : index
    %c0_98 = arith.constant 0 : index
    %112 = vector.load %arg1[%c0_96, %c16, %c0_97, %c0_98] : memref<1x28x28x20xbf16, #tpu.memory_space<vmem>>, vector<1x1x28x20xbf16>
    %113 = vector.shape_cast %112 : vector<1x1x28x20xbf16> to vector<28x20xbf16>
    %c0_99 = arith.constant 0 : index
    %c17 = arith.constant 17 : index
    %c0_100 = arith.constant 0 : index
    %c0_101 = arith.constant 0 : index
    %114 = vector.load %arg1[%c0_99, %c17, %c0_100, %c0_101] : memref<1x28x28x20xbf16, #tpu.memory_space<vmem>>, vector<1x1x28x20xbf16>
    %115 = vector.shape_cast %114 : vector<1x1x28x20xbf16> to vector<28x20xbf16>
    %116 = arith.maximumf %113, %115 : vector<28x20xbf16>
    %cst_102 = arith.constant dense<0.000000e+00> : vector<14x20xf32>
    %117 = tpu.matmul %7, %116, %cst_102 {dimension_numbers = #tpu.dot_dimension_numbers<[1], [0], [0], [1], [0, 0, 1, 1], [], []>} : vector<14x28xbf16>, vector<28x20xbf16>, vector<14x20xf32> -> vector<14x20xf32>
    %cst_103 = arith.constant dense<0.000000e+00> : vector<14x20xf32>
    %118 = tpu.matmul %15, %116, %cst_103 {dimension_numbers = #tpu.dot_dimension_numbers<[1], [0], [0], [1], [0, 0, 1, 1], [], []>} : vector<14x28xbf16>, vector<28x20xbf16>, vector<14x20xf32> -> vector<14x20xf32>
    %119 = arith.maximumf %117, %118 : vector<14x20xf32>
    %120 = arith.truncf %119 : vector<14x20xf32> to vector<14x20xbf16>
    %c0_104 = arith.constant 0 : index
    %c8_105 = arith.constant 8 : index
    %c0_106 = arith.constant 0 : index
    %c0_107 = arith.constant 0 : index
    %121 = vector.load %arg2[%c0_104, %c8_105, %c0_106, %c0_107] : memref<1x14x14x20xbf16, #tpu.memory_space<vmem>>, vector<1x1x14x20xbf16>
    %122 = vector.shape_cast %121 : vector<1x1x14x20xbf16> to vector<14x20xbf16>
    %123 = vector.shape_cast %120 : vector<14x20xbf16> to vector<1x1x14x20xbf16>
    tpu.vector_store %arg2[%c0_104, %c8_105, %c0_106, %c0_107], %123 {strides = array<i32>} : memref<1x14x14x20xbf16, #tpu.memory_space<vmem>>, vector<1x1x14x20xbf16>,
    %c0_108 = arith.constant 0 : index
    %c18 = arith.constant 18 : index
    %c0_109 = arith.constant 0 : index
    %c0_110 = arith.constant 0 : index
    %124 = vector.load %arg1[%c0_108, %c18, %c0_109, %c0_110] : memref<1x28x28x20xbf16, #tpu.memory_space<vmem>>, vector<1x1x28x20xbf16>
    %125 = vector.shape_cast %124 : vector<1x1x28x20xbf16> to vector<28x20xbf16>
    %c0_111 = arith.constant 0 : index
    %c19 = arith.constant 19 : index
    %c0_112 = arith.constant 0 : index
    %c0_113 = arith.constant 0 : index
    %126 = vector.load %arg1[%c0_111, %c19, %c0_112, %c0_113] : memref<1x28x28x20xbf16, #tpu.memory_space<vmem>>, vector<1x1x28x20xbf16>
    %127 = vector.shape_cast %126 : vector<1x1x28x20xbf16> to vector<28x20xbf16>
    %128 = arith.maximumf %125, %127 : vector<28x20xbf16>
    %cst_114 = arith.constant dense<0.000000e+00> : vector<14x20xf32>
    %129 = tpu.matmul %7, %128, %cst_114 {dimension_numbers = #tpu.dot_dimension_numbers<[1], [0], [0], [1], [0, 0, 1, 1], [], []>} : vector<14x28xbf16>, vector<28x20xbf16>, vector<14x20xf32> -> vector<14x20xf32>
    %cst_115 = arith.constant dense<0.000000e+00> : vector<14x20xf32>
    %130 = tpu.matmul %15, %128, %cst_115 {dimension_numbers = #tpu.dot_dimension_numbers<[1], [0], [0], [1], [0, 0, 1, 1], [], []>} : vector<14x28xbf16>, vector<28x20xbf16>, vector<14x20xf32> -> vector<14x20xf32>
    %131 = arith.maximumf %129, %130 : vector<14x20xf32>
    %132 = arith.truncf %131 : vector<14x20xf32> to vector<14x20xbf16>
    %c0_116 = arith.constant 0 : index
    %c9_117 = arith.constant 9 : index
    %c0_118 = arith.constant 0 : index
    %c0_119 = arith.constant 0 : index
    %133 = vector.load %arg2[%c0_116, %c9_117, %c0_118, %c0_119] : memref<1x14x14x20xbf16, #tpu.memory_space<vmem>>, vector<1x1x14x20xbf16>
    %134 = vector.shape_cast %133 : vector<1x1x14x20xbf16> to vector<14x20xbf16>
    %135 = vector.shape_cast %132 : vector<14x20xbf16> to vector<1x1x14x20xbf16>
    tpu.vector_store %arg2[%c0_116, %c9_117, %c0_118, %c0_119], %135 {strides = array<i32>} : memref<1x14x14x20xbf16, #tpu.memory_space<vmem>>, vector<1x1x14x20xbf16>,
    %c0_120 = arith.constant 0 : index
    %c20 = arith.constant 20 : index
    %c0_121 = arith.constant 0 : index
    %c0_122 = arith.constant 0 : index
    %136 = vector.load %arg1[%c0_120, %c20, %c0_121, %c0_122] : memref<1x28x28x20xbf16, #tpu.memory_space<vmem>>, vector<1x1x28x20xbf16>
    %137 = vector.shape_cast %136 : vector<1x1x28x20xbf16> to vector<28x20xbf16>
    %c0_123 = arith.constant 0 : index
    %c21 = arith.constant 21 : index
    %c0_124 = arith.constant 0 : index
    %c0_125 = arith.constant 0 : index
    %138 = vector.load %arg1[%c0_123, %c21, %c0_124, %c0_125] : memref<1x28x28x20xbf16, #tpu.memory_space<vmem>>, vector<1x1x28x20xbf16>
    %139 = vector.shape_cast %138 : vector<1x1x28x20xbf16> to vector<28x20xbf16>
    %140 = arith.maximumf %137, %139 : vector<28x20xbf16>
    %cst_126 = arith.constant dense<0.000000e+00> : vector<14x20xf32>
    %141 = tpu.matmul %7, %140, %cst_126 {dimension_numbers = #tpu.dot_dimension_numbers<[1], [0], [0], [1], [0, 0, 1, 1], [], []>} : vector<14x28xbf16>, vector<28x20xbf16>, vector<14x20xf32> -> vector<14x20xf32>
    %cst_127 = arith.constant dense<0.000000e+00> : vector<14x20xf32>
    %142 = tpu.matmul %15, %140, %cst_127 {dimension_numbers = #tpu.dot_dimension_numbers<[1], [0], [0], [1], [0, 0, 1, 1], [], []>} : vector<14x28xbf16>, vector<28x20xbf16>, vector<14x20xf32> -> vector<14x20xf32>
    %143 = arith.maximumf %141, %142 : vector<14x20xf32>
    %144 = arith.truncf %143 : vector<14x20xf32> to vector<14x20xbf16>
    %c0_128 = arith.constant 0 : index
    %c10_129 = arith.constant 10 : index
    %c0_130 = arith.constant 0 : index
    %c0_131 = arith.constant 0 : index
    %145 = vector.load %arg2[%c0_128, %c10_129, %c0_130, %c0_131] : memref<1x14x14x20xbf16, #tpu.memory_space<vmem>>, vector<1x1x14x20xbf16>
    %146 = vector.shape_cast %145 : vector<1x1x14x20xbf16> to vector<14x20xbf16>
    %147 = vector.shape_cast %144 : vector<14x20xbf16> to vector<1x1x14x20xbf16>
    tpu.vector_store %arg2[%c0_128, %c10_129, %c0_130, %c0_131], %147 {strides = array<i32>} : memref<1x14x14x20xbf16, #tpu.memory_space<vmem>>, vector<1x1x14x20xbf16>,
    %c0_132 = arith.constant 0 : index
    %c22 = arith.constant 22 : index
    %c0_133 = arith.constant 0 : index
    %c0_134 = arith.constant 0 : index
    %148 = vector.load %arg1[%c0_132, %c22, %c0_133, %c0_134] : memref<1x28x28x20xbf16, #tpu.memory_space<vmem>>, vector<1x1x28x20xbf16>
    %149 = vector.shape_cast %148 : vector<1x1x28x20xbf16> to vector<28x20xbf16>
    %c0_135 = arith.constant 0 : index
    %c23 = arith.constant 23 : index
    %c0_136 = arith.constant 0 : index
    %c0_137 = arith.constant 0 : index
    %150 = vector.load %arg1[%c0_135, %c23, %c0_136, %c0_137] : memref<1x28x28x20xbf16, #tpu.memory_space<vmem>>, vector<1x1x28x20xbf16>
    %151 = vector.shape_cast %150 : vector<1x1x28x20xbf16> to vector<28x20xbf16>
    %152 = arith.maximumf %149, %151 : vector<28x20xbf16>
    %cst_138 = arith.constant dense<0.000000e+00> : vector<14x20xf32>
    %153 = tpu.matmul %7, %152, %cst_138 {dimension_numbers = #tpu.dot_dimension_numbers<[1], [0], [0], [1], [0, 0, 1, 1], [], []>} : vector<14x28xbf16>, vector<28x20xbf16>, vector<14x20xf32> -> vector<14x20xf32>
    %cst_139 = arith.constant dense<0.000000e+00> : vector<14x20xf32>
    %154 = tpu.matmul %15, %152, %cst_139 {dimension_numbers = #tpu.dot_dimension_numbers<[1], [0], [0], [1], [0, 0, 1, 1], [], []>} : vector<14x28xbf16>, vector<28x20xbf16>, vector<14x20xf32> -> vector<14x20xf32>
    %155 = arith.maximumf %153, %154 : vector<14x20xf32>
    %156 = arith.truncf %155 : vector<14x20xf32> to vector<14x20xbf16>
    %c0_140 = arith.constant 0 : index
    %c11_141 = arith.constant 11 : index
    %c0_142 = arith.constant 0 : index
    %c0_143 = arith.constant 0 : index
    %157 = vector.load %arg2[%c0_140, %c11_141, %c0_142, %c0_143] : memref<1x14x14x20xbf16, #tpu.memory_space<vmem>>, vector<1x1x14x20xbf16>
    %158 = vector.shape_cast %157 : vector<1x1x14x20xbf16> to vector<14x20xbf16>
    %159 = vector.shape_cast %156 : vector<14x20xbf16> to vector<1x1x14x20xbf16>
    tpu.vector_store %arg2[%c0_140, %c11_141, %c0_142, %c0_143], %159 {strides = array<i32>} : memref<1x14x14x20xbf16, #tpu.memory_space<vmem>>, vector<1x1x14x20xbf16>,
    %c0_144 = arith.constant 0 : index
    %c24 = arith.constant 24 : index
    %c0_145 = arith.constant 0 : index
    %c0_146 = arith.constant 0 : index
    %160 = vector.load %arg1[%c0_144, %c24, %c0_145, %c0_146] : memref<1x28x28x20xbf16, #tpu.memory_space<vmem>>, vector<1x1x28x20xbf16>
    %161 = vector.shape_cast %160 : vector<1x1x28x20xbf16> to vector<28x20xbf16>
    %c0_147 = arith.constant 0 : index
    %c25 = arith.constant 25 : index
    %c0_148 = arith.constant 0 : index
    %c0_149 = arith.constant 0 : index
    %162 = vector.load %arg1[%c0_147, %c25, %c0_148, %c0_149] : memref<1x28x28x20xbf16, #tpu.memory_space<vmem>>, vector<1x1x28x20xbf16>
    %163 = vector.shape_cast %162 : vector<1x1x28x20xbf16> to vector<28x20xbf16>
    %164 = arith.maximumf %161, %163 : vector<28x20xbf16>
    %cst_150 = arith.constant dense<0.000000e+00> : vector<14x20xf32>
    %165 = tpu.matmul %7, %164, %cst_150 {dimension_numbers = #tpu.dot_dimension_numbers<[1], [0], [0], [1], [0, 0, 1, 1], [], []>} : vector<14x28xbf16>, vector<28x20xbf16>, vector<14x20xf32> -> vector<14x20xf32>
    %cst_151 = arith.constant dense<0.000000e+00> : vector<14x20xf32>
    %166 = tpu.matmul %15, %164, %cst_151 {dimension_numbers = #tpu.dot_dimension_numbers<[1], [0], [0], [1], [0, 0, 1, 1], [], []>} : vector<14x28xbf16>, vector<28x20xbf16>, vector<14x20xf32> -> vector<14x20xf32>
    %167 = arith.maximumf %165, %166 : vector<14x20xf32>
    %168 = arith.truncf %167 : vector<14x20xf32> to vector<14x20xbf16>
    %c0_152 = arith.constant 0 : index
    %c12_153 = arith.constant 12 : index
    %c0_154 = arith.constant 0 : index
    %c0_155 = arith.constant 0 : index
    %169 = vector.load %arg2[%c0_152, %c12_153, %c0_154, %c0_155] : memref<1x14x14x20xbf16, #tpu.memory_space<vmem>>, vector<1x1x14x20xbf16>
    %170 = vector.shape_cast %169 : vector<1x1x14x20xbf16> to vector<14x20xbf16>
    %171 = vector.shape_cast %168 : vector<14x20xbf16> to vector<1x1x14x20xbf16>
    tpu.vector_store %arg2[%c0_152, %c12_153, %c0_154, %c0_155], %171 {strides = array<i32>} : memref<1x14x14x20xbf16, #tpu.memory_space<vmem>>, vector<1x1x14x20xbf16>,
    %c0_156 = arith.constant 0 : index
    %c26 = arith.constant 26 : index
    %c0_157 = arith.constant 0 : index
    %c0_158 = arith.constant 0 : index
    %172 = vector.load %arg1[%c0_156, %c26, %c0_157, %c0_158] : memref<1x28x28x20xbf16, #tpu.memory_space<vmem>>, vector<1x1x28x20xbf16>
    %173 = vector.shape_cast %172 : vector<1x1x28x20xbf16> to vector<28x20xbf16>
    %c0_159 = arith.constant 0 : index
    %c27 = arith.constant 27 : index
    %c0_160 = arith.constant 0 : index
    %c0_161 = arith.constant 0 : index
    %174 = vector.load %arg1[%c0_159, %c27, %c0_160, %c0_161] : memref<1x28x28x20xbf16, #tpu.memory_space<vmem>>, vector<1x1x28x20xbf16>
    %175 = vector.shape_cast %174 : vector<1x1x28x20xbf16> to vector<28x20xbf16>
    %176 = arith.maximumf %173, %175 : vector<28x20xbf16>
    %cst_162 = arith.constant dense<0.000000e+00> : vector<14x20xf32>
    %177 = tpu.matmul %7, %176, %cst_162 {dimension_numbers = #tpu.dot_dimension_numbers<[1], [0], [0], [1], [0, 0, 1, 1], [], []>} : vector<14x28xbf16>, vector<28x20xbf16>, vector<14x20xf32> -> vector<14x20xf32>
    %cst_163 = arith.constant dense<0.000000e+00> : vector<14x20xf32>
    %178 = tpu.matmul %15, %176, %cst_163 {dimension_numbers = #tpu.dot_dimension_numbers<[1], [0], [0], [1], [0, 0, 1, 1], [], []>} : vector<14x28xbf16>, vector<28x20xbf16>, vector<14x20xf32> -> vector<14x20xf32>
    %179 = arith.maximumf %177, %178 : vector<14x20xf32>
    %180 = arith.truncf %179 : vector<14x20xf32> to vector<14x20xbf16>
    %c0_164 = arith.constant 0 : index
    %c13_165 = arith.constant 13 : index
    %c0_166 = arith.constant 0 : index
    %c0_167 = arith.constant 0 : index
    %181 = vector.load %arg2[%c0_164, %c13_165, %c0_166, %c0_167] : memref<1x14x14x20xbf16, #tpu.memory_space<vmem>>, vector<1x1x14x20xbf16>
    %182 = vector.shape_cast %181 : vector<1x1x14x20xbf16> to vector<14x20xbf16>
    %183 = vector.shape_cast %180 : vector<14x20xbf16> to vector<1x1x14x20xbf16>
    tpu.vector_store %arg2[%c0_164, %c13_165, %c0_166, %c0_167], %183 {strides = array<i32>} : memref<1x14x14x20xbf16, #tpu.memory_space<vmem>>, vector<1x1x14x20xbf16>,
    return
  }
  func.func @transform_0(%arg0: i32) -> (i32, i32, i32, i32) {
    %c0_i32 = arith.constant 0 : i32
    %c0_i32_0 = arith.constant 0 : i32
    %c0_i32_1 = arith.constant 0 : i32
    %c0_i32_2 = arith.constant 0 : i32
    return %arg0, %c0_i32, %c0_i32_0, %c0_i32_1 : i32, i32, i32, i32
  }
  func.func @transform_1(%arg0: i32) -> (i32, i32, i32, i32) {
    %c0_i32 = arith.constant 0 : i32
    %c0_i32_0 = arith.constant 0 : i32
    %c0_i32_1 = arith.constant 0 : i32
    %c0_i32_2 = arith.constant 0 : i32
    return %arg0, %c0_i32, %c0_i32_0, %c0_i32_1 : i32, i32, i32, i32
  }
}

module attributes {stable_mosaic.version = 11 : i64} {
  func.func @_matmul_bias_kernel(%arg0: i32, %arg1: memref<200x500xbf16, #tpu.memory_space<vmem>>, %arg2: memref<500x50xbf16, #tpu.memory_space<vmem>>, %arg3: memref<1x50xf32, #tpu.memory_space<vmem>>, %arg4: memref<200x50xbf16, #tpu.memory_space<vmem>>) attributes {dimension_semantics = [#tpu.dimension_semantics<parallel>], iteration_bounds = array<i64: 1>, scalar_prefetch = 0 : i64, scratch_operands = 0 : i64, tpu.core_type = #tpu.core_type<tc>, window_params = [{transform_indices = @transform_0, window_bounds = array<i64: 200, 500>}, {pipeline_mode = #tpu.pipeline_mode<synchronous>, transform_indices = @transform_1, window_bounds = array<i64: 500, 50>}, {pipeline_mode = #tpu.pipeline_mode<synchronous>, transform_indices = @transform_2, window_bounds = array<i64: 1, 50>}, {transform_indices = @transform_3, window_bounds = array<i64: 200, 50>}]} {
    %c0 = arith.constant 0 : index
    %c0_0 = arith.constant 0 : index
    %0 = vector.load %arg1[%c0, %c0_0] : memref<200x500xbf16, #tpu.memory_space<vmem>>, vector<200x500xbf16>
    %c0_1 = arith.constant 0 : index
    %c0_2 = arith.constant 0 : index
    %1 = vector.load %arg2[%c0_1, %c0_2] : memref<500x50xbf16, #tpu.memory_space<vmem>>, vector<500x50xbf16>
    %cst = arith.constant dense<0.000000e+00> : vector<200x50xf32>
    %2 = tpu.matmul %0, %1, %cst {dimension_numbers = #tpu.dot_dimension_numbers<[1], [0], [0], [1], [0, 0, 1, 1], [], []>} : vector<200x500xbf16>, vector<500x50xbf16>, vector<200x50xf32> -> vector<200x50xf32>
    %c0_3 = arith.constant 0 : index
    %c0_4 = arith.constant 0 : index
    %3 = vector.load %arg3[%c0_3, %c0_4] : memref<1x50xf32, #tpu.memory_space<vmem>>, vector<1x50xf32>
    %4 = vector.broadcast %3 : vector<1x50xf32> to vector<200x50xf32>
    %5 = arith.addf %2, %4 : vector<200x50xf32>
    %cst_5 = arith.constant 0.000000e+00 : f32
    %6 = vector.broadcast %cst_5 : f32 to vector<200x50xf32>
    %7 = arith.maximumf %5, %6 : vector<200x50xf32>
    %8 = arith.truncf %7 : vector<200x50xf32> to vector<200x50xbf16>
    %c0_6 = arith.constant 0 : index
    %c0_7 = arith.constant 0 : index
    %9 = vector.load %arg4[%c0_6, %c0_7] : memref<200x50xbf16, #tpu.memory_space<vmem>>, vector<200x50xbf16>
    tpu.vector_store %arg4[%c0_6, %c0_7], %8 {strides = array<i32>} : memref<200x50xbf16, #tpu.memory_space<vmem>>, vector<200x50xbf16>,
    return
  }
  func.func @transform_0(%arg0: i32) -> (i32, i32) {
    %c0_i32 = arith.constant 0 : i32
    %c0_i32_0 = arith.constant 0 : i32
    return %arg0, %c0_i32 : i32, i32
  }
  func.func @transform_1(%arg0: i32) -> (i32, i32) {
    %c0_i32 = arith.constant 0 : i32
    %c0_i32_0 = arith.constant 0 : i32
    %c0_i32_1 = arith.constant 0 : i32
    return %c0_i32, %c0_i32_0 : i32, i32
  }
  func.func @transform_2(%arg0: i32) -> (i32, i32) {
    %c0_i32 = arith.constant 0 : i32
    %c0_i32_0 = arith.constant 0 : i32
    %c0_i32_1 = arith.constant 0 : i32
    return %c0_i32, %c0_i32_0 : i32, i32
  }
  func.func @transform_3(%arg0: i32) -> (i32, i32) {
    %c0_i32 = arith.constant 0 : i32
    %c0_i32_0 = arith.constant 0 : i32
    return %arg0, %c0_i32 : i32, i32
  }
}

module attributes {stable_mosaic.version = 11 : i64} {
  func.func @_maxpool2x2_kernel(%arg0: i32, %arg1: memref<1x10x10x50xbf16, #tpu.memory_space<vmem>>, %arg2: memref<1x5x5x50xbf16, #tpu.memory_space<vmem>>) attributes {dimension_semantics = [#tpu.dimension_semantics<parallel>], iteration_bounds = array<i64: 2>, scalar_prefetch = 0 : i64, scratch_operands = 0 : i64, tpu.core_type = #tpu.core_type<tc>, window_params = [{transform_indices = @transform_0, window_bounds = array<i64: 1, 10, 10, 50>}, {transform_indices = @transform_1, window_bounds = array<i64: 1, 5, 5, 50>}]} {
    %0 = tpu.iota {dimensions = array<i32: 0>} : vector<5x10xi32>
    %1 = tpu.iota {dimensions = array<i32: 1>} : vector<5x10xi32>
    %c2_i32 = arith.constant 2 : i32
    %2 = vector.broadcast %c2_i32 : i32 to vector<5x10xi32>
    %3 = arith.muli %2, %0 : vector<5x10xi32>
    %4 = arith.cmpi eq, %1, %3 : vector<5x10xi32>
    %5 = arith.extui %4 : vector<5x10xi1> to vector<5x10xi32>
    %6 = arith.sitofp %5 : vector<5x10xi32> to vector<5x10xf32>
    %7 = arith.truncf %6 : vector<5x10xf32> to vector<5x10xbf16>
    %c2_i32_0 = arith.constant 2 : i32
    %8 = vector.broadcast %c2_i32_0 : i32 to vector<5x10xi32>
    %9 = arith.muli %8, %0 : vector<5x10xi32>
    %c1_i32 = arith.constant 1 : i32
    %10 = vector.broadcast %c1_i32 : i32 to vector<5x10xi32>
    %11 = arith.addi %9, %10 : vector<5x10xi32>
    %12 = arith.cmpi eq, %1, %11 : vector<5x10xi32>
    %13 = arith.extui %12 : vector<5x10xi1> to vector<5x10xi32>
    %14 = arith.sitofp %13 : vector<5x10xi32> to vector<5x10xf32>
    %15 = arith.truncf %14 : vector<5x10xf32> to vector<5x10xbf16>
    %c0 = arith.constant 0 : index
    %c0_1 = arith.constant 0 : index
    %c0_2 = arith.constant 0 : index
    %c0_3 = arith.constant 0 : index
    %16 = vector.load %arg1[%c0, %c0_1, %c0_2, %c0_3] : memref<1x10x10x50xbf16, #tpu.memory_space<vmem>>, vector<1x1x10x50xbf16>
    %17 = vector.shape_cast %16 : vector<1x1x10x50xbf16> to vector<10x50xbf16>
    %c0_4 = arith.constant 0 : index
    %c1 = arith.constant 1 : index
    %c0_5 = arith.constant 0 : index
    %c0_6 = arith.constant 0 : index
    %18 = vector.load %arg1[%c0_4, %c1, %c0_5, %c0_6] : memref<1x10x10x50xbf16, #tpu.memory_space<vmem>>, vector<1x1x10x50xbf16>
    %19 = vector.shape_cast %18 : vector<1x1x10x50xbf16> to vector<10x50xbf16>
    %20 = arith.maximumf %17, %19 : vector<10x50xbf16>
    %cst = arith.constant dense<0.000000e+00> : vector<5x50xf32>
    %21 = tpu.matmul %7, %20, %cst {dimension_numbers = #tpu.dot_dimension_numbers<[1], [0], [0], [1], [0, 0, 1, 1], [], []>} : vector<5x10xbf16>, vector<10x50xbf16>, vector<5x50xf32> -> vector<5x50xf32>
    %cst_7 = arith.constant dense<0.000000e+00> : vector<5x50xf32>
    %22 = tpu.matmul %15, %20, %cst_7 {dimension_numbers = #tpu.dot_dimension_numbers<[1], [0], [0], [1], [0, 0, 1, 1], [], []>} : vector<5x10xbf16>, vector<10x50xbf16>, vector<5x50xf32> -> vector<5x50xf32>
    %23 = arith.maximumf %21, %22 : vector<5x50xf32>
    %24 = arith.truncf %23 : vector<5x50xf32> to vector<5x50xbf16>
    %c0_8 = arith.constant 0 : index
    %c0_9 = arith.constant 0 : index
    %c0_10 = arith.constant 0 : index
    %c0_11 = arith.constant 0 : index
    %25 = vector.load %arg2[%c0_8, %c0_9, %c0_10, %c0_11] : memref<1x5x5x50xbf16, #tpu.memory_space<vmem>>, vector<1x1x5x50xbf16>
    %26 = vector.shape_cast %25 : vector<1x1x5x50xbf16> to vector<5x50xbf16>
    %27 = vector.shape_cast %24 : vector<5x50xbf16> to vector<1x1x5x50xbf16>
    tpu.vector_store %arg2[%c0_8, %c0_9, %c0_10, %c0_11], %27 {strides = array<i32>} : memref<1x5x5x50xbf16, #tpu.memory_space<vmem>>, vector<1x1x5x50xbf16>,
    %c0_12 = arith.constant 0 : index
    %c2 = arith.constant 2 : index
    %c0_13 = arith.constant 0 : index
    %c0_14 = arith.constant 0 : index
    %28 = vector.load %arg1[%c0_12, %c2, %c0_13, %c0_14] : memref<1x10x10x50xbf16, #tpu.memory_space<vmem>>, vector<1x1x10x50xbf16>
    %29 = vector.shape_cast %28 : vector<1x1x10x50xbf16> to vector<10x50xbf16>
    %c0_15 = arith.constant 0 : index
    %c3 = arith.constant 3 : index
    %c0_16 = arith.constant 0 : index
    %c0_17 = arith.constant 0 : index
    %30 = vector.load %arg1[%c0_15, %c3, %c0_16, %c0_17] : memref<1x10x10x50xbf16, #tpu.memory_space<vmem>>, vector<1x1x10x50xbf16>
    %31 = vector.shape_cast %30 : vector<1x1x10x50xbf16> to vector<10x50xbf16>
    %32 = arith.maximumf %29, %31 : vector<10x50xbf16>
    %cst_18 = arith.constant dense<0.000000e+00> : vector<5x50xf32>
    %33 = tpu.matmul %7, %32, %cst_18 {dimension_numbers = #tpu.dot_dimension_numbers<[1], [0], [0], [1], [0, 0, 1, 1], [], []>} : vector<5x10xbf16>, vector<10x50xbf16>, vector<5x50xf32> -> vector<5x50xf32>
    %cst_19 = arith.constant dense<0.000000e+00> : vector<5x50xf32>
    %34 = tpu.matmul %15, %32, %cst_19 {dimension_numbers = #tpu.dot_dimension_numbers<[1], [0], [0], [1], [0, 0, 1, 1], [], []>} : vector<5x10xbf16>, vector<10x50xbf16>, vector<5x50xf32> -> vector<5x50xf32>
    %35 = arith.maximumf %33, %34 : vector<5x50xf32>
    %36 = arith.truncf %35 : vector<5x50xf32> to vector<5x50xbf16>
    %c0_20 = arith.constant 0 : index
    %c1_21 = arith.constant 1 : index
    %c0_22 = arith.constant 0 : index
    %c0_23 = arith.constant 0 : index
    %37 = vector.load %arg2[%c0_20, %c1_21, %c0_22, %c0_23] : memref<1x5x5x50xbf16, #tpu.memory_space<vmem>>, vector<1x1x5x50xbf16>
    %38 = vector.shape_cast %37 : vector<1x1x5x50xbf16> to vector<5x50xbf16>
    %39 = vector.shape_cast %36 : vector<5x50xbf16> to vector<1x1x5x50xbf16>
    tpu.vector_store %arg2[%c0_20, %c1_21, %c0_22, %c0_23], %39 {strides = array<i32>} : memref<1x5x5x50xbf16, #tpu.memory_space<vmem>>, vector<1x1x5x50xbf16>,
    %c0_24 = arith.constant 0 : index
    %c4 = arith.constant 4 : index
    %c0_25 = arith.constant 0 : index
    %c0_26 = arith.constant 0 : index
    %40 = vector.load %arg1[%c0_24, %c4, %c0_25, %c0_26] : memref<1x10x10x50xbf16, #tpu.memory_space<vmem>>, vector<1x1x10x50xbf16>
    %41 = vector.shape_cast %40 : vector<1x1x10x50xbf16> to vector<10x50xbf16>
    %c0_27 = arith.constant 0 : index
    %c5 = arith.constant 5 : index
    %c0_28 = arith.constant 0 : index
    %c0_29 = arith.constant 0 : index
    %42 = vector.load %arg1[%c0_27, %c5, %c0_28, %c0_29] : memref<1x10x10x50xbf16, #tpu.memory_space<vmem>>, vector<1x1x10x50xbf16>
    %43 = vector.shape_cast %42 : vector<1x1x10x50xbf16> to vector<10x50xbf16>
    %44 = arith.maximumf %41, %43 : vector<10x50xbf16>
    %cst_30 = arith.constant dense<0.000000e+00> : vector<5x50xf32>
    %45 = tpu.matmul %7, %44, %cst_30 {dimension_numbers = #tpu.dot_dimension_numbers<[1], [0], [0], [1], [0, 0, 1, 1], [], []>} : vector<5x10xbf16>, vector<10x50xbf16>, vector<5x50xf32> -> vector<5x50xf32>
    %cst_31 = arith.constant dense<0.000000e+00> : vector<5x50xf32>
    %46 = tpu.matmul %15, %44, %cst_31 {dimension_numbers = #tpu.dot_dimension_numbers<[1], [0], [0], [1], [0, 0, 1, 1], [], []>} : vector<5x10xbf16>, vector<10x50xbf16>, vector<5x50xf32> -> vector<5x50xf32>
    %47 = arith.maximumf %45, %46 : vector<5x50xf32>
    %48 = arith.truncf %47 : vector<5x50xf32> to vector<5x50xbf16>
    %c0_32 = arith.constant 0 : index
    %c2_33 = arith.constant 2 : index
    %c0_34 = arith.constant 0 : index
    %c0_35 = arith.constant 0 : index
    %49 = vector.load %arg2[%c0_32, %c2_33, %c0_34, %c0_35] : memref<1x5x5x50xbf16, #tpu.memory_space<vmem>>, vector<1x1x5x50xbf16>
    %50 = vector.shape_cast %49 : vector<1x1x5x50xbf16> to vector<5x50xbf16>
    %51 = vector.shape_cast %48 : vector<5x50xbf16> to vector<1x1x5x50xbf16>
    tpu.vector_store %arg2[%c0_32, %c2_33, %c0_34, %c0_35], %51 {strides = array<i32>} : memref<1x5x5x50xbf16, #tpu.memory_space<vmem>>, vector<1x1x5x50xbf16>,
    %c0_36 = arith.constant 0 : index
    %c6 = arith.constant 6 : index
    %c0_37 = arith.constant 0 : index
    %c0_38 = arith.constant 0 : index
    %52 = vector.load %arg1[%c0_36, %c6, %c0_37, %c0_38] : memref<1x10x10x50xbf16, #tpu.memory_space<vmem>>, vector<1x1x10x50xbf16>
    %53 = vector.shape_cast %52 : vector<1x1x10x50xbf16> to vector<10x50xbf16>
    %c0_39 = arith.constant 0 : index
    %c7 = arith.constant 7 : index
    %c0_40 = arith.constant 0 : index
    %c0_41 = arith.constant 0 : index
    %54 = vector.load %arg1[%c0_39, %c7, %c0_40, %c0_41] : memref<1x10x10x50xbf16, #tpu.memory_space<vmem>>, vector<1x1x10x50xbf16>
    %55 = vector.shape_cast %54 : vector<1x1x10x50xbf16> to vector<10x50xbf16>
    %56 = arith.maximumf %53, %55 : vector<10x50xbf16>
    %cst_42 = arith.constant dense<0.000000e+00> : vector<5x50xf32>
    %57 = tpu.matmul %7, %56, %cst_42 {dimension_numbers = #tpu.dot_dimension_numbers<[1], [0], [0], [1], [0, 0, 1, 1], [], []>} : vector<5x10xbf16>, vector<10x50xbf16>, vector<5x50xf32> -> vector<5x50xf32>
    %cst_43 = arith.constant dense<0.000000e+00> : vector<5x50xf32>
    %58 = tpu.matmul %15, %56, %cst_43 {dimension_numbers = #tpu.dot_dimension_numbers<[1], [0], [0], [1], [0, 0, 1, 1], [], []>} : vector<5x10xbf16>, vector<10x50xbf16>, vector<5x50xf32> -> vector<5x50xf32>
    %59 = arith.maximumf %57, %58 : vector<5x50xf32>
    %60 = arith.truncf %59 : vector<5x50xf32> to vector<5x50xbf16>
    %c0_44 = arith.constant 0 : index
    %c3_45 = arith.constant 3 : index
    %c0_46 = arith.constant 0 : index
    %c0_47 = arith.constant 0 : index
    %61 = vector.load %arg2[%c0_44, %c3_45, %c0_46, %c0_47] : memref<1x5x5x50xbf16, #tpu.memory_space<vmem>>, vector<1x1x5x50xbf16>
    %62 = vector.shape_cast %61 : vector<1x1x5x50xbf16> to vector<5x50xbf16>
    %63 = vector.shape_cast %60 : vector<5x50xbf16> to vector<1x1x5x50xbf16>
    tpu.vector_store %arg2[%c0_44, %c3_45, %c0_46, %c0_47], %63 {strides = array<i32>} : memref<1x5x5x50xbf16, #tpu.memory_space<vmem>>, vector<1x1x5x50xbf16>,
    %c0_48 = arith.constant 0 : index
    %c8 = arith.constant 8 : index
    %c0_49 = arith.constant 0 : index
    %c0_50 = arith.constant 0 : index
    %64 = vector.load %arg1[%c0_48, %c8, %c0_49, %c0_50] : memref<1x10x10x50xbf16, #tpu.memory_space<vmem>>, vector<1x1x10x50xbf16>
    %65 = vector.shape_cast %64 : vector<1x1x10x50xbf16> to vector<10x50xbf16>
    %c0_51 = arith.constant 0 : index
    %c9 = arith.constant 9 : index
    %c0_52 = arith.constant 0 : index
    %c0_53 = arith.constant 0 : index
    %66 = vector.load %arg1[%c0_51, %c9, %c0_52, %c0_53] : memref<1x10x10x50xbf16, #tpu.memory_space<vmem>>, vector<1x1x10x50xbf16>
    %67 = vector.shape_cast %66 : vector<1x1x10x50xbf16> to vector<10x50xbf16>
    %68 = arith.maximumf %65, %67 : vector<10x50xbf16>
    %cst_54 = arith.constant dense<0.000000e+00> : vector<5x50xf32>
    %69 = tpu.matmul %7, %68, %cst_54 {dimension_numbers = #tpu.dot_dimension_numbers<[1], [0], [0], [1], [0, 0, 1, 1], [], []>} : vector<5x10xbf16>, vector<10x50xbf16>, vector<5x50xf32> -> vector<5x50xf32>
    %cst_55 = arith.constant dense<0.000000e+00> : vector<5x50xf32>
    %70 = tpu.matmul %15, %68, %cst_55 {dimension_numbers = #tpu.dot_dimension_numbers<[1], [0], [0], [1], [0, 0, 1, 1], [], []>} : vector<5x10xbf16>, vector<10x50xbf16>, vector<5x50xf32> -> vector<5x50xf32>
    %71 = arith.maximumf %69, %70 : vector<5x50xf32>
    %72 = arith.truncf %71 : vector<5x50xf32> to vector<5x50xbf16>
    %c0_56 = arith.constant 0 : index
    %c4_57 = arith.constant 4 : index
    %c0_58 = arith.constant 0 : index
    %c0_59 = arith.constant 0 : index
    %73 = vector.load %arg2[%c0_56, %c4_57, %c0_58, %c0_59] : memref<1x5x5x50xbf16, #tpu.memory_space<vmem>>, vector<1x1x5x50xbf16>
    %74 = vector.shape_cast %73 : vector<1x1x5x50xbf16> to vector<5x50xbf16>
    %75 = vector.shape_cast %72 : vector<5x50xbf16> to vector<1x1x5x50xbf16>
    tpu.vector_store %arg2[%c0_56, %c4_57, %c0_58, %c0_59], %75 {strides = array<i32>} : memref<1x5x5x50xbf16, #tpu.memory_space<vmem>>, vector<1x1x5x50xbf16>,
    return
  }
  func.func @transform_0(%arg0: i32) -> (i32, i32, i32, i32) {
    %c0_i32 = arith.constant 0 : i32
    %c0_i32_0 = arith.constant 0 : i32
    %c0_i32_1 = arith.constant 0 : i32
    %c0_i32_2 = arith.constant 0 : i32
    return %arg0, %c0_i32, %c0_i32_0, %c0_i32_1 : i32, i32, i32, i32
  }
  func.func @transform_1(%arg0: i32) -> (i32, i32, i32, i32) {
    %c0_i32 = arith.constant 0 : i32
    %c0_i32_0 = arith.constant 0 : i32
    %c0_i32_1 = arith.constant 0 : i32
    %c0_i32_2 = arith.constant 0 : i32
    return %arg0, %c0_i32, %c0_i32_0, %c0_i32_1 : i32, i32, i32, i32
  }
}

module attributes {stable_mosaic.version = 11 : i64} {
  func.func @_mlp_head_kernel(%arg0: i32, %arg1: memref<2x1250xbf16, #tpu.memory_space<vmem>>, %arg2: memref<1250x500xbf16, #tpu.memory_space<vmem>>, %arg3: memref<1x500xf32, #tpu.memory_space<vmem>>, %arg4: memref<500x10xbf16, #tpu.memory_space<vmem>>, %arg5: memref<1x10xf32, #tpu.memory_space<vmem>>, %arg6: memref<2x10xf32, #tpu.memory_space<vmem>>) attributes {dimension_semantics = [#tpu.dimension_semantics<parallel>], iteration_bounds = array<i64: 1>, scalar_prefetch = 0 : i64, scratch_operands = 0 : i64, tpu.core_type = #tpu.core_type<tc>, window_params = [{transform_indices = @transform_0, window_bounds = array<i64: 2, 1250>}, {pipeline_mode = #tpu.pipeline_mode<synchronous>, transform_indices = @transform_1, window_bounds = array<i64: 1250, 500>}, {pipeline_mode = #tpu.pipeline_mode<synchronous>, transform_indices = @transform_2, window_bounds = array<i64: 1, 500>}, {pipeline_mode = #tpu.pipeline_mode<synchronous>, transform_indices = @transform_3, window_bounds = array<i64: 500, 10>}, {pipeline_mode = #tpu.pipeline_mode<synchronous>, transform_indices = @transform_4, window_bounds = array<i64: 1, 10>}, {transform_indices = @transform_5, window_bounds = array<i64: 2, 10>}]} {
    %c0 = arith.constant 0 : index
    %c0_0 = arith.constant 0 : index
    %0 = vector.load %arg1[%c0, %c0_0] : memref<2x1250xbf16, #tpu.memory_space<vmem>>, vector<2x1250xbf16>
    %c0_1 = arith.constant 0 : index
    %c0_2 = arith.constant 0 : index
    %1 = vector.load %arg2[%c0_1, %c0_2] : memref<1250x500xbf16, #tpu.memory_space<vmem>>, vector<1250x500xbf16>
    %cst = arith.constant dense<0.000000e+00> : vector<2x500xf32>
    %2 = tpu.matmul %0, %1, %cst {dimension_numbers = #tpu.dot_dimension_numbers<[1], [0], [0], [1], [0, 0, 1, 1], [], []>} : vector<2x1250xbf16>, vector<1250x500xbf16>, vector<2x500xf32> -> vector<2x500xf32>
    %c0_3 = arith.constant 0 : index
    %c0_4 = arith.constant 0 : index
    %3 = vector.load %arg3[%c0_3, %c0_4] : memref<1x500xf32, #tpu.memory_space<vmem>>, vector<1x500xf32>
    %4 = vector.broadcast %3 : vector<1x500xf32> to vector<2x500xf32>
    %5 = arith.addf %2, %4 : vector<2x500xf32>
    %cst_5 = arith.constant 0.000000e+00 : f32
    %6 = vector.broadcast %cst_5 : f32 to vector<2x500xf32>
    %7 = arith.maximumf %5, %6 : vector<2x500xf32>
    %8 = arith.truncf %7 : vector<2x500xf32> to vector<2x500xbf16>
    %c0_6 = arith.constant 0 : index
    %c0_7 = arith.constant 0 : index
    %9 = vector.load %arg4[%c0_6, %c0_7] : memref<500x10xbf16, #tpu.memory_space<vmem>>, vector<500x10xbf16>
    %cst_8 = arith.constant dense<0.000000e+00> : vector<2x10xf32>
    %10 = tpu.matmul %8, %9, %cst_8 {dimension_numbers = #tpu.dot_dimension_numbers<[1], [0], [0], [1], [0, 0, 1, 1], [], []>} : vector<2x500xbf16>, vector<500x10xbf16>, vector<2x10xf32> -> vector<2x10xf32>
    %c0_9 = arith.constant 0 : index
    %c0_10 = arith.constant 0 : index
    %11 = vector.load %arg5[%c0_9, %c0_10] : memref<1x10xf32, #tpu.memory_space<vmem>>, vector<1x10xf32>
    %12 = vector.broadcast %11 : vector<1x10xf32> to vector<2x10xf32>
    %13 = arith.addf %10, %12 : vector<2x10xf32>
    %cst_11 = arith.constant dense<0xFF800000> : vector<2xf32>
    %14 = vector.multi_reduction <maximumf>, %13, %cst_11 [1] : vector<2x10xf32> to vector<2xf32>
    %15 = vector.shape_cast %14 : vector<2xf32> to vector<2x1xf32>
    %16 = vector.broadcast %15 : vector<2x1xf32> to vector<2x10xf32>
    %17 = arith.subf %13, %16 : vector<2x10xf32>
    %18 = math.exp %17 : vector<2x10xf32>
    %cst_12 = arith.constant dense<0.000000e+00> : vector<2xf32>
    %19 = vector.multi_reduction <add>, %18, %cst_12 [1] : vector<2x10xf32> to vector<2xf32>
    %20 = vector.shape_cast %19 : vector<2xf32> to vector<2x1xf32>
    %21 = math.log %20 : vector<2x1xf32>
    %22 = vector.broadcast %21 : vector<2x1xf32> to vector<2x10xf32>
    %23 = arith.subf %17, %22 : vector<2x10xf32>
    %c0_13 = arith.constant 0 : index
    %c0_14 = arith.constant 0 : index
    %24 = vector.load %arg6[%c0_13, %c0_14] : memref<2x10xf32, #tpu.memory_space<vmem>>, vector<2x10xf32>
    tpu.vector_store %arg6[%c0_13, %c0_14], %23 {strides = array<i32>} : memref<2x10xf32, #tpu.memory_space<vmem>>, vector<2x10xf32>,
    return
  }
  func.func @transform_0(%arg0: i32) -> (i32, i32) {
    %c0_i32 = arith.constant 0 : i32
    %c0_i32_0 = arith.constant 0 : i32
    return %arg0, %c0_i32 : i32, i32
  }
  func.func @transform_1(%arg0: i32) -> (i32, i32) {
    %c0_i32 = arith.constant 0 : i32
    %c0_i32_0 = arith.constant 0 : i32
    %c0_i32_1 = arith.constant 0 : i32
    return %c0_i32, %c0_i32_0 : i32, i32
  }
  func.func @transform_2(%arg0: i32) -> (i32, i32) {
    %c0_i32 = arith.constant 0 : i32
    %c0_i32_0 = arith.constant 0 : i32
    %c0_i32_1 = arith.constant 0 : i32
    return %c0_i32, %c0_i32_0 : i32, i32
  }
  func.func @transform_3(%arg0: i32) -> (i32, i32) {
    %c0_i32 = arith.constant 0 : i32
    %c0_i32_0 = arith.constant 0 : i32
    %c0_i32_1 = arith.constant 0 : i32
    return %c0_i32, %c0_i32_0 : i32, i32
  }
  func.func @transform_4(%arg0: i32) -> (i32, i32) {
    %c0_i32 = arith.constant 0 : i32
    %c0_i32_0 = arith.constant 0 : i32
    %c0_i32_1 = arith.constant 0 : i32
    return %c0_i32, %c0_i32_0 : i32, i32
  }
  func.func @transform_5(%arg0: i32) -> (i32, i32) {
    %c0_i32 = arith.constant 0 : i32
    %c0_i32_0 = arith.constant 0 : i32
    return %arg0, %c0_i32 : i32, i32
  }
}

</mosaic_0001>

<llo_original>
// kernel: cifar_lenet_forward.5
$region0: #{cifar_lenet_forward.5}
  #allocation0 [shape = 'u32[]', space=smem, size = 0x4, offset = 0x4, fixed_abs, tag = 'smem constant byte address 0x4 - core index']
  #allocation1 [shape = 'u32[72,128]{1,0:T(1,128)}', space=vmem, size = 0x9000, scoped, tag = 'internal scratch']
  %s0 = inlined_call_operand.vmem [shape: bf16[1568,75], index: 0, kind: input, shape index: {}]
  %s1 = inlined_call_operand.vmem [shape: bf16[75,20], index: 1, kind: input, shape index: {}]
  %s2 = inlined_call_operand.vmem [shape: f32[1,20], index: 2, kind: input, shape index: {}]
  %s3 = inlined_call_operand.vmem [shape: bf16[1568,20], index: 3, kind: output, shape index: {}]
  %s4 = sld [smem:[#allocation0]]
  $region89: #{cifar_lenet_forward.5} parent=0
    _
  %s6 = ssub.s32 1, %s4
  %s7 = scalar_select 0, %s6, %s4
  $region1: #{cifar_lenet_forward.5} parent=0
    #allocation2 [shape = 'u8[131072]{0}', space=vmem, size = 0x20000, scoped, tag = 'output window, operand 0']
    loop: start=0, step=1, limit=9
    $region2: #{cifar_lenet_forward.5} parent=1 // loop_pre_header
      _
    $region3: #{cifar_lenet_forward.5} parent=1 // loop_header
      %s9 = sphi 0, %s13
      %p10 = scmp.ge.s32.totalorder %s9, 9
      %s19 = sphi 0, %s21
      %s22 = sphi 0, %s19
      %s23 = sphi 0, %s22
      %s39 = sphi 0, %s23
      %s43 = sphi 0, %s43
      %s45 = sphi 0, %s43
      %s46 = sphi 0, %s45
      %s60 = sphi 0, %s46
      %s64 = sphi 0, %s64
      %s66 = sphi 0, %s64
      %s67 = sphi 0, %s66
      %s81 = sphi 0, %s67
      %s87 = sphi 0, %s89
      %s90 = sphi 0, %s87
      %s91 = sphi 0, %s90
      %s107 = sphi 0, %s91
    $region4: #{cifar_lenet_forward.5} parent=1 // loop_header_branch
      %12 = sbr.rel (%p10) target = $region8
    $region5: #{cifar_lenet_forward.5} parent=1 // loop_body
      %s14 = ssub.s32 %s9, 1
      %s15 = ssub.s32 %s9, 2
      %s16 = sadd.s32 %s9, 1
      %s17 = ssub.s32 %s9, %s16
      %p18 = scmp.eq.s32.totalorder %s17, 0
      %s20 = sadd.s32 %s19, 1
      %s21 = scalar_select %p18, %s19, %s20
      %p24 = pneg %p18
      %p25 = scmp.eq.s32.totalorder %s9, 6
      %p26 = por %p24, %p25
      %p27 = scmp.ne.s32.totalorder %s19, %s22
      %p28 = scmp.eq.s32.totalorder %s9, 0
      %p29 = por %p27, %p28
      %p30 = scmp.ne.s32.totalorder %s19, %s22
      %p31 = scmp.eq.s32.totalorder %s14, 6
      %p32 = por %p30, %p31
      %p33 = scmp.ne.s32.totalorder %s22, %s23
      %p34 = scmp.eq.s32.totalorder %s14, 0
      %p35 = por %p33, %p34
      %p36 = scmp.ne.s32.totalorder %s22, %s23
      %p37 = scmp.eq.s32.totalorder %s15, 6
      %p38 = por %p36, %p37
      %p40 = scmp.ne.s32.totalorder %s23, %s39
      %p41 = scmp.eq.s32.totalorder %s15, 0
      %p42 = por %p40, %p41
      %s44 = sadd.s32 %s43, 1
      %p47 = scmp.eq.s32.totalorder %s9, 6
      %p48 = scmp.ne.s32.totalorder %s43, %s45
      %p49 = scmp.eq.s32.totalorder %s9, 0
      %p50 = por %p48, %p49
      %p51 = scmp.ne.s32.totalorder %s43, %s45
      %p52 = scmp.eq.s32.totalorder %s14, 6
      %p53 = por %p51, %p52
      %p54 = scmp.ne.s32.totalorder %s45, %s46
      %p55 = scmp.eq.s32.totalorder %s14, 0
      %p56 = por %p54, %p55
      %p57 = scmp.ne.s32.totalorder %s45, %s46
      %p58 = scmp.eq.s32.totalorder %s15, 6
      %p59 = por %p57, %p58
      %p61 = scmp.ne.s32.totalorder %s46, %s60
      %p62 = scmp.eq.s32.totalorder %s15, 0
      %p63 = por %p61, %p62
      %s65 = sadd.s32 %s64, 1
      %p68 = scmp.eq.s32.totalorder %s9, 6
      %p69 = scmp.ne.s32.totalorder %s64, %s66
      %p70 = scmp.eq.s32.totalorder %s9, 0
      %p71 = por %p69, %p70
      %p72 = scmp.ne.s32.totalorder %s64, %s66
      %p73 = scmp.eq.s32.totalorder %s14, 6
      %p74 = por %p72, %p73
      %p75 = scmp.ne.s32.totalorder %s66, %s67
      %p76 = scmp.eq.s32.totalorder %s14, 0
      %p77 = por %p75, %p76
      %p78 = scmp.ne.s32.totalorder %s66, %s67
      %p79 = scmp.eq.s32.totalorder %s15, 6
      %p80 = por %p78, %p79
      %p82 = scmp.ne.s32.totalorder %s67, %s81
      %p83 = scmp.eq.s32.totalorder %s15, 0
      %p84 = por %p82, %p83
      %s85 = ssub.s32 %s9, %s16
      %p86 = scmp.eq.s32.totalorder %s85, 0
      %s88 = sadd.s32 %s87, 1
      %s89 = scalar_select %p86, %s87, %s88
      %p92 = pneg %p86
      %p93 = scmp.eq.s32.totalorder %s9, 6
      %p94 = por %p92, %p93
      %p95 = scmp.ne.s32.totalorder %s87, %s90
      %p96 = scmp.eq.s32.totalorder %s9, 0
      %p97 = por %p95, %p96
      %p98 = scmp.ne.s32.totalorder %s87, %s90
      %p99 = scmp.eq.s32.totalorder %s14, 6
      %p100 = por %p98, %p99
      %p101 = scmp.ne.s32.totalorder %s90, %s91
      %p102 = scmp.eq.s32.totalorder %s14, 0
      %p103 = por %p101, %p102
      %p104 = scmp.ne.s32.totalorder %s90, %s91
      %p105 = scmp.eq.s32.totalorder %s15, 6
      %p106 = por %p104, %p105
      %p108 = scmp.ne.s32.totalorder %s91, %s107
      %p109 = scmp.eq.s32.totalorder %s15, 0
      %p110 = por %p108, %p109
      %p111 = scmp.le.s32.totalorder 1, %s9
      %p112 = scmp.lt.s32.totalorder %s9, 8
      %p113 = pnand %p111, %p112
      %p114 = pneg %p113
      // Predicated region
      $region9: #{cifar_lenet_forward.5} parent=5 // pred_check
        _
      $region10: #{cifar_lenet_forward.5} parent=5 // pred_check_branch
        %116 = sbr.rel (%p113) target = $region12
      $region11: #{cifar_lenet_forward.5} parent=5 // pred_region
        %s117 = ssub.s32 %s9, 1
        // Predicated region
        $region13: #{cifar_lenet_forward.5} parent=11 // pred_check
          %p118 = pneg %p56
        $region14: #{cifar_lenet_forward.5} parent=11 // pred_check_branch
          %120 = sbr.rel (%p118) target = $region16
        $region15: #{cifar_lenet_forward.5} parent=11 // pred_region
          _
        $region16: #{cifar_lenet_forward.5} parent=11 // pred_fallthru
          _
        // Predicated region
        $region17: #{cifar_lenet_forward.5} parent=11 // pred_check
          %p121 = pneg %p77
        $region18: #{cifar_lenet_forward.5} parent=11 // pred_check_branch
          %123 = sbr.rel (%p121) target = $region20
        $region19: #{cifar_lenet_forward.5} parent=11 // pred_region
          _
        $region20: #{cifar_lenet_forward.5} parent=11 // pred_fallthru
          _
      $region12: #{cifar_lenet_forward.5} parent=5 // pred_fallthru
        _
      %p124 = scmp.lt.s32.totalorder %s9, 7
      // Predicated region
      $region21: #{cifar_lenet_forward.5} parent=5 // pred_check
        %p125 = pneg %p124
      $region22: #{cifar_lenet_forward.5} parent=5 // pred_check_branch
        %127 = sbr.rel (%p125) target = $region24
      $region23: #{cifar_lenet_forward.5} parent=5 // pred_region
        // Predicated region
        $region25: #{cifar_lenet_forward.5} parent=23 // pred_check
          %p128 = pneg %p29
        $region26: #{cifar_lenet_forward.5} parent=23 // pred_check_branch
          %130 = sbr.rel (%p128) target = $region28
        $region27: #{cifar_lenet_forward.5} parent=23 // pred_region
          %s131 = smul.u32 32, %s9
          %s132 = ssub.s32 196, %s131
          %p133 = scmp.lt.s32.totalorder %s132, 32
          %s134 = scalar_select %p133, %s132, 32
          %s135 = smul.u32 4, %s134
          %p136 = scmp.lt.s32.totalorder %s131, 195
          %s137 = scalar_select %p136, %s131, 195
          %s138 = smul.addr %s137, 4
          %s139 = scalar_lea.vmem %s0, %s138
          %s140 = smul.u32 32, %s9
          %s141 = ssub.s32 196, %s140
          %p142 = scmp.lt.s32.totalorder %s141, 32
          %s143 = scalar_select %p142, %s141, 32
          %s144 = smul.u32 4, %s143
        $region28: #{cifar_lenet_forward.5} parent=23 // pred_fallthru
          _
      $region24: #{cifar_lenet_forward.5} parent=5 // pred_fallthru
        _
      %p145 = scmp.le.s32.totalorder 1, %s9
      %p146 = scmp.lt.s32.totalorder %s9, 8
      %p147 = pnand %p145, %p146
      %p148 = pneg %p147
      // Predicated region
      $region29: #{cifar_lenet_forward.5} parent=5 // pred_check
        _
      $region30: #{cifar_lenet_forward.5} parent=5 // pred_check_branch
        %150 = sbr.rel (%p147) target = $region32
      $region31: #{cifar_lenet_forward.5} parent=5 // pred_region
        %s151 = ssub.s32 %s9, 1
        %s152 = smul.u32 32, %s14
        %s153 = ssub.s32 196, %s152
        %p154 = scmp.lt.s32.totalorder %s153, 32
        %s155 = scalar_select %p154, %s153, 32
        %s156 = smul.u32 4, %s155
        %p157 = scmp.lt.s32.totalorder %s152, 195
        %s158 = scalar_select %p157, %s152, 195
        %s159 = smul.addr %s158, 4
        %s160 = scalar_lea.vmem %s0, %s159
        %p161 = pneg %p35
        %p162 = pneg %p32
        %p163 = pneg %p56
        %p164 = pneg %p53
        %p165 = pneg %p77
        %p166 = pneg %p74
        %p167 = pneg %p103
        %p168 = pneg %p100
        %s169 = sand.u32 %s90, 1
        %s170 = sand.u32 %s90, 1
        %s171 = smul.addr %s170, 128
        %s172 = scalar_lea.vmem [#allocation2], %s171
        %s173 = smul.u32 32, %s14
        %s174 = ssub.s32 196, %s173
        %p175 = scmp.lt.s32.totalorder %s174, 32
        %s176 = scalar_select %p175, %s174, 32
        %s177 = smul.u32 4, %s176
        %p178 = scmp.lt.s32.totalorder %s173, 195
        %s179 = scalar_select %p178, %s173, 195
        %s180 = smul.addr %s179, 4
        %s181 = scalar_lea.vmem %s0, %s180
        %s182 = smul.u32 32, %s14
        %s183 = ssub.s32 196, %s182
        %p184 = scmp.lt.s32.totalorder %s183, 32
        %s185 = scalar_select %p184, %s183, 32
        %s186 = smul.u32 4, %s185
        %s187 = smul.u32 32, %s14
        %s188 = ssub.s32 196, %s187
        %p189 = scmp.lt.s32.totalorder %s188, 32
        %s190 = scalar_select %p189, %s188, 32
        %s191 = smul.u32 4, %s190
        %v193 = vld [vmem:[%s181] sm:$0xf]
        %v194 = vld [vmem:[%s181 + $0x4] sm:$0xf]
        %v195 = vld [vmem:[%s181 + $0x8] sm:$0xf]
        %v196 = vld [vmem:[%s181 + $0xc] sm:$0xf]
        %v197 = vld [vmem:[%s181 + $0x10] sm:$0xf]
        %v198 = vld [vmem:[%s181 + $0x14] sm:$0xf]
        %v199 = vld [vmem:[%s181 + $0x18] sm:$0xf]
        %v200 = vld [vmem:[%s181 + $0x1c] sm:$0xf]
        %v201 = vld [vmem:[%s181 + $0x20] sm:$0xf]
        %v202 = vld [vmem:[%s181 + $0x24] sm:$0xf]
        %v203 = vld [vmem:[%s181 + $0x28] sm:$0xf]
        %v204 = vld [vmem:[%s181 + $0x2c] sm:$0xf]
        %v205 = vld [vmem:[%s181 + $0x30] sm:$0xf]
        %v206 = vld [vmem:[%s181 + $0x34] sm:$0xf]
        %v207 = vld [vmem:[%s181 + $0x38] sm:$0xf]
        %v208 = vld [vmem:[%s181 + $0x3c] sm:$0xf]
        %v209 = vld [vmem:[%s181 + $0x40] sm:$0xf]
        %v210 = vld [vmem:[%s181 + $0x44] sm:$0xf]
        %v211 = vld [vmem:[%s181 + $0x48] sm:$0xf]
        %v212 = vld [vmem:[%s181 + $0x4c] sm:$0xf]
        %v213 = vld [vmem:[%s181 + $0x50] sm:$0xf]
        %v214 = vld [vmem:[%s181 + $0x54] sm:$0xf]
        %v215 = vld [vmem:[%s181 + $0x58] sm:$0xf]
        %v216 = vld [vmem:[%s181 + $0x5c] sm:$0xf]
        %v217 = vld [vmem:[%s181 + $0x60] sm:$0xf]
        %v218 = vld [vmem:[%s181 + $0x64] sm:$0xf]
        %v219 = vld [vmem:[%s181 + $0x68] sm:$0xf]
        %v220 = vld [vmem:[%s181 + $0x6c] sm:$0xf]
        %v221 = vld [vmem:[%s181 + $0x70] sm:$0xf]
        %v222 = vld [vmem:[%s181 + $0x74] sm:$0xf]
        %v223 = vld [vmem:[%s181 + $0x78] sm:$0xf]
        %v224 = vld [vmem:[%s181 + $0x7c] sm:$0xf]
        %v225 = vld [vmem:[%s1] sm:$0xf]
        %v226 = vld [vmem:[%s1 + $0x4] sm:$0xf]
        %v227 = vld [vmem:[%s1 + $0x8] sm:$0xf]
        %v228 = vld [vmem:[%s1 + $0xc] sm:$0xf]
        %v229 = vld [vmem:[%s1 + $0x10] sm:$0xf]
        %v230 = vld [vmem:[%s1 + $0x14] sm:$0xf]
        %v231 = vld [vmem:[%s1 + $0x18] sm:$0xf]
        %v232 = vld [vmem:[%s1 + $0x1c] sm:$0xf]
        %v233 = vld [vmem:[%s1 + $0x20] sm:$0xf]
        %v234 = vld [vmem:[%s1 + $0x24] sm:$0x3]
        %v235 = vld [vmem:[%s2] sm:$0x1]
        %v237 = vperm.slane %v235, 0
        %v271 = vunpack.c.l.b16 %v193
        %v272 = vunpack.c.l.b16 %v194
        %v273 = vunpack.c.l.b16 %v195
        %v274 = vunpack.c.l.b16 %v196
        %v275 = vunpack.c.l.b16 %v197
        %v276 = vunpack.c.l.b16 %v198
        %v277 = vunpack.c.l.b16 %v199
        %v278 = vunpack.c.l.b16 %v200
        %v279 = vunpack.c.l.b16 %v201
        %v280 = vunpack.c.l.b16 %v202
        %v281 = vunpack.c.l.b16 %v203
        %v282 = vunpack.c.l.b16 %v204
        %v283 = vunpack.c.l.b16 %v205
        %v284 = vunpack.c.l.b16 %v206
        %v285 = vunpack.c.l.b16 %v207
        %v286 = vunpack.c.l.b16 %v208
        %v287 = vunpack.c.l.b16 %v209
        %v288 = vunpack.c.l.b16 %v210
        %v289 = vunpack.c.l.b16 %v211
        %v290 = vunpack.c.l.b16 %v212
        %v291 = vunpack.c.l.b16 %v213
        %v292 = vunpack.c.l.b16 %v214
        %v293 = vunpack.c.l.b16 %v215
        %v294 = vunpack.c.l.b16 %v216
        %v295 = vunpack.c.l.b16 %v217
        %v296 = vunpack.c.l.b16 %v218
        %v297 = vunpack.c.l.b16 %v219
        %v298 = vunpack.c.l.b16 %v220
        %v299 = vunpack.c.l.b16 %v221
        %v300 = vunpack.c.l.b16 %v222
        %v301 = vunpack.c.l.b16 %v223
        %v302 = vunpack.c.l.b16 %v224
        %v303 = vpack.c.b16 %v272, %v271
        %v304 = vpack.c.b16 %v274, %v273
        %v305 = vpack.c.b16 %v276, %v275
        %v306 = vpack.c.b16 %v278, %v277
        %v307 = vpack.c.b16 %v280, %v279
        %v308 = vpack.c.b16 %v282, %v281
        %v309 = vpack.c.b16 %v284, %v283
        %v310 = vpack.c.b16 %v286, %v285
        %v311 = vpack.c.b16 %v288, %v287
        %v312 = vpack.c.b16 %v290, %v289
        %v313 = vpack.c.b16 %v292, %v291
        %v314 = vpack.c.b16 %v294, %v293
        %v315 = vpack.c.b16 %v296, %v295
        %v316 = vpack.c.b16 %v298, %v297
        %v317 = vpack.c.b16 %v300, %v299
        %v318 = vpack.c.b16 %v302, %v301
        %v329 = vunpack.c.l.b16 %v225
        %v330 = vunpack.c.l.b16 %v226
        %v331 = vunpack.c.l.b16 %v227
        %v332 = vunpack.c.l.b16 %v228
        %v333 = vunpack.c.l.b16 %v229
        %v334 = vunpack.c.l.b16 %v230
        %v335 = vunpack.c.l.b16 %v231
        %v336 = vunpack.c.l.b16 %v232
        %v337 = vunpack.c.l.b16 %v233
        %v338 = vunpack.c.l.b16 %v234
        %v339 = vpack.c.b16 %v330, %v329
        %v340 = vpack.c.b16 %v332, %v331
        %v341 = vpack.c.b16 %v334, %v333
        %v342 = vpack.c.b16 %v336, %v335
        %v343 = vpack.c.b16 %v338, %v337
        %vm348 = vcmask 613376
        %v350 = vsel %vm348, %v303, 0
        %v353 = vsel %vm348, %v304, 0
        %v356 = vsel %vm348, %v305, 0
        %v359 = vsel %vm348, %v306, 0
        %v362 = vsel %vm348, %v307, 0
        %v365 = vsel %vm348, %v308, 0
        %v368 = vsel %vm348, %v309, 0
        %v371 = vsel %vm348, %v310, 0
        %v374 = vsel %vm348, %v311, 0
        %v377 = vsel %vm348, %v312, 0
        %v380 = vsel %vm348, %v313, 0
        %v383 = vsel %vm348, %v314, 0
        %v386 = vsel %vm348, %v315, 0
        %v389 = vsel %vm348, %v316, 0
        %v392 = vsel %vm348, %v317, 0
        %v395 = vsel %vm348, %v318, 0
        %vm397 = vcmask 1044480
        %vm398 = vcmask 1045504
        %v399 = vsel %vm397, 4294967295, 65535
        %v400 = vsel %vm398, %v399, 0
        %v402 = vand.u32 %v343, %v400
        %404 = vmatpush.bf16.msra.mxu0 0
        %405 = vmatpush.bf16.msra.mxu0 0
        %406 = vmatpush.bf16.msra.mxu0 0
        %407 = vmatpush.bf16.msra.mxu0 %v402
        %408 = vmatpush.bf16.msra.mxu0 %v342
        %409 = vmatpush.bf16.msra.mxu0 %v341
        %410 = vmatpush.bf16.msra.mxu0 %v340
        %411 = vmatpush.bf16.msra.mxu0 %v339
        %412 = vmatmul.bf16.gmra.mxu0 %v350
        %v413 = vpop.f32.mrf.mxu0
        %v414 = vadd.f32 %v237, %v413
        %v415 = vpop.f32.mrf.mxu0
        %v416 = vadd.f32 %v237, %v415
        %417 = vmatmul.bf16.gmra.mxu0 %v353
        %v418 = vpop.f32.mrf.mxu0
        %v419 = vadd.f32 %v237, %v418
        %v420 = vpop.f32.mrf.mxu0
        %v421 = vadd.f32 %v237, %v420
        %422 = vmatmul.bf16.gmra.mxu0 %v356
        %v423 = vpop.f32.mrf.mxu0
        %v424 = vadd.f32 %v237, %v423
        %v425 = vpop.f32.mrf.mxu0
        %v426 = vadd.f32 %v237, %v425
        %427 = vmatmul.bf16.gmra.mxu0 %v359
        %v428 = vpop.f32.mrf.mxu0
        %v429 = vadd.f32 %v237, %v428
        %v430 = vpop.f32.mrf.mxu0
        %v431 = vadd.f32 %v237, %v430
        %432 = vmatmul.bf16.gmra.mxu0 %v362
        %v433 = vpop.f32.mrf.mxu0
        %v434 = vadd.f32 %v237, %v433
        %v435 = vpop.f32.mrf.mxu0
        %v436 = vadd.f32 %v237, %v435
        %437 = vmatmul.bf16.gmra.mxu0 %v365
        %v438 = vpop.f32.mrf.mxu0
        %v439 = vadd.f32 %v237, %v438
        %v440 = vpop.f32.mrf.mxu0
        %v441 = vadd.f32 %v237, %v440
        %442 = vmatmul.bf16.gmra.mxu0 %v368
        %v443 = vpop.f32.mrf.mxu0
        %v444 = vadd.f32 %v237, %v443
        %v445 = vpop.f32.mrf.mxu0
        %v446 = vadd.f32 %v237, %v445
        %447 = vmatmul.bf16.gmra.mxu0 %v371
        %v448 = vpop.f32.mrf.mxu0
        %v449 = vadd.f32 %v237, %v448
        %v450 = vpop.f32.mrf.mxu0
        %v451 = vadd.f32 %v237, %v450
        %452 = vmatmul.bf16.gmra.mxu0 %v374
        %v453 = vpop.f32.mrf.mxu0
        %v454 = vadd.f32 %v237, %v453
        %v455 = vpop.f32.mrf.mxu0
        %v456 = vadd.f32 %v237, %v455
        %457 = vmatmul.bf16.gmra.mxu0 %v377
        %v458 = vpop.f32.mrf.mxu0
        %v459 = vadd.f32 %v237, %v458
        %v460 = vpop.f32.mrf.mxu0
        %v461 = vadd.f32 %v237, %v460
        %462 = vmatmul.bf16.gmra.mxu0 %v380
        %v463 = vpop.f32.mrf.mxu0
        %v464 = vadd.f32 %v237, %v463
        %v465 = vpop.f32.mrf.mxu0
        %v466 = vadd.f32 %v237, %v465
        %467 = vmatmul.bf16.gmra.mxu0 %v383
        %v468 = vpop.f32.mrf.mxu0
        %v469 = vadd.f32 %v237, %v468
        %v470 = vpop.f32.mrf.mxu0
        %v471 = vadd.f32 %v237, %v470
        %472 = vmatmul.bf16.gmra.mxu0 %v386
        %v473 = vpop.f32.mrf.mxu0
        %v474 = vadd.f32 %v237, %v473
        %v475 = vpop.f32.mrf.mxu0
        %v476 = vadd.f32 %v237, %v475
        %477 = vmatmul.bf16.gmra.mxu0 %v389
        %v478 = vpop.f32.mrf.mxu0
        %v479 = vadd.f32 %v237, %v478
        %v480 = vpop.f32.mrf.mxu0
        %v481 = vadd.f32 %v237, %v480
        %482 = vmatmul.bf16.gmra.mxu0 %v392
        %v483 = vpop.f32.mrf.mxu0
        %v484 = vadd.f32 %v237, %v483
        %v485 = vpop.f32.mrf.mxu0
        %v486 = vadd.f32 %v237, %v485
        %487 = vmatmul.bf16.gmra.mxu0 %v395
        %v488 = vpop.f32.mrf.mxu0
        %v489 = vadd.f32 %v237, %v488
        %v490 = vpop.f32.mrf.mxu0
        %v491 = vadd.f32 %v237, %v490
        %492 = vdwg.mxu0
        %v493 = vmax.f32 %v414, 0.0
        %v494 = vmax.f32 %v416, 0.0
        %v495 = vmax.f32 %v419, 0.0
        %v496 = vmax.f32 %v421, 0.0
        %v497 = vmax.f32 %v424, 0.0
        %v498 = vmax.f32 %v426, 0.0
        %v499 = vmax.f32 %v429, 0.0
        %v500 = vmax.f32 %v431, 0.0
        %v501 = vmax.f32 %v434, 0.0
        %v502 = vmax.f32 %v436, 0.0
        %v503 = vmax.f32 %v439, 0.0
        %v504 = vmax.f32 %v441, 0.0
        %v505 = vmax.f32 %v444, 0.0
        %v506 = vmax.f32 %v446, 0.0
        %v507 = vmax.f32 %v449, 0.0
        %v508 = vmax.f32 %v451, 0.0
        %v509 = vmax.f32 %v454, 0.0
        %v510 = vmax.f32 %v456, 0.0
        %v511 = vmax.f32 %v459, 0.0
        %v512 = vmax.f32 %v461, 0.0
        %v513 = vmax.f32 %v464, 0.0
        %v514 = vmax.f32 %v466, 0.0
        %v515 = vmax.f32 %v469, 0.0
        %v516 = vmax.f32 %v471, 0.0
        %v517 = vmax.f32 %v474, 0.0
        %v518 = vmax.f32 %v476, 0.0
        %v519 = vmax.f32 %v479, 0.0
        %v520 = vmax.f32 %v481, 0.0
        %v521 = vmax.f32 %v484, 0.0
        %v522 = vmax.f32 %v486, 0.0
        %v523 = vmax.f32 %v489, 0.0
        %v524 = vmax.f32 %v491, 0.0
        %v525 = vpack.c.bf16 %v493, %v493
        %v526 = vpack.c.bf16 %v494, %v494
        %v527 = vpack.c.bf16 %v495, %v495
        %v528 = vpack.c.bf16 %v496, %v496
        %v529 = vpack.c.bf16 %v497, %v497
        %v530 = vpack.c.bf16 %v498, %v498
        %v531 = vpack.c.bf16 %v499, %v499
        %v532 = vpack.c.bf16 %v500, %v500
        %v533 = vpack.c.bf16 %v501, %v501
        %v534 = vpack.c.bf16 %v502, %v502
        %v535 = vpack.c.bf16 %v503, %v503
        %v536 = vpack.c.bf16 %v504, %v504
        %v537 = vpack.c.bf16 %v505, %v505
        %v538 = vpack.c.bf16 %v506, %v506
        %v539 = vpack.c.bf16 %v507, %v507
        %v540 = vpack.c.bf16 %v508, %v508
        %v541 = vpack.c.bf16 %v509, %v509
        %v542 = vpack.c.bf16 %v510, %v510
        %v543 = vpack.c.bf16 %v511, %v511
        %v544 = vpack.c.bf16 %v512, %v512
        %v545 = vpack.c.bf16 %v513, %v513
        %v546 = vpack.c.bf16 %v514, %v514
        %v547 = vpack.c.bf16 %v515, %v515
        %v548 = vpack.c.bf16 %v516, %v516
        %v549 = vpack.c.bf16 %v517, %v517
        %v550 = vpack.c.bf16 %v518, %v518
        %v551 = vpack.c.bf16 %v519, %v519
        %v552 = vpack.c.bf16 %v520, %v520
        %v553 = vpack.c.bf16 %v521, %v521
        %v554 = vpack.c.bf16 %v522, %v522
        %v555 = vpack.c.bf16 %v523, %v523
        %v556 = vpack.c.bf16 %v524, %v524
        %vm557 = vcmask 158720
        %558 = vst.msk [vmem:[%s172] sm:$0xf] %vm557, %v525
        %559 = vst.msk [vmem:[%s172 + $0x4] sm:$0xf] %vm557, %v526
        %560 = vst.msk [vmem:[%s172 + $0x8] sm:$0xf] %vm557, %v527
        %561 = vst.msk [vmem:[%s172 + $0xc] sm:$0xf] %vm557, %v528
        %562 = vst.msk [vmem:[%s172 + $0x10] sm:$0xf] %vm557, %v529
        %563 = vst.msk [vmem:[%s172 + $0x14] sm:$0xf] %vm557, %v530
        %564 = vst.msk [vmem:[%s172 + $0x18] sm:$0xf] %vm557, %v531
        %565 = vst.msk [vmem:[%s172 + $0x1c] sm:$0xf] %vm557, %v532
        %566 = vst.msk [vmem:[%s172 + $0x20] sm:$0xf] %vm557, %v533
        %567 = vst.msk [vmem:[%s172 + $0x24] sm:$0xf] %vm557, %v534
        %568 = vst.msk [vmem:[%s172 + $0x28] sm:$0xf] %vm557, %v535
        %569 = vst.msk [vmem:[%s172 + $0x2c] sm:$0xf] %vm557, %v536
        %570 = vst.msk [vmem:[%s172 + $0x30] sm:$0xf] %vm557, %v537
        %571 = vst.msk [vmem:[%s172 + $0x34] sm:$0xf] %vm557, %v538
        %572 = vst.msk [vmem:[%s172 + $0x38] sm:$0xf] %vm557, %v539
        %573 = vst.msk [vmem:[%s172 + $0x3c] sm:$0xf] %vm557, %v540
        %574 = vst.msk [vmem:[%s172 + $0x40] sm:$0xf] %vm557, %v541
        %575 = vst.msk [vmem:[%s172 + $0x44] sm:$0xf] %vm557, %v542
        %576 = vst.msk [vmem:[%s172 + $0x48] sm:$0xf] %vm557, %v543
        %577 = vst.msk [vmem:[%s172 + $0x4c] sm:$0xf] %vm557, %v544
        %578 = vst.msk [vmem:[%s172 + $0x50] sm:$0xf] %vm557, %v545
        %579 = vst.msk [vmem:[%s172 + $0x54] sm:$0xf] %vm557, %v546
        %580 = vst.msk [vmem:[%s172 + $0x58] sm:$0xf] %vm557, %v547
        %581 = vst.msk [vmem:[%s172 + $0x5c] sm:$0xf] %vm557, %v548
        %582 = vst.msk [vmem:[%s172 + $0x60] sm:$0xf] %vm557, %v549
        %583 = vst.msk [vmem:[%s172 + $0x64] sm:$0xf] %vm557, %v550
        %584 = vst.msk [vmem:[%s172 + $0x68] sm:$0xf] %vm557, %v551
        %585 = vst.msk [vmem:[%s172 + $0x6c] sm:$0xf] %vm557, %v552
        %586 = vst.msk [vmem:[%s172 + $0x70] sm:$0xf] %vm557, %v553
        %587 = vst.msk [vmem:[%s172 + $0x74] sm:$0xf] %vm557, %v554
        %588 = vst.msk [vmem:[%s172 + $0x78] sm:$0xf] %vm557, %v555
        %589 = vst.msk [vmem:[%s172 + $0x7c] sm:$0xf] %vm557, %v556
        %s590 = sand.u32 %s90, 1
        %s591 = sand.u32 %s90, 1
        %s592 = smul.addr %s591, 128
        %s593 = scalar_lea.vmem [#allocation2], %s592
        // Predicated region
        $region33: #{cifar_lenet_forward.5} parent=31 // pred_check
          %p594 = pneg %p100
        $region34: #{cifar_lenet_forward.5} parent=31 // pred_check_branch
          %596 = sbr.rel (%p594) target = $region36
        $region35: #{cifar_lenet_forward.5} parent=31 // pred_region
          %s597 = smul.u32 32, %s14
          %s598 = ssub.s32 196, %s597
          %p599 = scmp.lt.s32.totalorder %s598, 32
          %s600 = scalar_select %p599, %s598, 32
          %s601 = smul.u32 4, %s600
          %p602 = scmp.ne.s32.totalorder 0, %s601
          %s603 = smul.addr %s597, 4
          %s604 = scalar_lea.vmem %s3, %s603
          // Predicated region
          $region37: #{cifar_lenet_forward.5} parent=35 // pred_check
            %p605 = pneg %p602
          $region38: #{cifar_lenet_forward.5} parent=35 // pred_check_branch
            %607 = sbr.rel (%p605) target = $region40
          $region39: #{cifar_lenet_forward.5} parent=35 // pred_region
            // Predicated region
            $region41: #{cifar_lenet_forward.5} parent=39 // pred_check
              _
            $region42: #{cifar_lenet_forward.5} parent=39 // pred_check_branch
              %609 = sbr.rel target = $region44
            $region43: #{cifar_lenet_forward.5} parent=39 // pred_region
              // Predicated region
              $region63: #{cifar_lenet_forward.5} parent=43 // pred_check
                _
              $region64: #{cifar_lenet_forward.5} parent=43 // pred_check_branch
                %721 = sbr.rel (0) target = $region66
              $region65: #{cifar_lenet_forward.5} parent=43 // pred_region
                %s723 = ssub.s32 16, 1
                %s724 = sshrl.u32 %s600, 5
                // While loop
                $region67: #{cifar_lenet_forward.5} parent=65 // loop_pre_header
                  _
                $region68: #{cifar_lenet_forward.5} parent=65 // loop_header
                  %s726 = sphi 0, %s728
                  %p727 = scmp.ge.s32.totalorder %s726, %s724
                  %s731 = sphi 0, %s800
                  %s732 = sphi %s593, %s803
                  %s733 = sphi %s604, %s804
                $region69: #{cifar_lenet_forward.5} parent=65 // loop_header_branch
                  %730 = sbr.rel (%p727) target = $region73
                $region70: #{cifar_lenet_forward.5} parent=65 // loop_body
                  %v734 = vld [vmem:[%s732] sm:%s723]
                  %735 = vst [vmem:[%s733] sm:%s723] %v734
                  %v736 = vld [vmem:[%s732 + $0x4] sm:%s723]
                  %737 = vst [vmem:[%s733 + $0x4] sm:%s723] %v736
                  %v738 = vld [vmem:[%s732 + $0x8] sm:%s723]
                  %739 = vst [vmem:[%s733 + $0x8] sm:%s723] %v738
                  %v740 = vld [vmem:[%s732 + $0xc] sm:%s723]
                  %741 = vst [vmem:[%s733 + $0xc] sm:%s723] %v740
                  %v742 = vld [vmem:[%s732 + $0x10] sm:%s723]
                  %743 = vst [vmem:[%s733 + $0x10] sm:%s723] %v742
                  %v744 = vld [vmem:[%s732 + $0x14] sm:%s723]
                  %745 = vst [vmem:[%s733 + $0x14] sm:%s723] %v744
                  %v746 = vld [vmem:[%s732 + $0x18] sm:%s723]
                  %747 = vst [vmem:[%s733 + $0x18] sm:%s723] %v746
                  %v748 = vld [vmem:[%s732 + $0x1c] sm:%s723]
                  %749 = vst [vmem:[%s733 + $0x1c] sm:%s723] %v748
                  %v750 = vld [vmem:[%s732 + $0x20] sm:%s723]
                  %751 = vst [vmem:[%s733 + $0x20] sm:%s723] %v750
                  %v752 = vld [vmem:[%s732 + $0x24] sm:%s723]
                  %753 = vst [vmem:[%s733 + $0x24] sm:%s723] %v752
                  %v754 = vld [vmem:[%s732 + $0x28] sm:%s723]
                  %755 = vst [vmem:[%s733 + $0x28] sm:%s723] %v754
                  %v756 = vld [vmem:[%s732 + $0x2c] sm:%s723]
                  %757 = vst [vmem:[%s733 + $0x2c] sm:%s723] %v756
                  %v758 = vld [vmem:[%s732 + $0x30] sm:%s723]
                  %759 = vst [vmem:[%s733 + $0x30] sm:%s723] %v758
                  %v760 = vld [vmem:[%s732 + $0x34] sm:%s723]
                  %761 = vst [vmem:[%s733 + $0x34] sm:%s723] %v760
                  %v762 = vld [vmem:[%s732 + $0x38] sm:%s723]
                  %763 = vst [vmem:[%s733 + $0x38] sm:%s723] %v762
                  %v764 = vld [vmem:[%s732 + $0x3c] sm:%s723]
                  %765 = vst [vmem:[%s733 + $0x3c] sm:%s723] %v764
                  %v766 = vld [vmem:[%s732 + $0x40] sm:%s723]
                  %767 = vst [vmem:[%s733 + $0x40] sm:%s723] %v766
                  %v768 = vld [vmem:[%s732 + $0x44] sm:%s723]
                  %769 = vst [vmem:[%s733 + $0x44] sm:%s723] %v768
                  %v770 = vld [vmem:[%s732 + $0x48] sm:%s723]
                  %771 = vst [vmem:[%s733 + $0x48] sm:%s723] %v770
                  %v772 = vld [vmem:[%s732 + $0x4c] sm:%s723]
                  %773 = vst [vmem:[%s733 + $0x4c] sm:%s723] %v772
                  %v774 = vld [vmem:[%s732 + $0x50] sm:%s723]
                  %775 = vst [vmem:[%s733 + $0x50] sm:%s723] %v774
                  %v776 = vld [vmem:[%s732 + $0x54] sm:%s723]
                  %777 = vst [vmem:[%s733 + $0x54] sm:%s723] %v776
                  %v778 = vld [vmem:[%s732 + $0x58] sm:%s723]
                  %779 = vst [vmem:[%s733 + $0x58] sm:%s723] %v778
                  %v780 = vld [vmem:[%s732 + $0x5c] sm:%s723]
                  %781 = vst [vmem:[%s733 + $0x5c] sm:%s723] %v780
                  %v782 = vld [vmem:[%s732 + $0x60] sm:%s723]
                  %783 = vst [vmem:[%s733 + $0x60] sm:%s723] %v782
                  %v784 = vld [vmem:[%s732 + $0x64] sm:%s723]
                  %785 = vst [vmem:[%s733 + $0x64] sm:%s723] %v784
                  %v786 = vld [vmem:[%s732 + $0x68] sm:%s723]
                  %787 = vst [vmem:[%s733 + $0x68] sm:%s723] %v786
                  %v788 = vld [vmem:[%s732 + $0x6c] sm:%s723]
                  %789 = vst [vmem:[%s733 + $0x6c] sm:%s723] %v788
                  %v790 = vld [vmem:[%s732 + $0x70] sm:%s723]
                  %791 = vst [vmem:[%s733 + $0x70] sm:%s723] %v790
                  %v792 = vld [vmem:[%s732 + $0x74] sm:%s723]
                  %793 = vst [vmem:[%s733 + $0x74] sm:%s723] %v792
                  %v794 = vld [vmem:[%s732 + $0x78] sm:%s723]
                  %795 = vst [vmem:[%s733 + $0x78] sm:%s723] %v794
                  %v796 = vld [vmem:[%s732 + $0x7c] sm:%s723]
                  %797 = vst [vmem:[%s733 + $0x7c] sm:%s723] %v796
                  %s798 = sadd.s32 1, %s731
                  %p799 = scmp.ge.s32.totalorder %s798, %s724
                  %s800 = scalar_select %p799, 0, %s798
                  %s801 = smul.u32 %s800, 128
                  %s802 = smul.u32 %s800, 128
                  %s803 = scalar_lea.vmem %s593, %s801 [#allocation2]
                  %s804 = scalar_lea.vmem %s604, %s802
                $region71: #{cifar_lenet_forward.5} parent=65 // loop_footer
                  %s728 = sadd.s32 %s726, 1
                $region72: #{cifar_lenet_forward.5} parent=65 // loop_footer_branch
                  %725 = sbr.rel target = $region68
                $region73: #{cifar_lenet_forward.5} parent=65 // loop_exit
                  _
                %s805 = sshrl.u32 %s600, 5
                %s806 = sand.u32 %s600, 31
                %s807 = smul.u32 %s805, 32
                %s808 = smul.u32 4, %s807
                %s809 = scalar_lea.vmem %s593, %s808 [#allocation2]
                %s810 = smul.u32 4, %s807
                %s811 = scalar_lea.vmem %s604, %s810
                // While loop
                $region74: #{cifar_lenet_forward.5} parent=65 // loop_pre_header
                  _
                $region75: #{cifar_lenet_forward.5} parent=65 // loop_header
                  %s813 = sphi 0, %s815
                  %p814 = scmp.ge.s32.totalorder %s813, %s806
                  %s818 = sphi 0, %s825
                  %s819 = sphi %s809, %s828
                  %s820 = sphi %s811, %s829
                $region76: #{cifar_lenet_forward.5} parent=65 // loop_header_branch
                  %817 = sbr.rel (%p814) target = $region80
                $region77: #{cifar_lenet_forward.5} parent=65 // loop_body
                  %v821 = vld [vmem:[%s819] sm:%s723]
                  %822 = vst [vmem:[%s820] sm:%s723] %v821
                  %s823 = sadd.s32 1, %s818
                  %p824 = scmp.ge.s32.totalorder %s823, %s806
                  %s825 = scalar_select %p824, 0, %s823
                  %s826 = smul.u32 %s825, 4
                  %s827 = smul.u32 %s825, 4
                  %s828 = scalar_lea.vmem %s809, %s826 [#allocation2]
                  %s829 = scalar_lea.vmem %s811, %s827
                $region78: #{cifar_lenet_forward.5} parent=65 // loop_footer
                  %s815 = sadd.s32 %s813, 1
                $region79: #{cifar_lenet_forward.5} parent=65 // loop_footer_branch
                  %812 = sbr.rel target = $region75
                $region80: #{cifar_lenet_forward.5} parent=65 // loop_exit
                  _
              $region66: #{cifar_lenet_forward.5} parent=43 // pred_fallthru
                _
            $region44: #{cifar_lenet_forward.5} parent=39 // pred_fallthru
              _
            // Predicated region
            $region45: #{cifar_lenet_forward.5} parent=39 // pred_check
              _
            $region46: #{cifar_lenet_forward.5} parent=39 // pred_check_branch
              %611 = sbr.rel (0) target = $region48
            $region47: #{cifar_lenet_forward.5} parent=39 // pred_region
              %s613 = ssub.s32 16, 1
              %s614 = sshrl.u32 %s600, 5
              // While loop
              $region49: #{cifar_lenet_forward.5} parent=47 // loop_pre_header
                _
              $region50: #{cifar_lenet_forward.5} parent=47 // loop_header
                %s616 = sphi 0, %s618
                %p617 = scmp.ge.s32.totalorder %s616, %s614
                %s621 = sphi 0, %s690
                %s622 = sphi %s593, %s693
                %s623 = sphi %s604, %s694
              $region51: #{cifar_lenet_forward.5} parent=47 // loop_header_branch
                %620 = sbr.rel (%p617) target = $region55
              $region52: #{cifar_lenet_forward.5} parent=47 // loop_body
                %v624 = vld [vmem:[%s622] sm:%s613]
                %625 = vst [vmem:[%s623] sm:%s613] %v624
                %v626 = vld [vmem:[%s622 + $0x4] sm:%s613]
                %627 = vst [vmem:[%s623 + $0x4] sm:%s613] %v626
                %v628 = vld [vmem:[%s622 + $0x8] sm:%s613]
                %629 = vst [vmem:[%s623 + $0x8] sm:%s613] %v628
                %v630 = vld [vmem:[%s622 + $0xc] sm:%s613]
                %631 = vst [vmem:[%s623 + $0xc] sm:%s613] %v630
                %v632 = vld [vmem:[%s622 + $0x10] sm:%s613]
                %633 = vst [vmem:[%s623 + $0x10] sm:%s613] %v632
                %v634 = vld [vmem:[%s622 + $0x14] sm:%s613]
                %635 = vst [vmem:[%s623 + $0x14] sm:%s613] %v634
                %v636 = vld [vmem:[%s622 + $0x18] sm:%s613]
                %637 = vst [vmem:[%s623 + $0x18] sm:%s613] %v636
                %v638 = vld [vmem:[%s622 + $0x1c] sm:%s613]
                %639 = vst [vmem:[%s623 + $0x1c] sm:%s613] %v638
                %v640 = vld [vmem:[%s622 + $0x20] sm:%s613]
                %641 = vst [vmem:[%s623 + $0x20] sm:%s613] %v640
                %v642 = vld [vmem:[%s622 + $0x24] sm:%s613]
                %643 = vst [vmem:[%s623 + $0x24] sm:%s613] %v642
                %v644 = vld [vmem:[%s622 + $0x28] sm:%s613]
                %645 = vst [vmem:[%s623 + $0x28] sm:%s613] %v644
                %v646 = vld [vmem:[%s622 + $0x2c] sm:%s613]
                %647 = vst [vmem:[%s623 + $0x2c] sm:%s613] %v646
                %v648 = vld [vmem:[%s622 + $0x30] sm:%s613]
                %649 = vst [vmem:[%s623 + $0x30] sm:%s613] %v648
                %v650 = vld [vmem:[%s622 + $0x34] sm:%s613]
                %651 = vst [vmem:[%s623 + $0x34] sm:%s613] %v650
                %v652 = vld [vmem:[%s622 + $0x38] sm:%s613]
                %653 = vst [vmem:[%s623 + $0x38] sm:%s613] %v652
                %v654 = vld [vmem:[%s622 + $0x3c] sm:%s613]
                %655 = vst [vmem:[%s623 + $0x3c] sm:%s613] %v654
                %v656 = vld [vmem:[%s622 + $0x40] sm:%s613]
                %657 = vst [vmem:[%s623 + $0x40] sm:%s613] %v656
                %v658 = vld [vmem:[%s622 + $0x44] sm:%s613]
                %659 = vst [vmem:[%s623 + $0x44] sm:%s613] %v658
                %v660 = vld [vmem:[%s622 + $0x48] sm:%s613]
                %661 = vst [vmem:[%s623 + $0x48] sm:%s613] %v660
                %v662 = vld [vmem:[%s622 + $0x4c] sm:%s613]
                %663 = vst [vmem:[%s623 + $0x4c] sm:%s613] %v662
                %v664 = vld [vmem:[%s622 + $0x50] sm:%s613]
                %665 = vst [vmem:[%s623 + $0x50] sm:%s613] %v664
                %v666 = vld [vmem:[%s622 + $0x54] sm:%s613]
                %667 = vst [vmem:[%s623 + $0x54] sm:%s613] %v666
                %v668 = vld [vmem:[%s622 + $0x58] sm:%s613]
                %669 = vst [vmem:[%s623 + $0x58] sm:%s613] %v668
                %v670 = vld [vmem:[%s622 + $0x5c] sm:%s613]
                %671 = vst [vmem:[%s623 + $0x5c] sm:%s613] %v670
                %v672 = vld [vmem:[%s622 + $0x60] sm:%s613]
                %673 = vst [vmem:[%s623 + $0x60] sm:%s613] %v672
                %v674 = vld [vmem:[%s622 + $0x64] sm:%s613]
                %675 = vst [vmem:[%s623 + $0x64] sm:%s613] %v674
                %v676 = vld [vmem:[%s622 + $0x68] sm:%s613]
                %677 = vst [vmem:[%s623 + $0x68] sm:%s613] %v676
                %v678 = vld [vmem:[%s622 + $0x6c] sm:%s613]
                %679 = vst [vmem:[%s623 + $0x6c] sm:%s613] %v678
                %v680 = vld [vmem:[%s622 + $0x70] sm:%s613]
                %681 = vst [vmem:[%s623 + $0x70] sm:%s613] %v680
                %v682 = vld [vmem:[%s622 + $0x74] sm:%s613]
                %683 = vst [vmem:[%s623 + $0x74] sm:%s613] %v682
                %v684 = vld [vmem:[%s622 + $0x78] sm:%s613]
                %685 = vst [vmem:[%s623 + $0x78] sm:%s613] %v684
                %v686 = vld [vmem:[%s622 + $0x7c] sm:%s613]
                %687 = vst [vmem:[%s623 + $0x7c] sm:%s613] %v686
                %s688 = sadd.s32 1, %s621
                %p689 = scmp.ge.s32.totalorder %s688, %s614
                %s690 = scalar_select %p689, 0, %s688
                %s691 = smul.u32 %s690, 128
                %s692 = smul.u32 %s690, 128
                %s693 = scalar_lea.vmem %s593, %s691 [#allocation2]
                %s694 = scalar_lea.vmem %s604, %s692
              $region53: #{cifar_lenet_forward.5} parent=47 // loop_footer
                %s618 = sadd.s32 %s616, 1
              $region54: #{cifar_lenet_forward.5} parent=47 // loop_footer_branch
                %615 = sbr.rel target = $region50
              $region55: #{cifar_lenet_forward.5} parent=47 // loop_exit
                _
              %s695 = sshrl.u32 %s600, 5
              %s696 = sand.u32 %s600, 31
              %s697 = smul.u32 %s695, 32
              %s698 = smul.u32 4, %s697
              %s699 = scalar_lea.vmem %s593, %s698 [#allocation2]
              %s700 = smul.u32 4, %s697
              %s701 = scalar_lea.vmem %s604, %s700
              // While loop
              $region56: #{cifar_lenet_forward.5} parent=47 // loop_pre_header
                _
              $region57: #{cifar_lenet_forward.5} parent=47 // loop_header
                %s703 = sphi 0, %s705
                %p704 = scmp.ge.s32.totalorder %s703, %s696
                %s708 = sphi 0, %s715
                %s709 = sphi %s699, %s718
                %s710 = sphi %s701, %s719
              $region58: #{cifar_lenet_forward.5} parent=47 // loop_header_branch
                %707 = sbr.rel (%p704) target = $region62
              $region59: #{cifar_lenet_forward.5} parent=47 // loop_body
                %v711 = vld [vmem:[%s709] sm:%s613]
                %712 = vst [vmem:[%s710] sm:%s613] %v711
                %s713 = sadd.s32 1, %s708
                %p714 = scmp.ge.s32.totalorder %s713, %s696
                %s715 = scalar_select %p714, 0, %s713
                %s716 = smul.u32 %s715, 4
                %s717 = smul.u32 %s715, 4
                %s718 = scalar_lea.vmem %s699, %s716 [#allocation2]
                %s719 = scalar_lea.vmem %s701, %s717
              $region60: #{cifar_lenet_forward.5} parent=47 // loop_footer
                %s705 = sadd.s32 %s703, 1
              $region61: #{cifar_lenet_forward.5} parent=47 // loop_footer_branch
                %702 = sbr.rel target = $region57
              $region62: #{cifar_lenet_forward.5} parent=47 // loop_exit
                _
            $region48: #{cifar_lenet_forward.5} parent=39 // pred_fallthru
              _
          $region40: #{cifar_lenet_forward.5} parent=35 // pred_fallthru
            _
          %830 = vnop
        $region36: #{cifar_lenet_forward.5} parent=31 // pred_fallthru
          _
      $region32: #{cifar_lenet_forward.5} parent=5 // pred_fallthru
        _
      %p831 = scmp.le.s32.totalorder 2, %s9
      // Predicated region
      $region81: #{cifar_lenet_forward.5} parent=5 // pred_check
        %p832 = pneg %p831
      $region82: #{cifar_lenet_forward.5} parent=5 // pred_check_branch
        %834 = sbr.rel (%p832) target = $region84
      $region83: #{cifar_lenet_forward.5} parent=5 // pred_region
        %s835 = ssub.s32 %s9, 2
        // Predicated region
        $region85: #{cifar_lenet_forward.5} parent=83 // pred_check
          %p836 = pneg %p106
        $region86: #{cifar_lenet_forward.5} parent=83 // pred_check_branch
          %838 = sbr.rel (%p836) target = $region88
        $region87: #{cifar_lenet_forward.5} parent=83 // pred_region
          %s839 = sand.u32 %s91, 1
          %s840 = sand.u32 %s91, 1
          %s841 = smul.addr %s840, 128
          %s842 = scalar_lea.vmem [#allocation2], %s841
        $region88: #{cifar_lenet_forward.5} parent=83 // pred_fallthru
          _
      $region84: #{cifar_lenet_forward.5} parent=5 // pred_fallthru
        _
    $region6: #{cifar_lenet_forward.5} parent=1 // loop_footer
      %s13 = sadd.s32 1, %s9
    $region7: #{cifar_lenet_forward.5} parent=1 // loop_footer_branch
      %8 = sbr.rel target = $region3
    $region8: #{cifar_lenet_forward.5} parent=1 // loop_exit
      _

// kernel: cifar_lenet_forward.6
$region0: #{cifar_lenet_forward.6}
  #allocation0 [shape = 'u32[]', space=smem, size = 0x4, offset = 0x4, fixed_abs, tag = 'smem constant byte address 0x4 - core index']
  #allocation1 [shape = 'u32[72,128]{1,0:T(1,128)}', space=vmem, size = 0x9000, scoped, tag = 'internal scratch']
  %s0 = inlined_call_operand.vmem [shape: bf16[2,28,28,20], index: 0, kind: input, shape index: {}]
  %s1 = inlined_call_operand.vmem [shape: bf16[2,14,14,20], index: 1, kind: output, shape index: {}]
  %s2 = sld [smem:[#allocation0]]
  $region37: #{cifar_lenet_forward.6} parent=0
    _
  %s4 = ssub.s32 1, %s2
  %s5 = scalar_select 0, %s4, %s2
  loop: start=0, step=1, limit=4
  $region2: #{cifar_lenet_forward.6} parent=0 // loop_pre_header
    _
  $region3: #{cifar_lenet_forward.6} parent=0 // loop_header
    %s7 = sphi 0, %s11
    %p8 = scmp.ge.s32.totalorder %s7, 4
    %s17 = sphi 0, %s19
    %s20 = sphi 0, %s17
    %s21 = sphi 0, %s20
    %s37 = sphi 0, %s21
    %s43 = sphi 0, %s45
    %s46 = sphi 0, %s43
    %s47 = sphi 0, %s46
    %s63 = sphi 0, %s47
  $region4: #{cifar_lenet_forward.6} parent=0 // loop_header_branch
    %10 = sbr.rel (%p8) target = $region8
  $region5: #{cifar_lenet_forward.6} parent=0 // loop_body
    %s12 = ssub.s32 %s7, 1
    %s13 = ssub.s32 %s7, 2
    %s14 = sadd.s32 %s7, 1
    %s15 = ssub.s32 %s7, %s14
    %p16 = scmp.eq.s32.totalorder %s15, 0
    %s18 = sadd.s32 %s17, 1
    %s19 = scalar_select %p16, %s17, %s18
    %p22 = pneg %p16
    %p23 = scmp.eq.s32.totalorder %s7, 1
    %p24 = por %p22, %p23
    %p25 = scmp.ne.s32.totalorder %s17, %s20
    %p26 = scmp.eq.s32.totalorder %s7, 0
    %p27 = por %p25, %p26
    %p28 = scmp.ne.s32.totalorder %s17, %s20
    %p29 = scmp.eq.s32.totalorder %s12, 1
    %p30 = por %p28, %p29
    %p31 = scmp.ne.s32.totalorder %s20, %s21
    %p32 = scmp.eq.s32.totalorder %s12, 0
    %p33 = por %p31, %p32
    %p34 = scmp.ne.s32.totalorder %s20, %s21
    %p35 = scmp.eq.s32.totalorder %s13, 1
    %p36 = por %p34, %p35
    %p38 = scmp.ne.s32.totalorder %s21, %s37
    %p39 = scmp.eq.s32.totalorder %s13, 0
    %p40 = por %p38, %p39
    %s41 = ssub.s32 %s7, %s14
    %p42 = scmp.eq.s32.totalorder %s41, 0
    %s44 = sadd.s32 %s43, 1
    %s45 = scalar_select %p42, %s43, %s44
    %p48 = pneg %p42
    %p49 = scmp.eq.s32.totalorder %s7, 1
    %p50 = por %p48, %p49
    %p51 = scmp.ne.s32.totalorder %s43, %s46
    %p52 = scmp.eq.s32.totalorder %s7, 0
    %p53 = por %p51, %p52
    %p54 = scmp.ne.s32.totalorder %s43, %s46
    %p55 = scmp.eq.s32.totalorder %s12, 1
    %p56 = por %p54, %p55
    %p57 = scmp.ne.s32.totalorder %s46, %s47
    %p58 = scmp.eq.s32.totalorder %s12, 0
    %p59 = por %p57, %p58
    %p60 = scmp.ne.s32.totalorder %s46, %s47
    %p61 = scmp.eq.s32.totalorder %s13, 1
    %p62 = por %p60, %p61
    %p64 = scmp.ne.s32.totalorder %s47, %s63
    %p65 = scmp.eq.s32.totalorder %s13, 0
    %p66 = por %p64, %p65
    %p67 = scmp.le.s32.totalorder 1, %s7
    %p68 = scmp.lt.s32.totalorder %s7, 3
    %p69 = pnand %p67, %p68
    %p70 = pneg %p69
    // Predicated region
    $region9: #{cifar_lenet_forward.6} parent=5 // pred_check
      _
    $region10: #{cifar_lenet_forward.6} parent=5 // pred_check_branch
      %72 = sbr.rel (%p69) target = $region12
    $region11: #{cifar_lenet_forward.6} parent=5 // pred_region
      %s73 = ssub.s32 %s7, 1
    $region12: #{cifar_lenet_forward.6} parent=5 // pred_fallthru
      _
    %p74 = scmp.lt.s32.totalorder %s7, 2
    // Predicated region
    $region13: #{cifar_lenet_forward.6} parent=5 // pred_check
      %p75 = pneg %p74
    $region14: #{cifar_lenet_forward.6} parent=5 // pred_check_branch
      %77 = sbr.rel (%p75) target = $region16
    $region15: #{cifar_lenet_forward.6} parent=5 // pred_region
      // Predicated region
      $region17: #{cifar_lenet_forward.6} parent=15 // pred_check
        %p78 = pneg %p27
      $region18: #{cifar_lenet_forward.6} parent=15 // pred_check_branch
        %80 = sbr.rel (%p78) target = $region20
      $region19: #{cifar_lenet_forward.6} parent=15 // pred_region
        %p81 = scmp.lt.s32.totalorder %s7, 1
        %s82 = scalar_select %p81, %s7, 1
        %s83 = smul.addr %s82, 112
        %s84 = smul.addr %s83, 4
        %s85 = scalar_lea.vmem %s0, %s84
      $region20: #{cifar_lenet_forward.6} parent=15 // pred_fallthru
        _
    $region16: #{cifar_lenet_forward.6} parent=5 // pred_fallthru
      _
    %p86 = scmp.le.s32.totalorder 1, %s7
    %p87 = scmp.lt.s32.totalorder %s7, 3
    %p88 = pnand %p86, %p87
    %p89 = pneg %p88
    // Predicated region
    $region21: #{cifar_lenet_forward.6} parent=5 // pred_check
      _
    $region22: #{cifar_lenet_forward.6} parent=5 // pred_check_branch
      %91 = sbr.rel (%p88) target = $region24
    $region23: #{cifar_lenet_forward.6} parent=5 // pred_region
      %s92 = ssub.s32 %s7, 1
      %p93 = scmp.lt.s32.totalorder %s12, 1
      %s94 = scalar_select %p93, %s12, 1
      %s95 = smul.addr %s94, 112
      %s96 = smul.addr %s95, 4
      %s97 = scalar_lea.vmem %s0, %s96
      %p98 = pneg %p33
      %p99 = pneg %p30
      %p100 = pneg %p59
      %p101 = pneg %p56
      %p102 = scmp.lt.s32.totalorder %s12, 1
      %s103 = scalar_select %p102, %s12, 1
      %s104 = smul.addr %s103, 28
      %s105 = smul.addr %s104, 4
      %s106 = scalar_lea.vmem %s1, %s105
      %p107 = scmp.lt.s32.totalorder %s12, 1
      %s108 = scalar_select %p107, %s12, 1
      %s109 = smul.addr %s108, 112
      %s110 = smul.addr %s109, 4
      %s111 = scalar_lea.vmem %s0, %s110
      %p112 = scmp.lt.s32.totalorder %s12, 1
      %s113 = scalar_select %p112, %s12, 1
      %s114 = smul.addr %s113, 28
      %s115 = smul.addr %s114, 4
      %s116 = scalar_lea.vmem %s1, %s115
      %v118 = vlaneseq
      %v119 = vshrl.u32 %v118, 7
      %v120 = vadd.s32 %v119, 8
      %v121 = vlaneseq
      %v122 = vand.u32 %v121, 127
      %v123 = vmul.u32 %v119, 2
      %v124 = vmul.u32 %v120, 2
      %vm125 = vcmp.eq.s32.totalorder %v122, %v123
      %vm126 = vcmp.eq.s32.totalorder %v122, %v124
      %v127 = vsel %vm125, 1, 0
      %v128 = vsel %vm126, 1, 0
      %v129 = vcvt.s32.f32 %v127
      %v130 = vcvt.s32.f32 %v128
      %v131 = vpack.c.bf16 %v130, %v129
      %v132 = vadd.s32 %v123, 1
      %v133 = vadd.s32 %v124, 1
      %vm134 = vcmp.eq.s32.totalorder %v122, %v132
      %vm135 = vcmp.eq.s32.totalorder %v122, %v133
      %v136 = vsel %vm134, 1, 0
      %v137 = vsel %vm135, 1, 0
      %v138 = vcvt.s32.f32 %v136
      %v139 = vcvt.s32.f32 %v137
      %v140 = vpack.c.bf16 %v139, %v138
      %v141 = vld [vmem:[%s111] sm:$0xf]
      %v142 = vld [vmem:[%s111 + $0x4] sm:$0xf]
      %v143 = vld [vmem:[%s111 + $0x8] sm:$0xf]
      %v144 = vld [vmem:[%s111 + $0xc] sm:$0x3]
      %s145 = scalar_lea.vmem %s111, 16
      %v146 = vld [vmem:[%s145] sm:$0xf]
      %v147 = vld [vmem:[%s145 + $0x4] sm:$0xf]
      %v148 = vld [vmem:[%s145 + $0x8] sm:$0xf]
      %v149 = vld [vmem:[%s145 + $0xc] sm:$0x3]
      %v150 = vunpack.c.l.bf16 %v141
      %v151 = vunpack.c.l.bf16 %v142
      %v152 = vunpack.c.l.bf16 %v143
      %v153 = vunpack.c.l.bf16 %v144
      %v154 = vunpack.c.l.bf16 %v146
      %v155 = vunpack.c.l.bf16 %v147
      %v156 = vunpack.c.l.bf16 %v148
      %v157 = vunpack.c.l.bf16 %v149
      %v158 = vmax.f32 %v150, %v154
      %v159 = vmax.f32 %v151, %v155
      %v160 = vmax.f32 %v152, %v156
      %v161 = vmax.f32 %v153, %v157
      %v162 = vpack.c.bf16 %v159, %v158
      %v163 = vpack.c.bf16 %v161, %v160
      %vm164 = vcmask 228352
      %v166 = vsel %vm164, %v131, 0
      %vm168 = vcmask 1045504
      %v170 = vsel %vm168, %v163, 0
      %172 = vmatpush.bf16.msra.mxu0 0
      %173 = vmatpush.bf16.msra.mxu0 0
      %174 = vmatpush.bf16.msra.mxu0 0
      %175 = vmatpush.bf16.msra.mxu0 0
      %176 = vmatpush.bf16.msra.mxu0 0
      %177 = vmatpush.bf16.msra.mxu0 0
      %178 = vmatpush.bf16.msra.mxu0 %v170
      %179 = vmatpush.bf16.msra.mxu0 %v162
      %180 = vmatmul.bf16.gmra.mxu0 %v166
      %v181 = vpop.f32.mrf.mxu0
      %v182 = vadd.f32 0.0, %v181
      %v183 = vpop.f32.mrf.mxu0
      %v184 = vadd.f32 0.0, %v183
      %185 = vdwg.mxu0
      %v187 = vsel %vm164, %v140, 0
      %189 = vmatpush.bf16.msra.mxu0 0
      %190 = vmatpush.bf16.msra.mxu0 0
      %191 = vmatpush.bf16.msra.mxu0 0
      %192 = vmatpush.bf16.msra.mxu0 0
      %193 = vmatpush.bf16.msra.mxu0 0
      %194 = vmatpush.bf16.msra.mxu0 0
      %195 = vmatpush.bf16.msra.mxu0 %v170
      %196 = vmatpush.bf16.msra.mxu0 %v162
      %197 = vmatmul.bf16.gmra.mxu0 %v187
      %v198 = vpop.f32.mrf.mxu0
      %v199 = vadd.f32 0.0, %v198
      %v200 = vpop.f32.mrf.mxu0
      %v201 = vadd.f32 0.0, %v200
      %202 = vdwg.mxu0
      %v203 = vmax.f32 %v182, %v199
      %v204 = vmax.f32 %v184, %v201
      %v205 = vpack.c.bf16 %v203, %v203
      %v206 = vpack.c.bf16 %v204, %v204
      %vm207 = vcmask 158720
      %208 = vst.msk [vmem:[%s116] sm:$0xf] %vm207, %v205
      %vm209 = vcmask 157696
      %210 = vst.msk [vmem:[%s116 + $0x4] sm:$0x7] %vm209, %v206
      %s211 = scalar_lea.vmem %s111, 32
      %v212 = vld [vmem:[%s211] sm:$0xf]
      %v213 = vld [vmem:[%s211 + $0x4] sm:$0xf]
      %v214 = vld [vmem:[%s211 + $0x8] sm:$0xf]
      %v215 = vld [vmem:[%s211 + $0xc] sm:$0x3]
      %s216 = scalar_lea.vmem %s111, 48
      %v217 = vld [vmem:[%s216] sm:$0xf]
      %v218 = vld [vmem:[%s216 + $0x4] sm:$0xf]
      %v219 = vld [vmem:[%s216 + $0x8] sm:$0xf]
      %v220 = vld [vmem:[%s216 + $0xc] sm:$0x3]
      %v221 = vunpack.c.l.bf16 %v212
      %v222 = vunpack.c.l.bf16 %v213
      %v223 = vunpack.c.l.bf16 %v214
      %v224 = vunpack.c.l.bf16 %v215
      %v225 = vunpack.c.l.bf16 %v217
      %v226 = vunpack.c.l.bf16 %v218
      %v227 = vunpack.c.l.bf16 %v219
      %v228 = vunpack.c.l.bf16 %v220
      %v229 = vmax.f32 %v221, %v225
      %v230 = vmax.f32 %v222, %v226
      %v231 = vmax.f32 %v223, %v227
      %v232 = vmax.f32 %v224, %v228
      %v233 = vpack.c.bf16 %v230, %v229
      %v234 = vpack.c.bf16 %v232, %v231
      %v236 = vsel %vm168, %v234, 0
      %238 = vmatpush.bf16.msra.mxu0 0
      %239 = vmatpush.bf16.msra.mxu0 0
      %240 = vmatpush.bf16.msra.mxu0 0
      %241 = vmatpush.bf16.msra.mxu0 0
      %242 = vmatpush.bf16.msra.mxu0 0
      %243 = vmatpush.bf16.msra.mxu0 0
      %244 = vmatpush.bf16.msra.mxu0 %v236
      %245 = vmatpush.bf16.msra.mxu0 %v233
      %246 = vmatmul.bf16.gmra.mxu0 %v166
      %v247 = vpop.f32.mrf.mxu0
      %v248 = vadd.f32 0.0, %v247
      %v249 = vpop.f32.mrf.mxu0
      %v250 = vadd.f32 0.0, %v249
      %251 = vdwg.mxu0
      %252 = vmatpush.bf16.msra.mxu0 0
      %253 = vmatpush.bf16.msra.mxu0 0
      %254 = vmatpush.bf16.msra.mxu0 0
      %255 = vmatpush.bf16.msra.mxu0 0
      %256 = vmatpush.bf16.msra.mxu0 0
      %257 = vmatpush.bf16.msra.mxu0 0
      %258 = vmatpush.bf16.msra.mxu0 %v236
      %259 = vmatpush.bf16.msra.mxu0 %v233
      %260 = vmatmul.bf16.gmra.mxu0 %v187
      %v261 = vpop.f32.mrf.mxu0
      %v262 = vadd.f32 0.0, %v261
      %v263 = vpop.f32.mrf.mxu0
      %v264 = vadd.f32 0.0, %v263
      %265 = vdwg.mxu0
      %v266 = vmax.f32 %v248, %v262
      %v267 = vmax.f32 %v250, %v264
      %v268 = vpack.c.bf16 %v266, %v266
      %v269 = vpack.c.bf16 %v267, %v267
      %s270 = scalar_lea.vmem %s116, 8
      %271 = vst.msk [vmem:[%s270] sm:$0xf] %vm207, %v268
      %272 = vst.msk [vmem:[%s270 + $0x4] sm:$0x7] %vm209, %v269
      %s273 = scalar_lea.vmem %s111, 64
      %v274 = vld [vmem:[%s273] sm:$0xf]
      %v275 = vld [vmem:[%s273 + $0x4] sm:$0xf]
      %v276 = vld [vmem:[%s273 + $0x8] sm:$0xf]
      %v277 = vld [vmem:[%s273 + $0xc] sm:$0x3]
      %s278 = scalar_lea.vmem %s111, 80
      %v279 = vld [vmem:[%s278] sm:$0xf]
      %v280 = vld [vmem:[%s278 + $0x4] sm:$0xf]
      %v281 = vld [vmem:[%s278 + $0x8] sm:$0xf]
      %v282 = vld [vmem:[%s278 + $0xc] sm:$0x3]
      %v283 = vunpack.c.l.bf16 %v274
      %v284 = vunpack.c.l.bf16 %v275
      %v285 = vunpack.c.l.bf16 %v276
      %v286 = vunpack.c.l.bf16 %v277
      %v287 = vunpack.c.l.bf16 %v279
      %v288 = vunpack.c.l.bf16 %v280
      %v289 = vunpack.c.l.bf16 %v281
      %v290 = vunpack.c.l.bf16 %v282
      %v291 = vmax.f32 %v283, %v287
      %v292 = vmax.f32 %v284, %v288
      %v293 = vmax.f32 %v285, %v289
      %v294 = vmax.f32 %v286, %v290
      %v295 = vpack.c.bf16 %v292, %v291
      %v296 = vpack.c.bf16 %v294, %v293
      %v298 = vsel %vm168, %v296, 0
      %300 = vmatpush.bf16.msra.mxu0 0
      %301 = vmatpush.bf16.msra.mxu0 0
      %302 = vmatpush.bf16.msra.mxu0 0
      %303 = vmatpush.bf16.msra.mxu0 0
      %304 = vmatpush.bf16.msra.mxu0 0
      %305 = vmatpush.bf16.msra.mxu0 0
      %306 = vmatpush.bf16.msra.mxu0 %v298
      %307 = vmatpush.bf16.msra.mxu0 %v295
      %308 = vmatmul.bf16.gmra.mxu0 %v166
      %v309 = vpop.f32.mrf.mxu0
      %v310 = vadd.f32 0.0, %v309
      %v311 = vpop.f32.mrf.mxu0
      %v312 = vadd.f32 0.0, %v311
      %313 = vdwg.mxu0
      %314 = vmatpush.bf16.msra.mxu0 0
      %315 = vmatpush.bf16.msra.mxu0 0
      %316 = vmatpush.bf16.msra.mxu0 0
      %317 = vmatpush.bf16.msra.mxu0 0
      %318 = vmatpush.bf16.msra.mxu0 0
      %319 = vmatpush.bf16.msra.mxu0 0
      %320 = vmatpush.bf16.msra.mxu0 %v298
      %321 = vmatpush.bf16.msra.mxu0 %v295
      %322 = vmatmul.bf16.gmra.mxu0 %v187
      %v323 = vpop.f32.mrf.mxu0
      %v324 = vadd.f32 0.0, %v323
      %v325 = vpop.f32.mrf.mxu0
      %v326 = vadd.f32 0.0, %v325
      %327 = vdwg.mxu0
      %v328 = vmax.f32 %v310, %v324
      %v329 = vmax.f32 %v312, %v326
      %v330 = vpack.c.bf16 %v328, %v328
      %v331 = vpack.c.bf16 %v329, %v329
      %s332 = scalar_lea.vmem %s116, 16
      %333 = vst.msk [vmem:[%s332] sm:$0xf] %vm207, %v330
      %334 = vst.msk [vmem:[%s332 + $0x4] sm:$0x7] %vm209, %v331
      %s335 = scalar_lea.vmem %s111, 96
      %v336 = vld [vmem:[%s335] sm:$0xf]
      %v337 = vld [vmem:[%s335 + $0x4] sm:$0xf]
      %v338 = vld [vmem:[%s335 + $0x8] sm:$0xf]
      %v339 = vld [vmem:[%s335 + $0xc] sm:$0x3]
      %s340 = scalar_lea.vmem %s111, 112
      %v341 = vld [vmem:[%s340] sm:$0xf]
      %v342 = vld [vmem:[%s340 + $0x4] sm:$0xf]
      %v343 = vld [vmem:[%s340 + $0x8] sm:$0xf]
      %v344 = vld [vmem:[%s340 + $0xc] sm:$0x3]
      %v345 = vunpack.c.l.bf16 %v336
      %v346 = vunpack.c.l.bf16 %v337
      %v347 = vunpack.c.l.bf16 %v338
      %v348 = vunpack.c.l.bf16 %v339
      %v349 = vunpack.c.l.bf16 %v341
      %v350 = vunpack.c.l.bf16 %v342
      %v351 = vunpack.c.l.bf16 %v343
      %v352 = vunpack.c.l.bf16 %v344
      %v353 = vmax.f32 %v345, %v349
      %v354 = vmax.f32 %v346, %v350
      %v355 = vmax.f32 %v347, %v351
      %v356 = vmax.f32 %v348, %v352
      %v357 = vpack.c.bf16 %v354, %v353
      %v358 = vpack.c.bf16 %v356, %v355
      %v360 = vsel %vm168, %v358, 0
      %362 = vmatpush.bf16.msra.mxu0 0
      %363 = vmatpush.bf16.msra.mxu0 0
      %364 = vmatpush.bf16.msra.mxu0 0
      %365 = vmatpush.bf16.msra.mxu0 0
      %366 = vmatpush.bf16.msra.mxu0 0
      %367 = vmatpush.bf16.msra.mxu0 0
      %368 = vmatpush.bf16.msra.mxu0 %v360
      %369 = vmatpush.bf16.msra.mxu0 %v357
      %370 = vmatmul.bf16.gmra.mxu0 %v166
      %v371 = vpop.f32.mrf.mxu0
      %v372 = vadd.f32 0.0, %v371
      %v373 = vpop.f32.mrf.mxu0
      %v374 = vadd.f32 0.0, %v373
      %375 = vdwg.mxu0
      %376 = vmatpush.bf16.msra.mxu0 0
      %377 = vmatpush.bf16.msra.mxu0 0
      %378 = vmatpush.bf16.msra.mxu0 0
      %379 = vmatpush.bf16.msra.mxu0 0
      %380 = vmatpush.bf16.msra.mxu0 0
      %381 = vmatpush.bf16.msra.mxu0 0
      %382 = vmatpush.bf16.msra.mxu0 %v360
      %383 = vmatpush.bf16.msra.mxu0 %v357
      %384 = vmatmul.bf16.gmra.mxu0 %v187
      %v385 = vpop.f32.mrf.mxu0
      %v386 = vadd.f32 0.0, %v385
      %v387 = vpop.f32.mrf.mxu0
      %v388 = vadd.f32 0.0, %v387
      %389 = vdwg.mxu0
      %v390 = vmax.f32 %v372, %v386
      %v391 = vmax.f32 %v374, %v388
      %v392 = vpack.c.bf16 %v390, %v390
      %v393 = vpack.c.bf16 %v391, %v391
      %s394 = scalar_lea.vmem %s116, 24
      %395 = vst.msk [vmem:[%s394] sm:$0xf] %vm207, %v392
      %396 = vst.msk [vmem:[%s394 + $0x4] sm:$0x7] %vm209, %v393
      %s397 = scalar_lea.vmem %s111, 128
      %v398 = vld [vmem:[%s397] sm:$0xf]
      %v399 = vld [vmem:[%s397 + $0x4] sm:$0xf]
      %v400 = vld [vmem:[%s397 + $0x8] sm:$0xf]
      %v401 = vld [vmem:[%s397 + $0xc] sm:$0x3]
      %s402 = scalar_lea.vmem %s111, 144
      %v403 = vld [vmem:[%s402] sm:$0xf]
      %v404 = vld [vmem:[%s402 + $0x4] sm:$0xf]
      %v405 = vld [vmem:[%s402 + $0x8] sm:$0xf]
      %v406 = vld [vmem:[%s402 + $0xc] sm:$0x3]
      %v407 = vunpack.c.l.bf16 %v398
      %v408 = vunpack.c.l.bf16 %v399
      %v409 = vunpack.c.l.bf16 %v400
      %v410 = vunpack.c.l.bf16 %v401
      %v411 = vunpack.c.l.bf16 %v403
      %v412 = vunpack.c.l.bf16 %v404
      %v413 = vunpack.c.l.bf16 %v405
      %v414 = vunpack.c.l.bf16 %v406
      %v415 = vmax.f32 %v407, %v411
      %v416 = vmax.f32 %v408, %v412
      %v417 = vmax.f32 %v409, %v413
      %v418 = vmax.f32 %v410, %v414
      %v419 = vpack.c.bf16 %v416, %v415
      %v420 = vpack.c.bf16 %v418, %v417
      %v422 = vsel %vm168, %v420, 0
      %424 = vmatpush.bf16.msra.mxu0 0
      %425 = vmatpush.bf16.msra.mxu0 0
      %426 = vmatpush.bf16.msra.mxu0 0
      %427 = vmatpush.bf16.msra.mxu0 0
      %428 = vmatpush.bf16.msra.mxu0 0
      %429 = vmatpush.bf16.msra.mxu0 0
      %430 = vmatpush.bf16.msra.mxu0 %v422
      %431 = vmatpush.bf16.msra.mxu0 %v419
      %432 = vmatmul.bf16.gmra.mxu0 %v166
      %v433 = vpop.f32.mrf.mxu0
      %v434 = vadd.f32 0.0, %v433
      %v435 = vpop.f32.mrf.mxu0
      %v436 = vadd.f32 0.0, %v435
      %437 = vdwg.mxu0
      %438 = vmatpush.bf16.msra.mxu0 0
      %439 = vmatpush.bf16.msra.mxu0 0
      %440 = vmatpush.bf16.msra.mxu0 0
      %441 = vmatpush.bf16.msra.mxu0 0
      %442 = vmatpush.bf16.msra.mxu0 0
      %443 = vmatpush.bf16.msra.mxu0 0
      %444 = vmatpush.bf16.msra.mxu0 %v422
      %445 = vmatpush.bf16.msra.mxu0 %v419
      %446 = vmatmul.bf16.gmra.mxu0 %v187
      %v447 = vpop.f32.mrf.mxu0
      %v448 = vadd.f32 0.0, %v447
      %v449 = vpop.f32.mrf.mxu0
      %v450 = vadd.f32 0.0, %v449
      %451 = vdwg.mxu0
      %v452 = vmax.f32 %v434, %v448
      %v453 = vmax.f32 %v436, %v450
      %v454 = vpack.c.bf16 %v452, %v452
      %v455 = vpack.c.bf16 %v453, %v453
      %s456 = scalar_lea.vmem %s116, 32
      %457 = vst.msk [vmem:[%s456] sm:$0xf] %vm207, %v454
      %458 = vst.msk [vmem:[%s456 + $0x4] sm:$0x7] %vm209, %v455
      %s459 = scalar_lea.vmem %s111, 160
      %v460 = vld [vmem:[%s459] sm:$0xf]
      %v461 = vld [vmem:[%s459 + $0x4] sm:$0xf]
      %v462 = vld [vmem:[%s459 + $0x8] sm:$0xf]
      %v463 = vld [vmem:[%s459 + $0xc] sm:$0x3]
      %s464 = scalar_lea.vmem %s111, 176
      %v465 = vld [vmem:[%s464] sm:$0xf]
      %v466 = vld [vmem:[%s464 + $0x4] sm:$0xf]
      %v467 = vld [vmem:[%s464 + $0x8] sm:$0xf]
      %v468 = vld [vmem:[%s464 + $0xc] sm:$0x3]
      %v469 = vunpack.c.l.bf16 %v460
      %v470 = vunpack.c.l.bf16 %v461
      %v471 = vunpack.c.l.bf16 %v462
      %v472 = vunpack.c.l.bf16 %v463
      %v473 = vunpack.c.l.bf16 %v465
      %v474 = vunpack.c.l.bf16 %v466
      %v475 = vunpack.c.l.bf16 %v467
      %v476 = vunpack.c.l.bf16 %v468
      %v477 = vmax.f32 %v469, %v473
      %v478 = vmax.f32 %v470, %v474
      %v479 = vmax.f32 %v471, %v475
      %v480 = vmax.f32 %v472, %v476
      %v481 = vpack.c.bf16 %v478, %v477
      %v482 = vpack.c.bf16 %v480, %v479
      %v484 = vsel %vm168, %v482, 0
      %486 = vmatpush.bf16.msra.mxu0 0
      %487 = vmatpush.bf16.msra.mxu0 0
      %488 = vmatpush.bf16.msra.mxu0 0
      %489 = vmatpush.bf16.msra.mxu0 0
      %490 = vmatpush.bf16.msra.mxu0 0
      %491 = vmatpush.bf16.msra.mxu0 0
      %492 = vmatpush.bf16.msra.mxu0 %v484
      %493 = vmatpush.bf16.msra.mxu0 %v481
      %494 = vmatmul.bf16.gmra.mxu0 %v166
      %v495 = vpop.f32.mrf.mxu0
      %v496 = vadd.f32 0.0, %v495
      %v497 = vpop.f32.mrf.mxu0
      %v498 = vadd.f32 0.0, %v497
      %499 = vdwg.mxu0
      %500 = vmatpush.bf16.msra.mxu0 0
      %501 = vmatpush.bf16.msra.mxu0 0
      %502 = vmatpush.bf16.msra.mxu0 0
      %503 = vmatpush.bf16.msra.mxu0 0
      %504 = vmatpush.bf16.msra.mxu0 0
      %505 = vmatpush.bf16.msra.mxu0 0
      %506 = vmatpush.bf16.msra.mxu0 %v484
      %507 = vmatpush.bf16.msra.mxu0 %v481
      %508 = vmatmul.bf16.gmra.mxu0 %v187
      %v509 = vpop.f32.mrf.mxu0
      %v510 = vadd.f32 0.0, %v509
      %v511 = vpop.f32.mrf.mxu0
      %v512 = vadd.f32 0.0, %v511
      %513 = vdwg.mxu0
      %v514 = vmax.f32 %v496, %v510
      %v515 = vmax.f32 %v498, %v512
      %v516 = vpack.c.bf16 %v514, %v514
      %v517 = vpack.c.bf16 %v515, %v515
      %s518 = scalar_lea.vmem %s116, 40
      %519 = vst.msk [vmem:[%s518] sm:$0xf] %vm207, %v516
      %520 = vst.msk [vmem:[%s518 + $0x4] sm:$0x7] %vm209, %v517
      %s521 = scalar_lea.vmem %s111, 192
      %v522 = vld [vmem:[%s521] sm:$0xf]
      %v523 = vld [vmem:[%s521 + $0x4] sm:$0xf]
      %v524 = vld [vmem:[%s521 + $0x8] sm:$0xf]
      %v525 = vld [vmem:[%s521 + $0xc] sm:$0x3]
      %s526 = scalar_lea.vmem %s111, 208
      %v527 = vld [vmem:[%s526] sm:$0xf]
      %v528 = vld [vmem:[%s526 + $0x4] sm:$0xf]
      %v529 = vld [vmem:[%s526 + $0x8] sm:$0xf]
      %v530 = vld [vmem:[%s526 + $0xc] sm:$0x3]
      %v531 = vunpack.c.l.bf16 %v522
      %v532 = vunpack.c.l.bf16 %v523
      %v533 = vunpack.c.l.bf16 %v524
      %v534 = vunpack.c.l.bf16 %v525
      %v535 = vunpack.c.l.bf16 %v527
      %v536 = vunpack.c.l.bf16 %v528
      %v537 = vunpack.c.l.bf16 %v529
      %v538 = vunpack.c.l.bf16 %v530
      %v539 = vmax.f32 %v531, %v535
      %v540 = vmax.f32 %v532, %v536
      %v541 = vmax.f32 %v533, %v537
      %v542 = vmax.f32 %v534, %v538
      %v543 = vpack.c.bf16 %v540, %v539
      %v544 = vpack.c.bf16 %v542, %v541
      %v546 = vsel %vm168, %v544, 0
      %548 = vmatpush.bf16.msra.mxu0 0
      %549 = vmatpush.bf16.msra.mxu0 0
      %550 = vmatpush.bf16.msra.mxu0 0
      %551 = vmatpush.bf16.msra.mxu0 0
      %552 = vmatpush.bf16.msra.mxu0 0
      %553 = vmatpush.bf16.msra.mxu0 0
      %554 = vmatpush.bf16.msra.mxu0 %v546
      %555 = vmatpush.bf16.msra.mxu0 %v543
      %556 = vmatmul.bf16.gmra.mxu0 %v166
      %v557 = vpop.f32.mrf.mxu0
      %v558 = vadd.f32 0.0, %v557
      %v559 = vpop.f32.mrf.mxu0
      %v560 = vadd.f32 0.0, %v559
      %561 = vdwg.mxu0
      %562 = vmatpush.bf16.msra.mxu0 0
      %563 = vmatpush.bf16.msra.mxu0 0
      %564 = vmatpush.bf16.msra.mxu0 0
      %565 = vmatpush.bf16.msra.mxu0 0
      %566 = vmatpush.bf16.msra.mxu0 0
      %567 = vmatpush.bf16.msra.mxu0 0
      %568 = vmatpush.bf16.msra.mxu0 %v546
      %569 = vmatpush.bf16.msra.mxu0 %v543
      %570 = vmatmul.bf16.gmra.mxu0 %v187
      %v571 = vpop.f32.mrf.mxu0
      %v572 = vadd.f32 0.0, %v571
      %v573 = vpop.f32.mrf.mxu0
      %v574 = vadd.f32 0.0, %v573
      %575 = vdwg.mxu0
      %v576 = vmax.f32 %v558, %v572
      %v577 = vmax.f32 %v560, %v574
      %v578 = vpack.c.bf16 %v576, %v576
      %v579 = vpack.c.bf16 %v577, %v577
      %s580 = scalar_lea.vmem %s116, 48
      %581 = vst.msk [vmem:[%s580] sm:$0xf] %vm207, %v578
      %582 = vst.msk [vmem:[%s580 + $0x4] sm:$0x7] %vm209, %v579
      %s583 = scalar_lea.vmem %s111, 224
      %v584 = vld [vmem:[%s583] sm:$0xf]
      %v585 = vld [vmem:[%s583 + $0x4] sm:$0xf]
      %v586 = vld [vmem:[%s583 + $0x8] sm:$0xf]
      %v587 = vld [vmem:[%s583 + $0xc] sm:$0x3]
      %s588 = scalar_lea.vmem %s111, 240
      %v589 = vld [vmem:[%s588] sm:$0xf]
      %v590 = vld [vmem:[%s588 + $0x4] sm:$0xf]
      %v591 = vld [vmem:[%s588 + $0x8] sm:$0xf]
      %v592 = vld [vmem:[%s588 + $0xc] sm:$0x3]
      %v593 = vunpack.c.l.bf16 %v584
      %v594 = vunpack.c.l.bf16 %v585
      %v595 = vunpack.c.l.bf16 %v586
      %v596 = vunpack.c.l.bf16 %v587
      %v597 = vunpack.c.l.bf16 %v589
      %v598 = vunpack.c.l.bf16 %v590
      %v599 = vunpack.c.l.bf16 %v591
      %v600 = vunpack.c.l.bf16 %v592
      %v601 = vmax.f32 %v593, %v597
      %v602 = vmax.f32 %v594, %v598
      %v603 = vmax.f32 %v595, %v599
      %v604 = vmax.f32 %v596, %v600
      %v605 = vpack.c.bf16 %v602, %v601
      %v606 = vpack.c.bf16 %v604, %v603
      %v608 = vsel %vm168, %v606, 0
      %610 = vmatpush.bf16.msra.mxu0 0
      %611 = vmatpush.bf16.msra.mxu0 0
      %612 = vmatpush.bf16.msra.mxu0 0
      %613 = vmatpush.bf16.msra.mxu0 0
      %614 = vmatpush.bf16.msra.mxu0 0
      %615 = vmatpush.bf16.msra.mxu0 0
      %616 = vmatpush.bf16.msra.mxu0 %v608
      %617 = vmatpush.bf16.msra.mxu0 %v605
      %618 = vmatmul.bf16.gmra.mxu0 %v166
      %v619 = vpop.f32.mrf.mxu0
      %v620 = vadd.f32 0.0, %v619
      %v621 = vpop.f32.mrf.mxu0
      %v622 = vadd.f32 0.0, %v621
      %623 = vdwg.mxu0
      %624 = vmatpush.bf16.msra.mxu0 0
      %625 = vmatpush.bf16.msra.mxu0 0
      %626 = vmatpush.bf16.msra.mxu0 0
      %627 = vmatpush.bf16.msra.mxu0 0
      %628 = vmatpush.bf16.msra.mxu0 0
      %629 = vmatpush.bf16.msra.mxu0 0
      %630 = vmatpush.bf16.msra.mxu0 %v608
      %631 = vmatpush.bf16.msra.mxu0 %v605
      %632 = vmatmul.bf16.gmra.mxu0 %v187
      %v633 = vpop.f32.mrf.mxu0
      %v634 = vadd.f32 0.0, %v633
      %v635 = vpop.f32.mrf.mxu0
      %v636 = vadd.f32 0.0, %v635
      %637 = vdwg.mxu0
      %v638 = vmax.f32 %v620, %v634
      %v639 = vmax.f32 %v622, %v636
      %v640 = vpack.c.bf16 %v638, %v638
      %v641 = vpack.c.bf16 %v639, %v639
      %s642 = scalar_lea.vmem %s116, 56
      %643 = vst.msk [vmem:[%s642] sm:$0xf] %vm207, %v640
      %644 = vst.msk [vmem:[%s642 + $0x4] sm:$0x7] %vm209, %v641
      %s645 = scalar_lea.vmem %s111, 256
      %v646 = vld [vmem:[%s645] sm:$0xf]
      %v647 = vld [vmem:[%s645 + $0x4] sm:$0xf]
      %v648 = vld [vmem:[%s645 + $0x8] sm:$0xf]
      %v649 = vld [vmem:[%s645 + $0xc] sm:$0x3]
      %s650 = scalar_lea.vmem %s111, 272
      %v651 = vld [vmem:[%s650] sm:$0xf]
      %v652 = vld [vmem:[%s650 + $0x4] sm:$0xf]
      %v653 = vld [vmem:[%s650 + $0x8] sm:$0xf]
      %v654 = vld [vmem:[%s650 + $0xc] sm:$0x3]
      %v655 = vunpack.c.l.bf16 %v646
      %v656 = vunpack.c.l.bf16 %v647
      %v657 = vunpack.c.l.bf16 %v648
      %v658 = vunpack.c.l.bf16 %v649
      %v659 = vunpack.c.l.bf16 %v651
      %v660 = vunpack.c.l.bf16 %v652
      %v661 = vunpack.c.l.bf16 %v653
      %v662 = vunpack.c.l.bf16 %v654
      %v663 = vmax.f32 %v655, %v659
      %v664 = vmax.f32 %v656, %v660
      %v665 = vmax.f32 %v657, %v661
      %v666 = vmax.f32 %v658, %v662
      %v667 = vpack.c.bf16 %v664, %v663
      %v668 = vpack.c.bf16 %v666, %v665
      %v670 = vsel %vm168, %v668, 0
      %672 = vmatpush.bf16.msra.mxu0 0
      %673 = vmatpush.bf16.msra.mxu0 0
      %674 = vmatpush.bf16.msra.mxu0 0
      %675 = vmatpush.bf16.msra.mxu0 0
      %676 = vmatpush.bf16.msra.mxu0 0
      %677 = vmatpush.bf16.msra.mxu0 0
      %678 = vmatpush.bf16.msra.mxu0 %v670
      %679 = vmatpush.bf16.msra.mxu0 %v667
      %680 = vmatmul.bf16.gmra.mxu0 %v166
      %v681 = vpop.f32.mrf.mxu0
      %v682 = vadd.f32 0.0, %v681
      %v683 = vpop.f32.mrf.mxu0
      %v684 = vadd.f32 0.0, %v683
      %685 = vdwg.mxu0
      %686 = vmatpush.bf16.msra.mxu0 0
      %687 = vmatpush.bf16.msra.mxu0 0
      %688 = vmatpush.bf16.msra.mxu0 0
      %689 = vmatpush.bf16.msra.mxu0 0
      %690 = vmatpush.bf16.msra.mxu0 0
      %691 = vmatpush.bf16.msra.mxu0 0
      %692 = vmatpush.bf16.msra.mxu0 %v670
      %693 = vmatpush.bf16.msra.mxu0 %v667
      %694 = vmatmul.bf16.gmra.mxu0 %v187
      %v695 = vpop.f32.mrf.mxu0
      %v696 = vadd.f32 0.0, %v695
      %v697 = vpop.f32.mrf.mxu0
      %v698 = vadd.f32 0.0, %v697
      %699 = vdwg.mxu0
      %v700 = vmax.f32 %v682, %v696
      %v701 = vmax.f32 %v684, %v698
      %v702 = vpack.c.bf16 %v700, %v700
      %v703 = vpack.c.bf16 %v701, %v701
      %s704 = scalar_lea.vmem %s116, 64
      %705 = vst.msk [vmem:[%s704] sm:$0xf] %vm207, %v702
      %706 = vst.msk [vmem:[%s704 + $0x4] sm:$0x7] %vm209, %v703
      %s707 = scalar_lea.vmem %s111, 288
      %v708 = vld [vmem:[%s707] sm:$0xf]
      %v709 = vld [vmem:[%s707 + $0x4] sm:$0xf]
      %v710 = vld [vmem:[%s707 + $0x8] sm:$0xf]
      %v711 = vld [vmem:[%s707 + $0xc] sm:$0x3]
      %s712 = scalar_lea.vmem %s111, 304
      %v713 = vld [vmem:[%s712] sm:$0xf]
      %v714 = vld [vmem:[%s712 + $0x4] sm:$0xf]
      %v715 = vld [vmem:[%s712 + $0x8] sm:$0xf]
      %v716 = vld [vmem:[%s712 + $0xc] sm:$0x3]
      %v717 = vunpack.c.l.bf16 %v708
      %v718 = vunpack.c.l.bf16 %v709
      %v719 = vunpack.c.l.bf16 %v710
      %v720 = vunpack.c.l.bf16 %v711
      %v721 = vunpack.c.l.bf16 %v713
      %v722 = vunpack.c.l.bf16 %v714
      %v723 = vunpack.c.l.bf16 %v715
      %v724 = vunpack.c.l.bf16 %v716
      %v725 = vmax.f32 %v717, %v721
      %v726 = vmax.f32 %v718, %v722
      %v727 = vmax.f32 %v719, %v723
      %v728 = vmax.f32 %v720, %v724
      %v729 = vpack.c.bf16 %v726, %v725
      %v730 = vpack.c.bf16 %v728, %v727
      %v732 = vsel %vm168, %v730, 0
      %734 = vmatpush.bf16.msra.mxu0 0
      %735 = vmatpush.bf16.msra.mxu0 0
      %736 = vmatpush.bf16.msra.mxu0 0
      %737 = vmatpush.bf16.msra.mxu0 0
      %738 = vmatpush.bf16.msra.mxu0 0
      %739 = vmatpush.bf16.msra.mxu0 0
      %740 = vmatpush.bf16.msra.mxu0 %v732
      %741 = vmatpush.bf16.msra.mxu0 %v729
      %742 = vmatmul.bf16.gmra.mxu0 %v166
      %v743 = vpop.f32.mrf.mxu0
      %v744 = vadd.f32 0.0, %v743
      %v745 = vpop.f32.mrf.mxu0
      %v746 = vadd.f32 0.0, %v745
      %747 = vdwg.mxu0
      %748 = vmatpush.bf16.msra.mxu0 0
      %749 = vmatpush.bf16.msra.mxu0 0
      %750 = vmatpush.bf16.msra.mxu0 0
      %751 = vmatpush.bf16.msra.mxu0 0
      %752 = vmatpush.bf16.msra.mxu0 0
      %753 = vmatpush.bf16.msra.mxu0 0
      %754 = vmatpush.bf16.msra.mxu0 %v732
      %755 = vmatpush.bf16.msra.mxu0 %v729
      %756 = vmatmul.bf16.gmra.mxu0 %v187
      %v757 = vpop.f32.mrf.mxu0
      %v758 = vadd.f32 0.0, %v757
      %v759 = vpop.f32.mrf.mxu0
      %v760 = vadd.f32 0.0, %v759
      %761 = vdwg.mxu0
      %v762 = vmax.f32 %v744, %v758
      %v763 = vmax.f32 %v746, %v760
      %v764 = vpack.c.bf16 %v762, %v762
      %v765 = vpack.c.bf16 %v763, %v763
      %s766 = scalar_lea.vmem %s116, 72
      %767 = vst.msk [vmem:[%s766] sm:$0xf] %vm207, %v764
      %768 = vst.msk [vmem:[%s766 + $0x4] sm:$0x7] %vm209, %v765
      %s769 = scalar_lea.vmem %s111, 320
      %v770 = vld [vmem:[%s769] sm:$0xf]
      %v771 = vld [vmem:[%s769 + $0x4] sm:$0xf]
      %v772 = vld [vmem:[%s769 + $0x8] sm:$0xf]
      %v773 = vld [vmem:[%s769 + $0xc] sm:$0x3]
      %s774 = scalar_lea.vmem %s111, 336
      %v775 = vld [vmem:[%s774] sm:$0xf]
      %v776 = vld [vmem:[%s774 + $0x4] sm:$0xf]
      %v777 = vld [vmem:[%s774 + $0x8] sm:$0xf]
      %v778 = vld [vmem:[%s774 + $0xc] sm:$0x3]
      %v779 = vunpack.c.l.bf16 %v770
      %v780 = vunpack.c.l.bf16 %v771
      %v781 = vunpack.c.l.bf16 %v772
      %v782 = vunpack.c.l.bf16 %v773
      %v783 = vunpack.c.l.bf16 %v775
      %v784 = vunpack.c.l.bf16 %v776
      %v785 = vunpack.c.l.bf16 %v777
      %v786 = vunpack.c.l.bf16 %v778
      %v787 = vmax.f32 %v779, %v783
      %v788 = vmax.f32 %v780, %v784
      %v789 = vmax.f32 %v781, %v785
      %v790 = vmax.f32 %v782, %v786
      %v791 = vpack.c.bf16 %v788, %v787
      %v792 = vpack.c.bf16 %v790, %v789
      %v794 = vsel %vm168, %v792, 0
      %796 = vmatpush.bf16.msra.mxu0 0
      %797 = vmatpush.bf16.msra.mxu0 0
      %798 = vmatpush.bf16.msra.mxu0 0
      %799 = vmatpush.bf16.msra.mxu0 0
      %800 = vmatpush.bf16.msra.mxu0 0
      %801 = vmatpush.bf16.msra.mxu0 0
      %802 = vmatpush.bf16.msra.mxu0 %v794
      %803 = vmatpush.bf16.msra.mxu0 %v791
      %804 = vmatmul.bf16.gmra.mxu0 %v166
      %v805 = vpop.f32.mrf.mxu0
      %v806 = vadd.f32 0.0, %v805
      %v807 = vpop.f32.mrf.mxu0
      %v808 = vadd.f32 0.0, %v807
      %809 = vdwg.mxu0
      %810 = vmatpush.bf16.msra.mxu0 0
      %811 = vmatpush.bf16.msra.mxu0 0
      %812 = vmatpush.bf16.msra.mxu0 0
      %813 = vmatpush.bf16.msra.mxu0 0
      %814 = vmatpush.bf16.msra.mxu0 0
      %815 = vmatpush.bf16.msra.mxu0 0
      %816 = vmatpush.bf16.msra.mxu0 %v794
      %817 = vmatpush.bf16.msra.mxu0 %v791
      %818 = vmatmul.bf16.gmra.mxu0 %v187
      %v819 = vpop.f32.mrf.mxu0
      %v820 = vadd.f32 0.0, %v819
      %v821 = vpop.f32.mrf.mxu0
      %v822 = vadd.f32 0.0, %v821
      %823 = vdwg.mxu0
      %v824 = vmax.f32 %v806, %v820
      %v825 = vmax.f32 %v808, %v822
      %v826 = vpack.c.bf16 %v824, %v824
      %v827 = vpack.c.bf16 %v825, %v825
      %s828 = scalar_lea.vmem %s116, 80
      %829 = vst.msk [vmem:[%s828] sm:$0xf] %vm207, %v826
      %830 = vst.msk [vmem:[%s828 + $0x4] sm:$0x7] %vm209, %v827
      %s831 = scalar_lea.vmem %s111, 352
      %v832 = vld [vmem:[%s831] sm:$0xf]
      %v833 = vld [vmem:[%s831 + $0x4] sm:$0xf]
      %v834 = vld [vmem:[%s831 + $0x8] sm:$0xf]
      %v835 = vld [vmem:[%s831 + $0xc] sm:$0x3]
      %s836 = scalar_lea.vmem %s111, 368
      %v837 = vld [vmem:[%s836] sm:$0xf]
      %v838 = vld [vmem:[%s836 + $0x4] sm:$0xf]
      %v839 = vld [vmem:[%s836 + $0x8] sm:$0xf]
      %v840 = vld [vmem:[%s836 + $0xc] sm:$0x3]
      %v841 = vunpack.c.l.bf16 %v832
      %v842 = vunpack.c.l.bf16 %v833
      %v843 = vunpack.c.l.bf16 %v834
      %v844 = vunpack.c.l.bf16 %v835
      %v845 = vunpack.c.l.bf16 %v837
      %v846 = vunpack.c.l.bf16 %v838
      %v847 = vunpack.c.l.bf16 %v839
      %v848 = vunpack.c.l.bf16 %v840
      %v849 = vmax.f32 %v841, %v845
      %v850 = vmax.f32 %v842, %v846
      %v851 = vmax.f32 %v843, %v847
      %v852 = vmax.f32 %v844, %v848
      %v853 = vpack.c.bf16 %v850, %v849
      %v854 = vpack.c.bf16 %v852, %v851
      %v856 = vsel %vm168, %v854, 0
      %858 = vmatpush.bf16.msra.mxu0 0
      %859 = vmatpush.bf16.msra.mxu0 0
      %860 = vmatpush.bf16.msra.mxu0 0
      %861 = vmatpush.bf16.msra.mxu0 0
      %862 = vmatpush.bf16.msra.mxu0 0
      %863 = vmatpush.bf16.msra.mxu0 0
      %864 = vmatpush.bf16.msra.mxu0 %v856
      %865 = vmatpush.bf16.msra.mxu0 %v853
      %866 = vmatmul.bf16.gmra.mxu0 %v166
      %v867 = vpop.f32.mrf.mxu0
      %v868 = vadd.f32 0.0, %v867
      %v869 = vpop.f32.mrf.mxu0
      %v870 = vadd.f32 0.0, %v869
      %871 = vdwg.mxu0
      %872 = vmatpush.bf16.msra.mxu0 0
      %873 = vmatpush.bf16.msra.mxu0 0
      %874 = vmatpush.bf16.msra.mxu0 0
      %875 = vmatpush.bf16.msra.mxu0 0
      %876 = vmatpush.bf16.msra.mxu0 0
      %877 = vmatpush.bf16.msra.mxu0 0
      %878 = vmatpush.bf16.msra.mxu0 %v856
      %879 = vmatpush.bf16.msra.mxu0 %v853
      %880 = vmatmul.bf16.gmra.mxu0 %v187
      %v881 = vpop.f32.mrf.mxu0
      %v882 = vadd.f32 0.0, %v881
      %v883 = vpop.f32.mrf.mxu0
      %v884 = vadd.f32 0.0, %v883
      %885 = vdwg.mxu0
      %v886 = vmax.f32 %v868, %v882
      %v887 = vmax.f32 %v870, %v884
      %v888 = vpack.c.bf16 %v886, %v886
      %v889 = vpack.c.bf16 %v887, %v887
      %s890 = scalar_lea.vmem %s116, 88
      %891 = vst.msk [vmem:[%s890] sm:$0xf] %vm207, %v888
      %892 = vst.msk [vmem:[%s890 + $0x4] sm:$0x7] %vm209, %v889
      %s893 = scalar_lea.vmem %s111, 384
      %v894 = vld [vmem:[%s893] sm:$0xf]
      %v895 = vld [vmem:[%s893 + $0x4] sm:$0xf]
      %v896 = vld [vmem:[%s893 + $0x8] sm:$0xf]
      %v897 = vld [vmem:[%s893 + $0xc] sm:$0x3]
      %s898 = scalar_lea.vmem %s111, 400
      %v899 = vld [vmem:[%s898] sm:$0xf]
      %v900 = vld [vmem:[%s898 + $0x4] sm:$0xf]
      %v901 = vld [vmem:[%s898 + $0x8] sm:$0xf]
      %v902 = vld [vmem:[%s898 + $0xc] sm:$0x3]
      %v903 = vunpack.c.l.bf16 %v894
      %v904 = vunpack.c.l.bf16 %v895
      %v905 = vunpack.c.l.bf16 %v896
      %v906 = vunpack.c.l.bf16 %v897
      %v907 = vunpack.c.l.bf16 %v899
      %v908 = vunpack.c.l.bf16 %v900
      %v909 = vunpack.c.l.bf16 %v901
      %v910 = vunpack.c.l.bf16 %v902
      %v911 = vmax.f32 %v903, %v907
      %v912 = vmax.f32 %v904, %v908
      %v913 = vmax.f32 %v905, %v909
      %v914 = vmax.f32 %v906, %v910
      %v915 = vpack.c.bf16 %v912, %v911
      %v916 = vpack.c.bf16 %v914, %v913
      %v918 = vsel %vm168, %v916, 0
      %920 = vmatpush.bf16.msra.mxu0 0
      %921 = vmatpush.bf16.msra.mxu0 0
      %922 = vmatpush.bf16.msra.mxu0 0
      %923 = vmatpush.bf16.msra.mxu0 0
      %924 = vmatpush.bf16.msra.mxu0 0
      %925 = vmatpush.bf16.msra.mxu0 0
      %926 = vmatpush.bf16.msra.mxu0 %v918
      %927 = vmatpush.bf16.msra.mxu0 %v915
      %928 = vmatmul.bf16.gmra.mxu0 %v166
      %v929 = vpop.f32.mrf.mxu0
      %v930 = vadd.f32 0.0, %v929
      %v931 = vpop.f32.mrf.mxu0
      %v932 = vadd.f32 0.0, %v931
      %933 = vdwg.mxu0
      %934 = vmatpush.bf16.msra.mxu0 0
      %935 = vmatpush.bf16.msra.mxu0 0
      %936 = vmatpush.bf16.msra.mxu0 0
      %937 = vmatpush.bf16.msra.mxu0 0
      %938 = vmatpush.bf16.msra.mxu0 0
      %939 = vmatpush.bf16.msra.mxu0 0
      %940 = vmatpush.bf16.msra.mxu0 %v918
      %941 = vmatpush.bf16.msra.mxu0 %v915
      %942 = vmatmul.bf16.gmra.mxu0 %v187
      %v943 = vpop.f32.mrf.mxu0
      %v944 = vadd.f32 0.0, %v943
      %v945 = vpop.f32.mrf.mxu0
      %v946 = vadd.f32 0.0, %v945
      %947 = vdwg.mxu0
      %v948 = vmax.f32 %v930, %v944
      %v949 = vmax.f32 %v932, %v946
      %v950 = vpack.c.bf16 %v948, %v948
      %v951 = vpack.c.bf16 %v949, %v949
      %s952 = scalar_lea.vmem %s116, 96
      %953 = vst.msk [vmem:[%s952] sm:$0xf] %vm207, %v950
      %954 = vst.msk [vmem:[%s952 + $0x4] sm:$0x7] %vm209, %v951
      %s955 = scalar_lea.vmem %s111, 416
      %v956 = vld [vmem:[%s955] sm:$0xf]
      %v957 = vld [vmem:[%s955 + $0x4] sm:$0xf]
      %v958 = vld [vmem:[%s955 + $0x8] sm:$0xf]
      %v959 = vld [vmem:[%s955 + $0xc] sm:$0x3]
      %s960 = scalar_lea.vmem %s111, 432
      %v961 = vld [vmem:[%s960] sm:$0xf]
      %v962 = vld [vmem:[%s960 + $0x4] sm:$0xf]
      %v963 = vld [vmem:[%s960 + $0x8] sm:$0xf]
      %v964 = vld [vmem:[%s960 + $0xc] sm:$0x3]
      %v965 = vunpack.c.l.bf16 %v956
      %v966 = vunpack.c.l.bf16 %v957
      %v967 = vunpack.c.l.bf16 %v958
      %v968 = vunpack.c.l.bf16 %v959
      %v969 = vunpack.c.l.bf16 %v961
      %v970 = vunpack.c.l.bf16 %v962
      %v971 = vunpack.c.l.bf16 %v963
      %v972 = vunpack.c.l.bf16 %v964
      %v973 = vmax.f32 %v965, %v969
      %v974 = vmax.f32 %v966, %v970
      %v975 = vmax.f32 %v967, %v971
      %v976 = vmax.f32 %v968, %v972
      %v977 = vpack.c.bf16 %v974, %v973
      %v978 = vpack.c.bf16 %v976, %v975
      %v980 = vsel %vm168, %v978, 0
      %982 = vmatpush.bf16.msra.mxu0 0
      %983 = vmatpush.bf16.msra.mxu0 0
      %984 = vmatpush.bf16.msra.mxu0 0
      %985 = vmatpush.bf16.msra.mxu0 0
      %986 = vmatpush.bf16.msra.mxu0 0
      %987 = vmatpush.bf16.msra.mxu0 0
      %988 = vmatpush.bf16.msra.mxu0 %v980
      %989 = vmatpush.bf16.msra.mxu0 %v977
      %990 = vmatmul.bf16.gmra.mxu0 %v166
      %v991 = vpop.f32.mrf.mxu0
      %v992 = vadd.f32 0.0, %v991
      %v993 = vpop.f32.mrf.mxu0
      %v994 = vadd.f32 0.0, %v993
      %995 = vdwg.mxu0
      %996 = vmatpush.bf16.msra.mxu0 0
      %997 = vmatpush.bf16.msra.mxu0 0
      %998 = vmatpush.bf16.msra.mxu0 0
      %999 = vmatpush.bf16.msra.mxu0 0
      %1000 = vmatpush.bf16.msra.mxu0 0
      %1001 = vmatpush.bf16.msra.mxu0 0
      %1002 = vmatpush.bf16.msra.mxu0 %v980
      %1003 = vmatpush.bf16.msra.mxu0 %v977
      %1004 = vmatmul.bf16.gmra.mxu0 %v187
      %v1005 = vpop.f32.mrf.mxu0
      %v1006 = vadd.f32 0.0, %v1005
      %v1007 = vpop.f32.mrf.mxu0
      %v1008 = vadd.f32 0.0, %v1007
      %1009 = vdwg.mxu0
      %v1010 = vmax.f32 %v992, %v1006
      %v1011 = vmax.f32 %v994, %v1008
      %v1012 = vpack.c.bf16 %v1010, %v1010
      %v1013 = vpack.c.bf16 %v1011, %v1011
      %s1014 = scalar_lea.vmem %s116, 104
      %1015 = vst.msk [vmem:[%s1014] sm:$0xf] %vm207, %v1012
      %1016 = vst.msk [vmem:[%s1014 + $0x4] sm:$0x7] %vm209, %v1013
      %p1017 = scmp.lt.s32.totalorder %s12, 1
      %s1018 = scalar_select %p1017, %s12, 1
      %s1019 = smul.addr %s1018, 28
      %s1020 = smul.addr %s1019, 4
      %s1021 = scalar_lea.vmem %s1, %s1020
      // Predicated region
      $region25: #{cifar_lenet_forward.6} parent=23 // pred_check
        %p1022 = pneg %p56
      $region26: #{cifar_lenet_forward.6} parent=23 // pred_check_branch
        %1024 = sbr.rel (%p1022) target = $region28
      $region27: #{cifar_lenet_forward.6} parent=23 // pred_region
        _
      $region28: #{cifar_lenet_forward.6} parent=23 // pred_fallthru
        _
    $region24: #{cifar_lenet_forward.6} parent=5 // pred_fallthru
      _
    %p1025 = scmp.le.s32.totalorder 2, %s7
    // Predicated region
    $region29: #{cifar_lenet_forward.6} parent=5 // pred_check
      %p1026 = pneg %p1025
    $region30: #{cifar_lenet_forward.6} parent=5 // pred_check_branch
      %1028 = sbr.rel (%p1026) target = $region32
    $region31: #{cifar_lenet_forward.6} parent=5 // pred_region
      %s1029 = ssub.s32 %s7, 2
      // Predicated region
      $region33: #{cifar_lenet_forward.6} parent=31 // pred_check
        %p1030 = pneg %p62
      $region34: #{cifar_lenet_forward.6} parent=31 // pred_check_branch
        %1032 = sbr.rel (%p1030) target = $region36
      $region35: #{cifar_lenet_forward.6} parent=31 // pred_region
        %p1033 = scmp.lt.s32.totalorder %s13, 1
        %s1034 = scalar_select %p1033, %s13, 1
        %s1035 = smul.addr %s1034, 28
        %s1036 = smul.addr %s1035, 4
        %s1037 = scalar_lea.vmem %s1, %s1036
      $region36: #{cifar_lenet_forward.6} parent=31 // pred_fallthru
        _
    $region32: #{cifar_lenet_forward.6} parent=5 // pred_fallthru
      _
  $region6: #{cifar_lenet_forward.6} parent=0 // loop_footer
    %s11 = sadd.s32 1, %s7
  $region7: #{cifar_lenet_forward.6} parent=0 // loop_footer_branch
    %6 = sbr.rel target = $region3
  $region8: #{cifar_lenet_forward.6} parent=0 // loop_exit
    _

// kernel: cifar_lenet_forward.7
$region0: #{cifar_lenet_forward.7}
  #allocation0 [shape = 'u32[]', space=smem, size = 0x4, offset = 0x4, fixed_abs, tag = 'smem constant byte address 0x4 - core index']
  #allocation1 [shape = 'u32[72,128]{1,0:T(1,128)}', space=vmem, size = 0x9000, scoped, tag = 'internal scratch']
  %s0 = inlined_call_operand.vmem [shape: bf16[200,500], index: 0, kind: input, shape index: {}]
  %s1 = inlined_call_operand.vmem [shape: bf16[500,50], index: 1, kind: input, shape index: {}]
  %s2 = inlined_call_operand.vmem [shape: f32[1,50], index: 2, kind: input, shape index: {}]
  %s3 = inlined_call_operand.vmem [shape: bf16[200,50], index: 3, kind: output, shape index: {}]
  %s4 = sld [smem:[#allocation0]]
  $region22: #{cifar_lenet_forward.7} parent=0
    _
  %s6 = ssub.s32 1, %s4
  %s7 = scalar_select 0, %s6, %s4
  // Predicated region
  $region2: #{cifar_lenet_forward.7} parent=0 // pred_check
    _
  $region3: #{cifar_lenet_forward.7} parent=0 // pred_check_branch
    %9 = sbr.rel (0) target = $region5
  $region4: #{cifar_lenet_forward.7} parent=0 // pred_region
    _
  $region5: #{cifar_lenet_forward.7} parent=0 // pred_fallthru
    _
  // Predicated region
  $region6: #{cifar_lenet_forward.7} parent=0 // pred_check
    _
  $region7: #{cifar_lenet_forward.7} parent=0 // pred_check_branch
    %11 = sbr.rel (0) target = $region9
  $region8: #{cifar_lenet_forward.7} parent=0 // pred_region
    _
  $region9: #{cifar_lenet_forward.7} parent=0 // pred_fallthru
    _
  // Predicated region
  $region10: #{cifar_lenet_forward.7} parent=0 // pred_check
    _
  $region11: #{cifar_lenet_forward.7} parent=0 // pred_check_branch
    %13 = sbr.rel (0) target = $region13
  $region12: #{cifar_lenet_forward.7} parent=0 // pred_region
    _
  $region13: #{cifar_lenet_forward.7} parent=0 // pred_fallthru
    _
  %v14 = vld [vmem:[%s0] sm:$0xff]
  %v15 = vld [vmem:[%s0 + $0x8] sm:$0xff]
  %v16 = vld [vmem:[%s0 + $0x10] sm:$0xff]
  %v17 = vld [vmem:[%s0 + $0x18] sm:$0xff]
  %v18 = vld [vmem:[%s0 + $0x20] sm:$0xff]
  %v19 = vld [vmem:[%s0 + $0x28] sm:$0xff]
  %v20 = vld [vmem:[%s0 + $0x30] sm:$0xff]
  %v21 = vld [vmem:[%s0 + $0x38] sm:$0xff]
  %v22 = vld [vmem:[%s0 + $0x40] sm:$0xff]
  %v23 = vld [vmem:[%s0 + $0x48] sm:$0xff]
  %v24 = vld [vmem:[%s0 + $0x50] sm:$0xff]
  %v25 = vld [vmem:[%s0 + $0x58] sm:$0xff]
  %v26 = vld [vmem:[%s0 + $0x60] sm:$0xff]
  %v27 = vld [vmem:[%s0 + $0x68] sm:$0xff]
  %v28 = vld [vmem:[%s0 + $0x70] sm:$0xff]
  %v29 = vld [vmem:[%s0 + $0x78] sm:$0xff]
  %v30 = vld [vmem:[%s0 + $0x80] sm:$0xff]
  %v31 = vld [vmem:[%s0 + $0x88] sm:$0xff]
  %v32 = vld [vmem:[%s0 + $0x90] sm:$0xff]
  %v33 = vld [vmem:[%s0 + $0x98] sm:$0xff]
  %v34 = vld [vmem:[%s0 + $0xa0] sm:$0xff]
  %v35 = vld [vmem:[%s0 + $0xa8] sm:$0xff]
  %v36 = vld [vmem:[%s0 + $0xb0] sm:$0xff]
  %v37 = vld [vmem:[%s0 + $0xb8] sm:$0xff]
  %v38 = vld [vmem:[%s0 + $0xc0] sm:$0xff]
  %v39 = vld [vmem:[%s0 + $0xc8] sm:$0xff]
  %v40 = vld [vmem:[%s0 + $0xd0] sm:$0xff]
  %v41 = vld [vmem:[%s0 + $0xd8] sm:$0xff]
  %v42 = vld [vmem:[%s0 + $0xe0] sm:$0xff]
  %v43 = vld [vmem:[%s0 + $0xe8] sm:$0xff]
  %v44 = vld [vmem:[%s0 + $0xf0] sm:$0xff]
  %v45 = vld [vmem:[%s0 + $0xf8] sm:$0xff]
  %v46 = vld [vmem:[%s0 + $0x100] sm:$0xff]
  %v47 = vld [vmem:[%s0 + $0x108] sm:$0xff]
  %v48 = vld [vmem:[%s0 + $0x110] sm:$0xff]
  %v49 = vld [vmem:[%s0 + $0x118] sm:$0xff]
  %v50 = vld [vmem:[%s0 + $0x120] sm:$0xff]
  %v51 = vld [vmem:[%s0 + $0x128] sm:$0xff]
  %v52 = vld [vmem:[%s0 + $0x130] sm:$0xff]
  %v53 = vld [vmem:[%s0 + $0x138] sm:$0xff]
  %v54 = vld [vmem:[%s0 + $0x140] sm:$0xff]
  %v55 = vld [vmem:[%s0 + $0x148] sm:$0xff]
  %v56 = vld [vmem:[%s0 + $0x150] sm:$0xff]
  %v57 = vld [vmem:[%s0 + $0x158] sm:$0xff]
  %v58 = vld [vmem:[%s0 + $0x160] sm:$0xff]
  %v59 = vld [vmem:[%s0 + $0x168] sm:$0xff]
  %v60 = vld [vmem:[%s0 + $0x170] sm:$0xff]
  %v61 = vld [vmem:[%s0 + $0x178] sm:$0xff]
  %v62 = vld [vmem:[%s0 + $0x180] sm:$0xff]
  %v63 = vld [vmem:[%s0 + $0x188] sm:$0xff]
  %v64 = vld [vmem:[%s1] sm:$0xf]
  %v65 = vld [vmem:[%s1 + $0x4] sm:$0xf]
  %v66 = vld [vmem:[%s1 + $0x8] sm:$0xf]
  %v67 = vld [vmem:[%s1 + $0xc] sm:$0xf]
  %v68 = vld [vmem:[%s1 + $0x10] sm:$0xf]
  %v69 = vld [vmem:[%s1 + $0x14] sm:$0xf]
  %v70 = vld [vmem:[%s1 + $0x18] sm:$0xf]
  %v71 = vld [vmem:[%s1 + $0x1c] sm:$0xf]
  %v72 = vld [vmem:[%s1 + $0x20] sm:$0xf]
  %v73 = vld [vmem:[%s1 + $0x24] sm:$0xf]
  %v74 = vld [vmem:[%s1 + $0x28] sm:$0xf]
  %v75 = vld [vmem:[%s1 + $0x2c] sm:$0xf]
  %v76 = vld [vmem:[%s1 + $0x30] sm:$0xf]
  %v77 = vld [vmem:[%s1 + $0x34] sm:$0xf]
  %v78 = vld [vmem:[%s1 + $0x38] sm:$0xf]
  %v79 = vld [vmem:[%s1 + $0x3c] sm:$0xf]
  %v80 = vld [vmem:[%s1 + $0x40] sm:$0xf]
  %v81 = vld [vmem:[%s1 + $0x44] sm:$0xf]
  %v82 = vld [vmem:[%s1 + $0x48] sm:$0xf]
  %v83 = vld [vmem:[%s1 + $0x4c] sm:$0xf]
  %v84 = vld [vmem:[%s1 + $0x50] sm:$0xf]
  %v85 = vld [vmem:[%s1 + $0x54] sm:$0xf]
  %v86 = vld [vmem:[%s1 + $0x58] sm:$0xf]
  %v87 = vld [vmem:[%s1 + $0x5c] sm:$0xf]
  %v88 = vld [vmem:[%s1 + $0x60] sm:$0xf]
  %v89 = vld [vmem:[%s1 + $0x64] sm:$0xf]
  %v90 = vld [vmem:[%s1 + $0x68] sm:$0xf]
  %v91 = vld [vmem:[%s1 + $0x6c] sm:$0xf]
  %v92 = vld [vmem:[%s1 + $0x70] sm:$0xf]
  %v93 = vld [vmem:[%s1 + $0x74] sm:$0xf]
  %v94 = vld [vmem:[%s1 + $0x78] sm:$0xf]
  %v95 = vld [vmem:[%s1 + $0x7c] sm:$0xf]
  %v96 = vld [vmem:[%s1 + $0x80] sm:$0xf]
  %v97 = vld [vmem:[%s1 + $0x84] sm:$0xf]
  %v98 = vld [vmem:[%s1 + $0x88] sm:$0xf]
  %v99 = vld [vmem:[%s1 + $0x8c] sm:$0xf]
  %v100 = vld [vmem:[%s1 + $0x90] sm:$0xf]
  %v101 = vld [vmem:[%s1 + $0x94] sm:$0xf]
  %v102 = vld [vmem:[%s1 + $0x98] sm:$0xf]
  %v103 = vld [vmem:[%s1 + $0x9c] sm:$0xf]
  %v104 = vld [vmem:[%s1 + $0xa0] sm:$0xf]
  %v105 = vld [vmem:[%s1 + $0xa4] sm:$0xf]
  %v106 = vld [vmem:[%s1 + $0xa8] sm:$0xf]
  %v107 = vld [vmem:[%s1 + $0xac] sm:$0xf]
  %v108 = vld [vmem:[%s1 + $0xb0] sm:$0xf]
  %v109 = vld [vmem:[%s1 + $0xb4] sm:$0xf]
  %v110 = vld [vmem:[%s1 + $0xb8] sm:$0xf]
  %v111 = vld [vmem:[%s1 + $0xbc] sm:$0xf]
  %v112 = vld [vmem:[%s1 + $0xc0] sm:$0xf]
  %v113 = vld [vmem:[%s1 + $0xc4] sm:$0xf]
  %v114 = vld [vmem:[%s1 + $0xc8] sm:$0xf]
  %v115 = vld [vmem:[%s1 + $0xcc] sm:$0xf]
  %v116 = vld [vmem:[%s1 + $0xd0] sm:$0xf]
  %v117 = vld [vmem:[%s1 + $0xd4] sm:$0xf]
  %v118 = vld [vmem:[%s1 + $0xd8] sm:$0xf]
  %v119 = vld [vmem:[%s1 + $0xdc] sm:$0xf]
  %v120 = vld [vmem:[%s1 + $0xe0] sm:$0xf]
  %v121 = vld [vmem:[%s1 + $0xe4] sm:$0xf]
  %v122 = vld [vmem:[%s1 + $0xe8] sm:$0xf]
  %v123 = vld [vmem:[%s1 + $0xec] sm:$0xf]
  %v124 = vld [vmem:[%s1 + $0xf0] sm:$0xf]
  %v125 = vld [vmem:[%s1 + $0xf4] sm:$0xf]
  %v126 = vld [vmem:[%s1 + $0xf8] sm:$0x3]
  %v127 = vld [vmem:[%s2] sm:$0x1]
  %v129 = vperm.slane %v127, 0
  %v181 = vunpack.c.l.b16 %v14
  %v182 = vunpack.c.h.b16 %v14
  %v183 = vunpack.c.l.b16 %v15
  %v184 = vunpack.c.h.b16 %v15
  %v185 = vunpack.c.l.b16 %v16
  %v186 = vunpack.c.h.b16 %v16
  %v187 = vunpack.c.l.b16 %v17
  %v188 = vunpack.c.h.b16 %v17
  %v189 = vunpack.c.l.b16 %v18
  %v190 = vunpack.c.h.b16 %v18
  %v191 = vunpack.c.l.b16 %v19
  %v192 = vunpack.c.h.b16 %v19
  %v193 = vunpack.c.l.b16 %v20
  %v194 = vunpack.c.h.b16 %v20
  %v195 = vunpack.c.l.b16 %v21
  %v196 = vunpack.c.h.b16 %v21
  %v197 = vunpack.c.l.b16 %v22
  %v198 = vunpack.c.h.b16 %v22
  %v199 = vunpack.c.l.b16 %v23
  %v200 = vunpack.c.h.b16 %v23
  %v201 = vunpack.c.l.b16 %v24
  %v202 = vunpack.c.h.b16 %v24
  %v203 = vunpack.c.l.b16 %v25
  %v204 = vunpack.c.h.b16 %v25
  %v205 = vunpack.c.l.b16 %v26
  %v206 = vunpack.c.h.b16 %v26
  %v207 = vunpack.c.l.b16 %v27
  %v208 = vunpack.c.h.b16 %v27
  %v209 = vunpack.c.l.b16 %v28
  %v210 = vunpack.c.h.b16 %v28
  %v211 = vunpack.c.l.b16 %v29
  %v212 = vunpack.c.h.b16 %v29
  %v213 = vunpack.c.l.b16 %v30
  %v214 = vunpack.c.h.b16 %v30
  %v215 = vunpack.c.l.b16 %v31
  %v216 = vunpack.c.h.b16 %v31
  %v217 = vunpack.c.l.b16 %v32
  %v218 = vunpack.c.h.b16 %v32
  %v219 = vunpack.c.l.b16 %v33
  %v220 = vunpack.c.h.b16 %v33
  %v221 = vunpack.c.l.b16 %v34
  %v222 = vunpack.c.h.b16 %v34
  %v223 = vunpack.c.l.b16 %v35
  %v224 = vunpack.c.h.b16 %v35
  %v225 = vunpack.c.l.b16 %v36
  %v226 = vunpack.c.h.b16 %v36
  %v227 = vunpack.c.l.b16 %v37
  %v228 = vunpack.c.h.b16 %v37
  %v229 = vunpack.c.l.b16 %v38
  %v230 = vunpack.c.h.b16 %v38
  %v231 = vunpack.c.l.b16 %v39
  %v232 = vunpack.c.h.b16 %v39
  %v233 = vunpack.c.l.b16 %v40
  %v234 = vunpack.c.h.b16 %v40
  %v235 = vunpack.c.l.b16 %v41
  %v236 = vunpack.c.h.b16 %v41
  %v237 = vunpack.c.l.b16 %v42
  %v238 = vunpack.c.h.b16 %v42
  %v239 = vunpack.c.l.b16 %v43
  %v240 = vunpack.c.h.b16 %v43
  %v241 = vunpack.c.l.b16 %v44
  %v242 = vunpack.c.h.b16 %v44
  %v243 = vunpack.c.l.b16 %v45
  %v244 = vunpack.c.h.b16 %v45
  %v245 = vunpack.c.l.b16 %v46
  %v246 = vunpack.c.h.b16 %v46
  %v247 = vunpack.c.l.b16 %v47
  %v248 = vunpack.c.h.b16 %v47
  %v249 = vunpack.c.l.b16 %v48
  %v250 = vunpack.c.h.b16 %v48
  %v251 = vunpack.c.l.b16 %v49
  %v252 = vunpack.c.h.b16 %v49
  %v253 = vunpack.c.l.b16 %v50
  %v254 = vunpack.c.h.b16 %v50
  %v255 = vunpack.c.l.b16 %v51
  %v256 = vunpack.c.h.b16 %v51
  %v257 = vunpack.c.l.b16 %v52
  %v258 = vunpack.c.h.b16 %v52
  %v259 = vunpack.c.l.b16 %v53
  %v260 = vunpack.c.h.b16 %v53
  %v261 = vunpack.c.l.b16 %v54
  %v262 = vunpack.c.h.b16 %v54
  %v263 = vunpack.c.l.b16 %v55
  %v264 = vunpack.c.h.b16 %v55
  %v265 = vunpack.c.l.b16 %v56
  %v266 = vunpack.c.h.b16 %v56
  %v267 = vunpack.c.l.b16 %v57
  %v268 = vunpack.c.h.b16 %v57
  %v269 = vunpack.c.l.b16 %v58
  %v270 = vunpack.c.h.b16 %v58
  %v271 = vunpack.c.l.b16 %v59
  %v272 = vunpack.c.h.b16 %v59
  %v273 = vunpack.c.l.b16 %v60
  %v274 = vunpack.c.h.b16 %v60
  %v275 = vunpack.c.l.b16 %v61
  %v276 = vunpack.c.h.b16 %v61
  %v277 = vunpack.c.l.b16 %v62
  %v278 = vunpack.c.h.b16 %v62
  %v279 = vunpack.c.l.b16 %v63
  %v280 = vunpack.c.h.b16 %v63
  %v281 = vpack.c.b16 %v185, %v181
  %v282 = vpack.c.b16 %v186, %v182
  %v283 = vpack.c.b16 %v187, %v183
  %v284 = vpack.c.b16 %v188, %v184
  %v285 = vpack.c.b16 %v193, %v189
  %v286 = vpack.c.b16 %v194, %v190
  %v287 = vpack.c.b16 %v195, %v191
  %v288 = vpack.c.b16 %v196, %v192
  %v289 = vpack.c.b16 %v201, %v197
  %v290 = vpack.c.b16 %v202, %v198
  %v291 = vpack.c.b16 %v203, %v199
  %v292 = vpack.c.b16 %v204, %v200
  %v293 = vpack.c.b16 %v209, %v205
  %v294 = vpack.c.b16 %v210, %v206
  %v295 = vpack.c.b16 %v211, %v207
  %v296 = vpack.c.b16 %v212, %v208
  %v297 = vpack.c.b16 %v217, %v213
  %v298 = vpack.c.b16 %v218, %v214
  %v299 = vpack.c.b16 %v219, %v215
  %v300 = vpack.c.b16 %v220, %v216
  %v301 = vpack.c.b16 %v225, %v221
  %v302 = vpack.c.b16 %v226, %v222
  %v303 = vpack.c.b16 %v227, %v223
  %v304 = vpack.c.b16 %v228, %v224
  %v305 = vpack.c.b16 %v233, %v229
  %v306 = vpack.c.b16 %v234, %v230
  %v307 = vpack.c.b16 %v235, %v231
  %v308 = vpack.c.b16 %v236, %v232
  %v309 = vpack.c.b16 %v241, %v237
  %v310 = vpack.c.b16 %v242, %v238
  %v311 = vpack.c.b16 %v243, %v239
  %v312 = vpack.c.b16 %v244, %v240
  %v313 = vpack.c.b16 %v249, %v245
  %v314 = vpack.c.b16 %v250, %v246
  %v315 = vpack.c.b16 %v251, %v247
  %v316 = vpack.c.b16 %v252, %v248
  %v317 = vpack.c.b16 %v257, %v253
  %v318 = vpack.c.b16 %v258, %v254
  %v319 = vpack.c.b16 %v259, %v255
  %v320 = vpack.c.b16 %v260, %v256
  %v321 = vpack.c.b16 %v265, %v261
  %v322 = vpack.c.b16 %v266, %v262
  %v323 = vpack.c.b16 %v267, %v263
  %v324 = vpack.c.b16 %v268, %v264
  %v325 = vpack.c.b16 %v273, %v269
  %v326 = vpack.c.b16 %v274, %v270
  %v327 = vpack.c.b16 %v275, %v271
  %v328 = vpack.c.b16 %v276, %v272
  %v329 = vpack.c.b16 %v277, %v277
  %v330 = vpack.c.b16 %v278, %v278
  %v331 = vpack.c.b16 %v279, %v279
  %v332 = vpack.c.b16 %v280, %v280
  %v435 = vunpack.c.l.b16 %v64
  %v436 = vunpack.c.l.b16 %v65
  %v437 = vunpack.c.l.b16 %v66
  %v438 = vunpack.c.l.b16 %v67
  %v439 = vunpack.c.l.b16 %v68
  %v440 = vunpack.c.l.b16 %v69
  %v441 = vunpack.c.l.b16 %v70
  %v442 = vunpack.c.l.b16 %v71
  %v443 = vunpack.c.l.b16 %v72
  %v444 = vunpack.c.l.b16 %v73
  %v445 = vunpack.c.l.b16 %v74
  %v446 = vunpack.c.l.b16 %v75
  %v447 = vunpack.c.l.b16 %v76
  %v448 = vunpack.c.l.b16 %v77
  %v449 = vunpack.c.l.b16 %v78
  %v450 = vunpack.c.l.b16 %v79
  %v451 = vunpack.c.l.b16 %v80
  %v452 = vunpack.c.l.b16 %v81
  %v453 = vunpack.c.l.b16 %v82
  %v454 = vunpack.c.l.b16 %v83
  %v455 = vunpack.c.l.b16 %v84
  %v456 = vunpack.c.l.b16 %v85
  %v457 = vunpack.c.l.b16 %v86
  %v458 = vunpack.c.l.b16 %v87
  %v459 = vunpack.c.l.b16 %v88
  %v460 = vunpack.c.l.b16 %v89
  %v461 = vunpack.c.l.b16 %v90
  %v462 = vunpack.c.l.b16 %v91
  %v463 = vunpack.c.l.b16 %v92
  %v464 = vunpack.c.l.b16 %v93
  %v465 = vunpack.c.l.b16 %v94
  %v466 = vunpack.c.l.b16 %v95
  %v467 = vunpack.c.l.b16 %v96
  %v468 = vunpack.c.l.b16 %v97
  %v469 = vunpack.c.l.b16 %v98
  %v470 = vunpack.c.l.b16 %v99
  %v471 = vunpack.c.l.b16 %v100
  %v472 = vunpack.c.l.b16 %v101
  %v473 = vunpack.c.l.b16 %v102
  %v474 = vunpack.c.l.b16 %v103
  %v475 = vunpack.c.l.b16 %v104
  %v476 = vunpack.c.l.b16 %v105
  %v477 = vunpack.c.l.b16 %v106
  %v478 = vunpack.c.l.b16 %v107
  %v479 = vunpack.c.l.b16 %v108
  %v480 = vunpack.c.l.b16 %v109
  %v481 = vunpack.c.l.b16 %v110
  %v482 = vunpack.c.l.b16 %v111
  %v483 = vunpack.c.l.b16 %v112
  %v484 = vunpack.c.l.b16 %v113
  %v485 = vunpack.c.l.b16 %v114
  %v486 = vunpack.c.l.b16 %v115
  %v487 = vunpack.c.l.b16 %v116
  %v488 = vunpack.c.l.b16 %v117
  %v489 = vunpack.c.l.b16 %v118
  %v490 = vunpack.c.l.b16 %v119
  %v491 = vunpack.c.l.b16 %v120
  %v492 = vunpack.c.l.b16 %v121
  %v493 = vunpack.c.l.b16 %v122
  %v494 = vunpack.c.l.b16 %v123
  %v495 = vunpack.c.l.b16 %v124
  %v496 = vunpack.c.l.b16 %v125
  %v497 = vunpack.c.l.b16 %v126
  %v498 = vpack.c.b16 %v436, %v435
  %v499 = vpack.c.b16 %v438, %v437
  %v500 = vpack.c.b16 %v440, %v439
  %v501 = vpack.c.b16 %v442, %v441
  %v502 = vpack.c.b16 %v444, %v443
  %v503 = vpack.c.b16 %v446, %v445
  %v504 = vpack.c.b16 %v448, %v447
  %v505 = vpack.c.b16 %v450, %v449
  %v506 = vpack.c.b16 %v452, %v451
  %v507 = vpack.c.b16 %v454, %v453
  %v508 = vpack.c.b16 %v456, %v455
  %v509 = vpack.c.b16 %v458, %v457
  %v510 = vpack.c.b16 %v460, %v459
  %v511 = vpack.c.b16 %v462, %v461
  %v512 = vpack.c.b16 %v464, %v463
  %v513 = vpack.c.b16 %v466, %v465
  %v514 = vpack.c.b16 %v468, %v467
  %v515 = vpack.c.b16 %v470, %v469
  %v516 = vpack.c.b16 %v472, %v471
  %v517 = vpack.c.b16 %v474, %v473
  %v518 = vpack.c.b16 %v476, %v475
  %v519 = vpack.c.b16 %v478, %v477
  %v520 = vpack.c.b16 %v480, %v479
  %v521 = vpack.c.b16 %v482, %v481
  %v522 = vpack.c.b16 %v484, %v483
  %v523 = vpack.c.b16 %v486, %v485
  %v524 = vpack.c.b16 %v488, %v487
  %v525 = vpack.c.b16 %v490, %v489
  %v526 = vpack.c.b16 %v492, %v491
  %v527 = vpack.c.b16 %v494, %v493
  %v528 = vpack.c.b16 %v496, %v495
  %v529 = vpack.c.b16 %v497, %v497
  %vm561 = vcmask 949248
  %v563 = vsel %vm561, %v284, 0
  %v566 = vsel %vm561, %v288, 0
  %v569 = vsel %vm561, %v292, 0
  %v572 = vsel %vm561, %v296, 0
  %v575 = vsel %vm561, %v300, 0
  %v578 = vsel %vm561, %v304, 0
  %v581 = vsel %vm561, %v308, 0
  %v584 = vsel %vm561, %v312, 0
  %v587 = vsel %vm561, %v316, 0
  %v590 = vsel %vm561, %v320, 0
  %v593 = vsel %vm561, %v324, 0
  %v596 = vsel %vm561, %v328, 0
  %v599 = vsel %vm561, %v332, 0
  %vm601 = vcmask 1041408
  %v603 = vsel %vm601, %v529, 0
  %605 = vmatpush.bf16.msra.mxu0 %v505
  %606 = vmatpush.bf16.msra.mxu0 %v504
  %607 = vmatpush.bf16.msra.mxu0 %v503
  %608 = vmatpush.bf16.msra.mxu0 %v502
  %609 = vmatpush.bf16.msra.mxu0 %v501
  %610 = vmatpush.bf16.msra.mxu0 %v500
  %611 = vmatpush.bf16.msra.mxu0 %v499
  %612 = vmatpush.bf16.msra.mxu0 %v498
  %613 = vmatmul.bf16.gmra.mxu0 %v281
  %v614 = vpop.f32.mrf.mxu0
  %v615 = vadd.f32 %v129, %v614
  %v616 = vpop.f32.mrf.mxu0
  %v617 = vadd.f32 %v129, %v616
  %618 = vmatmul.bf16.gmra.mxu0 %v285
  %v619 = vpop.f32.mrf.mxu0
  %v620 = vadd.f32 %v129, %v619
  %v621 = vpop.f32.mrf.mxu0
  %v622 = vadd.f32 %v129, %v621
  %623 = vmatmul.bf16.gmra.mxu0 %v289
  %v624 = vpop.f32.mrf.mxu0
  %v625 = vadd.f32 %v129, %v624
  %v626 = vpop.f32.mrf.mxu0
  %v627 = vadd.f32 %v129, %v626
  %628 = vmatmul.bf16.gmra.mxu0 %v293
  %v629 = vpop.f32.mrf.mxu0
  %v630 = vadd.f32 %v129, %v629
  %v631 = vpop.f32.mrf.mxu0
  %v632 = vadd.f32 %v129, %v631
  %633 = vmatmul.bf16.gmra.mxu0 %v297
  %v634 = vpop.f32.mrf.mxu0
  %v635 = vadd.f32 %v129, %v634
  %v636 = vpop.f32.mrf.mxu0
  %v637 = vadd.f32 %v129, %v636
  %638 = vmatmul.bf16.gmra.mxu0 %v301
  %v639 = vpop.f32.mrf.mxu0
  %v640 = vadd.f32 %v129, %v639
  %v641 = vpop.f32.mrf.mxu0
  %v642 = vadd.f32 %v129, %v641
  %643 = vmatmul.bf16.gmra.mxu0 %v305
  %v644 = vpop.f32.mrf.mxu0
  %v645 = vadd.f32 %v129, %v644
  %v646 = vpop.f32.mrf.mxu0
  %v647 = vadd.f32 %v129, %v646
  %648 = vmatmul.bf16.gmra.mxu0 %v309
  %v649 = vpop.f32.mrf.mxu0
  %v650 = vadd.f32 %v129, %v649
  %v651 = vpop.f32.mrf.mxu0
  %v652 = vadd.f32 %v129, %v651
  %653 = vmatmul.bf16.gmra.mxu0 %v313
  %v654 = vpop.f32.mrf.mxu0
  %v655 = vadd.f32 %v129, %v654
  %v656 = vpop.f32.mrf.mxu0
  %v657 = vadd.f32 %v129, %v656
  %658 = vmatmul.bf16.gmra.mxu0 %v317
  %v659 = vpop.f32.mrf.mxu0
  %v660 = vadd.f32 %v129, %v659
  %v661 = vpop.f32.mrf.mxu0
  %v662 = vadd.f32 %v129, %v661
  %663 = vmatmul.bf16.gmra.mxu0 %v321
  %v664 = vpop.f32.mrf.mxu0
  %v665 = vadd.f32 %v129, %v664
  %v666 = vpop.f32.mrf.mxu0
  %v667 = vadd.f32 %v129, %v666
  %668 = vmatmul.bf16.gmra.mxu0 %v325
  %v669 = vpop.f32.mrf.mxu0
  %v670 = vadd.f32 %v129, %v669
  %v671 = vpop.f32.mrf.mxu0
  %v672 = vadd.f32 %v129, %v671
  %673 = vmatmul.bf16.gmra.mxu0 %v329
  %v674 = vpop.f32.mrf.mxu0
  %v675 = vadd.f32 %v129, %v674
  %v676 = vpop.f32.mrf.mxu0
  %677 = vdwg.mxu0
  %678 = vmatpush.bf16.msra.mxu0 %v513
  %679 = vmatpush.bf16.msra.mxu0 %v512
  %680 = vmatpush.bf16.msra.mxu0 %v511
  %681 = vmatpush.bf16.msra.mxu0 %v510
  %682 = vmatpush.bf16.msra.mxu0 %v509
  %683 = vmatpush.bf16.msra.mxu0 %v508
  %684 = vmatpush.bf16.msra.mxu0 %v507
  %685 = vmatpush.bf16.msra.mxu0 %v506
  %686 = vmatmul.bf16.gmra.mxu0 %v282
  %v687 = vpop.f32.mrf.mxu0
  %v688 = vadd.f32 %v615, %v687
  %v689 = vpop.f32.mrf.mxu0
  %v690 = vadd.f32 %v617, %v689
  %691 = vmatmul.bf16.gmra.mxu0 %v286
  %v692 = vpop.f32.mrf.mxu0
  %v693 = vadd.f32 %v620, %v692
  %v694 = vpop.f32.mrf.mxu0
  %v695 = vadd.f32 %v622, %v694
  %696 = vmatmul.bf16.gmra.mxu0 %v290
  %v697 = vpop.f32.mrf.mxu0
  %v698 = vadd.f32 %v625, %v697
  %v699 = vpop.f32.mrf.mxu0
  %v700 = vadd.f32 %v627, %v699
  %701 = vmatmul.bf16.gmra.mxu0 %v294
  %v702 = vpop.f32.mrf.mxu0
  %v703 = vadd.f32 %v630, %v702
  %v704 = vpop.f32.mrf.mxu0
  %v705 = vadd.f32 %v632, %v704
  %706 = vmatmul.bf16.gmra.mxu0 %v298
  %v707 = vpop.f32.mrf.mxu0
  %v708 = vadd.f32 %v635, %v707
  %v709 = vpop.f32.mrf.mxu0
  %v710 = vadd.f32 %v637, %v709
  %711 = vmatmul.bf16.gmra.mxu0 %v302
  %v712 = vpop.f32.mrf.mxu0
  %v713 = vadd.f32 %v640, %v712
  %v714 = vpop.f32.mrf.mxu0
  %v715 = vadd.f32 %v642, %v714
  %716 = vmatmul.bf16.gmra.mxu0 %v306
  %v717 = vpop.f32.mrf.mxu0
  %v718 = vadd.f32 %v645, %v717
  %v719 = vpop.f32.mrf.mxu0
  %v720 = vadd.f32 %v647, %v719
  %721 = vmatmul.bf16.gmra.mxu0 %v310
  %v722 = vpop.f32.mrf.mxu0
  %v723 = vadd.f32 %v650, %v722
  %v724 = vpop.f32.mrf.mxu0
  %v725 = vadd.f32 %v652, %v724
  %726 = vmatmul.bf16.gmra.mxu0 %v314
  %v727 = vpop.f32.mrf.mxu0
  %v728 = vadd.f32 %v655, %v727
  %v729 = vpop.f32.mrf.mxu0
  %v730 = vadd.f32 %v657, %v729
  %731 = vmatmul.bf16.gmra.mxu0 %v318
  %v732 = vpop.f32.mrf.mxu0
  %v733 = vadd.f32 %v660, %v732
  %v734 = vpop.f32.mrf.mxu0
  %v735 = vadd.f32 %v662, %v734
  %736 = vmatmul.bf16.gmra.mxu0 %v322
  %v737 = vpop.f32.mrf.mxu0
  %v738 = vadd.f32 %v665, %v737
  %v739 = vpop.f32.mrf.mxu0
  %v740 = vadd.f32 %v667, %v739
  %741 = vmatmul.bf16.gmra.mxu0 %v326
  %v742 = vpop.f32.mrf.mxu0
  %v743 = vadd.f32 %v670, %v742
  %v744 = vpop.f32.mrf.mxu0
  %v745 = vadd.f32 %v672, %v744
  %746 = vmatmul.bf16.gmra.mxu0 %v330
  %v747 = vpop.f32.mrf.mxu0
  %v748 = vadd.f32 %v675, %v747
  %v749 = vpop.f32.mrf.mxu0
  %750 = vdwg.mxu0
  %751 = vmatpush.bf16.msra.mxu0 %v521
  %752 = vmatpush.bf16.msra.mxu0 %v520
  %753 = vmatpush.bf16.msra.mxu0 %v519
  %754 = vmatpush.bf16.msra.mxu0 %v518
  %755 = vmatpush.bf16.msra.mxu0 %v517
  %756 = vmatpush.bf16.msra.mxu0 %v516
  %757 = vmatpush.bf16.msra.mxu0 %v515
  %758 = vmatpush.bf16.msra.mxu0 %v514
  %759 = vmatmul.bf16.gmra.mxu0 %v283
  %v760 = vpop.f32.mrf.mxu0
  %v761 = vadd.f32 %v688, %v760
  %v762 = vpop.f32.mrf.mxu0
  %v763 = vadd.f32 %v690, %v762
  %764 = vmatmul.bf16.gmra.mxu0 %v287
  %v765 = vpop.f32.mrf.mxu0
  %v766 = vadd.f32 %v693, %v765
  %v767 = vpop.f32.mrf.mxu0
  %v768 = vadd.f32 %v695, %v767
  %769 = vmatmul.bf16.gmra.mxu0 %v291
  %v770 = vpop.f32.mrf.mxu0
  %v771 = vadd.f32 %v698, %v770
  %v772 = vpop.f32.mrf.mxu0
  %v773 = vadd.f32 %v700, %v772
  %774 = vmatmul.bf16.gmra.mxu0 %v295
  %v775 = vpop.f32.mrf.mxu0
  %v776 = vadd.f32 %v703, %v775
  %v777 = vpop.f32.mrf.mxu0
  %v778 = vadd.f32 %v705, %v777
  %779 = vmatmul.bf16.gmra.mxu0 %v299
  %v780 = vpop.f32.mrf.mxu0
  %v781 = vadd.f32 %v708, %v780
  %v782 = vpop.f32.mrf.mxu0
  %v783 = vadd.f32 %v710, %v782
  %784 = vmatmul.bf16.gmra.mxu0 %v303
  %v785 = vpop.f32.mrf.mxu0
  %v786 = vadd.f32 %v713, %v785
  %v787 = vpop.f32.mrf.mxu0
  %v788 = vadd.f32 %v715, %v787
  %789 = vmatmul.bf16.gmra.mxu0 %v307
  %v790 = vpop.f32.mrf.mxu0
  %v791 = vadd.f32 %v718, %v790
  %v792 = vpop.f32.mrf.mxu0
  %v793 = vadd.f32 %v720, %v792
  %794 = vmatmul.bf16.gmra.mxu0 %v311
  %v795 = vpop.f32.mrf.mxu0
  %v796 = vadd.f32 %v723, %v795
  %v797 = vpop.f32.mrf.mxu0
  %v798 = vadd.f32 %v725, %v797
  %799 = vmatmul.bf16.gmra.mxu0 %v315
  %v800 = vpop.f32.mrf.mxu0
  %v801 = vadd.f32 %v728, %v800
  %v802 = vpop.f32.mrf.mxu0
  %v803 = vadd.f32 %v730, %v802
  %804 = vmatmul.bf16.gmra.mxu0 %v319
  %v805 = vpop.f32.mrf.mxu0
  %v806 = vadd.f32 %v733, %v805
  %v807 = vpop.f32.mrf.mxu0
  %v808 = vadd.f32 %v735, %v807
  %809 = vmatmul.bf16.gmra.mxu0 %v323
  %v810 = vpop.f32.mrf.mxu0
  %v811 = vadd.f32 %v738, %v810
  %v812 = vpop.f32.mrf.mxu0
  %v813 = vadd.f32 %v740, %v812
  %814 = vmatmul.bf16.gmra.mxu0 %v327
  %v815 = vpop.f32.mrf.mxu0
  %v816 = vadd.f32 %v743, %v815
  %v817 = vpop.f32.mrf.mxu0
  %v818 = vadd.f32 %v745, %v817
  %819 = vmatmul.bf16.gmra.mxu0 %v331
  %v820 = vpop.f32.mrf.mxu0
  %v821 = vadd.f32 %v748, %v820
  %v822 = vpop.f32.mrf.mxu0
  %823 = vdwg.mxu0
  %824 = vmatpush.bf16.msra.mxu0 %v603
  %825 = vmatpush.bf16.msra.mxu0 %v528
  %826 = vmatpush.bf16.msra.mxu0 %v527
  %827 = vmatpush.bf16.msra.mxu0 %v526
  %828 = vmatpush.bf16.msra.mxu0 %v525
  %829 = vmatpush.bf16.msra.mxu0 %v524
  %830 = vmatpush.bf16.msra.mxu0 %v523
  %831 = vmatpush.bf16.msra.mxu0 %v522
  %832 = vmatmul.bf16.gmra.mxu0 %v563
  %v833 = vpop.f32.mrf.mxu0
  %v834 = vadd.f32 %v761, %v833
  %v835 = vpop.f32.mrf.mxu0
  %v836 = vadd.f32 %v763, %v835
  %837 = vmatmul.bf16.gmra.mxu0 %v566
  %v838 = vpop.f32.mrf.mxu0
  %v839 = vadd.f32 %v766, %v838
  %v840 = vpop.f32.mrf.mxu0
  %v841 = vadd.f32 %v768, %v840
  %842 = vmatmul.bf16.gmra.mxu0 %v569
  %v843 = vpop.f32.mrf.mxu0
  %v844 = vadd.f32 %v771, %v843
  %v845 = vpop.f32.mrf.mxu0
  %v846 = vadd.f32 %v773, %v845
  %847 = vmatmul.bf16.gmra.mxu0 %v572
  %v848 = vpop.f32.mrf.mxu0
  %v849 = vadd.f32 %v776, %v848
  %v850 = vpop.f32.mrf.mxu0
  %v851 = vadd.f32 %v778, %v850
  %852 = vmatmul.bf16.gmra.mxu0 %v575
  %v853 = vpop.f32.mrf.mxu0
  %v854 = vadd.f32 %v781, %v853
  %v855 = vpop.f32.mrf.mxu0
  %v856 = vadd.f32 %v783, %v855
  %857 = vmatmul.bf16.gmra.mxu0 %v578
  %v858 = vpop.f32.mrf.mxu0
  %v859 = vadd.f32 %v786, %v858
  %v860 = vpop.f32.mrf.mxu0
  %v861 = vadd.f32 %v788, %v860
  %862 = vmatmul.bf16.gmra.mxu0 %v581
  %v863 = vpop.f32.mrf.mxu0
  %v864 = vadd.f32 %v791, %v863
  %v865 = vpop.f32.mrf.mxu0
  %v866 = vadd.f32 %v793, %v865
  %867 = vmatmul.bf16.gmra.mxu0 %v584
  %v868 = vpop.f32.mrf.mxu0
  %v869 = vadd.f32 %v796, %v868
  %v870 = vpop.f32.mrf.mxu0
  %v871 = vadd.f32 %v798, %v870
  %872 = vmatmul.bf16.gmra.mxu0 %v587
  %v873 = vpop.f32.mrf.mxu0
  %v874 = vadd.f32 %v801, %v873
  %v875 = vpop.f32.mrf.mxu0
  %v876 = vadd.f32 %v803, %v875
  %877 = vmatmul.bf16.gmra.mxu0 %v590
  %v878 = vpop.f32.mrf.mxu0
  %v879 = vadd.f32 %v806, %v878
  %v880 = vpop.f32.mrf.mxu0
  %v881 = vadd.f32 %v808, %v880
  %882 = vmatmul.bf16.gmra.mxu0 %v593
  %v883 = vpop.f32.mrf.mxu0
  %v884 = vadd.f32 %v811, %v883
  %v885 = vpop.f32.mrf.mxu0
  %v886 = vadd.f32 %v813, %v885
  %887 = vmatmul.bf16.gmra.mxu0 %v596
  %v888 = vpop.f32.mrf.mxu0
  %v889 = vadd.f32 %v816, %v888
  %v890 = vpop.f32.mrf.mxu0
  %v891 = vadd.f32 %v818, %v890
  %892 = vmatmul.bf16.gmra.mxu0 %v599
  %v893 = vpop.f32.mrf.mxu0
  %v894 = vadd.f32 %v821, %v893
  %v895 = vpop.f32.mrf.mxu0
  %896 = vdwg.mxu0
  %v897 = vmax.f32 %v834, 0.0
  %v898 = vmax.f32 %v836, 0.0
  %v899 = vmax.f32 %v839, 0.0
  %v900 = vmax.f32 %v841, 0.0
  %v901 = vmax.f32 %v844, 0.0
  %v902 = vmax.f32 %v846, 0.0
  %v903 = vmax.f32 %v849, 0.0
  %v904 = vmax.f32 %v851, 0.0
  %v905 = vmax.f32 %v854, 0.0
  %v906 = vmax.f32 %v856, 0.0
  %v907 = vmax.f32 %v859, 0.0
  %v908 = vmax.f32 %v861, 0.0
  %v909 = vmax.f32 %v864, 0.0
  %v910 = vmax.f32 %v866, 0.0
  %v911 = vmax.f32 %v869, 0.0
  %v912 = vmax.f32 %v871, 0.0
  %v913 = vmax.f32 %v874, 0.0
  %v914 = vmax.f32 %v876, 0.0
  %v915 = vmax.f32 %v879, 0.0
  %v916 = vmax.f32 %v881, 0.0
  %v917 = vmax.f32 %v884, 0.0
  %v918 = vmax.f32 %v886, 0.0
  %v919 = vmax.f32 %v889, 0.0
  %v920 = vmax.f32 %v891, 0.0
  %v921 = vmax.f32 %v894, 0.0
  %v922 = vpack.c.bf16 %v897, %v897
  %v923 = vpack.c.bf16 %v898, %v898
  %v924 = vpack.c.bf16 %v899, %v899
  %v925 = vpack.c.bf16 %v900, %v900
  %v926 = vpack.c.bf16 %v901, %v901
  %v927 = vpack.c.bf16 %v902, %v902
  %v928 = vpack.c.bf16 %v903, %v903
  %v929 = vpack.c.bf16 %v904, %v904
  %v930 = vpack.c.bf16 %v905, %v905
  %v931 = vpack.c.bf16 %v906, %v906
  %v932 = vpack.c.bf16 %v907, %v907
  %v933 = vpack.c.bf16 %v908, %v908
  %v934 = vpack.c.bf16 %v909, %v909
  %v935 = vpack.c.bf16 %v910, %v910
  %v936 = vpack.c.bf16 %v911, %v911
  %v937 = vpack.c.bf16 %v912, %v912
  %v938 = vpack.c.bf16 %v913, %v913
  %v939 = vpack.c.bf16 %v914, %v914
  %v940 = vpack.c.bf16 %v915, %v915
  %v941 = vpack.c.bf16 %v916, %v916
  %v942 = vpack.c.bf16 %v917, %v917
  %v943 = vpack.c.bf16 %v918, %v918
  %v944 = vpack.c.bf16 %v919, %v919
  %v945 = vpack.c.bf16 %v920, %v920
  %v946 = vpack.c.bf16 %v921, %v921
  %vm947 = vcmask 404480
  %948 = vst.msk [vmem:[%s3] sm:$0xf] %vm947, %v922
  %949 = vst.msk [vmem:[%s3 + $0x4] sm:$0xf] %vm947, %v923
  %950 = vst.msk [vmem:[%s3 + $0x8] sm:$0xf] %vm947, %v924
  %951 = vst.msk [vmem:[%s3 + $0xc] sm:$0xf] %vm947, %v925
  %952 = vst.msk [vmem:[%s3 + $0x10] sm:$0xf] %vm947, %v926
  %953 = vst.msk [vmem:[%s3 + $0x14] sm:$0xf] %vm947, %v927
  %954 = vst.msk [vmem:[%s3 + $0x18] sm:$0xf] %vm947, %v928
  %955 = vst.msk [vmem:[%s3 + $0x1c] sm:$0xf] %vm947, %v929
  %956 = vst.msk [vmem:[%s3 + $0x20] sm:$0xf] %vm947, %v930
  %957 = vst.msk [vmem:[%s3 + $0x24] sm:$0xf] %vm947, %v931
  %958 = vst.msk [vmem:[%s3 + $0x28] sm:$0xf] %vm947, %v932
  %959 = vst.msk [vmem:[%s3 + $0x2c] sm:$0xf] %vm947, %v933
  %960 = vst.msk [vmem:[%s3 + $0x30] sm:$0xf] %vm947, %v934
  %961 = vst.msk [vmem:[%s3 + $0x34] sm:$0xf] %vm947, %v935
  %962 = vst.msk [vmem:[%s3 + $0x38] sm:$0xf] %vm947, %v936
  %963 = vst.msk [vmem:[%s3 + $0x3c] sm:$0xf] %vm947, %v937
  %964 = vst.msk [vmem:[%s3 + $0x40] sm:$0xf] %vm947, %v938
  %965 = vst.msk [vmem:[%s3 + $0x44] sm:$0xf] %vm947, %v939
  %966 = vst.msk [vmem:[%s3 + $0x48] sm:$0xf] %vm947, %v940
  %967 = vst.msk [vmem:[%s3 + $0x4c] sm:$0xf] %vm947, %v941
  %968 = vst.msk [vmem:[%s3 + $0x50] sm:$0xf] %vm947, %v942
  %969 = vst.msk [vmem:[%s3 + $0x54] sm:$0xf] %vm947, %v943
  %970 = vst.msk [vmem:[%s3 + $0x58] sm:$0xf] %vm947, %v944
  %971 = vst.msk [vmem:[%s3 + $0x5c] sm:$0xf] %vm947, %v945
  %972 = vst.msk [vmem:[%s3 + $0x60] sm:$0xf] %vm947, %v946
  // Predicated region
  $region14: #{cifar_lenet_forward.7} parent=0 // pred_check
    _
  $region15: #{cifar_lenet_forward.7} parent=0 // pred_check_branch
    %974 = sbr.rel (0) target = $region17
  $region16: #{cifar_lenet_forward.7} parent=0 // pred_region
    _
  $region17: #{cifar_lenet_forward.7} parent=0 // pred_fallthru
    _
  // Predicated region
  $region18: #{cifar_lenet_forward.7} parent=0 // pred_check
    _
  $region19: #{cifar_lenet_forward.7} parent=0 // pred_check_branch
    %976 = sbr.rel (0) target = $region21
  $region20: #{cifar_lenet_forward.7} parent=0 // pred_region
    _
  $region21: #{cifar_lenet_forward.7} parent=0 // pred_fallthru
    _

// kernel: cifar_lenet_forward.8
$region0: #{cifar_lenet_forward.8}
  #allocation0 [shape = 'u32[]', space=smem, size = 0x4, offset = 0x4, fixed_abs, tag = 'smem constant byte address 0x4 - core index']
  #allocation1 [shape = 'u32[72,128]{1,0:T(1,128)}', space=vmem, size = 0x9000, scoped, tag = 'internal scratch']
  %s0 = inlined_call_operand.vmem [shape: bf16[2,10,10,50], index: 0, kind: input, shape index: {}]
  %s1 = inlined_call_operand.vmem [shape: bf16[2,5,5,50], index: 1, kind: output, shape index: {}]
  %s2 = sld [smem:[#allocation0]]
  $region37: #{cifar_lenet_forward.8} parent=0
    _
  %s4 = ssub.s32 1, %s2
  %s5 = scalar_select 0, %s4, %s2
  loop: start=0, step=1, limit=4
  $region2: #{cifar_lenet_forward.8} parent=0 // loop_pre_header
    _
  $region3: #{cifar_lenet_forward.8} parent=0 // loop_header
    %s7 = sphi 0, %s11
    %p8 = scmp.ge.s32.totalorder %s7, 4
    %s17 = sphi 0, %s19
    %s20 = sphi 0, %s17
    %s21 = sphi 0, %s20
    %s37 = sphi 0, %s21
    %s43 = sphi 0, %s45
    %s46 = sphi 0, %s43
    %s47 = sphi 0, %s46
    %s63 = sphi 0, %s47
  $region4: #{cifar_lenet_forward.8} parent=0 // loop_header_branch
    %10 = sbr.rel (%p8) target = $region8
  $region5: #{cifar_lenet_forward.8} parent=0 // loop_body
    %s12 = ssub.s32 %s7, 1
    %s13 = ssub.s32 %s7, 2
    %s14 = sadd.s32 %s7, 1
    %s15 = ssub.s32 %s7, %s14
    %p16 = scmp.eq.s32.totalorder %s15, 0
    %s18 = sadd.s32 %s17, 1
    %s19 = scalar_select %p16, %s17, %s18
    %p22 = pneg %p16
    %p23 = scmp.eq.s32.totalorder %s7, 1
    %p24 = por %p22, %p23
    %p25 = scmp.ne.s32.totalorder %s17, %s20
    %p26 = scmp.eq.s32.totalorder %s7, 0
    %p27 = por %p25, %p26
    %p28 = scmp.ne.s32.totalorder %s17, %s20
    %p29 = scmp.eq.s32.totalorder %s12, 1
    %p30 = por %p28, %p29
    %p31 = scmp.ne.s32.totalorder %s20, %s21
    %p32 = scmp.eq.s32.totalorder %s12, 0
    %p33 = por %p31, %p32
    %p34 = scmp.ne.s32.totalorder %s20, %s21
    %p35 = scmp.eq.s32.totalorder %s13, 1
    %p36 = por %p34, %p35
    %p38 = scmp.ne.s32.totalorder %s21, %s37
    %p39 = scmp.eq.s32.totalorder %s13, 0
    %p40 = por %p38, %p39
    %s41 = ssub.s32 %s7, %s14
    %p42 = scmp.eq.s32.totalorder %s41, 0
    %s44 = sadd.s32 %s43, 1
    %s45 = scalar_select %p42, %s43, %s44
    %p48 = pneg %p42
    %p49 = scmp.eq.s32.totalorder %s7, 1
    %p50 = por %p48, %p49
    %p51 = scmp.ne.s32.totalorder %s43, %s46
    %p52 = scmp.eq.s32.totalorder %s7, 0
    %p53 = por %p51, %p52
    %p54 = scmp.ne.s32.totalorder %s43, %s46
    %p55 = scmp.eq.s32.totalorder %s12, 1
    %p56 = por %p54, %p55
    %p57 = scmp.ne.s32.totalorder %s46, %s47
    %p58 = scmp.eq.s32.totalorder %s12, 0
    %p59 = por %p57, %p58
    %p60 = scmp.ne.s32.totalorder %s46, %s47
    %p61 = scmp.eq.s32.totalorder %s13, 1
    %p62 = por %p60, %p61
    %p64 = scmp.ne.s32.totalorder %s47, %s63
    %p65 = scmp.eq.s32.totalorder %s13, 0
    %p66 = por %p64, %p65
    %p67 = scmp.le.s32.totalorder 1, %s7
    %p68 = scmp.lt.s32.totalorder %s7, 3
    %p69 = pnand %p67, %p68
    %p70 = pneg %p69
    // Predicated region
    $region9: #{cifar_lenet_forward.8} parent=5 // pred_check
      _
    $region10: #{cifar_lenet_forward.8} parent=5 // pred_check_branch
      %72 = sbr.rel (%p69) target = $region12
    $region11: #{cifar_lenet_forward.8} parent=5 // pred_region
      %s73 = ssub.s32 %s7, 1
    $region12: #{cifar_lenet_forward.8} parent=5 // pred_fallthru
      _
    %p74 = scmp.lt.s32.totalorder %s7, 2
    // Predicated region
    $region13: #{cifar_lenet_forward.8} parent=5 // pred_check
      %p75 = pneg %p74
    $region14: #{cifar_lenet_forward.8} parent=5 // pred_check_branch
      %77 = sbr.rel (%p75) target = $region16
    $region15: #{cifar_lenet_forward.8} parent=5 // pred_region
      // Predicated region
      $region17: #{cifar_lenet_forward.8} parent=15 // pred_check
        %p78 = pneg %p27
      $region18: #{cifar_lenet_forward.8} parent=15 // pred_check_branch
        %80 = sbr.rel (%p78) target = $region20
      $region19: #{cifar_lenet_forward.8} parent=15 // pred_region
        %p81 = scmp.lt.s32.totalorder %s7, 1
        %s82 = scalar_select %p81, %s7, 1
        %s83 = smul.addr %s82, 20
        %s84 = smul.addr %s83, 4
        %s85 = scalar_lea.vmem %s0, %s84
      $region20: #{cifar_lenet_forward.8} parent=15 // pred_fallthru
        _
    $region16: #{cifar_lenet_forward.8} parent=5 // pred_fallthru
      _
    %p86 = scmp.le.s32.totalorder 1, %s7
    %p87 = scmp.lt.s32.totalorder %s7, 3
    %p88 = pnand %p86, %p87
    %p89 = pneg %p88
    // Predicated region
    $region21: #{cifar_lenet_forward.8} parent=5 // pred_check
      _
    $region22: #{cifar_lenet_forward.8} parent=5 // pred_check_branch
      %91 = sbr.rel (%p88) target = $region24
    $region23: #{cifar_lenet_forward.8} parent=5 // pred_region
      %s92 = ssub.s32 %s7, 1
      %p93 = scmp.lt.s32.totalorder %s12, 1
      %s94 = scalar_select %p93, %s12, 1
      %s95 = smul.addr %s94, 20
      %s96 = smul.addr %s95, 4
      %s97 = scalar_lea.vmem %s0, %s96
      %p98 = pneg %p33
      %p99 = pneg %p30
      %p100 = pneg %p59
      %p101 = pneg %p56
      %p102 = scmp.lt.s32.totalorder %s12, 1
      %s103 = scalar_select %p102, %s12, 1
      %s104 = smul.addr %s103, 5
      %s105 = smul.addr %s104, 4
      %s106 = scalar_lea.vmem %s1, %s105
      %p107 = scmp.lt.s32.totalorder %s12, 1
      %s108 = scalar_select %p107, %s12, 1
      %s109 = smul.addr %s108, 20
      %s110 = smul.addr %s109, 4
      %s111 = scalar_lea.vmem %s0, %s110
      %p112 = scmp.lt.s32.totalorder %s12, 1
      %s113 = scalar_select %p112, %s12, 1
      %s114 = smul.addr %s113, 5
      %s115 = smul.addr %s114, 4
      %s116 = scalar_lea.vmem %s1, %s115
      %v118 = vlaneseq
      %v119 = vshrl.u32 %v118, 7
      %v120 = vlaneseq
      %v121 = vand.u32 %v120, 127
      %v122 = vmul.u32 %v119, 2
      %vm123 = vcmp.eq.s32.totalorder %v121, %v122
      %v124 = vsel %vm123, 1, 0
      %v125 = vcvt.s32.f32 %v124
      %v126 = vpack.c.bf16 %v125, %v125
      %v127 = vadd.s32 %v122, 1
      %vm128 = vcmp.eq.s32.totalorder %v121, %v127
      %v129 = vsel %vm128, 1, 0
      %v130 = vcvt.s32.f32 %v129
      %v131 = vpack.c.bf16 %v130, %v130
      %v132 = vld [vmem:[%s111] sm:$0xf]
      %v133 = vld [vmem:[%s111 + $0x4] sm:$0x1]
      %s134 = scalar_lea.vmem %s111, 8
      %v135 = vld [vmem:[%s134] sm:$0xf]
      %v136 = vld [vmem:[%s134 + $0x4] sm:$0x1]
      %v137 = vunpack.c.l.bf16 %v132
      %v138 = vunpack.c.l.bf16 %v133
      %v139 = vunpack.c.l.bf16 %v135
      %v140 = vunpack.c.l.bf16 %v136
      %v141 = vmax.f32 %v137, %v139
      %v142 = vmax.f32 %v138, %v140
      %v143 = vpack.c.bf16 %v142, %v141
      %vm144 = vcmask 80896
      %v146 = vsel %vm144, %v126, 0
      %vm148 = vcmask 1044480
      %v150 = vsel %vm148, %v143, 0
      %152 = vmatpush.bf16.msra.mxu0 0
      %153 = vmatpush.bf16.msra.mxu0 0
      %154 = vmatpush.bf16.msra.mxu0 0
      %155 = vmatpush.bf16.msra.mxu0 0
      %156 = vmatpush.bf16.msra.mxu0 0
      %157 = vmatpush.bf16.msra.mxu0 0
      %158 = vmatpush.bf16.msra.mxu0 0
      %159 = vmatpush.bf16.msra.mxu0 %v150
      %160 = vmatmul.bf16.gmra.mxu0 %v146
      %v161 = vpop.f32.mrf.mxu0
      %v162 = vadd.f32 0.0, %v161
      %v163 = vpop.f32.mrf.mxu0
      %164 = vdwg.mxu0
      %v166 = vsel %vm144, %v131, 0
      %168 = vmatpush.bf16.msra.mxu0 0
      %169 = vmatpush.bf16.msra.mxu0 0
      %170 = vmatpush.bf16.msra.mxu0 0
      %171 = vmatpush.bf16.msra.mxu0 0
      %172 = vmatpush.bf16.msra.mxu0 0
      %173 = vmatpush.bf16.msra.mxu0 0
      %174 = vmatpush.bf16.msra.mxu0 0
      %175 = vmatpush.bf16.msra.mxu0 %v150
      %176 = vmatmul.bf16.gmra.mxu0 %v166
      %v177 = vpop.f32.mrf.mxu0
      %v178 = vadd.f32 0.0, %v177
      %v179 = vpop.f32.mrf.mxu0
      %180 = vdwg.mxu0
      %v181 = vmax.f32 %v162, %v178
      %v182 = vpack.c.bf16 %v181, %v181
      %vm183 = vcmask 403456
      %vm184 = vsmask.f32 2304
      %vm185 = vmand %vm183, %vm184
      %v186 = vld [vmem:[%s116] sm:$0x7]
      %v187 = vsel %vm185, %v182, %v186
      %188 = vst [vmem:[%s116] sm:$0x7] %v187
      %s189 = scalar_lea.vmem %s111, 16
      %v190 = vld [vmem:[%s189] sm:$0xf]
      %v191 = vld [vmem:[%s189 + $0x4] sm:$0x1]
      %s192 = scalar_lea.vmem %s111, 24
      %v193 = vld [vmem:[%s192] sm:$0xf]
      %v194 = vld [vmem:[%s192 + $0x4] sm:$0x1]
      %v195 = vunpack.c.l.bf16 %v190
      %v196 = vunpack.c.l.bf16 %v191
      %v197 = vunpack.c.l.bf16 %v193
      %v198 = vunpack.c.l.bf16 %v194
      %v199 = vmax.f32 %v195, %v197
      %v200 = vmax.f32 %v196, %v198
      %v201 = vpack.c.bf16 %v200, %v199
      %v203 = vsel %vm148, %v201, 0
      %205 = vmatpush.bf16.msra.mxu0 0
      %206 = vmatpush.bf16.msra.mxu0 0
      %207 = vmatpush.bf16.msra.mxu0 0
      %208 = vmatpush.bf16.msra.mxu0 0
      %209 = vmatpush.bf16.msra.mxu0 0
      %210 = vmatpush.bf16.msra.mxu0 0
      %211 = vmatpush.bf16.msra.mxu0 0
      %212 = vmatpush.bf16.msra.mxu0 %v203
      %213 = vmatmul.bf16.gmra.mxu0 %v146
      %v214 = vpop.f32.mrf.mxu0
      %v215 = vadd.f32 0.0, %v214
      %v216 = vpop.f32.mrf.mxu0
      %217 = vdwg.mxu0
      %218 = vmatpush.bf16.msra.mxu0 0
      %219 = vmatpush.bf16.msra.mxu0 0
      %220 = vmatpush.bf16.msra.mxu0 0
      %221 = vmatpush.bf16.msra.mxu0 0
      %222 = vmatpush.bf16.msra.mxu0 0
      %223 = vmatpush.bf16.msra.mxu0 0
      %224 = vmatpush.bf16.msra.mxu0 0
      %225 = vmatpush.bf16.msra.mxu0 %v203
      %226 = vmatmul.bf16.gmra.mxu0 %v166
      %v227 = vpop.f32.mrf.mxu0
      %v228 = vadd.f32 0.0, %v227
      %v229 = vpop.f32.mrf.mxu0
      %230 = vdwg.mxu0
      %v231 = vmax.f32 %v215, %v228
      %v232 = vpack.c.bf16 %v231, %v231
      %s233 = scalar_lea.vmem %s116, 4
      %v234 = vld [vmem:[%s233] sm:$0x7]
      %v235 = vsel %vm185, %v232, %v234
      %236 = vst [vmem:[%s233] sm:$0x7] %v235
      %s237 = scalar_lea.vmem %s111, 32
      %v238 = vld [vmem:[%s237] sm:$0xf]
      %v239 = vld [vmem:[%s237 + $0x4] sm:$0x1]
      %s240 = scalar_lea.vmem %s111, 40
      %v241 = vld [vmem:[%s240] sm:$0xf]
      %v242 = vld [vmem:[%s240 + $0x4] sm:$0x1]
      %v243 = vunpack.c.l.bf16 %v238
      %v244 = vunpack.c.l.bf16 %v239
      %v245 = vunpack.c.l.bf16 %v241
      %v246 = vunpack.c.l.bf16 %v242
      %v247 = vmax.f32 %v243, %v245
      %v248 = vmax.f32 %v244, %v246
      %v249 = vpack.c.bf16 %v248, %v247
      %v251 = vsel %vm148, %v249, 0
      %253 = vmatpush.bf16.msra.mxu0 0
      %254 = vmatpush.bf16.msra.mxu0 0
      %255 = vmatpush.bf16.msra.mxu0 0
      %256 = vmatpush.bf16.msra.mxu0 0
      %257 = vmatpush.bf16.msra.mxu0 0
      %258 = vmatpush.bf16.msra.mxu0 0
      %259 = vmatpush.bf16.msra.mxu0 0
      %260 = vmatpush.bf16.msra.mxu0 %v251
      %261 = vmatmul.bf16.gmra.mxu0 %v146
      %v262 = vpop.f32.mrf.mxu0
      %v263 = vadd.f32 0.0, %v262
      %v264 = vpop.f32.mrf.mxu0
      %265 = vdwg.mxu0
      %266 = vmatpush.bf16.msra.mxu0 0
      %267 = vmatpush.bf16.msra.mxu0 0
      %268 = vmatpush.bf16.msra.mxu0 0
      %269 = vmatpush.bf16.msra.mxu0 0
      %270 = vmatpush.bf16.msra.mxu0 0
      %271 = vmatpush.bf16.msra.mxu0 0
      %272 = vmatpush.bf16.msra.mxu0 0
      %273 = vmatpush.bf16.msra.mxu0 %v251
      %274 = vmatmul.bf16.gmra.mxu0 %v166
      %v275 = vpop.f32.mrf.mxu0
      %v276 = vadd.f32 0.0, %v275
      %v277 = vpop.f32.mrf.mxu0
      %278 = vdwg.mxu0
      %v279 = vmax.f32 %v263, %v276
      %v280 = vpack.c.bf16 %v279, %v279
      %s281 = scalar_lea.vmem %s116, 8
      %v282 = vld [vmem:[%s281] sm:$0x7]
      %v283 = vsel %vm185, %v280, %v282
      %284 = vst [vmem:[%s281] sm:$0x7] %v283
      %s285 = scalar_lea.vmem %s111, 48
      %v286 = vld [vmem:[%s285] sm:$0xf]
      %v287 = vld [vmem:[%s285 + $0x4] sm:$0x1]
      %s288 = scalar_lea.vmem %s111, 56
      %v289 = vld [vmem:[%s288] sm:$0xf]
      %v290 = vld [vmem:[%s288 + $0x4] sm:$0x1]
      %v291 = vunpack.c.l.bf16 %v286
      %v292 = vunpack.c.l.bf16 %v287
      %v293 = vunpack.c.l.bf16 %v289
      %v294 = vunpack.c.l.bf16 %v290
      %v295 = vmax.f32 %v291, %v293
      %v296 = vmax.f32 %v292, %v294
      %v297 = vpack.c.bf16 %v296, %v295
      %v299 = vsel %vm148, %v297, 0
      %301 = vmatpush.bf16.msra.mxu0 0
      %302 = vmatpush.bf16.msra.mxu0 0
      %303 = vmatpush.bf16.msra.mxu0 0
      %304 = vmatpush.bf16.msra.mxu0 0
      %305 = vmatpush.bf16.msra.mxu0 0
      %306 = vmatpush.bf16.msra.mxu0 0
      %307 = vmatpush.bf16.msra.mxu0 0
      %308 = vmatpush.bf16.msra.mxu0 %v299
      %309 = vmatmul.bf16.gmra.mxu0 %v146
      %v310 = vpop.f32.mrf.mxu0
      %v311 = vadd.f32 0.0, %v310
      %v312 = vpop.f32.mrf.mxu0
      %313 = vdwg.mxu0
      %314 = vmatpush.bf16.msra.mxu0 0
      %315 = vmatpush.bf16.msra.mxu0 0
      %316 = vmatpush.bf16.msra.mxu0 0
      %317 = vmatpush.bf16.msra.mxu0 0
      %318 = vmatpush.bf16.msra.mxu0 0
      %319 = vmatpush.bf16.msra.mxu0 0
      %320 = vmatpush.bf16.msra.mxu0 0
      %321 = vmatpush.bf16.msra.mxu0 %v299
      %322 = vmatmul.bf16.gmra.mxu0 %v166
      %v323 = vpop.f32.mrf.mxu0
      %v324 = vadd.f32 0.0, %v323
      %v325 = vpop.f32.mrf.mxu0
      %326 = vdwg.mxu0
      %v327 = vmax.f32 %v311, %v324
      %v328 = vpack.c.bf16 %v327, %v327
      %s329 = scalar_lea.vmem %s116, 12
      %v330 = vld [vmem:[%s329] sm:$0x7]
      %v331 = vsel %vm185, %v328, %v330
      %332 = vst [vmem:[%s329] sm:$0x7] %v331
      %s333 = scalar_lea.vmem %s111, 64
      %v334 = vld [vmem:[%s333] sm:$0xf]
      %v335 = vld [vmem:[%s333 + $0x4] sm:$0x1]
      %s336 = scalar_lea.vmem %s111, 72
      %v337 = vld [vmem:[%s336] sm:$0xf]
      %v338 = vld [vmem:[%s336 + $0x4] sm:$0x1]
      %v339 = vunpack.c.l.bf16 %v334
      %v340 = vunpack.c.l.bf16 %v335
      %v341 = vunpack.c.l.bf16 %v337
      %v342 = vunpack.c.l.bf16 %v338
      %v343 = vmax.f32 %v339, %v341
      %v344 = vmax.f32 %v340, %v342
      %v345 = vpack.c.bf16 %v344, %v343
      %v347 = vsel %vm148, %v345, 0
      %349 = vmatpush.bf16.msra.mxu0 0
      %350 = vmatpush.bf16.msra.mxu0 0
      %351 = vmatpush.bf16.msra.mxu0 0
      %352 = vmatpush.bf16.msra.mxu0 0
      %353 = vmatpush.bf16.msra.mxu0 0
      %354 = vmatpush.bf16.msra.mxu0 0
      %355 = vmatpush.bf16.msra.mxu0 0
      %356 = vmatpush.bf16.msra.mxu0 %v347
      %357 = vmatmul.bf16.gmra.mxu0 %v146
      %v358 = vpop.f32.mrf.mxu0
      %v359 = vadd.f32 0.0, %v358
      %v360 = vpop.f32.mrf.mxu0
      %361 = vdwg.mxu0
      %362 = vmatpush.bf16.msra.mxu0 0
      %363 = vmatpush.bf16.msra.mxu0 0
      %364 = vmatpush.bf16.msra.mxu0 0
      %365 = vmatpush.bf16.msra.mxu0 0
      %366 = vmatpush.bf16.msra.mxu0 0
      %367 = vmatpush.bf16.msra.mxu0 0
      %368 = vmatpush.bf16.msra.mxu0 0
      %369 = vmatpush.bf16.msra.mxu0 %v347
      %370 = vmatmul.bf16.gmra.mxu0 %v166
      %v371 = vpop.f32.mrf.mxu0
      %v372 = vadd.f32 0.0, %v371
      %v373 = vpop.f32.mrf.mxu0
      %374 = vdwg.mxu0
      %v375 = vmax.f32 %v359, %v372
      %v376 = vpack.c.bf16 %v375, %v375
      %s377 = scalar_lea.vmem %s116, 16
      %v378 = vld [vmem:[%s377] sm:$0x7]
      %v379 = vsel %vm185, %v376, %v378
      %380 = vst [vmem:[%s377] sm:$0x7] %v379
      %p381 = scmp.lt.s32.totalorder %s12, 1
      %s382 = scalar_select %p381, %s12, 1
      %s383 = smul.addr %s382, 5
      %s384 = smul.addr %s383, 4
      %s385 = scalar_lea.vmem %s1, %s384
      // Predicated region
      $region25: #{cifar_lenet_forward.8} parent=23 // pred_check
        %p386 = pneg %p56
      $region26: #{cifar_lenet_forward.8} parent=23 // pred_check_branch
        %388 = sbr.rel (%p386) target = $region28
      $region27: #{cifar_lenet_forward.8} parent=23 // pred_region
        _
      $region28: #{cifar_lenet_forward.8} parent=23 // pred_fallthru
        _
    $region24: #{cifar_lenet_forward.8} parent=5 // pred_fallthru
      _
    %p389 = scmp.le.s32.totalorder 2, %s7
    // Predicated region
    $region29: #{cifar_lenet_forward.8} parent=5 // pred_check
      %p390 = pneg %p389
    $region30: #{cifar_lenet_forward.8} parent=5 // pred_check_branch
      %392 = sbr.rel (%p390) target = $region32
    $region31: #{cifar_lenet_forward.8} parent=5 // pred_region
      %s393 = ssub.s32 %s7, 2
      // Predicated region
      $region33: #{cifar_lenet_forward.8} parent=31 // pred_check
        %p394 = pneg %p62
      $region34: #{cifar_lenet_forward.8} parent=31 // pred_check_branch
        %396 = sbr.rel (%p394) target = $region36
      $region35: #{cifar_lenet_forward.8} parent=31 // pred_region
        %p397 = scmp.lt.s32.totalorder %s13, 1
        %s398 = scalar_select %p397, %s13, 1
        %s399 = smul.addr %s398, 5
        %s400 = smul.addr %s399, 4
        %s401 = scalar_lea.vmem %s1, %s400
      $region36: #{cifar_lenet_forward.8} parent=31 // pred_fallthru
        _
    $region32: #{cifar_lenet_forward.8} parent=5 // pred_fallthru
      _
  $region6: #{cifar_lenet_forward.8} parent=0 // loop_footer
    %s11 = sadd.s32 1, %s7
  $region7: #{cifar_lenet_forward.8} parent=0 // loop_footer_branch
    %6 = sbr.rel target = $region3
  $region8: #{cifar_lenet_forward.8} parent=0 // loop_exit
    _

// kernel: cifar_lenet_forward.9
$region0: #{cifar_lenet_forward.9}
  #allocation0 [shape = 'u32[]', space=smem, size = 0x4, offset = 0x4, fixed_abs, tag = 'smem constant byte address 0x4 - core index']
  #allocation1 [shape = 'u32[72,128]{1,0:T(1,128)}', space=vmem, size = 0x9000, scoped, tag = 'internal scratch']
  %s0 = inlined_call_operand.vmem [shape: bf16[2,1250], index: 0, kind: input, shape index: {}]
  %s1 = inlined_call_operand.vmem [shape: bf16[1250,500], index: 1, kind: input, shape index: {}]
  %s2 = inlined_call_operand.vmem [shape: f32[1,500], index: 2, kind: input, shape index: {}]
  %s3 = inlined_call_operand.vmem [shape: bf16[500,10], index: 3, kind: input, shape index: {}]
  %s4 = inlined_call_operand.vmem [shape: f32[1,10], index: 4, kind: input, shape index: {}]
  %s5 = inlined_call_operand.hbm [shape: f32[2,10], index: 5, kind: output, shape index: {}]
  %s6 = sld [smem:[#allocation0]]
  $region30: #{cifar_lenet_forward.9} parent=0
    _
  %s8 = ssub.s32 1, %s6
  %s9 = scalar_select 0, %s8, %s6
  $region1: #{cifar_lenet_forward.9} parent=0
    #allocation2 [shape = 'u8[1024]{0}', space=vmem, size = 0x400, scoped, tag = 'output window, operand 0, single buffered']
    #allocation3 [shape = 's32[1]{0}', space=sflag, size = 0x4, scoped, tag = 'scoped memory for cifar_lenet_forward.9']
    %10 = vsyncpa [#allocation3], 0
    // Predicated region
    $region2: #{cifar_lenet_forward.9} parent=1 // pred_check
      _
    $region3: #{cifar_lenet_forward.9} parent=1 // pred_check_branch
      %12 = sbr.rel (0) target = $region5
    $region4: #{cifar_lenet_forward.9} parent=1 // pred_region
      _
    $region5: #{cifar_lenet_forward.9} parent=1 // pred_fallthru
      _
    // Predicated region
    $region6: #{cifar_lenet_forward.9} parent=1 // pred_check
      _
    $region7: #{cifar_lenet_forward.9} parent=1 // pred_check_branch
      %14 = sbr.rel (0) target = $region9
    $region8: #{cifar_lenet_forward.9} parent=1 // pred_region
      _
    $region9: #{cifar_lenet_forward.9} parent=1 // pred_fallthru
      _
    // Predicated region
    $region10: #{cifar_lenet_forward.9} parent=1 // pred_check
      _
    $region11: #{cifar_lenet_forward.9} parent=1 // pred_check_branch
      %16 = sbr.rel (0) target = $region13
    $region12: #{cifar_lenet_forward.9} parent=1 // pred_region
      _
    $region13: #{cifar_lenet_forward.9} parent=1 // pred_fallthru
      _
    // Predicated region
    $region14: #{cifar_lenet_forward.9} parent=1 // pred_check
      _
    $region15: #{cifar_lenet_forward.9} parent=1 // pred_check_branch
      %18 = sbr.rel (0) target = $region17
    $region16: #{cifar_lenet_forward.9} parent=1 // pred_region
      _
    $region17: #{cifar_lenet_forward.9} parent=1 // pred_fallthru
      _
    // Predicated region
    $region18: #{cifar_lenet_forward.9} parent=1 // pred_check
      _
    $region19: #{cifar_lenet_forward.9} parent=1 // pred_check_branch
      %20 = sbr.rel (0) target = $region21
    $region20: #{cifar_lenet_forward.9} parent=1 // pred_region
      _
    $region21: #{cifar_lenet_forward.9} parent=1 // pred_fallthru
      _
    %v22 = vld [vmem:[%s0] sm:$0xff]
    %v23 = vld [vmem:[%s0 + $0x8] sm:$0x3]
    %v24 = vld [vmem:[%s1] sm:$0xff]
    %v25 = vld [vmem:[%s1 + $0x8] sm:$0xff]
    %v26 = vld [vmem:[%s1 + $0x10] sm:$0xff]
    %v27 = vld [vmem:[%s1 + $0x18] sm:$0xff]
    %v28 = vld [vmem:[%s1 + $0x20] sm:$0xff]
    %v29 = vld [vmem:[%s1 + $0x28] sm:$0xff]
    %v30 = vld [vmem:[%s1 + $0x30] sm:$0xff]
    %v31 = vld [vmem:[%s1 + $0x38] sm:$0xff]
    %v32 = vld [vmem:[%s1 + $0x40] sm:$0xff]
    %v33 = vld [vmem:[%s1 + $0x48] sm:$0xff]
    %v34 = vld [vmem:[%s1 + $0x50] sm:$0xff]
    %v35 = vld [vmem:[%s1 + $0x58] sm:$0xff]
    %v36 = vld [vmem:[%s1 + $0x60] sm:$0xff]
    %v37 = vld [vmem:[%s1 + $0x68] sm:$0xff]
    %v38 = vld [vmem:[%s1 + $0x70] sm:$0xff]
    %v39 = vld [vmem:[%s1 + $0x78] sm:$0xff]
    %v40 = vld [vmem:[%s1 + $0x80] sm:$0xff]
    %v41 = vld [vmem:[%s1 + $0x88] sm:$0xff]
    %v42 = vld [vmem:[%s1 + $0x90] sm:$0xff]
    %v43 = vld [vmem:[%s1 + $0x98] sm:$0xff]
    %v44 = vld [vmem:[%s1 + $0xa0] sm:$0xff]
    %v45 = vld [vmem:[%s1 + $0xa8] sm:$0xff]
    %v46 = vld [vmem:[%s1 + $0xb0] sm:$0xff]
    %v47 = vld [vmem:[%s1 + $0xb8] sm:$0xff]
    %v48 = vld [vmem:[%s1 + $0xc0] sm:$0xff]
    %v49 = vld [vmem:[%s1 + $0xc8] sm:$0xff]
    %v50 = vld [vmem:[%s1 + $0xd0] sm:$0xff]
    %v51 = vld [vmem:[%s1 + $0xd8] sm:$0xff]
    %v52 = vld [vmem:[%s1 + $0xe0] sm:$0xff]
    %v53 = vld [vmem:[%s1 + $0xe8] sm:$0xff]
    %v54 = vld [vmem:[%s1 + $0xf0] sm:$0xff]
    %v55 = vld [vmem:[%s1 + $0xf8] sm:$0xff]
    %v56 = vld [vmem:[%s1 + $0x100] sm:$0xff]
    %v57 = vld [vmem:[%s1 + $0x108] sm:$0xff]
    %v58 = vld [vmem:[%s1 + $0x110] sm:$0xff]
    %v59 = vld [vmem:[%s1 + $0x118] sm:$0xff]
    %v60 = vld [vmem:[%s1 + $0x120] sm:$0xff]
    %v61 = vld [vmem:[%s1 + $0x128] sm:$0xff]
    %v62 = vld [vmem:[%s1 + $0x130] sm:$0xff]
    %v63 = vld [vmem:[%s1 + $0x138] sm:$0xff]
    %v64 = vld [vmem:[%s1 + $0x140] sm:$0xff]
    %v65 = vld [vmem:[%s1 + $0x148] sm:$0xff]
    %v66 = vld [vmem:[%s1 + $0x150] sm:$0xff]
    %v67 = vld [vmem:[%s1 + $0x158] sm:$0xff]
    %v68 = vld [vmem:[%s1 + $0x160] sm:$0xff]
    %v69 = vld [vmem:[%s1 + $0x168] sm:$0xff]
    %v70 = vld [vmem:[%s1 + $0x170] sm:$0xff]
    %v71 = vld [vmem:[%s1 + $0x178] sm:$0xff]
    %v72 = vld [vmem:[%s1 + $0x180] sm:$0xff]
    %v73 = vld [vmem:[%s1 + $0x188] sm:$0xff]
    %v74 = vld [vmem:[%s1 + $0x190] sm:$0xff]
    %v75 = vld [vmem:[%s1 + $0x198] sm:$0xff]
    %v76 = vld [vmem:[%s1 + $0x1a0] sm:$0xff]
    %v77 = vld [vmem:[%s1 + $0x1a8] sm:$0xff]
    %v78 = vld [vmem:[%s1 + $0x1b0] sm:$0xff]
    %v79 = vld [vmem:[%s1 + $0x1b8] sm:$0xff]
    %v80 = vld [vmem:[%s1 + $0x1c0] sm:$0xff]
    %v81 = vld [vmem:[%s1 + $0x1c8] sm:$0xff]
    %v82 = vld [vmem:[%s1 + $0x1d0] sm:$0xff]
    %v83 = vld [vmem:[%s1 + $0x1d8] sm:$0xff]
    %v84 = vld [vmem:[%s1 + $0x1e0] sm:$0xff]
    %v85 = vld [vmem:[%s1 + $0x1e8] sm:$0xff]
    %v86 = vld [vmem:[%s1 + $0x1f0] sm:$0xff]
    %v87 = vld [vmem:[%s1 + $0x1f8] sm:$0xff]
    %v88 = vld [vmem:[%s1 + $0x200] sm:$0xff]
    %v89 = vld [vmem:[%s1 + $0x208] sm:$0xff]
    %v90 = vld [vmem:[%s1 + $0x210] sm:$0xff]
    %v91 = vld [vmem:[%s1 + $0x218] sm:$0xff]
    %v92 = vld [vmem:[%s1 + $0x220] sm:$0xff]
    %v93 = vld [vmem:[%s1 + $0x228] sm:$0xff]
    %v94 = vld [vmem:[%s1 + $0x230] sm:$0xff]
    %v95 = vld [vmem:[%s1 + $0x238] sm:$0xff]
    %v96 = vld [vmem:[%s1 + $0x240] sm:$0xff]
    %v97 = vld [vmem:[%s1 + $0x248] sm:$0xff]
    %v98 = vld [vmem:[%s1 + $0x250] sm:$0xff]
    %v99 = vld [vmem:[%s1 + $0x258] sm:$0xff]
    %v100 = vld [vmem:[%s1 + $0x260] sm:$0xff]
    %v101 = vld [vmem:[%s1 + $0x268] sm:$0xff]
    %v102 = vld [vmem:[%s1 + $0x270] sm:$0xff]
    %v103 = vld [vmem:[%s1 + $0x278] sm:$0xff]
    %v104 = vld [vmem:[%s1 + $0x280] sm:$0xff]
    %v105 = vld [vmem:[%s1 + $0x288] sm:$0xff]
    %v106 = vld [vmem:[%s1 + $0x290] sm:$0xff]
    %v107 = vld [vmem:[%s1 + $0x298] sm:$0xff]
    %v108 = vld [vmem:[%s1 + $0x2a0] sm:$0xff]
    %v109 = vld [vmem:[%s1 + $0x2a8] sm:$0xff]
    %v110 = vld [vmem:[%s1 + $0x2b0] sm:$0xff]
    %v111 = vld [vmem:[%s1 + $0x2b8] sm:$0xff]
    %v112 = vld [vmem:[%s1 + $0x2c0] sm:$0xff]
    %v113 = vld [vmem:[%s1 + $0x2c8] sm:$0xff]
    %v114 = vld [vmem:[%s1 + $0x2d0] sm:$0xff]
    %v115 = vld [vmem:[%s1 + $0x2d8] sm:$0xff]
    %v116 = vld [vmem:[%s1 + $0x2e0] sm:$0xff]
    %v117 = vld [vmem:[%s1 + $0x2e8] sm:$0xff]
    %v118 = vld [vmem:[%s1 + $0x2f0] sm:$0xff]
    %v119 = vld [vmem:[%s1 + $0x2f8] sm:$0xff]
    %v120 = vld [vmem:[%s1 + $0x300] sm:$0xff]
    %v121 = vld [vmem:[%s1 + $0x308] sm:$0xff]
    %v122 = vld [vmem:[%s1 + $0x310] sm:$0xff]
    %v123 = vld [vmem:[%s1 + $0x318] sm:$0xff]
    %v124 = vld [vmem:[%s1 + $0x320] sm:$0xff]
    %v125 = vld [vmem:[%s1 + $0x328] sm:$0xff]
    %v126 = vld [vmem:[%s1 + $0x330] sm:$0xff]
    %v127 = vld [vmem:[%s1 + $0x338] sm:$0xff]
    %v128 = vld [vmem:[%s1 + $0x340] sm:$0xff]
    %v129 = vld [vmem:[%s1 + $0x348] sm:$0xff]
    %v130 = vld [vmem:[%s1 + $0x350] sm:$0xff]
    %v131 = vld [vmem:[%s1 + $0x358] sm:$0xff]
    %v132 = vld [vmem:[%s1 + $0x360] sm:$0xff]
    %v133 = vld [vmem:[%s1 + $0x368] sm:$0xff]
    %v134 = vld [vmem:[%s1 + $0x370] sm:$0xff]
    %v135 = vld [vmem:[%s1 + $0x378] sm:$0xff]
    %v136 = vld [vmem:[%s1 + $0x380] sm:$0xff]
    %v137 = vld [vmem:[%s1 + $0x388] sm:$0xff]
    %v138 = vld [vmem:[%s1 + $0x390] sm:$0xff]
    %v139 = vld [vmem:[%s1 + $0x398] sm:$0xff]
    %v140 = vld [vmem:[%s1 + $0x3a0] sm:$0xff]
    %v141 = vld [vmem:[%s1 + $0x3a8] sm:$0xff]
    %v142 = vld [vmem:[%s1 + $0x3b0] sm:$0xff]
    %v143 = vld [vmem:[%s1 + $0x3b8] sm:$0xff]
    %v144 = vld [vmem:[%s1 + $0x3c0] sm:$0xff]
    %v145 = vld [vmem:[%s1 + $0x3c8] sm:$0xff]
    %v146 = vld [vmem:[%s1 + $0x3d0] sm:$0xff]
    %v147 = vld [vmem:[%s1 + $0x3d8] sm:$0xff]
    %v148 = vld [vmem:[%s1 + $0x3e0] sm:$0xff]
    %v149 = vld [vmem:[%s1 + $0x3e8] sm:$0xff]
    %v150 = vld [vmem:[%s1 + $0x3f0] sm:$0xff]
    %v151 = vld [vmem:[%s1 + $0x3f8] sm:$0xff]
    %v152 = vld [vmem:[%s1 + $0x400] sm:$0xff]
    %v153 = vld [vmem:[%s1 + $0x408] sm:$0xff]
    %v154 = vld [vmem:[%s1 + $0x410] sm:$0xff]
    %v155 = vld [vmem:[%s1 + $0x418] sm:$0xff]
    %v156 = vld [vmem:[%s1 + $0x420] sm:$0xff]
    %v157 = vld [vmem:[%s1 + $0x428] sm:$0xff]
    %v158 = vld [vmem:[%s1 + $0x430] sm:$0xff]
    %v159 = vld [vmem:[%s1 + $0x438] sm:$0xff]
    %v160 = vld [vmem:[%s1 + $0x440] sm:$0xff]
    %v161 = vld [vmem:[%s1 + $0x448] sm:$0xff]
    %v162 = vld [vmem:[%s1 + $0x450] sm:$0xff]
    %v163 = vld [vmem:[%s1 + $0x458] sm:$0xff]
    %v164 = vld [vmem:[%s1 + $0x460] sm:$0xff]
    %v165 = vld [vmem:[%s1 + $0x468] sm:$0xff]
    %v166 = vld [vmem:[%s1 + $0x470] sm:$0xff]
    %v167 = vld [vmem:[%s1 + $0x478] sm:$0xff]
    %v168 = vld [vmem:[%s1 + $0x480] sm:$0xff]
    %v169 = vld [vmem:[%s1 + $0x488] sm:$0xff]
    %v170 = vld [vmem:[%s1 + $0x490] sm:$0xff]
    %v171 = vld [vmem:[%s1 + $0x498] sm:$0xff]
    %v172 = vld [vmem:[%s1 + $0x4a0] sm:$0xff]
    %v173 = vld [vmem:[%s1 + $0x4a8] sm:$0xff]
    %v174 = vld [vmem:[%s1 + $0x4b0] sm:$0xff]
    %v175 = vld [vmem:[%s1 + $0x4b8] sm:$0xff]
    %v176 = vld [vmem:[%s1 + $0x4c0] sm:$0xff]
    %v177 = vld [vmem:[%s1 + $0x4c8] sm:$0xff]
    %v178 = vld [vmem:[%s1 + $0x4d0] sm:$0xff]
    %v179 = vld [vmem:[%s1 + $0x4d8] sm:$0xff]
    %v180 = vld [vmem:[%s1 + $0x4e0] sm:$0xff]
    %v181 = vld [vmem:[%s1 + $0x4e8] sm:$0xff]
    %v182 = vld [vmem:[%s1 + $0x4f0] sm:$0xff]
    %v183 = vld [vmem:[%s1 + $0x4f8] sm:$0xff]
    %v184 = vld [vmem:[%s1 + $0x500] sm:$0xff]
    %v185 = vld [vmem:[%s1 + $0x508] sm:$0xff]
    %v186 = vld [vmem:[%s1 + $0x510] sm:$0xff]
    %v187 = vld [vmem:[%s1 + $0x518] sm:$0xff]
    %v188 = vld [vmem:[%s1 + $0x520] sm:$0xff]
    %v189 = vld [vmem:[%s1 + $0x528] sm:$0xff]
    %v190 = vld [vmem:[%s1 + $0x530] sm:$0xff]
    %v191 = vld [vmem:[%s1 + $0x538] sm:$0xff]
    %v192 = vld [vmem:[%s1 + $0x540] sm:$0xff]
    %v193 = vld [vmem:[%s1 + $0x548] sm:$0xff]
    %v194 = vld [vmem:[%s1 + $0x550] sm:$0xff]
    %v195 = vld [vmem:[%s1 + $0x558] sm:$0xff]
    %v196 = vld [vmem:[%s1 + $0x560] sm:$0xff]
    %v197 = vld [vmem:[%s1 + $0x568] sm:$0xff]
    %v198 = vld [vmem:[%s1 + $0x570] sm:$0xff]
    %v199 = vld [vmem:[%s1 + $0x578] sm:$0xff]
    %v200 = vld [vmem:[%s1 + $0x580] sm:$0xff]
    %v201 = vld [vmem:[%s1 + $0x588] sm:$0xff]
    %v202 = vld [vmem:[%s1 + $0x590] sm:$0xff]
    %v203 = vld [vmem:[%s1 + $0x598] sm:$0xff]
    %v204 = vld [vmem:[%s1 + $0x5a0] sm:$0xff]
    %v205 = vld [vmem:[%s1 + $0x5a8] sm:$0xff]
    %v206 = vld [vmem:[%s1 + $0x5b0] sm:$0xff]
    %v207 = vld [vmem:[%s1 + $0x5b8] sm:$0xff]
    %v208 = vld [vmem:[%s1 + $0x5c0] sm:$0xff]
    %v209 = vld [vmem:[%s1 + $0x5c8] sm:$0xff]
    %v210 = vld [vmem:[%s1 + $0x5d0] sm:$0xff]
    %v211 = vld [vmem:[%s1 + $0x5d8] sm:$0xff]
    %v212 = vld [vmem:[%s1 + $0x5e0] sm:$0xff]
    %v213 = vld [vmem:[%s1 + $0x5e8] sm:$0xff]
    %v214 = vld [vmem:[%s1 + $0x5f0] sm:$0xff]
    %v215 = vld [vmem:[%s1 + $0x5f8] sm:$0xff]
    %v216 = vld [vmem:[%s1 + $0x600] sm:$0xff]
    %v217 = vld [vmem:[%s1 + $0x608] sm:$0xff]
    %v218 = vld [vmem:[%s1 + $0x610] sm:$0xff]
    %v219 = vld [vmem:[%s1 + $0x618] sm:$0xff]
    %v220 = vld [vmem:[%s1 + $0x620] sm:$0xff]
    %v221 = vld [vmem:[%s1 + $0x628] sm:$0xff]
    %v222 = vld [vmem:[%s1 + $0x630] sm:$0xff]
    %v223 = vld [vmem:[%s1 + $0x638] sm:$0xff]
    %v224 = vld [vmem:[%s1 + $0x640] sm:$0xff]
    %v225 = vld [vmem:[%s1 + $0x648] sm:$0xff]
    %v226 = vld [vmem:[%s1 + $0x650] sm:$0xff]
    %v227 = vld [vmem:[%s1 + $0x658] sm:$0xff]
    %v228 = vld [vmem:[%s1 + $0x660] sm:$0xff]
    %v229 = vld [vmem:[%s1 + $0x668] sm:$0xff]
    %v230 = vld [vmem:[%s1 + $0x670] sm:$0xff]
    %v231 = vld [vmem:[%s1 + $0x678] sm:$0xff]
    %v232 = vld [vmem:[%s1 + $0x680] sm:$0xff]
    %v233 = vld [vmem:[%s1 + $0x688] sm:$0xff]
    %v234 = vld [vmem:[%s1 + $0x690] sm:$0xff]
    %v235 = vld [vmem:[%s1 + $0x698] sm:$0xff]
    %v236 = vld [vmem:[%s1 + $0x6a0] sm:$0xff]
    %v237 = vld [vmem:[%s1 + $0x6a8] sm:$0xff]
    %v238 = vld [vmem:[%s1 + $0x6b0] sm:$0xff]
    %v239 = vld [vmem:[%s1 + $0x6b8] sm:$0xff]
    %v240 = vld [vmem:[%s1 + $0x6c0] sm:$0xff]
    %v241 = vld [vmem:[%s1 + $0x6c8] sm:$0xff]
    %v242 = vld [vmem:[%s1 + $0x6d0] sm:$0xff]
    %v243 = vld [vmem:[%s1 + $0x6d8] sm:$0xff]
    %v244 = vld [vmem:[%s1 + $0x6e0] sm:$0xff]
    %v245 = vld [vmem:[%s1 + $0x6e8] sm:$0xff]
    %v246 = vld [vmem:[%s1 + $0x6f0] sm:$0xff]
    %v247 = vld [vmem:[%s1 + $0x6f8] sm:$0xff]
    %v248 = vld [vmem:[%s1 + $0x700] sm:$0xff]
    %v249 = vld [vmem:[%s1 + $0x708] sm:$0xff]
    %v250 = vld [vmem:[%s1 + $0x710] sm:$0xff]
    %v251 = vld [vmem:[%s1 + $0x718] sm:$0xff]
    %v252 = vld [vmem:[%s1 + $0x720] sm:$0xff]
    %v253 = vld [vmem:[%s1 + $0x728] sm:$0xff]
    %v254 = vld [vmem:[%s1 + $0x730] sm:$0xff]
    %v255 = vld [vmem:[%s1 + $0x738] sm:$0xff]
    %v256 = vld [vmem:[%s1 + $0x740] sm:$0xff]
    %v257 = vld [vmem:[%s1 + $0x748] sm:$0xff]
    %v258 = vld [vmem:[%s1 + $0x750] sm:$0xff]
    %v259 = vld [vmem:[%s1 + $0x758] sm:$0xff]
    %v260 = vld [vmem:[%s1 + $0x760] sm:$0xff]
    %v261 = vld [vmem:[%s1 + $0x768] sm:$0xff]
    %v262 = vld [vmem:[%s1 + $0x770] sm:$0xff]
    %v263 = vld [vmem:[%s1 + $0x778] sm:$0xff]
    %v264 = vld [vmem:[%s1 + $0x780] sm:$0xff]
    %v265 = vld [vmem:[%s1 + $0x788] sm:$0xff]
    %v266 = vld [vmem:[%s1 + $0x790] sm:$0xff]
    %v267 = vld [vmem:[%s1 + $0x798] sm:$0xff]
    %v268 = vld [vmem:[%s1 + $0x7a0] sm:$0xff]
    %v269 = vld [vmem:[%s1 + $0x7a8] sm:$0xff]
    %v270 = vld [vmem:[%s1 + $0x7b0] sm:$0xff]
    %v271 = vld [vmem:[%s1 + $0x7b8] sm:$0xff]
    %v272 = vld [vmem:[%s1 + $0x7c0] sm:$0xff]
    %v273 = vld [vmem:[%s1 + $0x7c8] sm:$0xff]
    %v274 = vld [vmem:[%s1 + $0x7d0] sm:$0xff]
    %v275 = vld [vmem:[%s1 + $0x7d8] sm:$0xff]
    %v276 = vld [vmem:[%s1 + $0x7e0] sm:$0xff]
    %v277 = vld [vmem:[%s1 + $0x7e8] sm:$0xff]
    %v278 = vld [vmem:[%s1 + $0x7f0] sm:$0xff]
    %v279 = vld [vmem:[%s1 + $0x7f8] sm:$0xff]
    %v280 = vld [vmem:[%s1 + $0x800] sm:$0xff]
    %v281 = vld [vmem:[%s1 + $0x808] sm:$0xff]
    %v282 = vld [vmem:[%s1 + $0x810] sm:$0xff]
    %v283 = vld [vmem:[%s1 + $0x818] sm:$0xff]
    %v284 = vld [vmem:[%s1 + $0x820] sm:$0xff]
    %v285 = vld [vmem:[%s1 + $0x828] sm:$0xff]
    %v286 = vld [vmem:[%s1 + $0x830] sm:$0xff]
    %v287 = vld [vmem:[%s1 + $0x838] sm:$0xff]
    %v288 = vld [vmem:[%s1 + $0x840] sm:$0xff]
    %v289 = vld [vmem:[%s1 + $0x848] sm:$0xff]
    %v290 = vld [vmem:[%s1 + $0x850] sm:$0xff]
    %v291 = vld [vmem:[%s1 + $0x858] sm:$0xff]
    %v292 = vld [vmem:[%s1 + $0x860] sm:$0xff]
    %v293 = vld [vmem:[%s1 + $0x868] sm:$0xff]
    %v294 = vld [vmem:[%s1 + $0x870] sm:$0xff]
    %v295 = vld [vmem:[%s1 + $0x878] sm:$0xff]
    %v296 = vld [vmem:[%s1 + $0x880] sm:$0xff]
    %v297 = vld [vmem:[%s1 + $0x888] sm:$0xff]
    %v298 = vld [vmem:[%s1 + $0x890] sm:$0xff]
    %v299 = vld [vmem:[%s1 + $0x898] sm:$0xff]
    %v300 = vld [vmem:[%s1 + $0x8a0] sm:$0xff]
    %v301 = vld [vmem:[%s1 + $0x8a8] sm:$0xff]
    %v302 = vld [vmem:[%s1 + $0x8b0] sm:$0xff]
    %v303 = vld [vmem:[%s1 + $0x8b8] sm:$0xff]
    %v304 = vld [vmem:[%s1 + $0x8c0] sm:$0xff]
    %v305 = vld [vmem:[%s1 + $0x8c8] sm:$0xff]
    %v306 = vld [vmem:[%s1 + $0x8d0] sm:$0xff]
    %v307 = vld [vmem:[%s1 + $0x8d8] sm:$0xff]
    %v308 = vld [vmem:[%s1 + $0x8e0] sm:$0xff]
    %v309 = vld [vmem:[%s1 + $0x8e8] sm:$0xff]
    %v310 = vld [vmem:[%s1 + $0x8f0] sm:$0xff]
    %v311 = vld [vmem:[%s1 + $0x8f8] sm:$0xff]
    %v312 = vld [vmem:[%s1 + $0x900] sm:$0xff]
    %v313 = vld [vmem:[%s1 + $0x908] sm:$0xff]
    %v314 = vld [vmem:[%s1 + $0x910] sm:$0xff]
    %v315 = vld [vmem:[%s1 + $0x918] sm:$0xff]
    %v316 = vld [vmem:[%s1 + $0x920] sm:$0xff]
    %v317 = vld [vmem:[%s1 + $0x928] sm:$0xff]
    %v318 = vld [vmem:[%s1 + $0x930] sm:$0xff]
    %v319 = vld [vmem:[%s1 + $0x938] sm:$0xff]
    %v320 = vld [vmem:[%s1 + $0x940] sm:$0xff]
    %v321 = vld [vmem:[%s1 + $0x948] sm:$0xff]
    %v322 = vld [vmem:[%s1 + $0x950] sm:$0xff]
    %v323 = vld [vmem:[%s1 + $0x958] sm:$0xff]
    %v324 = vld [vmem:[%s1 + $0x960] sm:$0xff]
    %v325 = vld [vmem:[%s1 + $0x968] sm:$0xff]
    %v326 = vld [vmem:[%s1 + $0x970] sm:$0xff]
    %v327 = vld [vmem:[%s1 + $0x978] sm:$0xff]
    %v328 = vld [vmem:[%s1 + $0x980] sm:$0xff]
    %v329 = vld [vmem:[%s1 + $0x988] sm:$0xff]
    %v330 = vld [vmem:[%s1 + $0x990] sm:$0xff]
    %v331 = vld [vmem:[%s1 + $0x998] sm:$0xff]
    %v332 = vld [vmem:[%s1 + $0x9a0] sm:$0xff]
    %v333 = vld [vmem:[%s1 + $0x9a8] sm:$0xff]
    %v334 = vld [vmem:[%s1 + $0x9b0] sm:$0xff]
    %v335 = vld [vmem:[%s1 + $0x9b8] sm:$0xff]
    %v336 = vld [vmem:[%s1 + $0x9c0] sm:$0x11]
    %v337 = vld [vmem:[%s1 + $0x9c8] sm:$0x11]
    %v338 = vld [vmem:[%s2] sm:$0xf]
    %v340 = vperm.slane %v338, 0
    %v341 = vperm.slane %v338, 1
    %v342 = vperm.slane %v338, 2
    %v343 = vperm.slane %v338, 3
    %349 = vst [vmem:[#allocation1] ss:$9 sm:$0xff] %v22
    %v350 = vld [vmem:[#allocation1] sm:$0xff]
    %v351 = vld [vmem:[#allocation1 + $0x9] sm:$0xff]
    %v352 = vld [vmem:[#allocation1 + $0x12] sm:$0xff]
    %v353 = vld [vmem:[#allocation1 + $0x1b] sm:$0xff]
    %v354 = vld [vmem:[#allocation1 + $0x24] sm:$0xff]
    %v355 = vld [vmem:[#allocation1 + $0x2d] sm:$0xff]
    %v356 = vld [vmem:[#allocation1 + $0x36] sm:$0xff]
    %v357 = vld [vmem:[#allocation1 + $0x3f] sm:$0xff]
    %359 = vst [vmem:[#allocation1] ss:$9 sm:$0xff] %v23
    %v360 = vld [vmem:[#allocation1] sm:$0xff]
    %v361 = vld [vmem:[#allocation1 + $0x9] sm:$0xff]
    %v685 = vunpack.c.l.b16 %v24
    %v686 = vunpack.c.h.b16 %v24
    %v687 = vunpack.c.l.b16 %v25
    %v688 = vunpack.c.h.b16 %v25
    %v689 = vunpack.c.l.b16 %v26
    %v690 = vunpack.c.h.b16 %v26
    %v691 = vunpack.c.l.b16 %v27
    %v692 = vunpack.c.h.b16 %v27
    %v693 = vunpack.c.l.b16 %v28
    %v694 = vunpack.c.h.b16 %v28
    %v695 = vunpack.c.l.b16 %v29
    %v696 = vunpack.c.h.b16 %v29
    %v697 = vunpack.c.l.b16 %v30
    %v698 = vunpack.c.h.b16 %v30
    %v699 = vunpack.c.l.b16 %v31
    %v700 = vunpack.c.h.b16 %v31
    %v701 = vunpack.c.l.b16 %v32
    %v702 = vunpack.c.h.b16 %v32
    %v703 = vunpack.c.l.b16 %v33
    %v704 = vunpack.c.h.b16 %v33
    %v705 = vunpack.c.l.b16 %v34
    %v706 = vunpack.c.h.b16 %v34
    %v707 = vunpack.c.l.b16 %v35
    %v708 = vunpack.c.h.b16 %v35
    %v709 = vunpack.c.l.b16 %v36
    %v710 = vunpack.c.h.b16 %v36
    %v711 = vunpack.c.l.b16 %v37
    %v712 = vunpack.c.h.b16 %v37
    %v713 = vunpack.c.l.b16 %v38
    %v714 = vunpack.c.h.b16 %v38
    %v715 = vunpack.c.l.b16 %v39
    %v716 = vunpack.c.h.b16 %v39
    %v717 = vunpack.c.l.b16 %v40
    %v718 = vunpack.c.h.b16 %v40
    %v719 = vunpack.c.l.b16 %v41
    %v720 = vunpack.c.h.b16 %v41
    %v721 = vunpack.c.l.b16 %v42
    %v722 = vunpack.c.h.b16 %v42
    %v723 = vunpack.c.l.b16 %v43
    %v724 = vunpack.c.h.b16 %v43
    %v725 = vunpack.c.l.b16 %v44
    %v726 = vunpack.c.h.b16 %v44
    %v727 = vunpack.c.l.b16 %v45
    %v728 = vunpack.c.h.b16 %v45
    %v729 = vunpack.c.l.b16 %v46
    %v730 = vunpack.c.h.b16 %v46
    %v731 = vunpack.c.l.b16 %v47
    %v732 = vunpack.c.h.b16 %v47
    %v733 = vunpack.c.l.b16 %v48
    %v734 = vunpack.c.h.b16 %v48
    %v735 = vunpack.c.l.b16 %v49
    %v736 = vunpack.c.h.b16 %v49
    %v737 = vunpack.c.l.b16 %v50
    %v738 = vunpack.c.h.b16 %v50
    %v739 = vunpack.c.l.b16 %v51
    %v740 = vunpack.c.h.b16 %v51
    %v741 = vunpack.c.l.b16 %v52
    %v742 = vunpack.c.h.b16 %v52
    %v743 = vunpack.c.l.b16 %v53
    %v744 = vunpack.c.h.b16 %v53
    %v745 = vunpack.c.l.b16 %v54
    %v746 = vunpack.c.h.b16 %v54
    %v747 = vunpack.c.l.b16 %v55
    %v748 = vunpack.c.h.b16 %v55
    %v749 = vunpack.c.l.b16 %v56
    %v750 = vunpack.c.h.b16 %v56
    %v751 = vunpack.c.l.b16 %v57
    %v752 = vunpack.c.h.b16 %v57
    %v753 = vunpack.c.l.b16 %v58
    %v754 = vunpack.c.h.b16 %v58
    %v755 = vunpack.c.l.b16 %v59
    %v756 = vunpack.c.h.b16 %v59
    %v757 = vunpack.c.l.b16 %v60
    %v758 = vunpack.c.h.b16 %v60
    %v759 = vunpack.c.l.b16 %v61
    %v760 = vunpack.c.h.b16 %v61
    %v761 = vunpack.c.l.b16 %v62
    %v762 = vunpack.c.h.b16 %v62
    %v763 = vunpack.c.l.b16 %v63
    %v764 = vunpack.c.h.b16 %v63
    %v765 = vunpack.c.l.b16 %v64
    %v766 = vunpack.c.h.b16 %v64
    %v767 = vunpack.c.l.b16 %v65
    %v768 = vunpack.c.h.b16 %v65
    %v769 = vunpack.c.l.b16 %v66
    %v770 = vunpack.c.h.b16 %v66
    %v771 = vunpack.c.l.b16 %v67
    %v772 = vunpack.c.h.b16 %v67
    %v773 = vunpack.c.l.b16 %v68
    %v774 = vunpack.c.h.b16 %v68
    %v775 = vunpack.c.l.b16 %v69
    %v776 = vunpack.c.h.b16 %v69
    %v777 = vunpack.c.l.b16 %v70
    %v778 = vunpack.c.h.b16 %v70
    %v779 = vunpack.c.l.b16 %v71
    %v780 = vunpack.c.h.b16 %v71
    %v781 = vunpack.c.l.b16 %v72
    %v782 = vunpack.c.h.b16 %v72
    %v783 = vunpack.c.l.b16 %v73
    %v784 = vunpack.c.h.b16 %v73
    %v785 = vunpack.c.l.b16 %v74
    %v786 = vunpack.c.h.b16 %v74
    %v787 = vunpack.c.l.b16 %v75
    %v788 = vunpack.c.h.b16 %v75
    %v789 = vunpack.c.l.b16 %v76
    %v790 = vunpack.c.h.b16 %v76
    %v791 = vunpack.c.l.b16 %v77
    %v792 = vunpack.c.h.b16 %v77
    %v793 = vunpack.c.l.b16 %v78
    %v794 = vunpack.c.h.b16 %v78
    %v795 = vunpack.c.l.b16 %v79
    %v796 = vunpack.c.h.b16 %v79
    %v797 = vunpack.c.l.b16 %v80
    %v798 = vunpack.c.h.b16 %v80
    %v799 = vunpack.c.l.b16 %v81
    %v800 = vunpack.c.h.b16 %v81
    %v801 = vunpack.c.l.b16 %v82
    %v802 = vunpack.c.h.b16 %v82
    %v803 = vunpack.c.l.b16 %v83
    %v804 = vunpack.c.h.b16 %v83
    %v805 = vunpack.c.l.b16 %v84
    %v806 = vunpack.c.h.b16 %v84
    %v807 = vunpack.c.l.b16 %v85
    %v808 = vunpack.c.h.b16 %v85
    %v809 = vunpack.c.l.b16 %v86
    %v810 = vunpack.c.h.b16 %v86
    %v811 = vunpack.c.l.b16 %v87
    %v812 = vunpack.c.h.b16 %v87
    %v813 = vunpack.c.l.b16 %v88
    %v814 = vunpack.c.h.b16 %v88
    %v815 = vunpack.c.l.b16 %v89
    %v816 = vunpack.c.h.b16 %v89
    %v817 = vunpack.c.l.b16 %v90
    %v818 = vunpack.c.h.b16 %v90
    %v819 = vunpack.c.l.b16 %v91
    %v820 = vunpack.c.h.b16 %v91
    %v821 = vunpack.c.l.b16 %v92
    %v822 = vunpack.c.h.b16 %v92
    %v823 = vunpack.c.l.b16 %v93
    %v824 = vunpack.c.h.b16 %v93
    %v825 = vunpack.c.l.b16 %v94
    %v826 = vunpack.c.h.b16 %v94
    %v827 = vunpack.c.l.b16 %v95
    %v828 = vunpack.c.h.b16 %v95
    %v829 = vunpack.c.l.b16 %v96
    %v830 = vunpack.c.h.b16 %v96
    %v831 = vunpack.c.l.b16 %v97
    %v832 = vunpack.c.h.b16 %v97
    %v833 = vunpack.c.l.b16 %v98
    %v834 = vunpack.c.h.b16 %v98
    %v835 = vunpack.c.l.b16 %v99
    %v836 = vunpack.c.h.b16 %v99
    %v837 = vunpack.c.l.b16 %v100
    %v838 = vunpack.c.h.b16 %v100
    %v839 = vunpack.c.l.b16 %v101
    %v840 = vunpack.c.h.b16 %v101
    %v841 = vunpack.c.l.b16 %v102
    %v842 = vunpack.c.h.b16 %v102
    %v843 = vunpack.c.l.b16 %v103
    %v844 = vunpack.c.h.b16 %v103
    %v845 = vunpack.c.l.b16 %v104
    %v846 = vunpack.c.h.b16 %v104
    %v847 = vunpack.c.l.b16 %v105
    %v848 = vunpack.c.h.b16 %v105
    %v849 = vunpack.c.l.b16 %v106
    %v850 = vunpack.c.h.b16 %v106
    %v851 = vunpack.c.l.b16 %v107
    %v852 = vunpack.c.h.b16 %v107
    %v853 = vunpack.c.l.b16 %v108
    %v854 = vunpack.c.h.b16 %v108
    %v855 = vunpack.c.l.b16 %v109
    %v856 = vunpack.c.h.b16 %v109
    %v857 = vunpack.c.l.b16 %v110
    %v858 = vunpack.c.h.b16 %v110
    %v859 = vunpack.c.l.b16 %v111
    %v860 = vunpack.c.h.b16 %v111
    %v861 = vunpack.c.l.b16 %v112
    %v862 = vunpack.c.h.b16 %v112
    %v863 = vunpack.c.l.b16 %v113
    %v864 = vunpack.c.h.b16 %v113
    %v865 = vunpack.c.l.b16 %v114
    %v866 = vunpack.c.h.b16 %v114
    %v867 = vunpack.c.l.b16 %v115
    %v868 = vunpack.c.h.b16 %v115
    %v869 = vunpack.c.l.b16 %v116
    %v870 = vunpack.c.h.b16 %v116
    %v871 = vunpack.c.l.b16 %v117
    %v872 = vunpack.c.h.b16 %v117
    %v873 = vunpack.c.l.b16 %v118
    %v874 = vunpack.c.h.b16 %v118
    %v875 = vunpack.c.l.b16 %v119
    %v876 = vunpack.c.h.b16 %v119
    %v877 = vunpack.c.l.b16 %v120
    %v878 = vunpack.c.h.b16 %v120
    %v879 = vunpack.c.l.b16 %v121
    %v880 = vunpack.c.h.b16 %v121
    %v881 = vunpack.c.l.b16 %v122
    %v882 = vunpack.c.h.b16 %v122
    %v883 = vunpack.c.l.b16 %v123
    %v884 = vunpack.c.h.b16 %v123
    %v885 = vunpack.c.l.b16 %v124
    %v886 = vunpack.c.h.b16 %v124
    %v887 = vunpack.c.l.b16 %v125
    %v888 = vunpack.c.h.b16 %v125
    %v889 = vunpack.c.l.b16 %v126
    %v890 = vunpack.c.h.b16 %v126
    %v891 = vunpack.c.l.b16 %v127
    %v892 = vunpack.c.h.b16 %v127
    %v893 = vunpack.c.l.b16 %v128
    %v894 = vunpack.c.h.b16 %v128
    %v895 = vunpack.c.l.b16 %v129
    %v896 = vunpack.c.h.b16 %v129
    %v897 = vunpack.c.l.b16 %v130
    %v898 = vunpack.c.h.b16 %v130
    %v899 = vunpack.c.l.b16 %v131
    %v900 = vunpack.c.h.b16 %v131
    %v901 = vunpack.c.l.b16 %v132
    %v902 = vunpack.c.h.b16 %v132
    %v903 = vunpack.c.l.b16 %v133
    %v904 = vunpack.c.h.b16 %v133
    %v905 = vunpack.c.l.b16 %v134
    %v906 = vunpack.c.h.b16 %v134
    %v907 = vunpack.c.l.b16 %v135
    %v908 = vunpack.c.h.b16 %v135
    %v909 = vunpack.c.l.b16 %v136
    %v910 = vunpack.c.h.b16 %v136
    %v911 = vunpack.c.l.b16 %v137
    %v912 = vunpack.c.h.b16 %v137
    %v913 = vunpack.c.l.b16 %v138
    %v914 = vunpack.c.h.b16 %v138
    %v915 = vunpack.c.l.b16 %v139
    %v916 = vunpack.c.h.b16 %v139
    %v917 = vunpack.c.l.b16 %v140
    %v918 = vunpack.c.h.b16 %v140
    %v919 = vunpack.c.l.b16 %v141
    %v920 = vunpack.c.h.b16 %v141
    %v921 = vunpack.c.l.b16 %v142
    %v922 = vunpack.c.h.b16 %v142
    %v923 = vunpack.c.l.b16 %v143
    %v924 = vunpack.c.h.b16 %v143
    %v925 = vunpack.c.l.b16 %v144
    %v926 = vunpack.c.h.b16 %v144
    %v927 = vunpack.c.l.b16 %v145
    %v928 = vunpack.c.h.b16 %v145
    %v929 = vunpack.c.l.b16 %v146
    %v930 = vunpack.c.h.b16 %v146
    %v931 = vunpack.c.l.b16 %v147
    %v932 = vunpack.c.h.b16 %v147
    %v933 = vunpack.c.l.b16 %v148
    %v934 = vunpack.c.h.b16 %v148
    %v935 = vunpack.c.l.b16 %v149
    %v936 = vunpack.c.h.b16 %v149
    %v937 = vunpack.c.l.b16 %v150
    %v938 = vunpack.c.h.b16 %v150
    %v939 = vunpack.c.l.b16 %v151
    %v940 = vunpack.c.h.b16 %v151
    %v941 = vunpack.c.l.b16 %v152
    %v942 = vunpack.c.h.b16 %v152
    %v943 = vunpack.c.l.b16 %v153
    %v944 = vunpack.c.h.b16 %v153
    %v945 = vunpack.c.l.b16 %v154
    %v946 = vunpack.c.h.b16 %v154
    %v947 = vunpack.c.l.b16 %v155
    %v948 = vunpack.c.h.b16 %v155
    %v949 = vunpack.c.l.b16 %v156
    %v950 = vunpack.c.h.b16 %v156
    %v951 = vunpack.c.l.b16 %v157
    %v952 = vunpack.c.h.b16 %v157
    %v953 = vunpack.c.l.b16 %v158
    %v954 = vunpack.c.h.b16 %v158
    %v955 = vunpack.c.l.b16 %v159
    %v956 = vunpack.c.h.b16 %v159
    %v957 = vunpack.c.l.b16 %v160
    %v958 = vunpack.c.h.b16 %v160
    %v959 = vunpack.c.l.b16 %v161
    %v960 = vunpack.c.h.b16 %v161
    %v961 = vunpack.c.l.b16 %v162
    %v962 = vunpack.c.h.b16 %v162
    %v963 = vunpack.c.l.b16 %v163
    %v964 = vunpack.c.h.b16 %v163
    %v965 = vunpack.c.l.b16 %v164
    %v966 = vunpack.c.h.b16 %v164
    %v967 = vunpack.c.l.b16 %v165
    %v968 = vunpack.c.h.b16 %v165
    %v969 = vunpack.c.l.b16 %v166
    %v970 = vunpack.c.h.b16 %v166
    %v971 = vunpack.c.l.b16 %v167
    %v972 = vunpack.c.h.b16 %v167
    %v973 = vunpack.c.l.b16 %v168
    %v974 = vunpack.c.h.b16 %v168
    %v975 = vunpack.c.l.b16 %v169
    %v976 = vunpack.c.h.b16 %v169
    %v977 = vunpack.c.l.b16 %v170
    %v978 = vunpack.c.h.b16 %v170
    %v979 = vunpack.c.l.b16 %v171
    %v980 = vunpack.c.h.b16 %v171
    %v981 = vunpack.c.l.b16 %v172
    %v982 = vunpack.c.h.b16 %v172
    %v983 = vunpack.c.l.b16 %v173
    %v984 = vunpack.c.h.b16 %v173
    %v985 = vunpack.c.l.b16 %v174
    %v986 = vunpack.c.h.b16 %v174
    %v987 = vunpack.c.l.b16 %v175
    %v988 = vunpack.c.h.b16 %v175
    %v989 = vunpack.c.l.b16 %v176
    %v990 = vunpack.c.h.b16 %v176
    %v991 = vunpack.c.l.b16 %v177
    %v992 = vunpack.c.h.b16 %v177
    %v993 = vunpack.c.l.b16 %v178
    %v994 = vunpack.c.h.b16 %v178
    %v995 = vunpack.c.l.b16 %v179
    %v996 = vunpack.c.h.b16 %v179
    %v997 = vunpack.c.l.b16 %v180
    %v998 = vunpack.c.h.b16 %v180
    %v999 = vunpack.c.l.b16 %v181
    %v1000 = vunpack.c.h.b16 %v181
    %v1001 = vunpack.c.l.b16 %v182
    %v1002 = vunpack.c.h.b16 %v182
    %v1003 = vunpack.c.l.b16 %v183
    %v1004 = vunpack.c.h.b16 %v183
    %v1005 = vunpack.c.l.b16 %v184
    %v1006 = vunpack.c.h.b16 %v184
    %v1007 = vunpack.c.l.b16 %v185
    %v1008 = vunpack.c.h.b16 %v185
    %v1009 = vunpack.c.l.b16 %v186
    %v1010 = vunpack.c.h.b16 %v186
    %v1011 = vunpack.c.l.b16 %v187
    %v1012 = vunpack.c.h.b16 %v187
    %v1013 = vunpack.c.l.b16 %v188
    %v1014 = vunpack.c.h.b16 %v188
    %v1015 = vunpack.c.l.b16 %v189
    %v1016 = vunpack.c.h.b16 %v189
    %v1017 = vunpack.c.l.b16 %v190
    %v1018 = vunpack.c.h.b16 %v190
    %v1019 = vunpack.c.l.b16 %v191
    %v1020 = vunpack.c.h.b16 %v191
    %v1021 = vunpack.c.l.b16 %v192
    %v1022 = vunpack.c.h.b16 %v192
    %v1023 = vunpack.c.l.b16 %v193
    %v1024 = vunpack.c.h.b16 %v193
    %v1025 = vunpack.c.l.b16 %v194
    %v1026 = vunpack.c.h.b16 %v194
    %v1027 = vunpack.c.l.b16 %v195
    %v1028 = vunpack.c.h.b16 %v195
    %v1029 = vunpack.c.l.b16 %v196
    %v1030 = vunpack.c.h.b16 %v196
    %v1031 = vunpack.c.l.b16 %v197
    %v1032 = vunpack.c.h.b16 %v197
    %v1033 = vunpack.c.l.b16 %v198
    %v1034 = vunpack.c.h.b16 %v198
    %v1035 = vunpack.c.l.b16 %v199
    %v1036 = vunpack.c.h.b16 %v199
    %v1037 = vunpack.c.l.b16 %v200
    %v1038 = vunpack.c.h.b16 %v200
    %v1039 = vunpack.c.l.b16 %v201
    %v1040 = vunpack.c.h.b16 %v201
    %v1041 = vunpack.c.l.b16 %v202
    %v1042 = vunpack.c.h.b16 %v202
    %v1043 = vunpack.c.l.b16 %v203
    %v1044 = vunpack.c.h.b16 %v203
    %v1045 = vunpack.c.l.b16 %v204
    %v1046 = vunpack.c.h.b16 %v204
    %v1047 = vunpack.c.l.b16 %v205
    %v1048 = vunpack.c.h.b16 %v205
    %v1049 = vunpack.c.l.b16 %v206
    %v1050 = vunpack.c.h.b16 %v206
    %v1051 = vunpack.c.l.b16 %v207
    %v1052 = vunpack.c.h.b16 %v207
    %v1053 = vunpack.c.l.b16 %v208
    %v1054 = vunpack.c.h.b16 %v208
    %v1055 = vunpack.c.l.b16 %v209
    %v1056 = vunpack.c.h.b16 %v209
    %v1057 = vunpack.c.l.b16 %v210
    %v1058 = vunpack.c.h.b16 %v210
    %v1059 = vunpack.c.l.b16 %v211
    %v1060 = vunpack.c.h.b16 %v211
    %v1061 = vunpack.c.l.b16 %v212
    %v1062 = vunpack.c.h.b16 %v212
    %v1063 = vunpack.c.l.b16 %v213
    %v1064 = vunpack.c.h.b16 %v213
    %v1065 = vunpack.c.l.b16 %v214
    %v1066 = vunpack.c.h.b16 %v214
    %v1067 = vunpack.c.l.b16 %v215
    %v1068 = vunpack.c.h.b16 %v215
    %v1069 = vunpack.c.l.b16 %v216
    %v1070 = vunpack.c.h.b16 %v216
    %v1071 = vunpack.c.l.b16 %v217
    %v1072 = vunpack.c.h.b16 %v217
    %v1073 = vunpack.c.l.b16 %v218
    %v1074 = vunpack.c.h.b16 %v218
    %v1075 = vunpack.c.l.b16 %v219
    %v1076 = vunpack.c.h.b16 %v219
    %v1077 = vunpack.c.l.b16 %v220
    %v1078 = vunpack.c.h.b16 %v220
    %v1079 = vunpack.c.l.b16 %v221
    %v1080 = vunpack.c.h.b16 %v221
    %v1081 = vunpack.c.l.b16 %v222
    %v1082 = vunpack.c.h.b16 %v222
    %v1083 = vunpack.c.l.b16 %v223
    %v1084 = vunpack.c.h.b16 %v223
    %v1085 = vunpack.c.l.b16 %v224
    %v1086 = vunpack.c.h.b16 %v224
    %v1087 = vunpack.c.l.b16 %v225
    %v1088 = vunpack.c.h.b16 %v225
    %v1089 = vunpack.c.l.b16 %v226
    %v1090 = vunpack.c.h.b16 %v226
    %v1091 = vunpack.c.l.b16 %v227
    %v1092 = vunpack.c.h.b16 %v227
    %v1093 = vunpack.c.l.b16 %v228
    %v1094 = vunpack.c.h.b16 %v228
    %v1095 = vunpack.c.l.b16 %v229
    %v1096 = vunpack.c.h.b16 %v229
    %v1097 = vunpack.c.l.b16 %v230
    %v1098 = vunpack.c.h.b16 %v230
    %v1099 = vunpack.c.l.b16 %v231
    %v1100 = vunpack.c.h.b16 %v231
    %v1101 = vunpack.c.l.b16 %v232
    %v1102 = vunpack.c.h.b16 %v232
    %v1103 = vunpack.c.l.b16 %v233
    %v1104 = vunpack.c.h.b16 %v233
    %v1105 = vunpack.c.l.b16 %v234
    %v1106 = vunpack.c.h.b16 %v234
    %v1107 = vunpack.c.l.b16 %v235
    %v1108 = vunpack.c.h.b16 %v235
    %v1109 = vunpack.c.l.b16 %v236
    %v1110 = vunpack.c.h.b16 %v236
    %v1111 = vunpack.c.l.b16 %v237
    %v1112 = vunpack.c.h.b16 %v237
    %v1113 = vunpack.c.l.b16 %v238
    %v1114 = vunpack.c.h.b16 %v238
    %v1115 = vunpack.c.l.b16 %v239
    %v1116 = vunpack.c.h.b16 %v239
    %v1117 = vunpack.c.l.b16 %v240
    %v1118 = vunpack.c.h.b16 %v240
    %v1119 = vunpack.c.l.b16 %v241
    %v1120 = vunpack.c.h.b16 %v241
    %v1121 = vunpack.c.l.b16 %v242
    %v1122 = vunpack.c.h.b16 %v242
    %v1123 = vunpack.c.l.b16 %v243
    %v1124 = vunpack.c.h.b16 %v243
    %v1125 = vunpack.c.l.b16 %v244
    %v1126 = vunpack.c.h.b16 %v244
    %v1127 = vunpack.c.l.b16 %v245
    %v1128 = vunpack.c.h.b16 %v245
    %v1129 = vunpack.c.l.b16 %v246
    %v1130 = vunpack.c.h.b16 %v246
    %v1131 = vunpack.c.l.b16 %v247
    %v1132 = vunpack.c.h.b16 %v247
    %v1133 = vunpack.c.l.b16 %v248
    %v1134 = vunpack.c.h.b16 %v248
    %v1135 = vunpack.c.l.b16 %v249
    %v1136 = vunpack.c.h.b16 %v249
    %v1137 = vunpack.c.l.b16 %v250
    %v1138 = vunpack.c.h.b16 %v250
    %v1139 = vunpack.c.l.b16 %v251
    %v1140 = vunpack.c.h.b16 %v251
    %v1141 = vunpack.c.l.b16 %v252
    %v1142 = vunpack.c.h.b16 %v252
    %v1143 = vunpack.c.l.b16 %v253
    %v1144 = vunpack.c.h.b16 %v253
    %v1145 = vunpack.c.l.b16 %v254
    %v1146 = vunpack.c.h.b16 %v254
    %v1147 = vunpack.c.l.b16 %v255
    %v1148 = vunpack.c.h.b16 %v255
    %v1149 = vunpack.c.l.b16 %v256
    %v1150 = vunpack.c.h.b16 %v256
    %v1151 = vunpack.c.l.b16 %v257
    %v1152 = vunpack.c.h.b16 %v257
    %v1153 = vunpack.c.l.b16 %v258
    %v1154 = vunpack.c.h.b16 %v258
    %v1155 = vunpack.c.l.b16 %v259
    %v1156 = vunpack.c.h.b16 %v259
    %v1157 = vunpack.c.l.b16 %v260
    %v1158 = vunpack.c.h.b16 %v260
    %v1159 = vunpack.c.l.b16 %v261
    %v1160 = vunpack.c.h.b16 %v261
    %v1161 = vunpack.c.l.b16 %v262
    %v1162 = vunpack.c.h.b16 %v262
    %v1163 = vunpack.c.l.b16 %v263
    %v1164 = vunpack.c.h.b16 %v263
    %v1165 = vunpack.c.l.b16 %v264
    %v1166 = vunpack.c.h.b16 %v264
    %v1167 = vunpack.c.l.b16 %v265
    %v1168 = vunpack.c.h.b16 %v265
    %v1169 = vunpack.c.l.b16 %v266
    %v1170 = vunpack.c.h.b16 %v266
    %v1171 = vunpack.c.l.b16 %v267
    %v1172 = vunpack.c.h.b16 %v267
    %v1173 = vunpack.c.l.b16 %v268
    %v1174 = vunpack.c.h.b16 %v268
    %v1175 = vunpack.c.l.b16 %v269
    %v1176 = vunpack.c.h.b16 %v269
    %v1177 = vunpack.c.l.b16 %v270
    %v1178 = vunpack.c.h.b16 %v270
    %v1179 = vunpack.c.l.b16 %v271
    %v1180 = vunpack.c.h.b16 %v271
    %v1181 = vunpack.c.l.b16 %v272
    %v1182 = vunpack.c.h.b16 %v272
    %v1183 = vunpack.c.l.b16 %v273
    %v1184 = vunpack.c.h.b16 %v273
    %v1185 = vunpack.c.l.b16 %v274
    %v1186 = vunpack.c.h.b16 %v274
    %v1187 = vunpack.c.l.b16 %v275
    %v1188 = vunpack.c.h.b16 %v275
    %v1189 = vunpack.c.l.b16 %v276
    %v1190 = vunpack.c.h.b16 %v276
    %v1191 = vunpack.c.l.b16 %v277
    %v1192 = vunpack.c.h.b16 %v277
    %v1193 = vunpack.c.l.b16 %v278
    %v1194 = vunpack.c.h.b16 %v278
    %v1195 = vunpack.c.l.b16 %v279
    %v1196 = vunpack.c.h.b16 %v279
    %v1197 = vunpack.c.l.b16 %v280
    %v1198 = vunpack.c.h.b16 %v280
    %v1199 = vunpack.c.l.b16 %v281
    %v1200 = vunpack.c.h.b16 %v281
    %v1201 = vunpack.c.l.b16 %v282
    %v1202 = vunpack.c.h.b16 %v282
    %v1203 = vunpack.c.l.b16 %v283
    %v1204 = vunpack.c.h.b16 %v283
    %v1205 = vunpack.c.l.b16 %v284
    %v1206 = vunpack.c.h.b16 %v284
    %v1207 = vunpack.c.l.b16 %v285
    %v1208 = vunpack.c.h.b16 %v285
    %v1209 = vunpack.c.l.b16 %v286
    %v1210 = vunpack.c.h.b16 %v286
    %v1211 = vunpack.c.l.b16 %v287
    %v1212 = vunpack.c.h.b16 %v287
    %v1213 = vunpack.c.l.b16 %v288
    %v1214 = vunpack.c.h.b16 %v288
    %v1215 = vunpack.c.l.b16 %v289
    %v1216 = vunpack.c.h.b16 %v289
    %v1217 = vunpack.c.l.b16 %v290
    %v1218 = vunpack.c.h.b16 %v290
    %v1219 = vunpack.c.l.b16 %v291
    %v1220 = vunpack.c.h.b16 %v291
    %v1221 = vunpack.c.l.b16 %v292
    %v1222 = vunpack.c.h.b16 %v292
    %v1223 = vunpack.c.l.b16 %v293
    %v1224 = vunpack.c.h.b16 %v293
    %v1225 = vunpack.c.l.b16 %v294
    %v1226 = vunpack.c.h.b16 %v294
    %v1227 = vunpack.c.l.b16 %v295
    %v1228 = vunpack.c.h.b16 %v295
    %v1229 = vunpack.c.l.b16 %v296
    %v1230 = vunpack.c.h.b16 %v296
    %v1231 = vunpack.c.l.b16 %v297
    %v1232 = vunpack.c.h.b16 %v297
    %v1233 = vunpack.c.l.b16 %v298
    %v1234 = vunpack.c.h.b16 %v298
    %v1235 = vunpack.c.l.b16 %v299
    %v1236 = vunpack.c.h.b16 %v299
    %v1237 = vunpack.c.l.b16 %v300
    %v1238 = vunpack.c.h.b16 %v300
    %v1239 = vunpack.c.l.b16 %v301
    %v1240 = vunpack.c.h.b16 %v301
    %v1241 = vunpack.c.l.b16 %v302
    %v1242 = vunpack.c.h.b16 %v302
    %v1243 = vunpack.c.l.b16 %v303
    %v1244 = vunpack.c.h.b16 %v303
    %v1245 = vunpack.c.l.b16 %v304
    %v1246 = vunpack.c.h.b16 %v304
    %v1247 = vunpack.c.l.b16 %v305
    %v1248 = vunpack.c.h.b16 %v305
    %v1249 = vunpack.c.l.b16 %v306
    %v1250 = vunpack.c.h.b16 %v306
    %v1251 = vunpack.c.l.b16 %v307
    %v1252 = vunpack.c.h.b16 %v307
    %v1253 = vunpack.c.l.b16 %v308
    %v1254 = vunpack.c.h.b16 %v308
    %v1255 = vunpack.c.l.b16 %v309
    %v1256 = vunpack.c.h.b16 %v309
    %v1257 = vunpack.c.l.b16 %v310
    %v1258 = vunpack.c.h.b16 %v310
    %v1259 = vunpack.c.l.b16 %v311
    %v1260 = vunpack.c.h.b16 %v311
    %v1261 = vunpack.c.l.b16 %v312
    %v1262 = vunpack.c.h.b16 %v312
    %v1263 = vunpack.c.l.b16 %v313
    %v1264 = vunpack.c.h.b16 %v313
    %v1265 = vunpack.c.l.b16 %v314
    %v1266 = vunpack.c.h.b16 %v314
    %v1267 = vunpack.c.l.b16 %v315
    %v1268 = vunpack.c.h.b16 %v315
    %v1269 = vunpack.c.l.b16 %v316
    %v1270 = vunpack.c.h.b16 %v316
    %v1271 = vunpack.c.l.b16 %v317
    %v1272 = vunpack.c.h.b16 %v317
    %v1273 = vunpack.c.l.b16 %v318
    %v1274 = vunpack.c.h.b16 %v318
    %v1275 = vunpack.c.l.b16 %v319
    %v1276 = vunpack.c.h.b16 %v319
    %v1277 = vunpack.c.l.b16 %v320
    %v1278 = vunpack.c.h.b16 %v320
    %v1279 = vunpack.c.l.b16 %v321
    %v1280 = vunpack.c.h.b16 %v321
    %v1281 = vunpack.c.l.b16 %v322
    %v1282 = vunpack.c.h.b16 %v322
    %v1283 = vunpack.c.l.b16 %v323
    %v1284 = vunpack.c.h.b16 %v323
    %v1285 = vunpack.c.l.b16 %v324
    %v1286 = vunpack.c.h.b16 %v324
    %v1287 = vunpack.c.l.b16 %v325
    %v1288 = vunpack.c.h.b16 %v325
    %v1289 = vunpack.c.l.b16 %v326
    %v1290 = vunpack.c.h.b16 %v326
    %v1291 = vunpack.c.l.b16 %v327
    %v1292 = vunpack.c.h.b16 %v327
    %v1293 = vunpack.c.l.b16 %v328
    %v1294 = vunpack.c.h.b16 %v328
    %v1295 = vunpack.c.l.b16 %v329
    %v1296 = vunpack.c.h.b16 %v329
    %v1297 = vunpack.c.l.b16 %v330
    %v1298 = vunpack.c.h.b16 %v330
    %v1299 = vunpack.c.l.b16 %v331
    %v1300 = vunpack.c.h.b16 %v331
    %v1301 = vunpack.c.l.b16 %v332
    %v1302 = vunpack.c.h.b16 %v332
    %v1303 = vunpack.c.l.b16 %v333
    %v1304 = vunpack.c.h.b16 %v333
    %v1305 = vunpack.c.l.b16 %v334
    %v1306 = vunpack.c.h.b16 %v334
    %v1307 = vunpack.c.l.b16 %v335
    %v1308 = vunpack.c.h.b16 %v335
    %v1309 = vunpack.c.l.b16 %v336
    %v1310 = vunpack.c.h.b16 %v336
    %v1311 = vunpack.c.l.b16 %v337
    %v1312 = vunpack.c.h.b16 %v337
    %v1313 = vpack.c.b16 %v689, %v685
    %v1314 = vpack.c.b16 %v690, %v686
    %v1315 = vpack.c.b16 %v691, %v687
    %v1316 = vpack.c.b16 %v692, %v688
    %v1317 = vpack.c.b16 %v697, %v693
    %v1318 = vpack.c.b16 %v698, %v694
    %v1319 = vpack.c.b16 %v699, %v695
    %v1320 = vpack.c.b16 %v700, %v696
    %v1321 = vpack.c.b16 %v705, %v701
    %v1322 = vpack.c.b16 %v706, %v702
    %v1323 = vpack.c.b16 %v707, %v703
    %v1324 = vpack.c.b16 %v708, %v704
    %v1325 = vpack.c.b16 %v713, %v709
    %v1326 = vpack.c.b16 %v714, %v710
    %v1327 = vpack.c.b16 %v715, %v711
    %v1328 = vpack.c.b16 %v716, %v712
    %v1329 = vpack.c.b16 %v721, %v717
    %v1330 = vpack.c.b16 %v722, %v718
    %v1331 = vpack.c.b16 %v723, %v719
    %v1332 = vpack.c.b16 %v724, %v720
    %v1333 = vpack.c.b16 %v729, %v725
    %v1334 = vpack.c.b16 %v730, %v726
    %v1335 = vpack.c.b16 %v731, %v727
    %v1336 = vpack.c.b16 %v732, %v728
    %v1337 = vpack.c.b16 %v737, %v733
    %v1338 = vpack.c.b16 %v738, %v734
    %v1339 = vpack.c.b16 %v739, %v735
    %v1340 = vpack.c.b16 %v740, %v736
    %v1341 = vpack.c.b16 %v745, %v741
    %v1342 = vpack.c.b16 %v746, %v742
    %v1343 = vpack.c.b16 %v747, %v743
    %v1344 = vpack.c.b16 %v748, %v744
    %v1345 = vpack.c.b16 %v753, %v749
    %v1346 = vpack.c.b16 %v754, %v750
    %v1347 = vpack.c.b16 %v755, %v751
    %v1348 = vpack.c.b16 %v756, %v752
    %v1349 = vpack.c.b16 %v761, %v757
    %v1350 = vpack.c.b16 %v762, %v758
    %v1351 = vpack.c.b16 %v763, %v759
    %v1352 = vpack.c.b16 %v764, %v760
    %v1353 = vpack.c.b16 %v769, %v765
    %v1354 = vpack.c.b16 %v770, %v766
    %v1355 = vpack.c.b16 %v771, %v767
    %v1356 = vpack.c.b16 %v772, %v768
    %v1357 = vpack.c.b16 %v777, %v773
    %v1358 = vpack.c.b16 %v778, %v774
    %v1359 = vpack.c.b16 %v779, %v775
    %v1360 = vpack.c.b16 %v780, %v776
    %v1361 = vpack.c.b16 %v785, %v781
    %v1362 = vpack.c.b16 %v786, %v782
    %v1363 = vpack.c.b16 %v787, %v783
    %v1364 = vpack.c.b16 %v788, %v784
    %v1365 = vpack.c.b16 %v793, %v789
    %v1366 = vpack.c.b16 %v794, %v790
    %v1367 = vpack.c.b16 %v795, %v791
    %v1368 = vpack.c.b16 %v796, %v792
    %v1369 = vpack.c.b16 %v801, %v797
    %v1370 = vpack.c.b16 %v802, %v798
    %v1371 = vpack.c.b16 %v803, %v799
    %v1372 = vpack.c.b16 %v804, %v800
    %v1373 = vpack.c.b16 %v809, %v805
    %v1374 = vpack.c.b16 %v810, %v806
    %v1375 = vpack.c.b16 %v811, %v807
    %v1376 = vpack.c.b16 %v812, %v808
    %v1377 = vpack.c.b16 %v817, %v813
    %v1378 = vpack.c.b16 %v818, %v814
    %v1379 = vpack.c.b16 %v819, %v815
    %v1380 = vpack.c.b16 %v820, %v816
    %v1381 = vpack.c.b16 %v825, %v821
    %v1382 = vpack.c.b16 %v826, %v822
    %v1383 = vpack.c.b16 %v827, %v823
    %v1384 = vpack.c.b16 %v828, %v824
    %v1385 = vpack.c.b16 %v833, %v829
    %v1386 = vpack.c.b16 %v834, %v830
    %v1387 = vpack.c.b16 %v835, %v831
    %v1388 = vpack.c.b16 %v836, %v832
    %v1389 = vpack.c.b16 %v841, %v837
    %v1390 = vpack.c.b16 %v842, %v838
    %v1391 = vpack.c.b16 %v843, %v839
    %v1392 = vpack.c.b16 %v844, %v840
    %v1393 = vpack.c.b16 %v849, %v845
    %v1394 = vpack.c.b16 %v850, %v846
    %v1395 = vpack.c.b16 %v851, %v847
    %v1396 = vpack.c.b16 %v852, %v848
    %v1397 = vpack.c.b16 %v857, %v853
    %v1398 = vpack.c.b16 %v858, %v854
    %v1399 = vpack.c.b16 %v859, %v855
    %v1400 = vpack.c.b16 %v860, %v856
    %v1401 = vpack.c.b16 %v865, %v861
    %v1402 = vpack.c.b16 %v866, %v862
    %v1403 = vpack.c.b16 %v867, %v863
    %v1404 = vpack.c.b16 %v868, %v864
    %v1405 = vpack.c.b16 %v873, %v869
    %v1406 = vpack.c.b16 %v874, %v870
    %v1407 = vpack.c.b16 %v875, %v871
    %v1408 = vpack.c.b16 %v876, %v872
    %v1409 = vpack.c.b16 %v881, %v877
    %v1410 = vpack.c.b16 %v882, %v878
    %v1411 = vpack.c.b16 %v883, %v879
    %v1412 = vpack.c.b16 %v884, %v880
    %v1413 = vpack.c.b16 %v889, %v885
    %v1414 = vpack.c.b16 %v890, %v886
    %v1415 = vpack.c.b16 %v891, %v887
    %v1416 = vpack.c.b16 %v892, %v888
    %v1417 = vpack.c.b16 %v897, %v893
    %v1418 = vpack.c.b16 %v898, %v894
    %v1419 = vpack.c.b16 %v899, %v895
    %v1420 = vpack.c.b16 %v900, %v896
    %v1421 = vpack.c.b16 %v905, %v901
    %v1422 = vpack.c.b16 %v906, %v902
    %v1423 = vpack.c.b16 %v907, %v903
    %v1424 = vpack.c.b16 %v908, %v904
    %v1425 = vpack.c.b16 %v913, %v909
    %v1426 = vpack.c.b16 %v914, %v910
    %v1427 = vpack.c.b16 %v915, %v911
    %v1428 = vpack.c.b16 %v916, %v912
    %v1429 = vpack.c.b16 %v921, %v917
    %v1430 = vpack.c.b16 %v922, %v918
    %v1431 = vpack.c.b16 %v923, %v919
    %v1432 = vpack.c.b16 %v924, %v920
    %v1433 = vpack.c.b16 %v929, %v925
    %v1434 = vpack.c.b16 %v930, %v926
    %v1435 = vpack.c.b16 %v931, %v927
    %v1436 = vpack.c.b16 %v932, %v928
    %v1437 = vpack.c.b16 %v937, %v933
    %v1438 = vpack.c.b16 %v938, %v934
    %v1439 = vpack.c.b16 %v939, %v935
    %v1440 = vpack.c.b16 %v940, %v936
    %v1441 = vpack.c.b16 %v945, %v941
    %v1442 = vpack.c.b16 %v946, %v942
    %v1443 = vpack.c.b16 %v947, %v943
    %v1444 = vpack.c.b16 %v948, %v944
    %v1445 = vpack.c.b16 %v953, %v949
    %v1446 = vpack.c.b16 %v954, %v950
    %v1447 = vpack.c.b16 %v955, %v951
    %v1448 = vpack.c.b16 %v956, %v952
    %v1449 = vpack.c.b16 %v961, %v957
    %v1450 = vpack.c.b16 %v962, %v958
    %v1451 = vpack.c.b16 %v963, %v959
    %v1452 = vpack.c.b16 %v964, %v960
    %v1453 = vpack.c.b16 %v969, %v965
    %v1454 = vpack.c.b16 %v970, %v966
    %v1455 = vpack.c.b16 %v971, %v967
    %v1456 = vpack.c.b16 %v972, %v968
    %v1457 = vpack.c.b16 %v977, %v973
    %v1458 = vpack.c.b16 %v978, %v974
    %v1459 = vpack.c.b16 %v979, %v975
    %v1460 = vpack.c.b16 %v980, %v976
    %v1461 = vpack.c.b16 %v985, %v981
    %v1462 = vpack.c.b16 %v986, %v982
    %v1463 = vpack.c.b16 %v987, %v983
    %v1464 = vpack.c.b16 %v988, %v984
    %v1465 = vpack.c.b16 %v993, %v989
    %v1466 = vpack.c.b16 %v994, %v990
    %v1467 = vpack.c.b16 %v995, %v991
    %v1468 = vpack.c.b16 %v996, %v992
    %v1469 = vpack.c.b16 %v1001, %v997
    %v1470 = vpack.c.b16 %v1002, %v998
    %v1471 = vpack.c.b16 %v1003, %v999
    %v1472 = vpack.c.b16 %v1004, %v1000
    %v1473 = vpack.c.b16 %v1009, %v1005
    %v1474 = vpack.c.b16 %v1010, %v1006
    %v1475 = vpack.c.b16 %v1011, %v1007
    %v1476 = vpack.c.b16 %v1012, %v1008
    %v1477 = vpack.c.b16 %v1017, %v1013
    %v1478 = vpack.c.b16 %v1018, %v1014
    %v1479 = vpack.c.b16 %v1019, %v1015
    %v1480 = vpack.c.b16 %v1020, %v1016
    %v1481 = vpack.c.b16 %v1025, %v1021
    %v1482 = vpack.c.b16 %v1026, %v1022
    %v1483 = vpack.c.b16 %v1027, %v1023
    %v1484 = vpack.c.b16 %v1028, %v1024
    %v1485 = vpack.c.b16 %v1033, %v1029
    %v1486 = vpack.c.b16 %v1034, %v1030
    %v1487 = vpack.c.b16 %v1035, %v1031
    %v1488 = vpack.c.b16 %v1036, %v1032
    %v1489 = vpack.c.b16 %v1041, %v1037
    %v1490 = vpack.c.b16 %v1042, %v1038
    %v1491 = vpack.c.b16 %v1043, %v1039
    %v1492 = vpack.c.b16 %v1044, %v1040
    %v1493 = vpack.c.b16 %v1049, %v1045
    %v1494 = vpack.c.b16 %v1050, %v1046
    %v1495 = vpack.c.b16 %v1051, %v1047
    %v1496 = vpack.c.b16 %v1052, %v1048
    %v1497 = vpack.c.b16 %v1057, %v1053
    %v1498 = vpack.c.b16 %v1058, %v1054
    %v1499 = vpack.c.b16 %v1059, %v1055
    %v1500 = vpack.c.b16 %v1060, %v1056
    %v1501 = vpack.c.b16 %v1065, %v1061
    %v1502 = vpack.c.b16 %v1066, %v1062
    %v1503 = vpack.c.b16 %v1067, %v1063
    %v1504 = vpack.c.b16 %v1068, %v1064
    %v1505 = vpack.c.b16 %v1073, %v1069
    %v1506 = vpack.c.b16 %v1074, %v1070
    %v1507 = vpack.c.b16 %v1075, %v1071
    %v1508 = vpack.c.b16 %v1076, %v1072
    %v1509 = vpack.c.b16 %v1081, %v1077
    %v1510 = vpack.c.b16 %v1082, %v1078
    %v1511 = vpack.c.b16 %v1083, %v1079
    %v1512 = vpack.c.b16 %v1084, %v1080
    %v1513 = vpack.c.b16 %v1089, %v1085
    %v1514 = vpack.c.b16 %v1090, %v1086
    %v1515 = vpack.c.b16 %v1091, %v1087
    %v1516 = vpack.c.b16 %v1092, %v1088
    %v1517 = vpack.c.b16 %v1097, %v1093
    %v1518 = vpack.c.b16 %v1098, %v1094
    %v1519 = vpack.c.b16 %v1099, %v1095
    %v1520 = vpack.c.b16 %v1100, %v1096
    %v1521 = vpack.c.b16 %v1105, %v1101
    %v1522 = vpack.c.b16 %v1106, %v1102
    %v1523 = vpack.c.b16 %v1107, %v1103
    %v1524 = vpack.c.b16 %v1108, %v1104
    %v1525 = vpack.c.b16 %v1113, %v1109
    %v1526 = vpack.c.b16 %v1114, %v1110
    %v1527 = vpack.c.b16 %v1115, %v1111
    %v1528 = vpack.c.b16 %v1116, %v1112
    %v1529 = vpack.c.b16 %v1121, %v1117
    %v1530 = vpack.c.b16 %v1122, %v1118
    %v1531 = vpack.c.b16 %v1123, %v1119
    %v1532 = vpack.c.b16 %v1124, %v1120
    %v1533 = vpack.c.b16 %v1129, %v1125
    %v1534 = vpack.c.b16 %v1130, %v1126
    %v1535 = vpack.c.b16 %v1131, %v1127
    %v1536 = vpack.c.b16 %v1132, %v1128
    %v1537 = vpack.c.b16 %v1137, %v1133
    %v1538 = vpack.c.b16 %v1138, %v1134
    %v1539 = vpack.c.b16 %v1139, %v1135
    %v1540 = vpack.c.b16 %v1140, %v1136
    %v1541 = vpack.c.b16 %v1145, %v1141
    %v1542 = vpack.c.b16 %v1146, %v1142
    %v1543 = vpack.c.b16 %v1147, %v1143
    %v1544 = vpack.c.b16 %v1148, %v1144
    %v1545 = vpack.c.b16 %v1153, %v1149
    %v1546 = vpack.c.b16 %v1154, %v1150
    %v1547 = vpack.c.b16 %v1155, %v1151
    %v1548 = vpack.c.b16 %v1156, %v1152
    %v1549 = vpack.c.b16 %v1161, %v1157
    %v1550 = vpack.c.b16 %v1162, %v1158
    %v1551 = vpack.c.b16 %v1163, %v1159
    %v1552 = vpack.c.b16 %v1164, %v1160
    %v1553 = vpack.c.b16 %v1169, %v1165
    %v1554 = vpack.c.b16 %v1170, %v1166
    %v1555 = vpack.c.b16 %v1171, %v1167
    %v1556 = vpack.c.b16 %v1172, %v1168
    %v1557 = vpack.c.b16 %v1177, %v1173
    %v1558 = vpack.c.b16 %v1178, %v1174
    %v1559 = vpack.c.b16 %v1179, %v1175
    %v1560 = vpack.c.b16 %v1180, %v1176
    %v1561 = vpack.c.b16 %v1185, %v1181
    %v1562 = vpack.c.b16 %v1186, %v1182
    %v1563 = vpack.c.b16 %v1187, %v1183
    %v1564 = vpack.c.b16 %v1188, %v1184
    %v1565 = vpack.c.b16 %v1193, %v1189
    %v1566 = vpack.c.b16 %v1194, %v1190
    %v1567 = vpack.c.b16 %v1195, %v1191
    %v1568 = vpack.c.b16 %v1196, %v1192
    %v1569 = vpack.c.b16 %v1201, %v1197
    %v1570 = vpack.c.b16 %v1202, %v1198
    %v1571 = vpack.c.b16 %v1203, %v1199
    %v1572 = vpack.c.b16 %v1204, %v1200
    %v1573 = vpack.c.b16 %v1209, %v1205
    %v1574 = vpack.c.b16 %v1210, %v1206
    %v1575 = vpack.c.b16 %v1211, %v1207
    %v1576 = vpack.c.b16 %v1212, %v1208
    %v1577 = vpack.c.b16 %v1217, %v1213
    %v1578 = vpack.c.b16 %v1218, %v1214
    %v1579 = vpack.c.b16 %v1219, %v1215
    %v1580 = vpack.c.b16 %v1220, %v1216
    %v1581 = vpack.c.b16 %v1225, %v1221
    %v1582 = vpack.c.b16 %v1226, %v1222
    %v1583 = vpack.c.b16 %v1227, %v1223
    %v1584 = vpack.c.b16 %v1228, %v1224
    %v1585 = vpack.c.b16 %v1233, %v1229
    %v1586 = vpack.c.b16 %v1234, %v1230
    %v1587 = vpack.c.b16 %v1235, %v1231
    %v1588 = vpack.c.b16 %v1236, %v1232
    %v1589 = vpack.c.b16 %v1241, %v1237
    %v1590 = vpack.c.b16 %v1242, %v1238
    %v1591 = vpack.c.b16 %v1243, %v1239
    %v1592 = vpack.c.b16 %v1244, %v1240
    %v1593 = vpack.c.b16 %v1249, %v1245
    %v1594 = vpack.c.b16 %v1250, %v1246
    %v1595 = vpack.c.b16 %v1251, %v1247
    %v1596 = vpack.c.b16 %v1252, %v1248
    %v1597 = vpack.c.b16 %v1257, %v1253
    %v1598 = vpack.c.b16 %v1258, %v1254
    %v1599 = vpack.c.b16 %v1259, %v1255
    %v1600 = vpack.c.b16 %v1260, %v1256
    %v1601 = vpack.c.b16 %v1265, %v1261
    %v1602 = vpack.c.b16 %v1266, %v1262
    %v1603 = vpack.c.b16 %v1267, %v1263
    %v1604 = vpack.c.b16 %v1268, %v1264
    %v1605 = vpack.c.b16 %v1273, %v1269
    %v1606 = vpack.c.b16 %v1274, %v1270
    %v1607 = vpack.c.b16 %v1275, %v1271
    %v1608 = vpack.c.b16 %v1276, %v1272
    %v1609 = vpack.c.b16 %v1281, %v1277
    %v1610 = vpack.c.b16 %v1282, %v1278
    %v1611 = vpack.c.b16 %v1283, %v1279
    %v1612 = vpack.c.b16 %v1284, %v1280
    %v1613 = vpack.c.b16 %v1289, %v1285
    %v1614 = vpack.c.b16 %v1290, %v1286
    %v1615 = vpack.c.b16 %v1291, %v1287
    %v1616 = vpack.c.b16 %v1292, %v1288
    %v1617 = vpack.c.b16 %v1297, %v1293
    %v1618 = vpack.c.b16 %v1298, %v1294
    %v1619 = vpack.c.b16 %v1299, %v1295
    %v1620 = vpack.c.b16 %v1300, %v1296
    %v1621 = vpack.c.b16 %v1305, %v1301
    %v1622 = vpack.c.b16 %v1306, %v1302
    %v1623 = vpack.c.b16 %v1307, %v1303
    %v1624 = vpack.c.b16 %v1308, %v1304
    %v1625 = vpack.c.b16 %v1309, %v1309
    %v1626 = vpack.c.b16 %v1310, %v1310
    %v1627 = vpack.c.b16 %v1311, %v1311
    %v1628 = vpack.c.b16 %v1312, %v1312
    %vm1941 = vcmask 801792
    %v1942 = vsel %vm1941, %v361, 0
    %vm1944 = vcmask 1040384
    %v1946 = vsel %vm1944, %v1625, 0
    %v1949 = vsel %vm1944, %v1626, 0
    %v1952 = vsel %vm1944, %v1627, 0
    %v1955 = vsel %vm1944, %v1628, 0
    %1957 = vmatpush.bf16.msra.mxu0 %v1341
    %1958 = vmatpush.bf16.msra.mxu0 %v1337
    %1959 = vmatpush.bf16.msra.mxu0 %v1333
    %1960 = vmatpush.bf16.msra.mxu0 %v1329
    %1961 = vmatpush.bf16.msra.mxu0 %v1325
    %1962 = vmatpush.bf16.msra.mxu0 %v1321
    %1963 = vmatpush.bf16.msra.mxu0 %v1317
    %1964 = vmatpush.bf16.msra.mxu0 %v1313
    %1965 = vmatmul.bf16.gmra.mxu0 %v350
    %v1966 = vpop.f32.mrf.mxu0
    %v1967 = vadd.f32 %v340, %v1966
    %v1968 = vpop.f32.mrf.mxu0
    %1969 = vdwg.mxu0
    %1970 = vmatpush.bf16.msra.mxu0 %v1373
    %1971 = vmatpush.bf16.msra.mxu0 %v1369
    %1972 = vmatpush.bf16.msra.mxu0 %v1365
    %1973 = vmatpush.bf16.msra.mxu0 %v1361
    %1974 = vmatpush.bf16.msra.mxu0 %v1357
    %1975 = vmatpush.bf16.msra.mxu0 %v1353
    %1976 = vmatpush.bf16.msra.mxu0 %v1349
    %1977 = vmatpush.bf16.msra.mxu0 %v1345
    %1978 = vmatmul.bf16.gmra.mxu0 %v351
    %v1979 = vpop.f32.mrf.mxu0
    %v1980 = vadd.f32 %v1967, %v1979
    %v1981 = vpop.f32.mrf.mxu0
    %1982 = vdwg.mxu0
    %1983 = vmatpush.bf16.msra.mxu0 %v1405
    %1984 = vmatpush.bf16.msra.mxu0 %v1401
    %1985 = vmatpush.bf16.msra.mxu0 %v1397
    %1986 = vmatpush.bf16.msra.mxu0 %v1393
    %1987 = vmatpush.bf16.msra.mxu0 %v1389
    %1988 = vmatpush.bf16.msra.mxu0 %v1385
    %1989 = vmatpush.bf16.msra.mxu0 %v1381
    %1990 = vmatpush.bf16.msra.mxu0 %v1377
    %1991 = vmatmul.bf16.gmra.mxu0 %v352
    %v1992 = vpop.f32.mrf.mxu0
    %v1993 = vadd.f32 %v1980, %v1992
    %v1994 = vpop.f32.mrf.mxu0
    %1995 = vdwg.mxu0
    %1996 = vmatpush.bf16.msra.mxu0 %v1437
    %1997 = vmatpush.bf16.msra.mxu0 %v1433
    %1998 = vmatpush.bf16.msra.mxu0 %v1429
    %1999 = vmatpush.bf16.msra.mxu0 %v1425
    %2000 = vmatpush.bf16.msra.mxu0 %v1421
    %2001 = vmatpush.bf16.msra.mxu0 %v1417
    %2002 = vmatpush.bf16.msra.mxu0 %v1413
    %2003 = vmatpush.bf16.msra.mxu0 %v1409
    %2004 = vmatmul.bf16.gmra.mxu0 %v353
    %v2005 = vpop.f32.mrf.mxu0
    %v2006 = vadd.f32 %v1993, %v2005
    %v2007 = vpop.f32.mrf.mxu0
    %2008 = vdwg.mxu0
    %2009 = vmatpush.bf16.msra.mxu0 %v1469
    %2010 = vmatpush.bf16.msra.mxu0 %v1465
    %2011 = vmatpush.bf16.msra.mxu0 %v1461
    %2012 = vmatpush.bf16.msra.mxu0 %v1457
    %2013 = vmatpush.bf16.msra.mxu0 %v1453
    %2014 = vmatpush.bf16.msra.mxu0 %v1449
    %2015 = vmatpush.bf16.msra.mxu0 %v1445
    %2016 = vmatpush.bf16.msra.mxu0 %v1441
    %2017 = vmatmul.bf16.gmra.mxu0 %v354
    %v2018 = vpop.f32.mrf.mxu0
    %v2019 = vadd.f32 %v2006, %v2018
    %v2020 = vpop.f32.mrf.mxu0
    %2021 = vdwg.mxu0
    %2022 = vmatpush.bf16.msra.mxu0 %v1501
    %2023 = vmatpush.bf16.msra.mxu0 %v1497
    %2024 = vmatpush.bf16.msra.mxu0 %v1493
    %2025 = vmatpush.bf16.msra.mxu0 %v1489
    %2026 = vmatpush.bf16.msra.mxu0 %v1485
    %2027 = vmatpush.bf16.msra.mxu0 %v1481
    %2028 = vmatpush.bf16.msra.mxu0 %v1477
    %2029 = vmatpush.bf16.msra.mxu0 %v1473
    %2030 = vmatmul.bf16.gmra.mxu0 %v355
    %v2031 = vpop.f32.mrf.mxu0
    %v2032 = vadd.f32 %v2019, %v2031
    %v2033 = vpop.f32.mrf.mxu0
    %2034 = vdwg.mxu0
    %2035 = vmatpush.bf16.msra.mxu0 %v1533
    %2036 = vmatpush.bf16.msra.mxu0 %v1529
    %2037 = vmatpush.bf16.msra.mxu0 %v1525
    %2038 = vmatpush.bf16.msra.mxu0 %v1521
    %2039 = vmatpush.bf16.msra.mxu0 %v1517
    %2040 = vmatpush.bf16.msra.mxu0 %v1513
    %2041 = vmatpush.bf16.msra.mxu0 %v1509
    %2042 = vmatpush.bf16.msra.mxu0 %v1505
    %2043 = vmatmul.bf16.gmra.mxu0 %v356
    %v2044 = vpop.f32.mrf.mxu0
    %v2045 = vadd.f32 %v2032, %v2044
    %v2046 = vpop.f32.mrf.mxu0
    %2047 = vdwg.mxu0
    %2048 = vmatpush.bf16.msra.mxu0 %v1565
    %2049 = vmatpush.bf16.msra.mxu0 %v1561
    %2050 = vmatpush.bf16.msra.mxu0 %v1557
    %2051 = vmatpush.bf16.msra.mxu0 %v1553
    %2052 = vmatpush.bf16.msra.mxu0 %v1549
    %2053 = vmatpush.bf16.msra.mxu0 %v1545
    %2054 = vmatpush.bf16.msra.mxu0 %v1541
    %2055 = vmatpush.bf16.msra.mxu0 %v1537
    %2056 = vmatmul.bf16.gmra.mxu0 %v357
    %v2057 = vpop.f32.mrf.mxu0
    %v2058 = vadd.f32 %v2045, %v2057
    %v2059 = vpop.f32.mrf.mxu0
    %2060 = vdwg.mxu0
    %2061 = vmatpush.bf16.msra.mxu0 %v1597
    %2062 = vmatpush.bf16.msra.mxu0 %v1593
    %2063 = vmatpush.bf16.msra.mxu0 %v1589
    %2064 = vmatpush.bf16.msra.mxu0 %v1585
    %2065 = vmatpush.bf16.msra.mxu0 %v1581
    %2066 = vmatpush.bf16.msra.mxu0 %v1577
    %2067 = vmatpush.bf16.msra.mxu0 %v1573
    %2068 = vmatpush.bf16.msra.mxu0 %v1569
    %2069 = vmatmul.bf16.gmra.mxu0 %v360
    %v2070 = vpop.f32.mrf.mxu0
    %v2071 = vadd.f32 %v2058, %v2070
    %v2072 = vpop.f32.mrf.mxu0
    %2073 = vdwg.mxu0
    %2074 = vmatpush.bf16.msra.mxu0 0
    %2075 = vmatpush.bf16.msra.mxu0 %v1946
    %2076 = vmatpush.bf16.msra.mxu0 %v1621
    %2077 = vmatpush.bf16.msra.mxu0 %v1617
    %2078 = vmatpush.bf16.msra.mxu0 %v1613
    %2079 = vmatpush.bf16.msra.mxu0 %v1609
    %2080 = vmatpush.bf16.msra.mxu0 %v1605
    %2081 = vmatpush.bf16.msra.mxu0 %v1601
    %2082 = vmatmul.bf16.gmra.mxu0 %v1942
    %v2083 = vpop.f32.mrf.mxu0
    %v2084 = vadd.f32 %v2071, %v2083
    %v2085 = vpop.f32.mrf.mxu0
    %2086 = vdwg.mxu0
    %2087 = vmatpush.bf16.msra.mxu0 %v1342
    %2088 = vmatpush.bf16.msra.mxu0 %v1338
    %2089 = vmatpush.bf16.msra.mxu0 %v1334
    %2090 = vmatpush.bf16.msra.mxu0 %v1330
    %2091 = vmatpush.bf16.msra.mxu0 %v1326
    %2092 = vmatpush.bf16.msra.mxu0 %v1322
    %2093 = vmatpush.bf16.msra.mxu0 %v1318
    %2094 = vmatpush.bf16.msra.mxu0 %v1314
    %2095 = vmatmul.bf16.gmra.mxu0 %v350
    %v2096 = vpop.f32.mrf.mxu0
    %v2097 = vadd.f32 %v341, %v2096
    %v2098 = vpop.f32.mrf.mxu0
    %2099 = vdwg.mxu0
    %2100 = vmatpush.bf16.msra.mxu0 %v1374
    %2101 = vmatpush.bf16.msra.mxu0 %v1370
    %2102 = vmatpush.bf16.msra.mxu0 %v1366
    %2103 = vmatpush.bf16.msra.mxu0 %v1362
    %2104 = vmatpush.bf16.msra.mxu0 %v1358
    %2105 = vmatpush.bf16.msra.mxu0 %v1354
    %2106 = vmatpush.bf16.msra.mxu0 %v1350
    %2107 = vmatpush.bf16.msra.mxu0 %v1346
    %2108 = vmatmul.bf16.gmra.mxu0 %v351
    %v2109 = vpop.f32.mrf.mxu0
    %v2110 = vadd.f32 %v2097, %v2109
    %v2111 = vpop.f32.mrf.mxu0
    %2112 = vdwg.mxu0
    %2113 = vmatpush.bf16.msra.mxu0 %v1406
    %2114 = vmatpush.bf16.msra.mxu0 %v1402
    %2115 = vmatpush.bf16.msra.mxu0 %v1398
    %2116 = vmatpush.bf16.msra.mxu0 %v1394
    %2117 = vmatpush.bf16.msra.mxu0 %v1390
    %2118 = vmatpush.bf16.msra.mxu0 %v1386
    %2119 = vmatpush.bf16.msra.mxu0 %v1382
    %2120 = vmatpush.bf16.msra.mxu0 %v1378
    %2121 = vmatmul.bf16.gmra.mxu0 %v352
    %v2122 = vpop.f32.mrf.mxu0
    %v2123 = vadd.f32 %v2110, %v2122
    %v2124 = vpop.f32.mrf.mxu0
    %2125 = vdwg.mxu0
    %2126 = vmatpush.bf16.msra.mxu0 %v1438
    %2127 = vmatpush.bf16.msra.mxu0 %v1434
    %2128 = vmatpush.bf16.msra.mxu0 %v1430
    %2129 = vmatpush.bf16.msra.mxu0 %v1426
    %2130 = vmatpush.bf16.msra.mxu0 %v1422
    %2131 = vmatpush.bf16.msra.mxu0 %v1418
    %2132 = vmatpush.bf16.msra.mxu0 %v1414
    %2133 = vmatpush.bf16.msra.mxu0 %v1410
    %2134 = vmatmul.bf16.gmra.mxu0 %v353
    %v2135 = vpop.f32.mrf.mxu0
    %v2136 = vadd.f32 %v2123, %v2135
    %v2137 = vpop.f32.mrf.mxu0
    %2138 = vdwg.mxu0
    %2139 = vmatpush.bf16.msra.mxu0 %v1470
    %2140 = vmatpush.bf16.msra.mxu0 %v1466
    %2141 = vmatpush.bf16.msra.mxu0 %v1462
    %2142 = vmatpush.bf16.msra.mxu0 %v1458
    %2143 = vmatpush.bf16.msra.mxu0 %v1454
    %2144 = vmatpush.bf16.msra.mxu0 %v1450
    %2145 = vmatpush.bf16.msra.mxu0 %v1446
    %2146 = vmatpush.bf16.msra.mxu0 %v1442
    %2147 = vmatmul.bf16.gmra.mxu0 %v354
    %v2148 = vpop.f32.mrf.mxu0
    %v2149 = vadd.f32 %v2136, %v2148
    %v2150 = vpop.f32.mrf.mxu0
    %2151 = vdwg.mxu0
    %2152 = vmatpush.bf16.msra.mxu0 %v1502
    %2153 = vmatpush.bf16.msra.mxu0 %v1498
    %2154 = vmatpush.bf16.msra.mxu0 %v1494
    %2155 = vmatpush.bf16.msra.mxu0 %v1490
    %2156 = vmatpush.bf16.msra.mxu0 %v1486
    %2157 = vmatpush.bf16.msra.mxu0 %v1482
    %2158 = vmatpush.bf16.msra.mxu0 %v1478
    %2159 = vmatpush.bf16.msra.mxu0 %v1474
    %2160 = vmatmul.bf16.gmra.mxu0 %v355
    %v2161 = vpop.f32.mrf.mxu0
    %v2162 = vadd.f32 %v2149, %v2161
    %v2163 = vpop.f32.mrf.mxu0
    %2164 = vdwg.mxu0
    %2165 = vmatpush.bf16.msra.mxu0 %v1534
    %2166 = vmatpush.bf16.msra.mxu0 %v1530
    %2167 = vmatpush.bf16.msra.mxu0 %v1526
    %2168 = vmatpush.bf16.msra.mxu0 %v1522
    %2169 = vmatpush.bf16.msra.mxu0 %v1518
    %2170 = vmatpush.bf16.msra.mxu0 %v1514
    %2171 = vmatpush.bf16.msra.mxu0 %v1510
    %2172 = vmatpush.bf16.msra.mxu0 %v1506
    %2173 = vmatmul.bf16.gmra.mxu0 %v356
    %v2174 = vpop.f32.mrf.mxu0
    %v2175 = vadd.f32 %v2162, %v2174
    %v2176 = vpop.f32.mrf.mxu0
    %2177 = vdwg.mxu0
    %2178 = vmatpush.bf16.msra.mxu0 %v1566
    %2179 = vmatpush.bf16.msra.mxu0 %v1562
    %2180 = vmatpush.bf16.msra.mxu0 %v1558
    %2181 = vmatpush.bf16.msra.mxu0 %v1554
    %2182 = vmatpush.bf16.msra.mxu0 %v1550
    %2183 = vmatpush.bf16.msra.mxu0 %v1546
    %2184 = vmatpush.bf16.msra.mxu0 %v1542
    %2185 = vmatpush.bf16.msra.mxu0 %v1538
    %2186 = vmatmul.bf16.gmra.mxu0 %v357
    %v2187 = vpop.f32.mrf.mxu0
    %v2188 = vadd.f32 %v2175, %v2187
    %v2189 = vpop.f32.mrf.mxu0
    %2190 = vdwg.mxu0
    %2191 = vmatpush.bf16.msra.mxu0 %v1598
    %2192 = vmatpush.bf16.msra.mxu0 %v1594
    %2193 = vmatpush.bf16.msra.mxu0 %v1590
    %2194 = vmatpush.bf16.msra.mxu0 %v1586
    %2195 = vmatpush.bf16.msra.mxu0 %v1582
    %2196 = vmatpush.bf16.msra.mxu0 %v1578
    %2197 = vmatpush.bf16.msra.mxu0 %v1574
    %2198 = vmatpush.bf16.msra.mxu0 %v1570
    %2199 = vmatmul.bf16.gmra.mxu0 %v360
    %v2200 = vpop.f32.mrf.mxu0
    %v2201 = vadd.f32 %v2188, %v2200
    %v2202 = vpop.f32.mrf.mxu0
    %2203 = vdwg.mxu0
    %2204 = vmatpush.bf16.msra.mxu0 0
    %2205 = vmatpush.bf16.msra.mxu0 %v1949
    %2206 = vmatpush.bf16.msra.mxu0 %v1622
    %2207 = vmatpush.bf16.msra.mxu0 %v1618
    %2208 = vmatpush.bf16.msra.mxu0 %v1614
    %2209 = vmatpush.bf16.msra.mxu0 %v1610
    %2210 = vmatpush.bf16.msra.mxu0 %v1606
    %2211 = vmatpush.bf16.msra.mxu0 %v1602
    %2212 = vmatmul.bf16.gmra.mxu0 %v1942
    %v2213 = vpop.f32.mrf.mxu0
    %v2214 = vadd.f32 %v2201, %v2213
    %v2215 = vpop.f32.mrf.mxu0
    %2216 = vdwg.mxu0
    %2217 = vmatpush.bf16.msra.mxu0 %v1343
    %2218 = vmatpush.bf16.msra.mxu0 %v1339
    %2219 = vmatpush.bf16.msra.mxu0 %v1335
    %2220 = vmatpush.bf16.msra.mxu0 %v1331
    %2221 = vmatpush.bf16.msra.mxu0 %v1327
    %2222 = vmatpush.bf16.msra.mxu0 %v1323
    %2223 = vmatpush.bf16.msra.mxu0 %v1319
    %2224 = vmatpush.bf16.msra.mxu0 %v1315
    %2225 = vmatmul.bf16.gmra.mxu0 %v350
    %v2226 = vpop.f32.mrf.mxu0
    %v2227 = vadd.f32 %v342, %v2226
    %v2228 = vpop.f32.mrf.mxu0
    %2229 = vdwg.mxu0
    %2230 = vmatpush.bf16.msra.mxu0 %v1375
    %2231 = vmatpush.bf16.msra.mxu0 %v1371
    %2232 = vmatpush.bf16.msra.mxu0 %v1367
    %2233 = vmatpush.bf16.msra.mxu0 %v1363
    %2234 = vmatpush.bf16.msra.mxu0 %v1359
    %2235 = vmatpush.bf16.msra.mxu0 %v1355
    %2236 = vmatpush.bf16.msra.mxu0 %v1351
    %2237 = vmatpush.bf16.msra.mxu0 %v1347
    %2238 = vmatmul.bf16.gmra.mxu0 %v351
    %v2239 = vpop.f32.mrf.mxu0
    %v2240 = vadd.f32 %v2227, %v2239
    %v2241 = vpop.f32.mrf.mxu0
    %2242 = vdwg.mxu0
    %2243 = vmatpush.bf16.msra.mxu0 %v1407
    %2244 = vmatpush.bf16.msra.mxu0 %v1403
    %2245 = vmatpush.bf16.msra.mxu0 %v1399
    %2246 = vmatpush.bf16.msra.mxu0 %v1395
    %2247 = vmatpush.bf16.msra.mxu0 %v1391
    %2248 = vmatpush.bf16.msra.mxu0 %v1387
    %2249 = vmatpush.bf16.msra.mxu0 %v1383
    %2250 = vmatpush.bf16.msra.mxu0 %v1379
    %2251 = vmatmul.bf16.gmra.mxu0 %v352
    %v2252 = vpop.f32.mrf.mxu0
    %v2253 = vadd.f32 %v2240, %v2252
    %v2254 = vpop.f32.mrf.mxu0
    %2255 = vdwg.mxu0
    %2256 = vmatpush.bf16.msra.mxu0 %v1439
    %2257 = vmatpush.bf16.msra.mxu0 %v1435
    %2258 = vmatpush.bf16.msra.mxu0 %v1431
    %2259 = vmatpush.bf16.msra.mxu0 %v1427
    %2260 = vmatpush.bf16.msra.mxu0 %v1423
    %2261 = vmatpush.bf16.msra.mxu0 %v1419
    %2262 = vmatpush.bf16.msra.mxu0 %v1415
    %2263 = vmatpush.bf16.msra.mxu0 %v1411
    %2264 = vmatmul.bf16.gmra.mxu0 %v353
    %v2265 = vpop.f32.mrf.mxu0
    %v2266 = vadd.f32 %v2253, %v2265
    %v2267 = vpop.f32.mrf.mxu0
    %2268 = vdwg.mxu0
    %2269 = vmatpush.bf16.msra.mxu0 %v1471
    %2270 = vmatpush.bf16.msra.mxu0 %v1467
    %2271 = vmatpush.bf16.msra.mxu0 %v1463
    %2272 = vmatpush.bf16.msra.mxu0 %v1459
    %2273 = vmatpush.bf16.msra.mxu0 %v1455
    %2274 = vmatpush.bf16.msra.mxu0 %v1451
    %2275 = vmatpush.bf16.msra.mxu0 %v1447
    %2276 = vmatpush.bf16.msra.mxu0 %v1443
    %2277 = vmatmul.bf16.gmra.mxu0 %v354
    %v2278 = vpop.f32.mrf.mxu0
    %v2279 = vadd.f32 %v2266, %v2278
    %v2280 = vpop.f32.mrf.mxu0
    %2281 = vdwg.mxu0
    %2282 = vmatpush.bf16.msra.mxu0 %v1503
    %2283 = vmatpush.bf16.msra.mxu0 %v1499
    %2284 = vmatpush.bf16.msra.mxu0 %v1495
    %2285 = vmatpush.bf16.msra.mxu0 %v1491
    %2286 = vmatpush.bf16.msra.mxu0 %v1487
    %2287 = vmatpush.bf16.msra.mxu0 %v1483
    %2288 = vmatpush.bf16.msra.mxu0 %v1479
    %2289 = vmatpush.bf16.msra.mxu0 %v1475
    %2290 = vmatmul.bf16.gmra.mxu0 %v355
    %v2291 = vpop.f32.mrf.mxu0
    %v2292 = vadd.f32 %v2279, %v2291
    %v2293 = vpop.f32.mrf.mxu0
    %2294 = vdwg.mxu0
    %2295 = vmatpush.bf16.msra.mxu0 %v1535
    %2296 = vmatpush.bf16.msra.mxu0 %v1531
    %2297 = vmatpush.bf16.msra.mxu0 %v1527
    %2298 = vmatpush.bf16.msra.mxu0 %v1523
    %2299 = vmatpush.bf16.msra.mxu0 %v1519
    %2300 = vmatpush.bf16.msra.mxu0 %v1515
    %2301 = vmatpush.bf16.msra.mxu0 %v1511
    %2302 = vmatpush.bf16.msra.mxu0 %v1507
    %2303 = vmatmul.bf16.gmra.mxu0 %v356
    %v2304 = vpop.f32.mrf.mxu0
    %v2305 = vadd.f32 %v2292, %v2304
    %v2306 = vpop.f32.mrf.mxu0
    %2307 = vdwg.mxu0
    %2308 = vmatpush.bf16.msra.mxu0 %v1567
    %2309 = vmatpush.bf16.msra.mxu0 %v1563
    %2310 = vmatpush.bf16.msra.mxu0 %v1559
    %2311 = vmatpush.bf16.msra.mxu0 %v1555
    %2312 = vmatpush.bf16.msra.mxu0 %v1551
    %2313 = vmatpush.bf16.msra.mxu0 %v1547
    %2314 = vmatpush.bf16.msra.mxu0 %v1543
    %2315 = vmatpush.bf16.msra.mxu0 %v1539
    %2316 = vmatmul.bf16.gmra.mxu0 %v357
    %v2317 = vpop.f32.mrf.mxu0
    %v2318 = vadd.f32 %v2305, %v2317
    %v2319 = vpop.f32.mrf.mxu0
    %2320 = vdwg.mxu0
    %2321 = vmatpush.bf16.msra.mxu0 %v1599
    %2322 = vmatpush.bf16.msra.mxu0 %v1595
    %2323 = vmatpush.bf16.msra.mxu0 %v1591
    %2324 = vmatpush.bf16.msra.mxu0 %v1587
    %2325 = vmatpush.bf16.msra.mxu0 %v1583
    %2326 = vmatpush.bf16.msra.mxu0 %v1579
    %2327 = vmatpush.bf16.msra.mxu0 %v1575
    %2328 = vmatpush.bf16.msra.mxu0 %v1571
    %2329 = vmatmul.bf16.gmra.mxu0 %v360
    %v2330 = vpop.f32.mrf.mxu0
    %v2331 = vadd.f32 %v2318, %v2330
    %v2332 = vpop.f32.mrf.mxu0
    %2333 = vdwg.mxu0
    %2334 = vmatpush.bf16.msra.mxu0 0
    %2335 = vmatpush.bf16.msra.mxu0 %v1952
    %2336 = vmatpush.bf16.msra.mxu0 %v1623
    %2337 = vmatpush.bf16.msra.mxu0 %v1619
    %2338 = vmatpush.bf16.msra.mxu0 %v1615
    %2339 = vmatpush.bf16.msra.mxu0 %v1611
    %2340 = vmatpush.bf16.msra.mxu0 %v1607
    %2341 = vmatpush.bf16.msra.mxu0 %v1603
    %2342 = vmatmul.bf16.gmra.mxu0 %v1942
    %v2343 = vpop.f32.mrf.mxu0
    %v2344 = vadd.f32 %v2331, %v2343
    %v2345 = vpop.f32.mrf.mxu0
    %2346 = vdwg.mxu0
    %2347 = vmatpush.bf16.msra.mxu0 %v1344
    %2348 = vmatpush.bf16.msra.mxu0 %v1340
    %2349 = vmatpush.bf16.msra.mxu0 %v1336
    %2350 = vmatpush.bf16.msra.mxu0 %v1332
    %2351 = vmatpush.bf16.msra.mxu0 %v1328
    %2352 = vmatpush.bf16.msra.mxu0 %v1324
    %2353 = vmatpush.bf16.msra.mxu0 %v1320
    %2354 = vmatpush.bf16.msra.mxu0 %v1316
    %2355 = vmatmul.bf16.gmra.mxu0 %v350
    %v2356 = vpop.f32.mrf.mxu0
    %v2357 = vadd.f32 %v343, %v2356
    %v2358 = vpop.f32.mrf.mxu0
    %2359 = vdwg.mxu0
    %2360 = vmatpush.bf16.msra.mxu0 %v1376
    %2361 = vmatpush.bf16.msra.mxu0 %v1372
    %2362 = vmatpush.bf16.msra.mxu0 %v1368
    %2363 = vmatpush.bf16.msra.mxu0 %v1364
    %2364 = vmatpush.bf16.msra.mxu0 %v1360
    %2365 = vmatpush.bf16.msra.mxu0 %v1356
    %2366 = vmatpush.bf16.msra.mxu0 %v1352
    %2367 = vmatpush.bf16.msra.mxu0 %v1348
    %2368 = vmatmul.bf16.gmra.mxu0 %v351
    %v2369 = vpop.f32.mrf.mxu0
    %v2370 = vadd.f32 %v2357, %v2369
    %v2371 = vpop.f32.mrf.mxu0
    %2372 = vdwg.mxu0
    %2373 = vmatpush.bf16.msra.mxu0 %v1408
    %2374 = vmatpush.bf16.msra.mxu0 %v1404
    %2375 = vmatpush.bf16.msra.mxu0 %v1400
    %2376 = vmatpush.bf16.msra.mxu0 %v1396
    %2377 = vmatpush.bf16.msra.mxu0 %v1392
    %2378 = vmatpush.bf16.msra.mxu0 %v1388
    %2379 = vmatpush.bf16.msra.mxu0 %v1384
    %2380 = vmatpush.bf16.msra.mxu0 %v1380
    %2381 = vmatmul.bf16.gmra.mxu0 %v352
    %v2382 = vpop.f32.mrf.mxu0
    %v2383 = vadd.f32 %v2370, %v2382
    %v2384 = vpop.f32.mrf.mxu0
    %2385 = vdwg.mxu0
    %2386 = vmatpush.bf16.msra.mxu0 %v1440
    %2387 = vmatpush.bf16.msra.mxu0 %v1436
    %2388 = vmatpush.bf16.msra.mxu0 %v1432
    %2389 = vmatpush.bf16.msra.mxu0 %v1428
    %2390 = vmatpush.bf16.msra.mxu0 %v1424
    %2391 = vmatpush.bf16.msra.mxu0 %v1420
    %2392 = vmatpush.bf16.msra.mxu0 %v1416
    %2393 = vmatpush.bf16.msra.mxu0 %v1412
    %2394 = vmatmul.bf16.gmra.mxu0 %v353
    %v2395 = vpop.f32.mrf.mxu0
    %v2396 = vadd.f32 %v2383, %v2395
    %v2397 = vpop.f32.mrf.mxu0
    %2398 = vdwg.mxu0
    %2399 = vmatpush.bf16.msra.mxu0 %v1472
    %2400 = vmatpush.bf16.msra.mxu0 %v1468
    %2401 = vmatpush.bf16.msra.mxu0 %v1464
    %2402 = vmatpush.bf16.msra.mxu0 %v1460
    %2403 = vmatpush.bf16.msra.mxu0 %v1456
    %2404 = vmatpush.bf16.msra.mxu0 %v1452
    %2405 = vmatpush.bf16.msra.mxu0 %v1448
    %2406 = vmatpush.bf16.msra.mxu0 %v1444
    %2407 = vmatmul.bf16.gmra.mxu0 %v354
    %v2408 = vpop.f32.mrf.mxu0
    %v2409 = vadd.f32 %v2396, %v2408
    %v2410 = vpop.f32.mrf.mxu0
    %2411 = vdwg.mxu0
    %2412 = vmatpush.bf16.msra.mxu0 %v1504
    %2413 = vmatpush.bf16.msra.mxu0 %v1500
    %2414 = vmatpush.bf16.msra.mxu0 %v1496
    %2415 = vmatpush.bf16.msra.mxu0 %v1492
    %2416 = vmatpush.bf16.msra.mxu0 %v1488
    %2417 = vmatpush.bf16.msra.mxu0 %v1484
    %2418 = vmatpush.bf16.msra.mxu0 %v1480
    %2419 = vmatpush.bf16.msra.mxu0 %v1476
    %2420 = vmatmul.bf16.gmra.mxu0 %v355
    %v2421 = vpop.f32.mrf.mxu0
    %v2422 = vadd.f32 %v2409, %v2421
    %v2423 = vpop.f32.mrf.mxu0
    %2424 = vdwg.mxu0
    %2425 = vmatpush.bf16.msra.mxu0 %v1536
    %2426 = vmatpush.bf16.msra.mxu0 %v1532
    %2427 = vmatpush.bf16.msra.mxu0 %v1528
    %2428 = vmatpush.bf16.msra.mxu0 %v1524
    %2429 = vmatpush.bf16.msra.mxu0 %v1520
    %2430 = vmatpush.bf16.msra.mxu0 %v1516
    %2431 = vmatpush.bf16.msra.mxu0 %v1512
    %2432 = vmatpush.bf16.msra.mxu0 %v1508
    %2433 = vmatmul.bf16.gmra.mxu0 %v356
    %v2434 = vpop.f32.mrf.mxu0
    %v2435 = vadd.f32 %v2422, %v2434
    %v2436 = vpop.f32.mrf.mxu0
    %2437 = vdwg.mxu0
    %2438 = vmatpush.bf16.msra.mxu0 %v1568
    %2439 = vmatpush.bf16.msra.mxu0 %v1564
    %2440 = vmatpush.bf16.msra.mxu0 %v1560
    %2441 = vmatpush.bf16.msra.mxu0 %v1556
    %2442 = vmatpush.bf16.msra.mxu0 %v1552
    %2443 = vmatpush.bf16.msra.mxu0 %v1548
    %2444 = vmatpush.bf16.msra.mxu0 %v1544
    %2445 = vmatpush.bf16.msra.mxu0 %v1540
    %2446 = vmatmul.bf16.gmra.mxu0 %v357
    %v2447 = vpop.f32.mrf.mxu0
    %v2448 = vadd.f32 %v2435, %v2447
    %v2449 = vpop.f32.mrf.mxu0
    %2450 = vdwg.mxu0
    %2451 = vmatpush.bf16.msra.mxu0 %v1600
    %2452 = vmatpush.bf16.msra.mxu0 %v1596
    %2453 = vmatpush.bf16.msra.mxu0 %v1592
    %2454 = vmatpush.bf16.msra.mxu0 %v1588
    %2455 = vmatpush.bf16.msra.mxu0 %v1584
    %2456 = vmatpush.bf16.msra.mxu0 %v1580
    %2457 = vmatpush.bf16.msra.mxu0 %v1576
    %2458 = vmatpush.bf16.msra.mxu0 %v1572
    %2459 = vmatmul.bf16.gmra.mxu0 %v360
    %v2460 = vpop.f32.mrf.mxu0
    %v2461 = vadd.f32 %v2448, %v2460
    %v2462 = vpop.f32.mrf.mxu0
    %2463 = vdwg.mxu0
    %2464 = vmatpush.bf16.msra.mxu0 0
    %2465 = vmatpush.bf16.msra.mxu0 %v1955
    %2466 = vmatpush.bf16.msra.mxu0 %v1624
    %2467 = vmatpush.bf16.msra.mxu0 %v1620
    %2468 = vmatpush.bf16.msra.mxu0 %v1616
    %2469 = vmatpush.bf16.msra.mxu0 %v1612
    %2470 = vmatpush.bf16.msra.mxu0 %v1608
    %2471 = vmatpush.bf16.msra.mxu0 %v1604
    %2472 = vmatmul.bf16.gmra.mxu0 %v1942
    %v2473 = vpop.f32.mrf.mxu0
    %v2474 = vadd.f32 %v2461, %v2473
    %v2475 = vpop.f32.mrf.mxu0
    %2476 = vdwg.mxu0
    %v2477 = vmax.f32 %v2084, 0.0
    %v2478 = vmax.f32 %v2214, 0.0
    %v2479 = vmax.f32 %v2344, 0.0
    %v2480 = vmax.f32 %v2474, 0.0
    %v2481 = vpack.c.bf16 %v2477, %v2477
    %v2482 = vpack.c.bf16 %v2478, %v2478
    %v2483 = vpack.c.bf16 %v2479, %v2479
    %v2484 = vpack.c.bf16 %v2480, %v2480
    %v2485 = vld [vmem:[%s3] sm:$0xf]
    %v2486 = vld [vmem:[%s3 + $0x4] sm:$0xf]
    %v2487 = vld [vmem:[%s3 + $0x8] sm:$0xf]
    %v2488 = vld [vmem:[%s3 + $0xc] sm:$0xf]
    %v2489 = vld [vmem:[%s3 + $0x10] sm:$0xf]
    %v2490 = vld [vmem:[%s3 + $0x14] sm:$0xf]
    %v2491 = vld [vmem:[%s3 + $0x18] sm:$0xf]
    %v2492 = vld [vmem:[%s3 + $0x1c] sm:$0xf]
    %v2493 = vld [vmem:[%s3 + $0x20] sm:$0xf]
    %v2494 = vld [vmem:[%s3 + $0x24] sm:$0xf]
    %v2495 = vld [vmem:[%s3 + $0x28] sm:$0xf]
    %v2496 = vld [vmem:[%s3 + $0x2c] sm:$0xf]
    %v2497 = vld [vmem:[%s3 + $0x30] sm:$0xf]
    %v2498 = vld [vmem:[%s3 + $0x34] sm:$0xf]
    %v2499 = vld [vmem:[%s3 + $0x38] sm:$0xf]
    %v2500 = vld [vmem:[%s3 + $0x3c] sm:$0xf]
    %v2501 = vld [vmem:[%s3 + $0x40] sm:$0xf]
    %v2502 = vld [vmem:[%s3 + $0x44] sm:$0xf]
    %v2503 = vld [vmem:[%s3 + $0x48] sm:$0xf]
    %v2504 = vld [vmem:[%s3 + $0x4c] sm:$0xf]
    %v2505 = vld [vmem:[%s3 + $0x50] sm:$0xf]
    %v2506 = vld [vmem:[%s3 + $0x54] sm:$0xf]
    %v2507 = vld [vmem:[%s3 + $0x58] sm:$0xf]
    %v2508 = vld [vmem:[%s3 + $0x5c] sm:$0xf]
    %v2509 = vld [vmem:[%s3 + $0x60] sm:$0xf]
    %v2510 = vld [vmem:[%s3 + $0x64] sm:$0xf]
    %v2511 = vld [vmem:[%s3 + $0x68] sm:$0xf]
    %v2512 = vld [vmem:[%s3 + $0x6c] sm:$0xf]
    %v2513 = vld [vmem:[%s3 + $0x70] sm:$0xf]
    %v2514 = vld [vmem:[%s3 + $0x74] sm:$0xf]
    %v2515 = vld [vmem:[%s3 + $0x78] sm:$0xf]
    %v2516 = vld [vmem:[%s3 + $0x7c] sm:$0xf]
    %v2517 = vld [vmem:[%s3 + $0x80] sm:$0xf]
    %v2518 = vld [vmem:[%s3 + $0x84] sm:$0xf]
    %v2519 = vld [vmem:[%s3 + $0x88] sm:$0xf]
    %v2520 = vld [vmem:[%s3 + $0x8c] sm:$0xf]
    %v2521 = vld [vmem:[%s3 + $0x90] sm:$0xf]
    %v2522 = vld [vmem:[%s3 + $0x94] sm:$0xf]
    %v2523 = vld [vmem:[%s3 + $0x98] sm:$0xf]
    %v2524 = vld [vmem:[%s3 + $0x9c] sm:$0xf]
    %v2525 = vld [vmem:[%s3 + $0xa0] sm:$0xf]
    %v2526 = vld [vmem:[%s3 + $0xa4] sm:$0xf]
    %v2527 = vld [vmem:[%s3 + $0xa8] sm:$0xf]
    %v2528 = vld [vmem:[%s3 + $0xac] sm:$0xf]
    %v2529 = vld [vmem:[%s3 + $0xb0] sm:$0xf]
    %v2530 = vld [vmem:[%s3 + $0xb4] sm:$0xf]
    %v2531 = vld [vmem:[%s3 + $0xb8] sm:$0xf]
    %v2532 = vld [vmem:[%s3 + $0xbc] sm:$0xf]
    %v2533 = vld [vmem:[%s3 + $0xc0] sm:$0xf]
    %v2534 = vld [vmem:[%s3 + $0xc4] sm:$0xf]
    %v2535 = vld [vmem:[%s3 + $0xc8] sm:$0xf]
    %v2536 = vld [vmem:[%s3 + $0xcc] sm:$0xf]
    %v2537 = vld [vmem:[%s3 + $0xd0] sm:$0xf]
    %v2538 = vld [vmem:[%s3 + $0xd4] sm:$0xf]
    %v2539 = vld [vmem:[%s3 + $0xd8] sm:$0xf]
    %v2540 = vld [vmem:[%s3 + $0xdc] sm:$0xf]
    %v2541 = vld [vmem:[%s3 + $0xe0] sm:$0xf]
    %v2542 = vld [vmem:[%s3 + $0xe4] sm:$0xf]
    %v2543 = vld [vmem:[%s3 + $0xe8] sm:$0xf]
    %v2544 = vld [vmem:[%s3 + $0xec] sm:$0xf]
    %v2545 = vld [vmem:[%s3 + $0xf0] sm:$0xf]
    %v2546 = vld [vmem:[%s3 + $0xf4] sm:$0xf]
    %v2547 = vld [vmem:[%s3 + $0xf8] sm:$0x3]
    %v2548 = vld [vmem:[%s4] sm:$0x1]
    %v2550 = vperm.slane %v2548, 0
    %v2615 = vunpack.c.l.b16 %v2485
    %v2616 = vunpack.c.l.b16 %v2486
    %v2617 = vunpack.c.l.b16 %v2487
    %v2618 = vunpack.c.l.b16 %v2488
    %v2619 = vunpack.c.l.b16 %v2489
    %v2620 = vunpack.c.l.b16 %v2490
    %v2621 = vunpack.c.l.b16 %v2491
    %v2622 = vunpack.c.l.b16 %v2492
    %v2623 = vunpack.c.l.b16 %v2493
    %v2624 = vunpack.c.l.b16 %v2494
    %v2625 = vunpack.c.l.b16 %v2495
    %v2626 = vunpack.c.l.b16 %v2496
    %v2627 = vunpack.c.l.b16 %v2497
    %v2628 = vunpack.c.l.b16 %v2498
    %v2629 = vunpack.c.l.b16 %v2499
    %v2630 = vunpack.c.l.b16 %v2500
    %v2631 = vunpack.c.l.b16 %v2501
    %v2632 = vunpack.c.l.b16 %v2502
    %v2633 = vunpack.c.l.b16 %v2503
    %v2634 = vunpack.c.l.b16 %v2504
    %v2635 = vunpack.c.l.b16 %v2505
    %v2636 = vunpack.c.l.b16 %v2506
    %v2637 = vunpack.c.l.b16 %v2507
    %v2638 = vunpack.c.l.b16 %v2508
    %v2639 = vunpack.c.l.b16 %v2509
    %v2640 = vunpack.c.l.b16 %v2510
    %v2641 = vunpack.c.l.b16 %v2511
    %v2642 = vunpack.c.l.b16 %v2512
    %v2643 = vunpack.c.l.b16 %v2513
    %v2644 = vunpack.c.l.b16 %v2514
    %v2645 = vunpack.c.l.b16 %v2515
    %v2646 = vunpack.c.l.b16 %v2516
    %v2647 = vunpack.c.l.b16 %v2517
    %v2648 = vunpack.c.l.b16 %v2518
    %v2649 = vunpack.c.l.b16 %v2519
    %v2650 = vunpack.c.l.b16 %v2520
    %v2651 = vunpack.c.l.b16 %v2521
    %v2652 = vunpack.c.l.b16 %v2522
    %v2653 = vunpack.c.l.b16 %v2523
    %v2654 = vunpack.c.l.b16 %v2524
    %v2655 = vunpack.c.l.b16 %v2525
    %v2656 = vunpack.c.l.b16 %v2526
    %v2657 = vunpack.c.l.b16 %v2527
    %v2658 = vunpack.c.l.b16 %v2528
    %v2659 = vunpack.c.l.b16 %v2529
    %v2660 = vunpack.c.l.b16 %v2530
    %v2661 = vunpack.c.l.b16 %v2531
    %v2662 = vunpack.c.l.b16 %v2532
    %v2663 = vunpack.c.l.b16 %v2533
    %v2664 = vunpack.c.l.b16 %v2534
    %v2665 = vunpack.c.l.b16 %v2535
    %v2666 = vunpack.c.l.b16 %v2536
    %v2667 = vunpack.c.l.b16 %v2537
    %v2668 = vunpack.c.l.b16 %v2538
    %v2669 = vunpack.c.l.b16 %v2539
    %v2670 = vunpack.c.l.b16 %v2540
    %v2671 = vunpack.c.l.b16 %v2541
    %v2672 = vunpack.c.l.b16 %v2542
    %v2673 = vunpack.c.l.b16 %v2543
    %v2674 = vunpack.c.l.b16 %v2544
    %v2675 = vunpack.c.l.b16 %v2545
    %v2676 = vunpack.c.l.b16 %v2546
    %v2677 = vunpack.c.l.b16 %v2547
    %v2678 = vpack.c.b16 %v2616, %v2615
    %v2679 = vpack.c.b16 %v2618, %v2617
    %v2680 = vpack.c.b16 %v2620, %v2619
    %v2681 = vpack.c.b16 %v2622, %v2621
    %v2682 = vpack.c.b16 %v2624, %v2623
    %v2683 = vpack.c.b16 %v2626, %v2625
    %v2684 = vpack.c.b16 %v2628, %v2627
    %v2685 = vpack.c.b16 %v2630, %v2629
    %v2686 = vpack.c.b16 %v2632, %v2631
    %v2687 = vpack.c.b16 %v2634, %v2633
    %v2688 = vpack.c.b16 %v2636, %v2635
    %v2689 = vpack.c.b16 %v2638, %v2637
    %v2690 = vpack.c.b16 %v2640, %v2639
    %v2691 = vpack.c.b16 %v2642, %v2641
    %v2692 = vpack.c.b16 %v2644, %v2643
    %v2693 = vpack.c.b16 %v2646, %v2645
    %v2694 = vpack.c.b16 %v2648, %v2647
    %v2695 = vpack.c.b16 %v2650, %v2649
    %v2696 = vpack.c.b16 %v2652, %v2651
    %v2697 = vpack.c.b16 %v2654, %v2653
    %v2698 = vpack.c.b16 %v2656, %v2655
    %v2699 = vpack.c.b16 %v2658, %v2657
    %v2700 = vpack.c.b16 %v2660, %v2659
    %v2701 = vpack.c.b16 %v2662, %v2661
    %v2702 = vpack.c.b16 %v2664, %v2663
    %v2703 = vpack.c.b16 %v2666, %v2665
    %v2704 = vpack.c.b16 %v2668, %v2667
    %v2705 = vpack.c.b16 %v2670, %v2669
    %v2706 = vpack.c.b16 %v2672, %v2671
    %v2707 = vpack.c.b16 %v2674, %v2673
    %v2708 = vpack.c.b16 %v2676, %v2675
    %v2709 = vpack.c.b16 %v2677, %v2677
    %vm2741 = vcmask 949248
    %v2743 = vsel %vm2741, %v2484, 0
    %vm2745 = vcmask 1041408
    %v2747 = vsel %vm2745, %v2709, 0
    %2749 = vmatpush.bf16.msra.mxu0 %v2685
    %2750 = vmatpush.bf16.msra.mxu0 %v2684
    %2751 = vmatpush.bf16.msra.mxu0 %v2683
    %2752 = vmatpush.bf16.msra.mxu0 %v2682
    %2753 = vmatpush.bf16.msra.mxu0 %v2681
    %2754 = vmatpush.bf16.msra.mxu0 %v2680
    %2755 = vmatpush.bf16.msra.mxu0 %v2679
    %2756 = vmatpush.bf16.msra.mxu0 %v2678
    %2757 = vmatmul.bf16.gmra.mxu0 %v2481
    %v2758 = vpop.f32.mrf.mxu0
    %v2759 = vadd.f32 %v2550, %v2758
    %v2760 = vpop.f32.mrf.mxu0
    %2761 = vdwg.mxu0
    %2762 = vmatpush.bf16.msra.mxu0 %v2693
    %2763 = vmatpush.bf16.msra.mxu0 %v2692
    %2764 = vmatpush.bf16.msra.mxu0 %v2691
    %2765 = vmatpush.bf16.msra.mxu0 %v2690
    %2766 = vmatpush.bf16.msra.mxu0 %v2689
    %2767 = vmatpush.bf16.msra.mxu0 %v2688
    %2768 = vmatpush.bf16.msra.mxu0 %v2687
    %2769 = vmatpush.bf16.msra.mxu0 %v2686
    %2770 = vmatmul.bf16.gmra.mxu0 %v2482
    %v2771 = vpop.f32.mrf.mxu0
    %v2772 = vadd.f32 %v2759, %v2771
    %v2773 = vpop.f32.mrf.mxu0
    %2774 = vdwg.mxu0
    %2775 = vmatpush.bf16.msra.mxu0 %v2701
    %2776 = vmatpush.bf16.msra.mxu0 %v2700
    %2777 = vmatpush.bf16.msra.mxu0 %v2699
    %2778 = vmatpush.bf16.msra.mxu0 %v2698
    %2779 = vmatpush.bf16.msra.mxu0 %v2697
    %2780 = vmatpush.bf16.msra.mxu0 %v2696
    %2781 = vmatpush.bf16.msra.mxu0 %v2695
    %2782 = vmatpush.bf16.msra.mxu0 %v2694
    %2783 = vmatmul.bf16.gmra.mxu0 %v2483
    %v2784 = vpop.f32.mrf.mxu0
    %v2785 = vadd.f32 %v2772, %v2784
    %v2786 = vpop.f32.mrf.mxu0
    %2787 = vdwg.mxu0
    %2788 = vmatpush.bf16.msra.mxu0 %v2747
    %2789 = vmatpush.bf16.msra.mxu0 %v2708
    %2790 = vmatpush.bf16.msra.mxu0 %v2707
    %2791 = vmatpush.bf16.msra.mxu0 %v2706
    %2792 = vmatpush.bf16.msra.mxu0 %v2705
    %2793 = vmatpush.bf16.msra.mxu0 %v2704
    %2794 = vmatpush.bf16.msra.mxu0 %v2703
    %2795 = vmatpush.bf16.msra.mxu0 %v2702
    %2796 = vmatmul.bf16.gmra.mxu0 %v2743
    %v2797 = vpop.f32.mrf.mxu0
    %v2798 = vadd.f32 %v2785, %v2797
    %v2799 = vpop.f32.mrf.mxu0
    %2800 = vdwg.mxu0
    %vm2801 = vcmask 74752
    %v2802 = vsel %vm2801, %v2798, -inf
    %2803 = vmax.xlane.f32.xlu0 %v2802
    %v2804 = vpop.xlane.xlu0 %2803
    %v2805 = vsub.f32 %v2798, %v2804
    %v2806 = vmul.f32 %v2805, 1.442695
    %v2807 = vpow.pop %v2806
    %v2808 = vsel %vm2801, %v2807, 0.0
    %2809 = vadd.xlane.f32.xlu0 %v2808
    %v2810 = vpop.xlane.xlu0 %2809
    %v2811 = vlog2.pop %v2810
    %v2812 = vmul.f32 %v2811, 0.6931472
    %v2813 = vsub.f32 %v2805, %v2812
    %2814 = vst.msk [vmem:[#allocation2] sm:$0x3] %vm2801, %v2813
    // Predicated region
    $region22: #{cifar_lenet_forward.9} parent=1 // pred_check
      _
    $region23: #{cifar_lenet_forward.9} parent=1 // pred_check_branch
      %2816 = sbr.rel (0) target = $region25
    $region24: #{cifar_lenet_forward.9} parent=1 // pred_region
      %2818 = vsyncadd [#allocation3], 0
      %s2820 = sshll.u32 [#allocation2], 4
      %s2821 = int_to_ptr.vmem [resolvable:$true] %s2820
      %s2822 = sshll.u32 %s5, 4
      %s2823 = int_to_ptr.hbm [resolvable:$true] %s2822
      %2825 = dma.vmem_to_hbm [thread:$0]  %s2821, 32, %s2823, [#allocation3]
    $region25: #{cifar_lenet_forward.9} parent=1 // pred_fallthru
      _
    // Predicated region
    $region26: #{cifar_lenet_forward.9} parent=1 // pred_check
      _
    $region27: #{cifar_lenet_forward.9} parent=1 // pred_check_branch
      %2827 = sbr.rel (0) target = $region29
    $region28: #{cifar_lenet_forward.9} parent=1 // pred_region
      %2829 = dma.done [#allocation3], 32
    $region29: #{cifar_lenet_forward.9} parent=1 // pred_fallthru
      _
    %2830 = vsyncpa [#allocation3], 1

</llo_original>
